<compile_context>
chip_gen: v5e
topology: v5e:2x2
jax: 0.10.0
libtpu: 0.0.40
codegen_flags: <defaults>
</compile_context>

<pallas_src>
import functools

import jax
import jax.numpy as jnp
from jax import lax
from jax.experimental import pallas as pl
from jax.experimental.pallas import tpu as pltpu


# ------------------------------ Pallas kernel -------------------------------

def _dqn_fused_kernel(xg_ref, m1_ref, m2_ref, w3_ref,
                      r1_ref, rt1_ref, r2_ref, rt2_ref,
                      g1_ref, be1_ref, g2_ref, be2_ref, g3_ref, be3_ref,
                      wl_ref, bl_ref, wh_ref, bh_ref,
                      o_ref,
                      a1_ref, a2_ref, h3_ref,
                      *, N, H, OH1, OW1, OH2, OW2):
    """Whole DQN forward on VMEM-resident data.

    Layouts:
      xg_ref : (N*H,  W*Cin)     input rows ordered as (n, h%4, h//4)
      a1_ref : (N*OH1, OW1*C1)   conv1 act, rows ordered as (n, oh%2, oh//2)
      a2_ref : (N*OH2, OW2*C2)   conv2 act, rows ordered as (n, oh2)
      m1/m2  : (5, lanes_in, lanes_out) banded weight mats (one per kernel row)
      w3     : (5, OW2*C2, C3)   conv3 weight rows (conv3 output is 1x1)
      r*/rt* : constant fold / broadcast matrices for per-channel BN stats
    """
    f32 = jnp.float32
    half1 = OH1 // 2
    qH = H // 4

    def bn_relu(pre, r_ref, rt_ref, g_ref, be_ref, count):
        # Train-mode BatchNorm over all rows (= N * spatial) per channel,
        # then affine + ReLU.  Channels are folded out of the (ow, c) lane
        # layout with the constant r/rt matrices (two-pass variance in f32).
        inv = 1.0 / count
        s = jnp.sum(pre, axis=0, keepdims=True)
        mean_c = jnp.dot(s, r_ref[...], preferred_element_type=f32) * inv
        cen = pre - jnp.dot(mean_c, rt_ref[...], preferred_element_type=f32)
        var_c = jnp.dot(jnp.sum(cen * cen, axis=0, keepdims=True), r_ref[...],
                        preferred_element_type=f32) * inv
        scale_c = g_ref[...] * lax.rsqrt(var_c + 1e-5)
        y = cen * jnp.dot(scale_c, rt_ref[...], preferred_element_type=f32)
        y = y + jnp.dot(be_ref[...], rt_ref[...], preferred_element_type=f32)
        return jnp.maximum(y, 0.0)

    # ---------------- conv1 (bias dropped: cancels in train-mode BN) --------
    L1 = a1_ref.shape[1]
    for n in range(N):
        for r in range(2):                       # output-row parity
            acc = jnp.zeros((half1, L1), f32)
            for i in range(5):                   # kernel row
                t = 2 * r + i                    # input row = 4*m + t
                start = n * H + (t % 4) * qH + t // 4
                rows = xg_ref[start:start + half1, :]
                acc = acc + jnp.dot(rows, m1_ref[i],
                                    preferred_element_type=f32)
            base = n * OH1 + r * half1
            a1_ref[base:base + half1, :] = acc
    a1_ref[...] = bn_relu(a1_ref[...], r1_ref, rt1_ref, g1_ref, be1_ref,
                          N * OH1 * OW1)

    # ---------------- conv2 --------------------------------------------------
    L2 = a2_ref.shape[1]
    for n in range(N):
        acc = jnp.zeros((OH2, L2), f32)
        for i in range(5):
            start = n * OH1 + (i % 2) * half1 + i // 2
            rows = a1_ref[start:start + OH2, :]
            acc = acc + jnp.dot(rows, m2_ref[i], preferred_element_type=f32)
        a2_ref[n * OH2:(n + 1) * OH2, :] = acc
    a2_ref[...] = bn_relu(a2_ref[...], r2_ref, rt2_ref, g2_ref, be2_ref,
                          N * OH2 * OW2)

    # ---------------- conv3 (1x1 spatial output) + BN3 + ReLU ---------------
    C3 = h3_ref.shape[1]
    for n in range(N):
        acc = jnp.zeros((1, C3), f32)
        for i in range(5):
            row = a2_ref[n * OH2 + i:n * OH2 + i + 1, :]
            acc = acc + jnp.dot(row, w3_ref[i], preferred_element_type=f32)
        h3_ref[n:n + 1, :] = acc
    h0 = h3_ref[...]
    mean3 = jnp.mean(h0, axis=0, keepdims=True)
    cen3 = h0 - mean3
    var3 = jnp.mean(cen3 * cen3, axis=0, keepdims=True)
    y3 = cen3 * (g3_ref[...] * lax.rsqrt(var3 + 1e-5)) + be3_ref[...]
    y3 = jnp.maximum(y3, 0.0)

    # ---------------- linear + ReLU + head -----------------------------------
    h = jnp.dot(y3, wl_ref[...], preferred_element_type=f32) + bl_ref[...]
    h = jnp.maximum(h, 0.0)
    o_ref[...] = (jnp.dot(h, wh_ref[...], preferred_element_type=f32)
                  + bh_ref[...])


# ----------------------- one-time parameter preparation ---------------------

def _band_weight(w, w_in, ow_out):
    """Torch conv weight (Cout, Cin, 5, 5) -> (5, w_in*Cin, ow_out*Cout) banded
    matrices: band[i, w*Cin+ci, ow*Cout+co] = w[co, ci, i, w-2*ow] for
    0 <= w-2*ow < 5, else 0.  One matrix per kernel row; the stride-2 width
    taps live along the lane dim, so the kernel only does plain 2-D matmuls."""
    cout, cin, kh, kw = w.shape
    wt = jnp.transpose(w, (2, 3, 1, 0))                    # (kh, kw, Cin, Cout)
    wv = jnp.arange(w_in)[:, None]
    ov = jnp.arange(ow_out)[None, :]
    tap = wv - 2 * ov                                      # (w_in, ow_out)
    valid = (tap >= 0) & (tap < kw)
    sel = wt[:, jnp.clip(tap, 0, kw - 1)]                  # (kh, w_in, ow, Cin, Cout)
    sel = jnp.where(valid[None, :, :, None, None], sel, 0.0)
    sel = jnp.transpose(sel, (0, 1, 3, 2, 4))              # (kh, w_in, Cin, ow, Cout)
    return sel.reshape(kh, w_in * cin, ow_out * cout)


def prepare_params(p, height, width):
    """Constant weight transforms, hoisted out of the per-step forward."""
    def osz(s):
        return (s - 5) // 2 + 1

    OH1, OW1 = osz(height), osz(width)
    OH2, OW2 = osz(OH1), osz(OW1)
    OH3, OW3 = osz(OH2), osz(OW2)
    # TODO(synk): generalise the parity-grouped row bookkeeping so the fused
    # kernel also covers conv3 outputs larger than 1x1 (e.g. the 84x84 default).
    assert height % 4 == 0 and OH1 % 2 == 0, "fused kernel needs H % 4 == 0"
    assert (OH3, OW3) == (1, 1) and (OH2, OW2) == (5, 5), \
        "fused kernel is specialised to conv3 output == 1x1 (e.g. 32x32 input)"

    C1, C2, C3 = p["w2"].shape[1], p["w3"].shape[1], p["w3"].shape[0]
    r1 = jnp.tile(jnp.eye(C1, dtype=jnp.float32), (OW1, 1))   # fold lanes->chan
    r2 = jnp.tile(jnp.eye(C2, dtype=jnp.float32), (OW2, 1))

    prepped = dict(
        # x/255 folded into conv1's weights (conv is linear in x); conv biases
        # b1/b2/b3 dropped: they cancel exactly under train-mode BatchNorm.
        m1=_band_weight(p["w1"], width, OW1) * (1.0 / 255.0),
        m2=_band_weight(p["w2"], OW1, OW2),
        w3=jnp.transpose(p["w3"], (2, 3, 1, 0)).reshape(5, OW2 * C2, C3),
        r1=r1, rt1=r1.T, r2=r2, rt2=r2.T,
        g1=p["g1"].reshape(1, C1), be1=p["be1"].reshape(1, C1),
        g2=p["g2"].reshape(1, C2), be2=p["be2"].reshape(1, C2),
        g3=p["g3"].reshape(1, C3), be3=p["be3"].reshape(1, C3),
        wl=p["wl"].T, bl=p["bl"].reshape(1, -1),
        wh=p["wh"].T, bh=p["bh"].reshape(1, -1),
    )
    meta = dict(OH1=OH1, OW1=OW1, OH2=OH2, OW2=OW2)
    return prepped, meta


# ------------------------------- forward (JAX) -------------------------------

def _group_rows_mod4(x):
    """(N, Cin, H, W) -> (N*H, W*Cin) f32 with rows ordered (n, h%4, h//4), so
    every in-kernel conv1 row access becomes a contiguous slice."""
    n, c, h, w = x.shape
    x = jnp.transpose(x.astype(jnp.float32), (0, 2, 3, 1))   # NHWC
    x = x.reshape(n, h // 4, 4, w * c)
    x = jnp.transpose(x, (0, 2, 1, 3))                       # (n, h%4, h//4, wc)
    return x.reshape(n * h, w * c)


def dqn_forward(prepped, meta, x):
    """x: (N, Cin, H, W) with values in [0, 255] (PyTorch layout)."""
    N, Cin, H, W = x.shape
    OH1, OW1, OH2, OW2 = meta["OH1"], meta["OW1"], meta["OH2"], meta["OW2"]
    C1 = prepped["g1"].shape[1]
    C2 = prepped["g2"].shape[1]
    C3 = prepped["g3"].shape[1]
    HID = prepped["wl"].shape[1]
    OUT = prepped["wh"].shape[1]

    xg = _group_rows_mod4(x)    # the only per-step XLA work besides the call

    inputs = [xg,
              prepped["m1"], prepped["m2"], prepped["w3"],
              prepped["r1"], prepped["rt1"], prepped["r2"], prepped["rt2"],
              prepped["g1"], prepped["be1"], prepped["g2"], prepped["be2"],
              prepped["g3"], prepped["be3"],
              prepped["wl"], prepped["bl"], prepped["wh"], prepped["bh"]]

    kernel = functools.partial(
        _dqn_fused_kernel, N=N, H=H, OH1=OH1, OW1=OW1, OH2=OH2, OW2=OW2)

    flops = 2 * (N * 2 * 5 * (OH1 // 2) * (W * Cin) * (OW1 * C1)
                 + N * 5 * OH2 * (OW1 * C1) * (OW2 * C2)
                 + N * 5 * (OW2 * C2) * C3
                 + N * C3 * HID + N * HID * OUT)
    bytes_accessed = 4 * (sum(int(a.size) for a in inputs) + N * OUT)

    def full_spec(a):
        nd = a.ndim
        return pl.BlockSpec(a.shape, lambda i, _nd=nd: (0,) * _nd)

    return pl.pallas_call(
        kernel,
        out_shape=jax.ShapeDtypeStruct((N, OUT), jnp.float32),
        grid=(1,),
        in_specs=[full_spec(a) for a in inputs],
        out_specs=pl.BlockSpec((N, OUT), lambda i: (0, 0)),
        scratch_shapes=[pltpu.VMEM((N * OH1, OW1 * C1), jnp.float32),
                        pltpu.VMEM((N * OH2, OW2 * C2), jnp.float32),
                        pltpu.VMEM((N, C3), jnp.float32)],
        compiler_params=pltpu.CompilerParams(
            dimension_semantics=("arbitrary",)),
        cost_estimate=pl.CostEstimate(flops=int(flops), transcendentals=0,
                                      bytes_accessed=int(bytes_accessed)),
    )(*inputs)


# ----------------------------- reference (JAX) -------------------------------

def ref_forward(params, x):
    x = x.astype(jnp.float32) / 255.0

    def cbr(x, w, b, g, be):
        y = lax.conv_general_dilated(
            x, w, (2, 2), "VALID",
            dimension_numbers=("NCHW", "OIHW", "NCHW"))
        y = y + b.reshape(1, -1, 1, 1)
        mean = jnp.mean(y, axis=(0, 2, 3), keepdims=True)
        var = jnp.mean((y - mean) ** 2, axis=(0, 2, 3), keepdims=True)
        y = (y - mean) * lax.rsqrt(var + 1e-5)
        y = y * g.reshape(1, -1, 1, 1) + be.reshape(1, -1, 1, 1)
        return jnp.maximum(y, 0.0)

    x = cbr(x, params["w1"], params["b1"], params["g1"], params["be1"])
    x = cbr(x, params["w2"], params["b2"], params["g2"], params["be2"])
    x = cbr(x, params["w3"], params["b3"], params["g3"], params["be3"])
    x = x.reshape(x.shape[0], -1)
    x = jnp.maximum(x @ params["wl"].T + params["bl"], 0.0)
    return x @ params["wh"].T + params["bh"]


# ------------------------------ param init -----------------------------------

def uniform_fan_in(key, shape, fan_in):
    bound = 1.0 / jnp.sqrt(jnp.float32(fan_in))
    return jax.random.uniform(key, shape, jnp.float32, -bound, bound)


def init_params(key, height, width, inchannel, output):
    def csz(s, k=5, st=2):
        return (s - k) // st + 1

    convw = csz(csz(csz(width)))
    convh = csz(csz(csz(height)))
    lin_in = convw * convh * 32

    keys = jax.random.split(key, 10)
    p = {}
    p["w1"] = uniform_fan_in(keys[0], (16, inchannel, 5, 5), inchannel * 25)
    p["b1"] = uniform_fan_in(keys[1], (16,), inchannel * 25)
    p["g1"], p["be1"] = jnp.ones((16,), jnp.float32), jnp.zeros((16,), jnp.float32)
    p["w2"] = uniform_fan_in(keys[2], (32, 16, 5, 5), 16 * 25)
    p["b2"] = uniform_fan_in(keys[3], (32,), 16 * 25)
    p["g2"], p["be2"] = jnp.ones((32,), jnp.float32), jnp.zeros((32,), jnp.float32)
    p["w3"] = uniform_fan_in(keys[4], (32, 32, 5, 5), 32 * 25)
    p["b3"] = uniform_fan_in(keys[5], (32,), 32 * 25)
    p["g3"], p["be3"] = jnp.ones((32,), jnp.float32), jnp.zeros((32,), jnp.float32)
    p["wl"] = uniform_fan_in(keys[6], (512, lin_in), lin_in)
    p["bl"] = uniform_fan_in(keys[7], (512,), lin_in)
    p["wh"] = uniform_fan_in(keys[8], (output, 512), 512)
    p["bh"] = uniform_fan_in(keys[9], (output,), 512)
    return p


# ---------------------------------- main --------------------------------------

if __name__ == "__main__":
    # Small DQN config: height=width=32 (smallest spatial size that survives
    # three 5x5/stride-2 convs), inchannel=4, output=14, batch=2.
    HEIGHT = WIDTH = 32
    INCH, OUT, BATCH = 4, 14, 2

    key = jax.random.PRNGKey(0)
    k_x, k_p = jax.random.split(key)
    x = jax.random.uniform(k_x, (BATCH, INCH, HEIGHT, WIDTH),
                           jnp.float32, 0.0, 255.0)
    params = init_params(k_p, HEIGHT, WIDTH, INCH, OUT)

    # One-time constant weight transforms (hoisted out of the per-step forward).
    prepped, meta = prepare_params(params, HEIGHT, WIDTH)

    fwd = jax.jit(lambda pp, xx: dqn_forward(pp, meta, xx))
    out = jax.block_until_ready(fwd(prepped, x))

    ref = ref_forward(params, x)
    assert out.shape == (BATCH, OUT), out.shape
    err = float(jnp.max(jnp.abs(out - ref)))
    assert jnp.allclose(out, ref, atol=5e-4, rtol=5e-4), err

    print("KERNEL_OK")
</pallas_src>

<mosaic_0001>
module attributes {stable_mosaic.version = 11 : i64} {
  func.func @_dqn_fused_kernel(%arg0: i32, %arg1: memref<64x128xf32, #tpu.memory_space<vmem>>, %arg2: memref<5x128x224xf32, #tpu.memory_space<vmem>>, %arg3: memref<5x224x160xf32, #tpu.memory_space<vmem>>, %arg4: memref<5x160x32xf32, #tpu.memory_space<vmem>>, %arg5: memref<224x16xf32, #tpu.memory_space<vmem>>, %arg6: memref<16x224xf32, #tpu.memory_space<vmem>>, %arg7: memref<160x32xf32, #tpu.memory_space<vmem>>, %arg8: memref<32x160xf32, #tpu.memory_space<vmem>>, %arg9: memref<1x16xf32, #tpu.memory_space<vmem>>, %arg10: memref<1x16xf32, #tpu.memory_space<vmem>>, %arg11: memref<1x32xf32, #tpu.memory_space<vmem>>, %arg12: memref<1x32xf32, #tpu.memory_space<vmem>>, %arg13: memref<1x32xf32, #tpu.memory_space<vmem>>, %arg14: memref<1x32xf32, #tpu.memory_space<vmem>>, %arg15: memref<32x512xf32, #tpu.memory_space<vmem>>, %arg16: memref<1x512xf32, #tpu.memory_space<vmem>>, %arg17: memref<512x14xf32, #tpu.memory_space<vmem>>, %arg18: memref<1x14xf32, #tpu.memory_space<vmem>>, %arg19: memref<2x14xf32, #tpu.memory_space<vmem>>, %arg20: memref<28x224xf32, #tpu.memory_space<vmem>>, %arg21: memref<10x160xf32, #tpu.memory_space<vmem>>, %arg22: memref<2x32xf32, #tpu.memory_space<vmem>>) attributes {dimension_semantics = [#tpu.dimension_semantics<arbitrary>], iteration_bounds = array<i64: 1>, scalar_prefetch = 0 : i64, scratch_operands = 3 : i64, tpu.core_type = #tpu.core_type<tc>, window_params = [{pipeline_mode = #tpu.pipeline_mode<synchronous>, transform_indices = @transform_0, window_bounds = array<i64: 64, 128>}, {pipeline_mode = #tpu.pipeline_mode<synchronous>, transform_indices = @transform_1, window_bounds = array<i64: 5, 128, 224>}, {pipeline_mode = #tpu.pipeline_mode<synchronous>, transform_indices = @transform_2, window_bounds = array<i64: 5, 224, 160>}, {pipeline_mode = #tpu.pipeline_mode<synchronous>, transform_indices = @transform_3, window_bounds = array<i64: 5, 160, 32>}, {pipeline_mode = #tpu.pipeline_mode<synchronous>, transform_indices = @transform_4, window_bounds = array<i64: 224, 16>}, {pipeline_mode = #tpu.pipeline_mode<synchronous>, transform_indices = @transform_5, window_bounds = array<i64: 16, 224>}, {pipeline_mode = #tpu.pipeline_mode<synchronous>, transform_indices = @transform_6, window_bounds = array<i64: 160, 32>}, {pipeline_mode = #tpu.pipeline_mode<synchronous>, transform_indices = @transform_7, window_bounds = array<i64: 32, 160>}, {pipeline_mode = #tpu.pipeline_mode<synchronous>, transform_indices = @transform_8, window_bounds = array<i64: 1, 16>}, {pipeline_mode = #tpu.pipeline_mode<synchronous>, transform_indices = @transform_9, window_bounds = array<i64: 1, 16>}, {pipeline_mode = #tpu.pipeline_mode<synchronous>, transform_indices = @transform_10, window_bounds = array<i64: 1, 32>}, {pipeline_mode = #tpu.pipeline_mode<synchronous>, transform_indices = @transform_11, window_bounds = array<i64: 1, 32>}, {pipeline_mode = #tpu.pipeline_mode<synchronous>, transform_indices = @transform_12, window_bounds = array<i64: 1, 32>}, {pipeline_mode = #tpu.pipeline_mode<synchronous>, transform_indices = @transform_13, window_bounds = array<i64: 1, 32>}, {pipeline_mode = #tpu.pipeline_mode<synchronous>, transform_indices = @transform_14, window_bounds = array<i64: 32, 512>}, {pipeline_mode = #tpu.pipeline_mode<synchronous>, transform_indices = @transform_15, window_bounds = array<i64: 1, 512>}, {pipeline_mode = #tpu.pipeline_mode<synchronous>, transform_indices = @transform_16, window_bounds = array<i64: 512, 14>}, {pipeline_mode = #tpu.pipeline_mode<synchronous>, transform_indices = @transform_17, window_bounds = array<i64: 1, 14>}, {pipeline_mode = #tpu.pipeline_mode<synchronous>, transform_indices = @transform_18, window_bounds = array<i64: 2, 14>}]} {
    %cst = arith.constant 0.000000e+00 : f32
    %0 = vector.broadcast %cst : f32 to vector<7x224xf32>
    %c0 = arith.constant 0 : index
    %c0_0 = arith.constant 0 : index
    %1 = vector.load %arg1[%c0, %c0_0] : memref<64x128xf32, #tpu.memory_space<vmem>>, vector<7x128xf32>
    %c0_1 = arith.constant 0 : index
    %c0_2 = arith.constant 0 : index
    %c0_3 = arith.constant 0 : index
    %2 = vector.load %arg2[%c0_1, %c0_2, %c0_3] : memref<5x128x224xf32, #tpu.memory_space<vmem>>, vector<1x128x224xf32>
    %3 = vector.shape_cast %2 : vector<1x128x224xf32> to vector<128x224xf32>
    %cst_4 = arith.constant dense<0.000000e+00> : vector<7x224xf32>
    %4 = tpu.matmul %1, %3, %cst_4 {dimension_numbers = #tpu.dot_dimension_numbers<[1], [0], [0], [1], [0, 0, 1, 1], [], []>} : vector<7x128xf32>, vector<128x224xf32>, vector<7x224xf32> -> vector<7x224xf32>
    %5 = arith.addf %0, %4 : vector<7x224xf32>
    %c8 = arith.constant 8 : index
    %c0_5 = arith.constant 0 : index
    %6 = vector.load %arg1[%c8, %c0_5] : memref<64x128xf32, #tpu.memory_space<vmem>>, vector<7x128xf32>
    %c1 = arith.constant 1 : index
    %c0_6 = arith.constant 0 : index
    %c0_7 = arith.constant 0 : index
    %7 = vector.load %arg2[%c1, %c0_6, %c0_7] : memref<5x128x224xf32, #tpu.memory_space<vmem>>, vector<1x128x224xf32>
    %8 = vector.shape_cast %7 : vector<1x128x224xf32> to vector<128x224xf32>
    %cst_8 = arith.constant dense<0.000000e+00> : vector<7x224xf32>
    %9 = tpu.matmul %6, %8, %cst_8 {dimension_numbers = #tpu.dot_dimension_numbers<[1], [0], [0], [1], [0, 0, 1, 1], [], []>} : vector<7x128xf32>, vector<128x224xf32>, vector<7x224xf32> -> vector<7x224xf32>
    %10 = arith.addf %5, %9 : vector<7x224xf32>
    %c16 = arith.constant 16 : index
    %c0_9 = arith.constant 0 : index
    %11 = vector.load %arg1[%c16, %c0_9] : memref<64x128xf32, #tpu.memory_space<vmem>>, vector<7x128xf32>
    %c2 = arith.constant 2 : index
    %c0_10 = arith.constant 0 : index
    %c0_11 = arith.constant 0 : index
    %12 = vector.load %arg2[%c2, %c0_10, %c0_11] : memref<5x128x224xf32, #tpu.memory_space<vmem>>, vector<1x128x224xf32>
    %13 = vector.shape_cast %12 : vector<1x128x224xf32> to vector<128x224xf32>
    %cst_12 = arith.constant dense<0.000000e+00> : vector<7x224xf32>
    %14 = tpu.matmul %11, %13, %cst_12 {dimension_numbers = #tpu.dot_dimension_numbers<[1], [0], [0], [1], [0, 0, 1, 1], [], []>} : vector<7x128xf32>, vector<128x224xf32>, vector<7x224xf32> -> vector<7x224xf32>
    %15 = arith.addf %10, %14 : vector<7x224xf32>
    %c24 = arith.constant 24 : index
    %c0_13 = arith.constant 0 : index
    %16 = vector.load %arg1[%c24, %c0_13] : memref<64x128xf32, #tpu.memory_space<vmem>>, vector<7x128xf32>
    %c3 = arith.constant 3 : index
    %c0_14 = arith.constant 0 : index
    %c0_15 = arith.constant 0 : index
    %17 = vector.load %arg2[%c3, %c0_14, %c0_15] : memref<5x128x224xf32, #tpu.memory_space<vmem>>, vector<1x128x224xf32>
    %18 = vector.shape_cast %17 : vector<1x128x224xf32> to vector<128x224xf32>
    %cst_16 = arith.constant dense<0.000000e+00> : vector<7x224xf32>
    %19 = tpu.matmul %16, %18, %cst_16 {dimension_numbers = #tpu.dot_dimension_numbers<[1], [0], [0], [1], [0, 0, 1, 1], [], []>} : vector<7x128xf32>, vector<128x224xf32>, vector<7x224xf32> -> vector<7x224xf32>
    %20 = arith.addf %15, %19 : vector<7x224xf32>
    %c1_17 = arith.constant 1 : index
    %c0_18 = arith.constant 0 : index
    %21 = vector.load %arg1[%c1_17, %c0_18] : memref<64x128xf32, #tpu.memory_space<vmem>>, vector<7x128xf32>
    %c4 = arith.constant 4 : index
    %c0_19 = arith.constant 0 : index
    %c0_20 = arith.constant 0 : index
    %22 = vector.load %arg2[%c4, %c0_19, %c0_20] : memref<5x128x224xf32, #tpu.memory_space<vmem>>, vector<1x128x224xf32>
    %23 = vector.shape_cast %22 : vector<1x128x224xf32> to vector<128x224xf32>
    %cst_21 = arith.constant dense<0.000000e+00> : vector<7x224xf32>
    %24 = tpu.matmul %21, %23, %cst_21 {dimension_numbers = #tpu.dot_dimension_numbers<[1], [0], [0], [1], [0, 0, 1, 1], [], []>} : vector<7x128xf32>, vector<128x224xf32>, vector<7x224xf32> -> vector<7x224xf32>
    %25 = arith.addf %20, %24 : vector<7x224xf32>
    %c0_22 = arith.constant 0 : index
    %c0_23 = arith.constant 0 : index
    %26 = vector.load %arg20[%c0_22, %c0_23] : memref<28x224xf32, #tpu.memory_space<vmem>>, vector<7x224xf32>
    tpu.vector_store %arg20[%c0_22, %c0_23], %25 {strides = array<i32>} : memref<28x224xf32, #tpu.memory_space<vmem>>, vector<7x224xf32>,
    %cst_24 = arith.constant 0.000000e+00 : f32
    %27 = vector.broadcast %cst_24 : f32 to vector<7x224xf32>
    %c16_25 = arith.constant 16 : index
    %c0_26 = arith.constant 0 : index
    %28 = vector.load %arg1[%c16_25, %c0_26] : memref<64x128xf32, #tpu.memory_space<vmem>>, vector<7x128xf32>
    %c0_27 = arith.constant 0 : index
    %c0_28 = arith.constant 0 : index
    %c0_29 = arith.constant 0 : index
    %29 = vector.load %arg2[%c0_27, %c0_28, %c0_29] : memref<5x128x224xf32, #tpu.memory_space<vmem>>, vector<1x128x224xf32>
    %30 = vector.shape_cast %29 : vector<1x128x224xf32> to vector<128x224xf32>
    %cst_30 = arith.constant dense<0.000000e+00> : vector<7x224xf32>
    %31 = tpu.matmul %28, %30, %cst_30 {dimension_numbers = #tpu.dot_dimension_numbers<[1], [0], [0], [1], [0, 0, 1, 1], [], []>} : vector<7x128xf32>, vector<128x224xf32>, vector<7x224xf32> -> vector<7x224xf32>
    %32 = arith.addf %27, %31 : vector<7x224xf32>
    %c24_31 = arith.constant 24 : index
    %c0_32 = arith.constant 0 : index
    %33 = vector.load %arg1[%c24_31, %c0_32] : memref<64x128xf32, #tpu.memory_space<vmem>>, vector<7x128xf32>
    %c1_33 = arith.constant 1 : index
    %c0_34 = arith.constant 0 : index
    %c0_35 = arith.constant 0 : index
    %34 = vector.load %arg2[%c1_33, %c0_34, %c0_35] : memref<5x128x224xf32, #tpu.memory_space<vmem>>, vector<1x128x224xf32>
    %35 = vector.shape_cast %34 : vector<1x128x224xf32> to vector<128x224xf32>
    %cst_36 = arith.constant dense<0.000000e+00> : vector<7x224xf32>
    %36 = tpu.matmul %33, %35, %cst_36 {dimension_numbers = #tpu.dot_dimension_numbers<[1], [0], [0], [1], [0, 0, 1, 1], [], []>} : vector<7x128xf32>, vector<128x224xf32>, vector<7x224xf32> -> vector<7x224xf32>
    %37 = arith.addf %32, %36 : vector<7x224xf32>
    %c1_37 = arith.constant 1 : index
    %c0_38 = arith.constant 0 : index
    %38 = vector.load %arg1[%c1_37, %c0_38] : memref<64x128xf32, #tpu.memory_space<vmem>>, vector<7x128xf32>
    %c2_39 = arith.constant 2 : index
    %c0_40 = arith.constant 0 : index
    %c0_41 = arith.constant 0 : index
    %39 = vector.load %arg2[%c2_39, %c0_40, %c0_41] : memref<5x128x224xf32, #tpu.memory_space<vmem>>, vector<1x128x224xf32>
    %40 = vector.shape_cast %39 : vector<1x128x224xf32> to vector<128x224xf32>
    %cst_42 = arith.constant dense<0.000000e+00> : vector<7x224xf32>
    %41 = tpu.matmul %38, %40, %cst_42 {dimension_numbers = #tpu.dot_dimension_numbers<[1], [0], [0], [1], [0, 0, 1, 1], [], []>} : vector<7x128xf32>, vector<128x224xf32>, vector<7x224xf32> -> vector<7x224xf32>
    %42 = arith.addf %37, %41 : vector<7x224xf32>
    %c9 = arith.constant 9 : index
    %c0_43 = arith.constant 0 : index
    %43 = vector.load %arg1[%c9, %c0_43] : memref<64x128xf32, #tpu.memory_space<vmem>>, vector<7x128xf32>
    %c3_44 = arith.constant 3 : index
    %c0_45 = arith.constant 0 : index
    %c0_46 = arith.constant 0 : index
    %44 = vector.load %arg2[%c3_44, %c0_45, %c0_46] : memref<5x128x224xf32, #tpu.memory_space<vmem>>, vector<1x128x224xf32>
    %45 = vector.shape_cast %44 : vector<1x128x224xf32> to vector<128x224xf32>
    %cst_47 = arith.constant dense<0.000000e+00> : vector<7x224xf32>
    %46 = tpu.matmul %43, %45, %cst_47 {dimension_numbers = #tpu.dot_dimension_numbers<[1], [0], [0], [1], [0, 0, 1, 1], [], []>} : vector<7x128xf32>, vector<128x224xf32>, vector<7x224xf32> -> vector<7x224xf32>
    %47 = arith.addf %42, %46 : vector<7x224xf32>
    %c17 = arith.constant 17 : index
    %c0_48 = arith.constant 0 : index
    %48 = vector.load %arg1[%c17, %c0_48] : memref<64x128xf32, #tpu.memory_space<vmem>>, vector<7x128xf32>
    %c4_49 = arith.constant 4 : index
    %c0_50 = arith.constant 0 : index
    %c0_51 = arith.constant 0 : index
    %49 = vector.load %arg2[%c4_49, %c0_50, %c0_51] : memref<5x128x224xf32, #tpu.memory_space<vmem>>, vector<1x128x224xf32>
    %50 = vector.shape_cast %49 : vector<1x128x224xf32> to vector<128x224xf32>
    %cst_52 = arith.constant dense<0.000000e+00> : vector<7x224xf32>
    %51 = tpu.matmul %48, %50, %cst_52 {dimension_numbers = #tpu.dot_dimension_numbers<[1], [0], [0], [1], [0, 0, 1, 1], [], []>} : vector<7x128xf32>, vector<128x224xf32>, vector<7x224xf32> -> vector<7x224xf32>
    %52 = arith.addf %47, %51 : vector<7x224xf32>
    %c7 = arith.constant 7 : index
    %c0_53 = arith.constant 0 : index
    %53 = vector.load %arg20[%c7, %c0_53] : memref<28x224xf32, #tpu.memory_space<vmem>>, vector<7x224xf32>
    tpu.vector_store %arg20[%c7, %c0_53], %52 {strides = array<i32>} : memref<28x224xf32, #tpu.memory_space<vmem>>, vector<7x224xf32>,
    %cst_54 = arith.constant 0.000000e+00 : f32
    %54 = vector.broadcast %cst_54 : f32 to vector<7x224xf32>
    %c32 = arith.constant 32 : index
    %c0_55 = arith.constant 0 : index
    %55 = vector.load %arg1[%c32, %c0_55] : memref<64x128xf32, #tpu.memory_space<vmem>>, vector<7x128xf32>
    %c0_56 = arith.constant 0 : index
    %c0_57 = arith.constant 0 : index
    %c0_58 = arith.constant 0 : index
    %56 = vector.load %arg2[%c0_56, %c0_57, %c0_58] : memref<5x128x224xf32, #tpu.memory_space<vmem>>, vector<1x128x224xf32>
    %57 = vector.shape_cast %56 : vector<1x128x224xf32> to vector<128x224xf32>
    %cst_59 = arith.constant dense<0.000000e+00> : vector<7x224xf32>
    %58 = tpu.matmul %55, %57, %cst_59 {dimension_numbers = #tpu.dot_dimension_numbers<[1], [0], [0], [1], [0, 0, 1, 1], [], []>} : vector<7x128xf32>, vector<128x224xf32>, vector<7x224xf32> -> vector<7x224xf32>
    %59 = arith.addf %54, %58 : vector<7x224xf32>
    %c40 = arith.constant 40 : index
    %c0_60 = arith.constant 0 : index
    %60 = vector.load %arg1[%c40, %c0_60] : memref<64x128xf32, #tpu.memory_space<vmem>>, vector<7x128xf32>
    %c1_61 = arith.constant 1 : index
    %c0_62 = arith.constant 0 : index
    %c0_63 = arith.constant 0 : index
    %61 = vector.load %arg2[%c1_61, %c0_62, %c0_63] : memref<5x128x224xf32, #tpu.memory_space<vmem>>, vector<1x128x224xf32>
    %62 = vector.shape_cast %61 : vector<1x128x224xf32> to vector<128x224xf32>
    %cst_64 = arith.constant dense<0.000000e+00> : vector<7x224xf32>
    %63 = tpu.matmul %60, %62, %cst_64 {dimension_numbers = #tpu.dot_dimension_numbers<[1], [0], [0], [1], [0, 0, 1, 1], [], []>} : vector<7x128xf32>, vector<128x224xf32>, vector<7x224xf32> -> vector<7x224xf32>
    %64 = arith.addf %59, %63 : vector<7x224xf32>
    %c48 = arith.constant 48 : index
    %c0_65 = arith.constant 0 : index
    %65 = vector.load %arg1[%c48, %c0_65] : memref<64x128xf32, #tpu.memory_space<vmem>>, vector<7x128xf32>
    %c2_66 = arith.constant 2 : index
    %c0_67 = arith.constant 0 : index
    %c0_68 = arith.constant 0 : index
    %66 = vector.load %arg2[%c2_66, %c0_67, %c0_68] : memref<5x128x224xf32, #tpu.memory_space<vmem>>, vector<1x128x224xf32>
    %67 = vector.shape_cast %66 : vector<1x128x224xf32> to vector<128x224xf32>
    %cst_69 = arith.constant dense<0.000000e+00> : vector<7x224xf32>
    %68 = tpu.matmul %65, %67, %cst_69 {dimension_numbers = #tpu.dot_dimension_numbers<[1], [0], [0], [1], [0, 0, 1, 1], [], []>} : vector<7x128xf32>, vector<128x224xf32>, vector<7x224xf32> -> vector<7x224xf32>
    %69 = arith.addf %64, %68 : vector<7x224xf32>
    %c56 = arith.constant 56 : index
    %c0_70 = arith.constant 0 : index
    %70 = vector.load %arg1[%c56, %c0_70] : memref<64x128xf32, #tpu.memory_space<vmem>>, vector<7x128xf32>
    %c3_71 = arith.constant 3 : index
    %c0_72 = arith.constant 0 : index
    %c0_73 = arith.constant 0 : index
    %71 = vector.load %arg2[%c3_71, %c0_72, %c0_73] : memref<5x128x224xf32, #tpu.memory_space<vmem>>, vector<1x128x224xf32>
    %72 = vector.shape_cast %71 : vector<1x128x224xf32> to vector<128x224xf32>
    %cst_74 = arith.constant dense<0.000000e+00> : vector<7x224xf32>
    %73 = tpu.matmul %70, %72, %cst_74 {dimension_numbers = #tpu.dot_dimension_numbers<[1], [0], [0], [1], [0, 0, 1, 1], [], []>} : vector<7x128xf32>, vector<128x224xf32>, vector<7x224xf32> -> vector<7x224xf32>
    %74 = arith.addf %69, %73 : vector<7x224xf32>
    %c33 = arith.constant 33 : index
    %c0_75 = arith.constant 0 : index
    %75 = vector.load %arg1[%c33, %c0_75] : memref<64x128xf32, #tpu.memory_space<vmem>>, vector<7x128xf32>
    %c4_76 = arith.constant 4 : index
    %c0_77 = arith.constant 0 : index
    %c0_78 = arith.constant 0 : index
    %76 = vector.load %arg2[%c4_76, %c0_77, %c0_78] : memref<5x128x224xf32, #tpu.memory_space<vmem>>, vector<1x128x224xf32>
    %77 = vector.shape_cast %76 : vector<1x128x224xf32> to vector<128x224xf32>
    %cst_79 = arith.constant dense<0.000000e+00> : vector<7x224xf32>
    %78 = tpu.matmul %75, %77, %cst_79 {dimension_numbers = #tpu.dot_dimension_numbers<[1], [0], [0], [1], [0, 0, 1, 1], [], []>} : vector<7x128xf32>, vector<128x224xf32>, vector<7x224xf32> -> vector<7x224xf32>
    %79 = arith.addf %74, %78 : vector<7x224xf32>
    %c14 = arith.constant 14 : index
    %c0_80 = arith.constant 0 : index
    %80 = vector.load %arg20[%c14, %c0_80] : memref<28x224xf32, #tpu.memory_space<vmem>>, vector<7x224xf32>
    tpu.vector_store %arg20[%c14, %c0_80], %79 {strides = array<i32>} : memref<28x224xf32, #tpu.memory_space<vmem>>, vector<7x224xf32>,
    %cst_81 = arith.constant 0.000000e+00 : f32
    %81 = vector.broadcast %cst_81 : f32 to vector<7x224xf32>
    %c48_82 = arith.constant 48 : index
    %c0_83 = arith.constant 0 : index
    %82 = vector.load %arg1[%c48_82, %c0_83] : memref<64x128xf32, #tpu.memory_space<vmem>>, vector<7x128xf32>
    %c0_84 = arith.constant 0 : index
    %c0_85 = arith.constant 0 : index
    %c0_86 = arith.constant 0 : index
    %83 = vector.load %arg2[%c0_84, %c0_85, %c0_86] : memref<5x128x224xf32, #tpu.memory_space<vmem>>, vector<1x128x224xf32>
    %84 = vector.shape_cast %83 : vector<1x128x224xf32> to vector<128x224xf32>
    %cst_87 = arith.constant dense<0.000000e+00> : vector<7x224xf32>
    %85 = tpu.matmul %82, %84, %cst_87 {dimension_numbers = #tpu.dot_dimension_numbers<[1], [0], [0], [1], [0, 0, 1, 1], [], []>} : vector<7x128xf32>, vector<128x224xf32>, vector<7x224xf32> -> vector<7x224xf32>
    %86 = arith.addf %81, %85 : vector<7x224xf32>
    %c56_88 = arith.constant 56 : index
    %c0_89 = arith.constant 0 : index
    %87 = vector.load %arg1[%c56_88, %c0_89] : memref<64x128xf32, #tpu.memory_space<vmem>>, vector<7x128xf32>
    %c1_90 = arith.constant 1 : index
    %c0_91 = arith.constant 0 : index
    %c0_92 = arith.constant 0 : index
    %88 = vector.load %arg2[%c1_90, %c0_91, %c0_92] : memref<5x128x224xf32, #tpu.memory_space<vmem>>, vector<1x128x224xf32>
    %89 = vector.shape_cast %88 : vector<1x128x224xf32> to vector<128x224xf32>
    %cst_93 = arith.constant dense<0.000000e+00> : vector<7x224xf32>
    %90 = tpu.matmul %87, %89, %cst_93 {dimension_numbers = #tpu.dot_dimension_numbers<[1], [0], [0], [1], [0, 0, 1, 1], [], []>} : vector<7x128xf32>, vector<128x224xf32>, vector<7x224xf32> -> vector<7x224xf32>
    %91 = arith.addf %86, %90 : vector<7x224xf32>
    %c33_94 = arith.constant 33 : index
    %c0_95 = arith.constant 0 : index
    %92 = vector.load %arg1[%c33_94, %c0_95] : memref<64x128xf32, #tpu.memory_space<vmem>>, vector<7x128xf32>
    %c2_96 = arith.constant 2 : index
    %c0_97 = arith.constant 0 : index
    %c0_98 = arith.constant 0 : index
    %93 = vector.load %arg2[%c2_96, %c0_97, %c0_98] : memref<5x128x224xf32, #tpu.memory_space<vmem>>, vector<1x128x224xf32>
    %94 = vector.shape_cast %93 : vector<1x128x224xf32> to vector<128x224xf32>
    %cst_99 = arith.constant dense<0.000000e+00> : vector<7x224xf32>
    %95 = tpu.matmul %92, %94, %cst_99 {dimension_numbers = #tpu.dot_dimension_numbers<[1], [0], [0], [1], [0, 0, 1, 1], [], []>} : vector<7x128xf32>, vector<128x224xf32>, vector<7x224xf32> -> vector<7x224xf32>
    %96 = arith.addf %91, %95 : vector<7x224xf32>
    %c41 = arith.constant 41 : index
    %c0_100 = arith.constant 0 : index
    %97 = vector.load %arg1[%c41, %c0_100] : memref<64x128xf32, #tpu.memory_space<vmem>>, vector<7x128xf32>
    %c3_101 = arith.constant 3 : index
    %c0_102 = arith.constant 0 : index
    %c0_103 = arith.constant 0 : index
    %98 = vector.load %arg2[%c3_101, %c0_102, %c0_103] : memref<5x128x224xf32, #tpu.memory_space<vmem>>, vector<1x128x224xf32>
    %99 = vector.shape_cast %98 : vector<1x128x224xf32> to vector<128x224xf32>
    %cst_104 = arith.constant dense<0.000000e+00> : vector<7x224xf32>
    %100 = tpu.matmul %97, %99, %cst_104 {dimension_numbers = #tpu.dot_dimension_numbers<[1], [0], [0], [1], [0, 0, 1, 1], [], []>} : vector<7x128xf32>, vector<128x224xf32>, vector<7x224xf32> -> vector<7x224xf32>
    %101 = arith.addf %96, %100 : vector<7x224xf32>
    %c49 = arith.constant 49 : index
    %c0_105 = arith.constant 0 : index
    %102 = vector.load %arg1[%c49, %c0_105] : memref<64x128xf32, #tpu.memory_space<vmem>>, vector<7x128xf32>
    %c4_106 = arith.constant 4 : index
    %c0_107 = arith.constant 0 : index
    %c0_108 = arith.constant 0 : index
    %103 = vector.load %arg2[%c4_106, %c0_107, %c0_108] : memref<5x128x224xf32, #tpu.memory_space<vmem>>, vector<1x128x224xf32>
    %104 = vector.shape_cast %103 : vector<1x128x224xf32> to vector<128x224xf32>
    %cst_109 = arith.constant dense<0.000000e+00> : vector<7x224xf32>
    %105 = tpu.matmul %102, %104, %cst_109 {dimension_numbers = #tpu.dot_dimension_numbers<[1], [0], [0], [1], [0, 0, 1, 1], [], []>} : vector<7x128xf32>, vector<128x224xf32>, vector<7x224xf32> -> vector<7x224xf32>
    %106 = arith.addf %101, %105 : vector<7x224xf32>
    %c21 = arith.constant 21 : index
    %c0_110 = arith.constant 0 : index
    %107 = vector.load %arg20[%c21, %c0_110] : memref<28x224xf32, #tpu.memory_space<vmem>>, vector<7x224xf32>
    tpu.vector_store %arg20[%c21, %c0_110], %106 {strides = array<i32>} : memref<28x224xf32, #tpu.memory_space<vmem>>, vector<7x224xf32>,
    %c0_111 = arith.constant 0 : index
    %c0_112 = arith.constant 0 : index
    %108 = vector.load %arg20[%c0_111, %c0_112] : memref<28x224xf32, #tpu.memory_space<vmem>>, vector<28x224xf32>
    %cst_113 = arith.constant dense<0.000000e+00> : vector<224xf32>
    %109 = vector.multi_reduction <add>, %108, %cst_113 [0] : vector<28x224xf32> to vector<224xf32>
    %110 = vector.shape_cast %109 : vector<224xf32> to vector<1x224xf32>
    %c0_114 = arith.constant 0 : index
    %c0_115 = arith.constant 0 : index
    %111 = vector.load %arg5[%c0_114, %c0_115] : memref<224x16xf32, #tpu.memory_space<vmem>>, vector<224x16xf32>
    %cst_116 = arith.constant dense<0.000000e+00> : vector<1x16xf32>
    %112 = tpu.matmul %110, %111, %cst_116 {dimension_numbers = #tpu.dot_dimension_numbers<[1], [0], [0], [1], [0, 0, 1, 1], [], []>} : vector<1x224xf32>, vector<224x16xf32>, vector<1x16xf32> -> vector<1x16xf32>
    %cst_117 = arith.constant 0.00255102036 : f32
    %113 = vector.broadcast %cst_117 : f32 to vector<1x16xf32>
    %114 = arith.mulf %112, %113 : vector<1x16xf32>
    %c0_118 = arith.constant 0 : index
    %c0_119 = arith.constant 0 : index
    %115 = vector.load %arg6[%c0_118, %c0_119] : memref<16x224xf32, #tpu.memory_space<vmem>>, vector<16x224xf32>
    %cst_120 = arith.constant dense<0.000000e+00> : vector<1x224xf32>
    %116 = tpu.matmul %114, %115, %cst_120 {dimension_numbers = #tpu.dot_dimension_numbers<[1], [0], [0], [1], [0, 0, 1, 1], [], []>} : vector<1x16xf32>, vector<16x224xf32>, vector<1x224xf32> -> vector<1x224xf32>
    %117 = vector.broadcast %116 : vector<1x224xf32> to vector<28x224xf32>
    %118 = arith.subf %108, %117 : vector<28x224xf32>
    %119 = arith.mulf %118, %118 : vector<28x224xf32>
    %cst_121 = arith.constant dense<0.000000e+00> : vector<224xf32>
    %120 = vector.multi_reduction <add>, %119, %cst_121 [0] : vector<28x224xf32> to vector<224xf32>
    %121 = vector.shape_cast %120 : vector<224xf32> to vector<1x224xf32>
    %c0_122 = arith.constant 0 : index
    %c0_123 = arith.constant 0 : index
    %122 = vector.load %arg5[%c0_122, %c0_123] : memref<224x16xf32, #tpu.memory_space<vmem>>, vector<224x16xf32>
    %cst_124 = arith.constant dense<0.000000e+00> : vector<1x16xf32>
    %123 = tpu.matmul %121, %122, %cst_124 {dimension_numbers = #tpu.dot_dimension_numbers<[1], [0], [0], [1], [0, 0, 1, 1], [], []>} : vector<1x224xf32>, vector<224x16xf32>, vector<1x16xf32> -> vector<1x16xf32>
    %cst_125 = arith.constant 0.00255102036 : f32
    %124 = vector.broadcast %cst_125 : f32 to vector<1x16xf32>
    %125 = arith.mulf %123, %124 : vector<1x16xf32>
    %c0_126 = arith.constant 0 : index
    %c0_127 = arith.constant 0 : index
    %126 = vector.load %arg9[%c0_126, %c0_127] : memref<1x16xf32, #tpu.memory_space<vmem>>, vector<1x16xf32>
    %cst_128 = arith.constant 9.99999974E-6 : f32
    %127 = vector.broadcast %cst_128 : f32 to vector<1x16xf32>
    %128 = arith.addf %125, %127 : vector<1x16xf32>
    %129 = math.rsqrt %128 : vector<1x16xf32>
    %130 = arith.mulf %126, %129 : vector<1x16xf32>
    %c0_129 = arith.constant 0 : index
    %c0_130 = arith.constant 0 : index
    %131 = vector.load %arg6[%c0_129, %c0_130] : memref<16x224xf32, #tpu.memory_space<vmem>>, vector<16x224xf32>
    %cst_131 = arith.constant dense<0.000000e+00> : vector<1x224xf32>
    %132 = tpu.matmul %130, %131, %cst_131 {dimension_numbers = #tpu.dot_dimension_numbers<[1], [0], [0], [1], [0, 0, 1, 1], [], []>} : vector<1x16xf32>, vector<16x224xf32>, vector<1x224xf32> -> vector<1x224xf32>
    %133 = vector.broadcast %132 : vector<1x224xf32> to vector<28x224xf32>
    %134 = arith.mulf %118, %133 : vector<28x224xf32>
    %c0_132 = arith.constant 0 : index
    %c0_133 = arith.constant 0 : index
    %135 = vector.load %arg10[%c0_132, %c0_133] : memref<1x16xf32, #tpu.memory_space<vmem>>, vector<1x16xf32>
    %c0_134 = arith.constant 0 : index
    %c0_135 = arith.constant 0 : index
    %136 = vector.load %arg6[%c0_134, %c0_135] : memref<16x224xf32, #tpu.memory_space<vmem>>, vector<16x224xf32>
    %cst_136 = arith.constant dense<0.000000e+00> : vector<1x224xf32>
    %137 = tpu.matmul %135, %136, %cst_136 {dimension_numbers = #tpu.dot_dimension_numbers<[1], [0], [0], [1], [0, 0, 1, 1], [], []>} : vector<1x16xf32>, vector<16x224xf32>, vector<1x224xf32> -> vector<1x224xf32>
    %138 = vector.broadcast %137 : vector<1x224xf32> to vector<28x224xf32>
    %139 = arith.addf %134, %138 : vector<28x224xf32>
    %cst_137 = arith.constant 0.000000e+00 : f32
    %140 = vector.broadcast %cst_137 : f32 to vector<28x224xf32>
    %141 = arith.maximumf %139, %140 : vector<28x224xf32>
    %c0_138 = arith.constant 0 : index
    %c0_139 = arith.constant 0 : index
    %142 = vector.load %arg20[%c0_138, %c0_139] : memref<28x224xf32, #tpu.memory_space<vmem>>, vector<28x224xf32>
    tpu.vector_store %arg20[%c0_138, %c0_139], %141 {strides = array<i32>} : memref<28x224xf32, #tpu.memory_space<vmem>>, vector<28x224xf32>,
    %cst_140 = arith.constant 0.000000e+00 : f32
    %143 = vector.broadcast %cst_140 : f32 to vector<5x160xf32>
    %c0_141 = arith.constant 0 : index
    %c0_142 = arith.constant 0 : index
    %144 = vector.load %arg20[%c0_141, %c0_142] : memref<28x224xf32, #tpu.memory_space<vmem>>, vector<5x224xf32>
    %c0_143 = arith.constant 0 : index
    %c0_144 = arith.constant 0 : index
    %c0_145 = arith.constant 0 : index
    %145 = vector.load %arg3[%c0_143, %c0_144, %c0_145] : memref<5x224x160xf32, #tpu.memory_space<vmem>>, vector<1x224x160xf32>
    %146 = vector.shape_cast %145 : vector<1x224x160xf32> to vector<224x160xf32>
    %cst_146 = arith.constant dense<0.000000e+00> : vector<5x160xf32>
    %147 = tpu.matmul %144, %146, %cst_146 {dimension_numbers = #tpu.dot_dimension_numbers<[1], [0], [0], [1], [0, 0, 1, 1], [], []>} : vector<5x224xf32>, vector<224x160xf32>, vector<5x160xf32> -> vector<5x160xf32>
    %148 = arith.addf %143, %147 : vector<5x160xf32>
    %c7_147 = arith.constant 7 : index
    %c0_148 = arith.constant 0 : index
    %149 = vector.load %arg20[%c7_147, %c0_148] : memref<28x224xf32, #tpu.memory_space<vmem>>, vector<5x224xf32>
    %c1_149 = arith.constant 1 : index
    %c0_150 = arith.constant 0 : index
    %c0_151 = arith.constant 0 : index
    %150 = vector.load %arg3[%c1_149, %c0_150, %c0_151] : memref<5x224x160xf32, #tpu.memory_space<vmem>>, vector<1x224x160xf32>
    %151 = vector.shape_cast %150 : vector<1x224x160xf32> to vector<224x160xf32>
    %cst_152 = arith.constant dense<0.000000e+00> : vector<5x160xf32>
    %152 = tpu.matmul %149, %151, %cst_152 {dimension_numbers = #tpu.dot_dimension_numbers<[1], [0], [0], [1], [0, 0, 1, 1], [], []>} : vector<5x224xf32>, vector<224x160xf32>, vector<5x160xf32> -> vector<5x160xf32>
    %153 = arith.addf %148, %152 : vector<5x160xf32>
    %c1_153 = arith.constant 1 : index
    %c0_154 = arith.constant 0 : index
    %154 = vector.load %arg20[%c1_153, %c0_154] : memref<28x224xf32, #tpu.memory_space<vmem>>, vector<5x224xf32>
    %c2_155 = arith.constant 2 : index
    %c0_156 = arith.constant 0 : index
    %c0_157 = arith.constant 0 : index
    %155 = vector.load %arg3[%c2_155, %c0_156, %c0_157] : memref<5x224x160xf32, #tpu.memory_space<vmem>>, vector<1x224x160xf32>
    %156 = vector.shape_cast %155 : vector<1x224x160xf32> to vector<224x160xf32>
    %cst_158 = arith.constant dense<0.000000e+00> : vector<5x160xf32>
    %157 = tpu.matmul %154, %156, %cst_158 {dimension_numbers = #tpu.dot_dimension_numbers<[1], [0], [0], [1], [0, 0, 1, 1], [], []>} : vector<5x224xf32>, vector<224x160xf32>, vector<5x160xf32> -> vector<5x160xf32>
    %158 = arith.addf %153, %157 : vector<5x160xf32>
    %c8_159 = arith.constant 8 : index
    %c0_160 = arith.constant 0 : index
    %159 = vector.load %arg20[%c8_159, %c0_160] : memref<28x224xf32, #tpu.memory_space<vmem>>, vector<5x224xf32>
    %c3_161 = arith.constant 3 : index
    %c0_162 = arith.constant 0 : index
    %c0_163 = arith.constant 0 : index
    %160 = vector.load %arg3[%c3_161, %c0_162, %c0_163] : memref<5x224x160xf32, #tpu.memory_space<vmem>>, vector<1x224x160xf32>
    %161 = vector.shape_cast %160 : vector<1x224x160xf32> to vector<224x160xf32>
    %cst_164 = arith.constant dense<0.000000e+00> : vector<5x160xf32>
    %162 = tpu.matmul %159, %161, %cst_164 {dimension_numbers = #tpu.dot_dimension_numbers<[1], [0], [0], [1], [0, 0, 1, 1], [], []>} : vector<5x224xf32>, vector<224x160xf32>, vector<5x160xf32> -> vector<5x160xf32>
    %163 = arith.addf %158, %162 : vector<5x160xf32>
    %c2_165 = arith.constant 2 : index
    %c0_166 = arith.constant 0 : index
    %164 = vector.load %arg20[%c2_165, %c0_166] : memref<28x224xf32, #tpu.memory_space<vmem>>, vector<5x224xf32>
    %c4_167 = arith.constant 4 : index
    %c0_168 = arith.constant 0 : index
    %c0_169 = arith.constant 0 : index
    %165 = vector.load %arg3[%c4_167, %c0_168, %c0_169] : memref<5x224x160xf32, #tpu.memory_space<vmem>>, vector<1x224x160xf32>
    %166 = vector.shape_cast %165 : vector<1x224x160xf32> to vector<224x160xf32>
    %cst_170 = arith.constant dense<0.000000e+00> : vector<5x160xf32>
    %167 = tpu.matmul %164, %166, %cst_170 {dimension_numbers = #tpu.dot_dimension_numbers<[1], [0], [0], [1], [0, 0, 1, 1], [], []>} : vector<5x224xf32>, vector<224x160xf32>, vector<5x160xf32> -> vector<5x160xf32>
    %168 = arith.addf %163, %167 : vector<5x160xf32>
    %c0_171 = arith.constant 0 : index
    %c0_172 = arith.constant 0 : index
    %169 = vector.load %arg21[%c0_171, %c0_172] : memref<10x160xf32, #tpu.memory_space<vmem>>, vector<5x160xf32>
    tpu.vector_store %arg21[%c0_171, %c0_172], %168 {strides = array<i32>} : memref<10x160xf32, #tpu.memory_space<vmem>>, vector<5x160xf32>,
    %cst_173 = arith.constant 0.000000e+00 : f32
    %170 = vector.broadcast %cst_173 : f32 to vector<5x160xf32>
    %c14_174 = arith.constant 14 : index
    %c0_175 = arith.constant 0 : index
    %171 = vector.load %arg20[%c14_174, %c0_175] : memref<28x224xf32, #tpu.memory_space<vmem>>, vector<5x224xf32>
    %c0_176 = arith.constant 0 : index
    %c0_177 = arith.constant 0 : index
    %c0_178 = arith.constant 0 : index
    %172 = vector.load %arg3[%c0_176, %c0_177, %c0_178] : memref<5x224x160xf32, #tpu.memory_space<vmem>>, vector<1x224x160xf32>
    %173 = vector.shape_cast %172 : vector<1x224x160xf32> to vector<224x160xf32>
    %cst_179 = arith.constant dense<0.000000e+00> : vector<5x160xf32>
    %174 = tpu.matmul %171, %173, %cst_179 {dimension_numbers = #tpu.dot_dimension_numbers<[1], [0], [0], [1], [0, 0, 1, 1], [], []>} : vector<5x224xf32>, vector<224x160xf32>, vector<5x160xf32> -> vector<5x160xf32>
    %175 = arith.addf %170, %174 : vector<5x160xf32>
    %c21_180 = arith.constant 21 : index
    %c0_181 = arith.constant 0 : index
    %176 = vector.load %arg20[%c21_180, %c0_181] : memref<28x224xf32, #tpu.memory_space<vmem>>, vector<5x224xf32>
    %c1_182 = arith.constant 1 : index
    %c0_183 = arith.constant 0 : index
    %c0_184 = arith.constant 0 : index
    %177 = vector.load %arg3[%c1_182, %c0_183, %c0_184] : memref<5x224x160xf32, #tpu.memory_space<vmem>>, vector<1x224x160xf32>
    %178 = vector.shape_cast %177 : vector<1x224x160xf32> to vector<224x160xf32>
    %cst_185 = arith.constant dense<0.000000e+00> : vector<5x160xf32>
    %179 = tpu.matmul %176, %178, %cst_185 {dimension_numbers = #tpu.dot_dimension_numbers<[1], [0], [0], [1], [0, 0, 1, 1], [], []>} : vector<5x224xf32>, vector<224x160xf32>, vector<5x160xf32> -> vector<5x160xf32>
    %180 = arith.addf %175, %179 : vector<5x160xf32>
    %c15 = arith.constant 15 : index
    %c0_186 = arith.constant 0 : index
    %181 = vector.load %arg20[%c15, %c0_186] : memref<28x224xf32, #tpu.memory_space<vmem>>, vector<5x224xf32>
    %c2_187 = arith.constant 2 : index
    %c0_188 = arith.constant 0 : index
    %c0_189 = arith.constant 0 : index
    %182 = vector.load %arg3[%c2_187, %c0_188, %c0_189] : memref<5x224x160xf32, #tpu.memory_space<vmem>>, vector<1x224x160xf32>
    %183 = vector.shape_cast %182 : vector<1x224x160xf32> to vector<224x160xf32>
    %cst_190 = arith.constant dense<0.000000e+00> : vector<5x160xf32>
    %184 = tpu.matmul %181, %183, %cst_190 {dimension_numbers = #tpu.dot_dimension_numbers<[1], [0], [0], [1], [0, 0, 1, 1], [], []>} : vector<5x224xf32>, vector<224x160xf32>, vector<5x160xf32> -> vector<5x160xf32>
    %185 = arith.addf %180, %184 : vector<5x160xf32>
    %c22 = arith.constant 22 : index
    %c0_191 = arith.constant 0 : index
    %186 = vector.load %arg20[%c22, %c0_191] : memref<28x224xf32, #tpu.memory_space<vmem>>, vector<5x224xf32>
    %c3_192 = arith.constant 3 : index
    %c0_193 = arith.constant 0 : index
    %c0_194 = arith.constant 0 : index
    %187 = vector.load %arg3[%c3_192, %c0_193, %c0_194] : memref<5x224x160xf32, #tpu.memory_space<vmem>>, vector<1x224x160xf32>
    %188 = vector.shape_cast %187 : vector<1x224x160xf32> to vector<224x160xf32>
    %cst_195 = arith.constant dense<0.000000e+00> : vector<5x160xf32>
    %189 = tpu.matmul %186, %188, %cst_195 {dimension_numbers = #tpu.dot_dimension_numbers<[1], [0], [0], [1], [0, 0, 1, 1], [], []>} : vector<5x224xf32>, vector<224x160xf32>, vector<5x160xf32> -> vector<5x160xf32>
    %190 = arith.addf %185, %189 : vector<5x160xf32>
    %c16_196 = arith.constant 16 : index
    %c0_197 = arith.constant 0 : index
    %191 = vector.load %arg20[%c16_196, %c0_197] : memref<28x224xf32, #tpu.memory_space<vmem>>, vector<5x224xf32>
    %c4_198 = arith.constant 4 : index
    %c0_199 = arith.constant 0 : index
    %c0_200 = arith.constant 0 : index
    %192 = vector.load %arg3[%c4_198, %c0_199, %c0_200] : memref<5x224x160xf32, #tpu.memory_space<vmem>>, vector<1x224x160xf32>
    %193 = vector.shape_cast %192 : vector<1x224x160xf32> to vector<224x160xf32>
    %cst_201 = arith.constant dense<0.000000e+00> : vector<5x160xf32>
    %194 = tpu.matmul %191, %193, %cst_201 {dimension_numbers = #tpu.dot_dimension_numbers<[1], [0], [0], [1], [0, 0, 1, 1], [], []>} : vector<5x224xf32>, vector<224x160xf32>, vector<5x160xf32> -> vector<5x160xf32>
    %195 = arith.addf %190, %194 : vector<5x160xf32>
    %c5 = arith.constant 5 : index
    %c0_202 = arith.constant 0 : index
    %196 = vector.load %arg21[%c5, %c0_202] : memref<10x160xf32, #tpu.memory_space<vmem>>, vector<5x160xf32>
    tpu.vector_store %arg21[%c5, %c0_202], %195 {strides = array<i32>} : memref<10x160xf32, #tpu.memory_space<vmem>>, vector<5x160xf32>,
    %c0_203 = arith.constant 0 : index
    %c0_204 = arith.constant 0 : index
    %197 = vector.load %arg21[%c0_203, %c0_204] : memref<10x160xf32, #tpu.memory_space<vmem>>, vector<10x160xf32>
    %cst_205 = arith.constant dense<0.000000e+00> : vector<160xf32>
    %198 = vector.multi_reduction <add>, %197, %cst_205 [0] : vector<10x160xf32> to vector<160xf32>
    %199 = vector.shape_cast %198 : vector<160xf32> to vector<1x160xf32>
    %c0_206 = arith.constant 0 : index
    %c0_207 = arith.constant 0 : index
    %200 = vector.load %arg7[%c0_206, %c0_207] : memref<160x32xf32, #tpu.memory_space<vmem>>, vector<160x32xf32>
    %cst_208 = arith.constant dense<0.000000e+00> : vector<1x32xf32>
    %201 = tpu.matmul %199, %200, %cst_208 {dimension_numbers = #tpu.dot_dimension_numbers<[1], [0], [0], [1], [0, 0, 1, 1], [], []>} : vector<1x160xf32>, vector<160x32xf32>, vector<1x32xf32> -> vector<1x32xf32>
    %cst_209 = arith.constant 2.000000e-02 : f32
    %202 = vector.broadcast %cst_209 : f32 to vector<1x32xf32>
    %203 = arith.mulf %201, %202 : vector<1x32xf32>
    %c0_210 = arith.constant 0 : index
    %c0_211 = arith.constant 0 : index
    %204 = vector.load %arg8[%c0_210, %c0_211] : memref<32x160xf32, #tpu.memory_space<vmem>>, vector<32x160xf32>
    %cst_212 = arith.constant dense<0.000000e+00> : vector<1x160xf32>
    %205 = tpu.matmul %203, %204, %cst_212 {dimension_numbers = #tpu.dot_dimension_numbers<[1], [0], [0], [1], [0, 0, 1, 1], [], []>} : vector<1x32xf32>, vector<32x160xf32>, vector<1x160xf32> -> vector<1x160xf32>
    %206 = vector.broadcast %205 : vector<1x160xf32> to vector<10x160xf32>
    %207 = arith.subf %197, %206 : vector<10x160xf32>
    %208 = arith.mulf %207, %207 : vector<10x160xf32>
    %cst_213 = arith.constant dense<0.000000e+00> : vector<160xf32>
    %209 = vector.multi_reduction <add>, %208, %cst_213 [0] : vector<10x160xf32> to vector<160xf32>
    %210 = vector.shape_cast %209 : vector<160xf32> to vector<1x160xf32>
    %c0_214 = arith.constant 0 : index
    %c0_215 = arith.constant 0 : index
    %211 = vector.load %arg7[%c0_214, %c0_215] : memref<160x32xf32, #tpu.memory_space<vmem>>, vector<160x32xf32>
    %cst_216 = arith.constant dense<0.000000e+00> : vector<1x32xf32>
    %212 = tpu.matmul %210, %211, %cst_216 {dimension_numbers = #tpu.dot_dimension_numbers<[1], [0], [0], [1], [0, 0, 1, 1], [], []>} : vector<1x160xf32>, vector<160x32xf32>, vector<1x32xf32> -> vector<1x32xf32>
    %cst_217 = arith.constant 2.000000e-02 : f32
    %213 = vector.broadcast %cst_217 : f32 to vector<1x32xf32>
    %214 = arith.mulf %212, %213 : vector<1x32xf32>
    %c0_218 = arith.constant 0 : index
    %c0_219 = arith.constant 0 : index
    %215 = vector.load %arg11[%c0_218, %c0_219] : memref<1x32xf32, #tpu.memory_space<vmem>>, vector<1x32xf32>
    %cst_220 = arith.constant 9.99999974E-6 : f32
    %216 = vector.broadcast %cst_220 : f32 to vector<1x32xf32>
    %217 = arith.addf %214, %216 : vector<1x32xf32>
    %218 = math.rsqrt %217 : vector<1x32xf32>
    %219 = arith.mulf %215, %218 : vector<1x32xf32>
    %c0_221 = arith.constant 0 : index
    %c0_222 = arith.constant 0 : index
    %220 = vector.load %arg8[%c0_221, %c0_222] : memref<32x160xf32, #tpu.memory_space<vmem>>, vector<32x160xf32>
    %cst_223 = arith.constant dense<0.000000e+00> : vector<1x160xf32>
    %221 = tpu.matmul %219, %220, %cst_223 {dimension_numbers = #tpu.dot_dimension_numbers<[1], [0], [0], [1], [0, 0, 1, 1], [], []>} : vector<1x32xf32>, vector<32x160xf32>, vector<1x160xf32> -> vector<1x160xf32>
    %222 = vector.broadcast %221 : vector<1x160xf32> to vector<10x160xf32>
    %223 = arith.mulf %207, %222 : vector<10x160xf32>
    %c0_224 = arith.constant 0 : index
    %c0_225 = arith.constant 0 : index
    %224 = vector.load %arg12[%c0_224, %c0_225] : memref<1x32xf32, #tpu.memory_space<vmem>>, vector<1x32xf32>
    %c0_226 = arith.constant 0 : index
    %c0_227 = arith.constant 0 : index
    %225 = vector.load %arg8[%c0_226, %c0_227] : memref<32x160xf32, #tpu.memory_space<vmem>>, vector<32x160xf32>
    %cst_228 = arith.constant dense<0.000000e+00> : vector<1x160xf32>
    %226 = tpu.matmul %224, %225, %cst_228 {dimension_numbers = #tpu.dot_dimension_numbers<[1], [0], [0], [1], [0, 0, 1, 1], [], []>} : vector<1x32xf32>, vector<32x160xf32>, vector<1x160xf32> -> vector<1x160xf32>
    %227 = vector.broadcast %226 : vector<1x160xf32> to vector<10x160xf32>
    %228 = arith.addf %223, %227 : vector<10x160xf32>
    %cst_229 = arith.constant 0.000000e+00 : f32
    %229 = vector.broadcast %cst_229 : f32 to vector<10x160xf32>
    %230 = arith.maximumf %228, %229 : vector<10x160xf32>
    %c0_230 = arith.constant 0 : index
    %c0_231 = arith.constant 0 : index
    %231 = vector.load %arg21[%c0_230, %c0_231] : memref<10x160xf32, #tpu.memory_space<vmem>>, vector<10x160xf32>
    tpu.vector_store %arg21[%c0_230, %c0_231], %230 {strides = array<i32>} : memref<10x160xf32, #tpu.memory_space<vmem>>, vector<10x160xf32>,
    %cst_232 = arith.constant 0.000000e+00 : f32
    %232 = vector.broadcast %cst_232 : f32 to vector<1x32xf32>
    %c0_233 = arith.constant 0 : index
    %c0_234 = arith.constant 0 : index
    %233 = vector.load %arg21[%c0_233, %c0_234] : memref<10x160xf32, #tpu.memory_space<vmem>>, vector<1x160xf32>
    %c0_235 = arith.constant 0 : index
    %c0_236 = arith.constant 0 : index
    %c0_237 = arith.constant 0 : index
    %234 = vector.load %arg4[%c0_235, %c0_236, %c0_237] : memref<5x160x32xf32, #tpu.memory_space<vmem>>, vector<1x160x32xf32>
    %235 = vector.shape_cast %234 : vector<1x160x32xf32> to vector<160x32xf32>
    %cst_238 = arith.constant dense<0.000000e+00> : vector<1x32xf32>
    %236 = tpu.matmul %233, %235, %cst_238 {dimension_numbers = #tpu.dot_dimension_numbers<[1], [0], [0], [1], [0, 0, 1, 1], [], []>} : vector<1x160xf32>, vector<160x32xf32>, vector<1x32xf32> -> vector<1x32xf32>
    %237 = arith.addf %232, %236 : vector<1x32xf32>
    %c1_239 = arith.constant 1 : index
    %c0_240 = arith.constant 0 : index
    %238 = vector.load %arg21[%c1_239, %c0_240] : memref<10x160xf32, #tpu.memory_space<vmem>>, vector<1x160xf32>
    %c1_241 = arith.constant 1 : index
    %c0_242 = arith.constant 0 : index
    %c0_243 = arith.constant 0 : index
    %239 = vector.load %arg4[%c1_241, %c0_242, %c0_243] : memref<5x160x32xf32, #tpu.memory_space<vmem>>, vector<1x160x32xf32>
    %240 = vector.shape_cast %239 : vector<1x160x32xf32> to vector<160x32xf32>
    %cst_244 = arith.constant dense<0.000000e+00> : vector<1x32xf32>
    %241 = tpu.matmul %238, %240, %cst_244 {dimension_numbers = #tpu.dot_dimension_numbers<[1], [0], [0], [1], [0, 0, 1, 1], [], []>} : vector<1x160xf32>, vector<160x32xf32>, vector<1x32xf32> -> vector<1x32xf32>
    %242 = arith.addf %237, %241 : vector<1x32xf32>
    %c2_245 = arith.constant 2 : index
    %c0_246 = arith.constant 0 : index
    %243 = vector.load %arg21[%c2_245, %c0_246] : memref<10x160xf32, #tpu.memory_space<vmem>>, vector<1x160xf32>
    %c2_247 = arith.constant 2 : index
    %c0_248 = arith.constant 0 : index
    %c0_249 = arith.constant 0 : index
    %244 = vector.load %arg4[%c2_247, %c0_248, %c0_249] : memref<5x160x32xf32, #tpu.memory_space<vmem>>, vector<1x160x32xf32>
    %245 = vector.shape_cast %244 : vector<1x160x32xf32> to vector<160x32xf32>
    %cst_250 = arith.constant dense<0.000000e+00> : vector<1x32xf32>
    %246 = tpu.matmul %243, %245, %cst_250 {dimension_numbers = #tpu.dot_dimension_numbers<[1], [0], [0], [1], [0, 0, 1, 1], [], []>} : vector<1x160xf32>, vector<160x32xf32>, vector<1x32xf32> -> vector<1x32xf32>
    %247 = arith.addf %242, %246 : vector<1x32xf32>
    %c3_251 = arith.constant 3 : index
    %c0_252 = arith.constant 0 : index
    %248 = vector.load %arg21[%c3_251, %c0_252] : memref<10x160xf32, #tpu.memory_space<vmem>>, vector<1x160xf32>
    %c3_253 = arith.constant 3 : index
    %c0_254 = arith.constant 0 : index
    %c0_255 = arith.constant 0 : index
    %249 = vector.load %arg4[%c3_253, %c0_254, %c0_255] : memref<5x160x32xf32, #tpu.memory_space<vmem>>, vector<1x160x32xf32>
    %250 = vector.shape_cast %249 : vector<1x160x32xf32> to vector<160x32xf32>
    %cst_256 = arith.constant dense<0.000000e+00> : vector<1x32xf32>
    %251 = tpu.matmul %248, %250, %cst_256 {dimension_numbers = #tpu.dot_dimension_numbers<[1], [0], [0], [1], [0, 0, 1, 1], [], []>} : vector<1x160xf32>, vector<160x32xf32>, vector<1x32xf32> -> vector<1x32xf32>
    %252 = arith.addf %247, %251 : vector<1x32xf32>
    %c4_257 = arith.constant 4 : index
    %c0_258 = arith.constant 0 : index
    %253 = vector.load %arg21[%c4_257, %c0_258] : memref<10x160xf32, #tpu.memory_space<vmem>>, vector<1x160xf32>
    %c4_259 = arith.constant 4 : index
    %c0_260 = arith.constant 0 : index
    %c0_261 = arith.constant 0 : index
    %254 = vector.load %arg4[%c4_259, %c0_260, %c0_261] : memref<5x160x32xf32, #tpu.memory_space<vmem>>, vector<1x160x32xf32>
    %255 = vector.shape_cast %254 : vector<1x160x32xf32> to vector<160x32xf32>
    %cst_262 = arith.constant dense<0.000000e+00> : vector<1x32xf32>
    %256 = tpu.matmul %253, %255, %cst_262 {dimension_numbers = #tpu.dot_dimension_numbers<[1], [0], [0], [1], [0, 0, 1, 1], [], []>} : vector<1x160xf32>, vector<160x32xf32>, vector<1x32xf32> -> vector<1x32xf32>
    %257 = arith.addf %252, %256 : vector<1x32xf32>
    %c0_263 = arith.constant 0 : index
    %c0_264 = arith.constant 0 : index
    %258 = vector.load %arg22[%c0_263, %c0_264] : memref<2x32xf32, #tpu.memory_space<vmem>>, vector<1x32xf32>
    tpu.vector_store %arg22[%c0_263, %c0_264], %257 {strides = array<i32>} : memref<2x32xf32, #tpu.memory_space<vmem>>, vector<1x32xf32>,
    %cst_265 = arith.constant 0.000000e+00 : f32
    %259 = vector.broadcast %cst_265 : f32 to vector<1x32xf32>
    %c5_266 = arith.constant 5 : index
    %c0_267 = arith.constant 0 : index
    %260 = vector.load %arg21[%c5_266, %c0_267] : memref<10x160xf32, #tpu.memory_space<vmem>>, vector<1x160xf32>
    %c0_268 = arith.constant 0 : index
    %c0_269 = arith.constant 0 : index
    %c0_270 = arith.constant 0 : index
    %261 = vector.load %arg4[%c0_268, %c0_269, %c0_270] : memref<5x160x32xf32, #tpu.memory_space<vmem>>, vector<1x160x32xf32>
    %262 = vector.shape_cast %261 : vector<1x160x32xf32> to vector<160x32xf32>
    %cst_271 = arith.constant dense<0.000000e+00> : vector<1x32xf32>
    %263 = tpu.matmul %260, %262, %cst_271 {dimension_numbers = #tpu.dot_dimension_numbers<[1], [0], [0], [1], [0, 0, 1, 1], [], []>} : vector<1x160xf32>, vector<160x32xf32>, vector<1x32xf32> -> vector<1x32xf32>
    %264 = arith.addf %259, %263 : vector<1x32xf32>
    %c6 = arith.constant 6 : index
    %c0_272 = arith.constant 0 : index
    %265 = vector.load %arg21[%c6, %c0_272] : memref<10x160xf32, #tpu.memory_space<vmem>>, vector<1x160xf32>
    %c1_273 = arith.constant 1 : index
    %c0_274 = arith.constant 0 : index
    %c0_275 = arith.constant 0 : index
    %266 = vector.load %arg4[%c1_273, %c0_274, %c0_275] : memref<5x160x32xf32, #tpu.memory_space<vmem>>, vector<1x160x32xf32>
    %267 = vector.shape_cast %266 : vector<1x160x32xf32> to vector<160x32xf32>
    %cst_276 = arith.constant dense<0.000000e+00> : vector<1x32xf32>
    %268 = tpu.matmul %265, %267, %cst_276 {dimension_numbers = #tpu.dot_dimension_numbers<[1], [0], [0], [1], [0, 0, 1, 1], [], []>} : vector<1x160xf32>, vector<160x32xf32>, vector<1x32xf32> -> vector<1x32xf32>
    %269 = arith.addf %264, %268 : vector<1x32xf32>
    %c7_277 = arith.constant 7 : index
    %c0_278 = arith.constant 0 : index
    %270 = vector.load %arg21[%c7_277, %c0_278] : memref<10x160xf32, #tpu.memory_space<vmem>>, vector<1x160xf32>
    %c2_279 = arith.constant 2 : index
    %c0_280 = arith.constant 0 : index
    %c0_281 = arith.constant 0 : index
    %271 = vector.load %arg4[%c2_279, %c0_280, %c0_281] : memref<5x160x32xf32, #tpu.memory_space<vmem>>, vector<1x160x32xf32>
    %272 = vector.shape_cast %271 : vector<1x160x32xf32> to vector<160x32xf32>
    %cst_282 = arith.constant dense<0.000000e+00> : vector<1x32xf32>
    %273 = tpu.matmul %270, %272, %cst_282 {dimension_numbers = #tpu.dot_dimension_numbers<[1], [0], [0], [1], [0, 0, 1, 1], [], []>} : vector<1x160xf32>, vector<160x32xf32>, vector<1x32xf32> -> vector<1x32xf32>
    %274 = arith.addf %269, %273 : vector<1x32xf32>
    %c8_283 = arith.constant 8 : index
    %c0_284 = arith.constant 0 : index
    %275 = vector.load %arg21[%c8_283, %c0_284] : memref<10x160xf32, #tpu.memory_space<vmem>>, vector<1x160xf32>
    %c3_285 = arith.constant 3 : index
    %c0_286 = arith.constant 0 : index
    %c0_287 = arith.constant 0 : index
    %276 = vector.load %arg4[%c3_285, %c0_286, %c0_287] : memref<5x160x32xf32, #tpu.memory_space<vmem>>, vector<1x160x32xf32>
    %277 = vector.shape_cast %276 : vector<1x160x32xf32> to vector<160x32xf32>
    %cst_288 = arith.constant dense<0.000000e+00> : vector<1x32xf32>
    %278 = tpu.matmul %275, %277, %cst_288 {dimension_numbers = #tpu.dot_dimension_numbers<[1], [0], [0], [1], [0, 0, 1, 1], [], []>} : vector<1x160xf32>, vector<160x32xf32>, vector<1x32xf32> -> vector<1x32xf32>
    %279 = arith.addf %274, %278 : vector<1x32xf32>
    %c9_289 = arith.constant 9 : index
    %c0_290 = arith.constant 0 : index
    %280 = vector.load %arg21[%c9_289, %c0_290] : memref<10x160xf32, #tpu.memory_space<vmem>>, vector<1x160xf32>
    %c4_291 = arith.constant 4 : index
    %c0_292 = arith.constant 0 : index
    %c0_293 = arith.constant 0 : index
    %281 = vector.load %arg4[%c4_291, %c0_292, %c0_293] : memref<5x160x32xf32, #tpu.memory_space<vmem>>, vector<1x160x32xf32>
    %282 = vector.shape_cast %281 : vector<1x160x32xf32> to vector<160x32xf32>
    %cst_294 = arith.constant dense<0.000000e+00> : vector<1x32xf32>
    %283 = tpu.matmul %280, %282, %cst_294 {dimension_numbers = #tpu.dot_dimension_numbers<[1], [0], [0], [1], [0, 0, 1, 1], [], []>} : vector<1x160xf32>, vector<160x32xf32>, vector<1x32xf32> -> vector<1x32xf32>
    %284 = arith.addf %279, %283 : vector<1x32xf32>
    %c1_295 = arith.constant 1 : index
    %c0_296 = arith.constant 0 : index
    %285 = vector.load %arg22[%c1_295, %c0_296] : memref<2x32xf32, #tpu.memory_space<vmem>>, vector<1x32xf32>
    tpu.vector_store %arg22[%c1_295, %c0_296], %284 {strides = array<i32>} : memref<2x32xf32, #tpu.memory_space<vmem>>, vector<1x32xf32>,
    %c0_297 = arith.constant 0 : index
    %c0_298 = arith.constant 0 : index
    %286 = vector.load %arg22[%c0_297, %c0_298] : memref<2x32xf32, #tpu.memory_space<vmem>>, vector<2x32xf32>
    %cst_299 = arith.constant dense<0.000000e+00> : vector<32xf32>
    %287 = vector.multi_reduction <add>, %286, %cst_299 [0] : vector<2x32xf32> to vector<32xf32>
    %288 = vector.shape_cast %287 : vector<32xf32> to vector<1x32xf32>
    %cst_300 = arith.constant 2.000000e+00 : f32
    %289 = vector.broadcast %cst_300 : f32 to vector<1x32xf32>
    %290 = arith.divf %288, %289 : vector<1x32xf32>
    %291 = vector.broadcast %290 : vector<1x32xf32> to vector<2x32xf32>
    %292 = arith.subf %286, %291 : vector<2x32xf32>
    %293 = arith.mulf %292, %292 : vector<2x32xf32>
    %cst_301 = arith.constant dense<0.000000e+00> : vector<32xf32>
    %294 = vector.multi_reduction <add>, %293, %cst_301 [0] : vector<2x32xf32> to vector<32xf32>
    %295 = vector.shape_cast %294 : vector<32xf32> to vector<1x32xf32>
    %cst_302 = arith.constant 2.000000e+00 : f32
    %296 = vector.broadcast %cst_302 : f32 to vector<1x32xf32>
    %297 = arith.divf %295, %296 : vector<1x32xf32>
    %c0_303 = arith.constant 0 : index
    %c0_304 = arith.constant 0 : index
    %298 = vector.load %arg13[%c0_303, %c0_304] : memref<1x32xf32, #tpu.memory_space<vmem>>, vector<1x32xf32>
    %cst_305 = arith.constant 9.99999974E-6 : f32
    %299 = vector.broadcast %cst_305 : f32 to vector<1x32xf32>
    %300 = arith.addf %297, %299 : vector<1x32xf32>
    %301 = math.rsqrt %300 : vector<1x32xf32>
    %302 = arith.mulf %298, %301 : vector<1x32xf32>
    %303 = vector.broadcast %302 : vector<1x32xf32> to vector<2x32xf32>
    %304 = arith.mulf %292, %303 : vector<2x32xf32>
    %c0_306 = arith.constant 0 : index
    %c0_307 = arith.constant 0 : index
    %305 = vector.load %arg14[%c0_306, %c0_307] : memref<1x32xf32, #tpu.memory_space<vmem>>, vector<1x32xf32>
    %306 = vector.broadcast %305 : vector<1x32xf32> to vector<2x32xf32>
    %307 = arith.addf %304, %306 : vector<2x32xf32>
    %cst_308 = arith.constant 0.000000e+00 : f32
    %308 = vector.broadcast %cst_308 : f32 to vector<2x32xf32>
    %309 = arith.maximumf %307, %308 : vector<2x32xf32>
    %c0_309 = arith.constant 0 : index
    %c0_310 = arith.constant 0 : index
    %310 = vector.load %arg15[%c0_309, %c0_310] : memref<32x512xf32, #tpu.memory_space<vmem>>, vector<32x512xf32>
    %cst_311 = arith.constant dense<0.000000e+00> : vector<2x512xf32>
    %311 = tpu.matmul %309, %310, %cst_311 {dimension_numbers = #tpu.dot_dimension_numbers<[1], [0], [0], [1], [0, 0, 1, 1], [], []>} : vector<2x32xf32>, vector<32x512xf32>, vector<2x512xf32> -> vector<2x512xf32>
    %c0_312 = arith.constant 0 : index
    %c0_313 = arith.constant 0 : index
    %312 = vector.load %arg16[%c0_312, %c0_313] : memref<1x512xf32, #tpu.memory_space<vmem>>, vector<1x512xf32>
    %313 = vector.broadcast %312 : vector<1x512xf32> to vector<2x512xf32>
    %314 = arith.addf %311, %313 : vector<2x512xf32>
    %cst_314 = arith.constant 0.000000e+00 : f32
    %315 = vector.broadcast %cst_314 : f32 to vector<2x512xf32>
    %316 = arith.maximumf %314, %315 : vector<2x512xf32>
    %c0_315 = arith.constant 0 : index
    %c0_316 = arith.constant 0 : index
    %317 = vector.load %arg17[%c0_315, %c0_316] : memref<512x14xf32, #tpu.memory_space<vmem>>, vector<512x14xf32>
    %cst_317 = arith.constant dense<0.000000e+00> : vector<2x14xf32>
    %318 = tpu.matmul %316, %317, %cst_317 {dimension_numbers = #tpu.dot_dimension_numbers<[1], [0], [0], [1], [0, 0, 1, 1], [], []>} : vector<2x512xf32>, vector<512x14xf32>, vector<2x14xf32> -> vector<2x14xf32>
    %c0_318 = arith.constant 0 : index
    %c0_319 = arith.constant 0 : index
    %319 = vector.load %arg18[%c0_318, %c0_319] : memref<1x14xf32, #tpu.memory_space<vmem>>, vector<1x14xf32>
    %320 = vector.broadcast %319 : vector<1x14xf32> to vector<2x14xf32>
    %321 = arith.addf %318, %320 : vector<2x14xf32>
    %c0_320 = arith.constant 0 : index
    %c0_321 = arith.constant 0 : index
    %322 = vector.load %arg19[%c0_320, %c0_321] : memref<2x14xf32, #tpu.memory_space<vmem>>, vector<2x14xf32>
    tpu.vector_store %arg19[%c0_320, %c0_321], %321 {strides = array<i32>} : memref<2x14xf32, #tpu.memory_space<vmem>>, vector<2x14xf32>,
    return
  }
  func.func @transform_0(%arg0: i32) -> (i32, i32) {
    %c0_i32 = arith.constant 0 : i32
    %c0_i32_0 = arith.constant 0 : i32
    %c0_i32_1 = arith.constant 0 : i32
    return %c0_i32, %c0_i32_0 : i32, i32
  }
  func.func @transform_1(%arg0: i32) -> (i32, i32, i32) {
    %c0_i32 = arith.constant 0 : i32
    %c0_i32_0 = arith.constant 0 : i32
    %c0_i32_1 = arith.constant 0 : i32
    %c0_i32_2 = arith.constant 0 : i32
    return %c0_i32, %c0_i32_0, %c0_i32_1 : i32, i32, i32
  }
  func.func @transform_2(%arg0: i32) -> (i32, i32, i32) {
    %c0_i32 = arith.constant 0 : i32
    %c0_i32_0 = arith.constant 0 : i32
    %c0_i32_1 = arith.constant 0 : i32
    %c0_i32_2 = arith.constant 0 : i32
    return %c0_i32, %c0_i32_0, %c0_i32_1 : i32, i32, i32
  }
  func.func @transform_3(%arg0: i32) -> (i32, i32, i32) {
    %c0_i32 = arith.constant 0 : i32
    %c0_i32_0 = arith.constant 0 : i32
    %c0_i32_1 = arith.constant 0 : i32
    %c0_i32_2 = arith.constant 0 : i32
    return %c0_i32, %c0_i32_0, %c0_i32_1 : i32, i32, i32
  }
  func.func @transform_4(%arg0: i32) -> (i32, i32) {
    %c0_i32 = arith.constant 0 : i32
    %c0_i32_0 = arith.constant 0 : i32
    %c0_i32_1 = arith.constant 0 : i32
    return %c0_i32, %c0_i32_0 : i32, i32
  }
  func.func @transform_5(%arg0: i32) -> (i32, i32) {
    %c0_i32 = arith.constant 0 : i32
    %c0_i32_0 = arith.constant 0 : i32
    %c0_i32_1 = arith.constant 0 : i32
    return %c0_i32, %c0_i32_0 : i32, i32
  }
  func.func @transform_6(%arg0: i32) -> (i32, i32) {
    %c0_i32 = arith.constant 0 : i32
    %c0_i32_0 = arith.constant 0 : i32
    %c0_i32_1 = arith.constant 0 : i32
    return %c0_i32, %c0_i32_0 : i32, i32
  }
  func.func @transform_7(%arg0: i32) -> (i32, i32) {
    %c0_i32 = arith.constant 0 : i32
    %c0_i32_0 = arith.constant 0 : i32
    %c0_i32_1 = arith.constant 0 : i32
    return %c0_i32, %c0_i32_0 : i32, i32
  }
  func.func @transform_8(%arg0: i32) -> (i32, i32) {
    %c0_i32 = arith.constant 0 : i32
    %c0_i32_0 = arith.constant 0 : i32
    %c0_i32_1 = arith.constant 0 : i32
    return %c0_i32, %c0_i32_0 : i32, i32
  }
  func.func @transform_9(%arg0: i32) -> (i32, i32) {
    %c0_i32 = arith.constant 0 : i32
    %c0_i32_0 = arith.constant 0 : i32
    %c0_i32_1 = arith.constant 0 : i32
    return %c0_i32, %c0_i32_0 : i32, i32
  }
  func.func @transform_10(%arg0: i32) -> (i32, i32) {
    %c0_i32 = arith.constant 0 : i32
    %c0_i32_0 = arith.constant 0 : i32
    %c0_i32_1 = arith.constant 0 : i32
    return %c0_i32, %c0_i32_0 : i32, i32
  }
  func.func @transform_11(%arg0: i32) -> (i32, i32) {
    %c0_i32 = arith.constant 0 : i32
    %c0_i32_0 = arith.constant 0 : i32
    %c0_i32_1 = arith.constant 0 : i32
    return %c0_i32, %c0_i32_0 : i32, i32
  }
  func.func @transform_12(%arg0: i32) -> (i32, i32) {
    %c0_i32 = arith.constant 0 : i32
    %c0_i32_0 = arith.constant 0 : i32
    %c0_i32_1 = arith.constant 0 : i32
    return %c0_i32, %c0_i32_0 : i32, i32
  }
  func.func @transform_13(%arg0: i32) -> (i32, i32) {
    %c0_i32 = arith.constant 0 : i32
    %c0_i32_0 = arith.constant 0 : i32
    %c0_i32_1 = arith.constant 0 : i32
    return %c0_i32, %c0_i32_0 : i32, i32
  }
  func.func @transform_14(%arg0: i32) -> (i32, i32) {
    %c0_i32 = arith.constant 0 : i32
    %c0_i32_0 = arith.constant 0 : i32
    %c0_i32_1 = arith.constant 0 : i32
    return %c0_i32, %c0_i32_0 : i32, i32
  }
  func.func @transform_15(%arg0: i32) -> (i32, i32) {
    %c0_i32 = arith.constant 0 : i32
    %c0_i32_0 = arith.constant 0 : i32
    %c0_i32_1 = arith.constant 0 : i32
    return %c0_i32, %c0_i32_0 : i32, i32
  }
  func.func @transform_16(%arg0: i32) -> (i32, i32) {
    %c0_i32 = arith.constant 0 : i32
    %c0_i32_0 = arith.constant 0 : i32
    %c0_i32_1 = arith.constant 0 : i32
    return %c0_i32, %c0_i32_0 : i32, i32
  }
  func.func @transform_17(%arg0: i32) -> (i32, i32) {
    %c0_i32 = arith.constant 0 : i32
    %c0_i32_0 = arith.constant 0 : i32
    %c0_i32_1 = arith.constant 0 : i32
    return %c0_i32, %c0_i32_0 : i32, i32
  }
  func.func @transform_18(%arg0: i32) -> (i32, i32) {
    %c0_i32 = arith.constant 0 : i32
    %c0_i32_0 = arith.constant 0 : i32
    %c0_i32_1 = arith.constant 0 : i32
    return %c0_i32, %c0_i32_0 : i32, i32
  }
}

</mosaic_0001>

<llo_original>
// kernel: _lambda_.1
$region0: #{_lambda_.1}
  #allocation0 [shape = 'u32[]', space=smem, size = 0x4, offset = 0x4, fixed_abs, tag = 'smem constant byte address 0x4 - core index']
  #allocation1 [shape = 'u32[72,128]{1,0:T(1,128)}', space=vmem, size = 0x9000, scoped, tag = 'internal scratch']
  #allocation2 [shape = 'f32[28,224]{1,0:T(8,128)}', space=vmem, size = 0x8000, scoped, tag = 'scratch operand']
  #allocation3 [shape = 'f32[10,160]{1,0:T(8,128)}', space=vmem, size = 0x4000, scoped, tag = 'scratch operand']
  #allocation4 [shape = 'f32[2,32]{1,0:T(2,128)}', space=vmem, size = 0x400, scoped, tag = 'scratch operand']
  %s0 = inlined_call_operand.vmem [shape: f32[64,128], index: 0, kind: input, shape index: {}]
  %s1 = inlined_call_operand.vmem [shape: f32[5,128,224], index: 1, kind: input, shape index: {}]
  %s2 = inlined_call_operand.vmem [shape: f32[5,224,160], index: 2, kind: input, shape index: {}]
  %s3 = inlined_call_operand.vmem [shape: f32[5,160,32], index: 3, kind: input, shape index: {}]
  %s4 = inlined_call_operand.vmem [shape: f32[224,16], index: 4, kind: input, shape index: {}]
  %s5 = inlined_call_operand.vmem [shape: f32[16,224], index: 5, kind: input, shape index: {}]
  %s6 = inlined_call_operand.vmem [shape: f32[160,32], index: 6, kind: input, shape index: {}]
  %s7 = inlined_call_operand.vmem [shape: f32[32,160], index: 7, kind: input, shape index: {}]
  %s8 = inlined_call_operand.vmem [shape: f32[1,16], index: 8, kind: input, shape index: {}]
  %s9 = inlined_call_operand.vmem [shape: f32[1,16], index: 9, kind: input, shape index: {}]
  %s10 = inlined_call_operand.vmem [shape: f32[1,32], index: 10, kind: input, shape index: {}]
  %s11 = inlined_call_operand.vmem [shape: f32[1,32], index: 11, kind: input, shape index: {}]
  %s12 = inlined_call_operand.vmem [shape: f32[1,32], index: 12, kind: input, shape index: {}]
  %s13 = inlined_call_operand.vmem [shape: f32[1,32], index: 13, kind: input, shape index: {}]
  %s14 = inlined_call_operand.vmem [shape: f32[32,512], index: 14, kind: input, shape index: {}]
  %s15 = inlined_call_operand.vmem [shape: f32[1,512], index: 15, kind: input, shape index: {}]
  %s16 = inlined_call_operand.vmem [shape: f32[512,14], index: 16, kind: input, shape index: {}]
  %s17 = inlined_call_operand.vmem [shape: f32[1,14], index: 17, kind: input, shape index: {}]
  %s18 = inlined_call_operand.hbm [shape: f32[2,14], index: 18, kind: output, shape index: {}]
  %s19 = sld [smem:[#allocation0]]
  $region82: #{_lambda_.1} parent=0
    _
  %s21 = ssub.s32 1, %s19
  %s22 = scalar_select 0, %s21, %s19
  $region1: #{_lambda_.1} parent=0
    #allocation5 [shape = 'u8[1024]{0}', space=vmem, size = 0x400, scoped, tag = 'output window, operand 0, single buffered']
    #allocation6 [shape = 's32[1]{0}', space=sflag, size = 0x4, scoped, tag = 'scoped memory for _lambda_.1']
    %23 = vsyncpa [#allocation6], 0
    // Predicated region
    $region2: #{_lambda_.1} parent=1 // pred_check
      _
    $region3: #{_lambda_.1} parent=1 // pred_check_branch
      %25 = sbr.rel (0) target = $region5
    $region4: #{_lambda_.1} parent=1 // pred_region
      _
    $region5: #{_lambda_.1} parent=1 // pred_fallthru
      _
    // Predicated region
    $region6: #{_lambda_.1} parent=1 // pred_check
      _
    $region7: #{_lambda_.1} parent=1 // pred_check_branch
      %27 = sbr.rel (0) target = $region9
    $region8: #{_lambda_.1} parent=1 // pred_region
      _
    $region9: #{_lambda_.1} parent=1 // pred_fallthru
      _
    // Predicated region
    $region10: #{_lambda_.1} parent=1 // pred_check
      _
    $region11: #{_lambda_.1} parent=1 // pred_check_branch
      %29 = sbr.rel (0) target = $region13
    $region12: #{_lambda_.1} parent=1 // pred_region
      _
    $region13: #{_lambda_.1} parent=1 // pred_fallthru
      _
    // Predicated region
    $region14: #{_lambda_.1} parent=1 // pred_check
      _
    $region15: #{_lambda_.1} parent=1 // pred_check_branch
      %31 = sbr.rel (0) target = $region17
    $region16: #{_lambda_.1} parent=1 // pred_region
      _
    $region17: #{_lambda_.1} parent=1 // pred_fallthru
      _
    // Predicated region
    $region18: #{_lambda_.1} parent=1 // pred_check
      _
    $region19: #{_lambda_.1} parent=1 // pred_check_branch
      %33 = sbr.rel (0) target = $region21
    $region20: #{_lambda_.1} parent=1 // pred_region
      _
    $region21: #{_lambda_.1} parent=1 // pred_fallthru
      _
    // Predicated region
    $region22: #{_lambda_.1} parent=1 // pred_check
      _
    $region23: #{_lambda_.1} parent=1 // pred_check_branch
      %35 = sbr.rel (0) target = $region25
    $region24: #{_lambda_.1} parent=1 // pred_region
      _
    $region25: #{_lambda_.1} parent=1 // pred_fallthru
      _
    // Predicated region
    $region26: #{_lambda_.1} parent=1 // pred_check
      _
    $region27: #{_lambda_.1} parent=1 // pred_check_branch
      %37 = sbr.rel (0) target = $region29
    $region28: #{_lambda_.1} parent=1 // pred_region
      _
    $region29: #{_lambda_.1} parent=1 // pred_fallthru
      _
    // Predicated region
    $region30: #{_lambda_.1} parent=1 // pred_check
      _
    $region31: #{_lambda_.1} parent=1 // pred_check_branch
      %39 = sbr.rel (0) target = $region33
    $region32: #{_lambda_.1} parent=1 // pred_region
      _
    $region33: #{_lambda_.1} parent=1 // pred_fallthru
      _
    // Predicated region
    $region34: #{_lambda_.1} parent=1 // pred_check
      _
    $region35: #{_lambda_.1} parent=1 // pred_check_branch
      %41 = sbr.rel (0) target = $region37
    $region36: #{_lambda_.1} parent=1 // pred_region
      _
    $region37: #{_lambda_.1} parent=1 // pred_fallthru
      _
    // Predicated region
    $region38: #{_lambda_.1} parent=1 // pred_check
      _
    $region39: #{_lambda_.1} parent=1 // pred_check_branch
      %43 = sbr.rel (0) target = $region41
    $region40: #{_lambda_.1} parent=1 // pred_region
      _
    $region41: #{_lambda_.1} parent=1 // pred_fallthru
      _
    // Predicated region
    $region42: #{_lambda_.1} parent=1 // pred_check
      _
    $region43: #{_lambda_.1} parent=1 // pred_check_branch
      %45 = sbr.rel (0) target = $region45
    $region44: #{_lambda_.1} parent=1 // pred_region
      _
    $region45: #{_lambda_.1} parent=1 // pred_fallthru
      _
    // Predicated region
    $region46: #{_lambda_.1} parent=1 // pred_check
      _
    $region47: #{_lambda_.1} parent=1 // pred_check_branch
      %47 = sbr.rel (0) target = $region49
    $region48: #{_lambda_.1} parent=1 // pred_region
      _
    $region49: #{_lambda_.1} parent=1 // pred_fallthru
      _
    // Predicated region
    $region50: #{_lambda_.1} parent=1 // pred_check
      _
    $region51: #{_lambda_.1} parent=1 // pred_check_branch
      %49 = sbr.rel (0) target = $region53
    $region52: #{_lambda_.1} parent=1 // pred_region
      _
    $region53: #{_lambda_.1} parent=1 // pred_fallthru
      _
    // Predicated region
    $region54: #{_lambda_.1} parent=1 // pred_check
      _
    $region55: #{_lambda_.1} parent=1 // pred_check_branch
      %51 = sbr.rel (0) target = $region57
    $region56: #{_lambda_.1} parent=1 // pred_region
      _
    $region57: #{_lambda_.1} parent=1 // pred_fallthru
      _
    // Predicated region
    $region58: #{_lambda_.1} parent=1 // pred_check
      _
    $region59: #{_lambda_.1} parent=1 // pred_check_branch
      %53 = sbr.rel (0) target = $region61
    $region60: #{_lambda_.1} parent=1 // pred_region
      _
    $region61: #{_lambda_.1} parent=1 // pred_fallthru
      _
    // Predicated region
    $region62: #{_lambda_.1} parent=1 // pred_check
      _
    $region63: #{_lambda_.1} parent=1 // pred_check_branch
      %55 = sbr.rel (0) target = $region65
    $region64: #{_lambda_.1} parent=1 // pred_region
      _
    $region65: #{_lambda_.1} parent=1 // pred_fallthru
      _
    // Predicated region
    $region66: #{_lambda_.1} parent=1 // pred_check
      _
    $region67: #{_lambda_.1} parent=1 // pred_check_branch
      %57 = sbr.rel (0) target = $region69
    $region68: #{_lambda_.1} parent=1 // pred_region
      _
    $region69: #{_lambda_.1} parent=1 // pred_fallthru
      _
    // Predicated region
    $region70: #{_lambda_.1} parent=1 // pred_check
      _
    $region71: #{_lambda_.1} parent=1 // pred_check_branch
      %59 = sbr.rel (0) target = $region73
    $region72: #{_lambda_.1} parent=1 // pred_region
      _
    $region73: #{_lambda_.1} parent=1 // pred_fallthru
      _
    %v60 = vld [vmem:[%s0] sm:$0x7f]
    %v61 = vld [vmem:[%s1] sm:$0xff]
    %v62 = vld [vmem:[%s1 + $0x8] sm:$0xff]
    %v63 = vld [vmem:[%s1 + $0x10] sm:$0xff]
    %v64 = vld [vmem:[%s1 + $0x18] sm:$0xff]
    %v65 = vld [vmem:[%s1 + $0x20] sm:$0xff]
    %v66 = vld [vmem:[%s1 + $0x28] sm:$0xff]
    %v67 = vld [vmem:[%s1 + $0x30] sm:$0xff]
    %v68 = vld [vmem:[%s1 + $0x38] sm:$0xff]
    %v69 = vld [vmem:[%s1 + $0x40] sm:$0xff]
    %v70 = vld [vmem:[%s1 + $0x48] sm:$0xff]
    %v71 = vld [vmem:[%s1 + $0x50] sm:$0xff]
    %v72 = vld [vmem:[%s1 + $0x58] sm:$0xff]
    %v73 = vld [vmem:[%s1 + $0x60] sm:$0xff]
    %v74 = vld [vmem:[%s1 + $0x68] sm:$0xff]
    %v75 = vld [vmem:[%s1 + $0x70] sm:$0xff]
    %v76 = vld [vmem:[%s1 + $0x78] sm:$0xff]
    %v77 = vld [vmem:[%s1 + $0x80] sm:$0xff]
    %v78 = vld [vmem:[%s1 + $0x88] sm:$0xff]
    %v79 = vld [vmem:[%s1 + $0x90] sm:$0xff]
    %v80 = vld [vmem:[%s1 + $0x98] sm:$0xff]
    %v81 = vld [vmem:[%s1 + $0xa0] sm:$0xff]
    %v82 = vld [vmem:[%s1 + $0xa8] sm:$0xff]
    %v83 = vld [vmem:[%s1 + $0xb0] sm:$0xff]
    %v84 = vld [vmem:[%s1 + $0xb8] sm:$0xff]
    %v85 = vld [vmem:[%s1 + $0xc0] sm:$0xff]
    %v86 = vld [vmem:[%s1 + $0xc8] sm:$0xff]
    %v87 = vld [vmem:[%s1 + $0xd0] sm:$0xff]
    %v88 = vld [vmem:[%s1 + $0xd8] sm:$0xff]
    %v89 = vld [vmem:[%s1 + $0xe0] sm:$0xff]
    %v90 = vld [vmem:[%s1 + $0xe8] sm:$0xff]
    %v91 = vld [vmem:[%s1 + $0xf0] sm:$0xff]
    %v92 = vld [vmem:[%s1 + $0xf8] sm:$0xff]
    %v93 = vld [vmem:[%s0 + $0x8] sm:$0x7f]
    %s94 = scalar_lea.vmem %s1, 256
    %v95 = vld [vmem:[%s94] sm:$0xff]
    %v96 = vld [vmem:[%s94 + $0x8] sm:$0xff]
    %v97 = vld [vmem:[%s94 + $0x10] sm:$0xff]
    %v98 = vld [vmem:[%s94 + $0x18] sm:$0xff]
    %v99 = vld [vmem:[%s94 + $0x20] sm:$0xff]
    %v100 = vld [vmem:[%s94 + $0x28] sm:$0xff]
    %v101 = vld [vmem:[%s94 + $0x30] sm:$0xff]
    %v102 = vld [vmem:[%s94 + $0x38] sm:$0xff]
    %v103 = vld [vmem:[%s94 + $0x40] sm:$0xff]
    %v104 = vld [vmem:[%s94 + $0x48] sm:$0xff]
    %v105 = vld [vmem:[%s94 + $0x50] sm:$0xff]
    %v106 = vld [vmem:[%s94 + $0x58] sm:$0xff]
    %v107 = vld [vmem:[%s94 + $0x60] sm:$0xff]
    %v108 = vld [vmem:[%s94 + $0x68] sm:$0xff]
    %v109 = vld [vmem:[%s94 + $0x70] sm:$0xff]
    %v110 = vld [vmem:[%s94 + $0x78] sm:$0xff]
    %v111 = vld [vmem:[%s94 + $0x80] sm:$0xff]
    %v112 = vld [vmem:[%s94 + $0x88] sm:$0xff]
    %v113 = vld [vmem:[%s94 + $0x90] sm:$0xff]
    %v114 = vld [vmem:[%s94 + $0x98] sm:$0xff]
    %v115 = vld [vmem:[%s94 + $0xa0] sm:$0xff]
    %v116 = vld [vmem:[%s94 + $0xa8] sm:$0xff]
    %v117 = vld [vmem:[%s94 + $0xb0] sm:$0xff]
    %v118 = vld [vmem:[%s94 + $0xb8] sm:$0xff]
    %v119 = vld [vmem:[%s94 + $0xc0] sm:$0xff]
    %v120 = vld [vmem:[%s94 + $0xc8] sm:$0xff]
    %v121 = vld [vmem:[%s94 + $0xd0] sm:$0xff]
    %v122 = vld [vmem:[%s94 + $0xd8] sm:$0xff]
    %v123 = vld [vmem:[%s94 + $0xe0] sm:$0xff]
    %v124 = vld [vmem:[%s94 + $0xe8] sm:$0xff]
    %v125 = vld [vmem:[%s94 + $0xf0] sm:$0xff]
    %v126 = vld [vmem:[%s94 + $0xf8] sm:$0xff]
    %127 = vmatpush.msra.mxu0 %v125
    %128 = vmatpush.msra.mxu0 %v123
    %129 = vmatpush.msra.mxu0 %v121
    %130 = vmatpush.msra.mxu0 %v119
    %131 = vmatpush.msra.mxu0 %v117
    %132 = vmatpush.msra.mxu0 %v115
    %133 = vmatpush.msra.mxu0 %v113
    %134 = vmatpush.msra.mxu0 %v111
    %135 = vmatpush.msra.mxu0 %v109
    %136 = vmatpush.msra.mxu0 %v107
    %137 = vmatpush.msra.mxu0 %v105
    %138 = vmatpush.msra.mxu0 %v103
    %139 = vmatpush.msra.mxu0 %v101
    %140 = vmatpush.msra.mxu0 %v99
    %141 = vmatpush.msra.mxu0 %v97
    %142 = vmatpush.msra.mxu0 %v95
    %143 = vmatmul.f32.gmra.mxu0 %v93
    %v144 = vpop.f32.mrf.mxu0
    %v145 = vadd.f32 0.0, %v144
    %146 = vdwg.mxu0
    %147 = vmatpush.msra.mxu0 %v126
    %148 = vmatpush.msra.mxu0 %v124
    %149 = vmatpush.msra.mxu0 %v122
    %150 = vmatpush.msra.mxu0 %v120
    %151 = vmatpush.msra.mxu0 %v118
    %152 = vmatpush.msra.mxu0 %v116
    %153 = vmatpush.msra.mxu0 %v114
    %154 = vmatpush.msra.mxu0 %v112
    %155 = vmatpush.msra.mxu0 %v110
    %156 = vmatpush.msra.mxu0 %v108
    %157 = vmatpush.msra.mxu0 %v106
    %158 = vmatpush.msra.mxu0 %v104
    %159 = vmatpush.msra.mxu0 %v102
    %160 = vmatpush.msra.mxu0 %v100
    %161 = vmatpush.msra.mxu0 %v98
    %162 = vmatpush.msra.mxu0 %v96
    %163 = vmatmul.f32.gmra.mxu0 %v93
    %v164 = vpop.f32.mrf.mxu0
    %v165 = vadd.f32 0.0, %v164
    %166 = vdwg.mxu0
    %167 = vmatpush.msra.mxu0 %v91
    %168 = vmatpush.msra.mxu0 %v89
    %169 = vmatpush.msra.mxu0 %v87
    %170 = vmatpush.msra.mxu0 %v85
    %171 = vmatpush.msra.mxu0 %v83
    %172 = vmatpush.msra.mxu0 %v81
    %173 = vmatpush.msra.mxu0 %v79
    %174 = vmatpush.msra.mxu0 %v77
    %175 = vmatpush.msra.mxu0 %v75
    %176 = vmatpush.msra.mxu0 %v73
    %177 = vmatpush.msra.mxu0 %v71
    %178 = vmatpush.msra.mxu0 %v69
    %179 = vmatpush.msra.mxu0 %v67
    %180 = vmatpush.msra.mxu0 %v65
    %181 = vmatpush.msra.mxu0 %v63
    %182 = vmatpush.msra.mxu0 %v61
    %183 = vmatmul.f32.gmra.mxu0 %v60
    %v184 = vpop.f32.mrf.mxu0
    %v185 = vadd.f32 %v145, %v184
    %186 = vdwg.mxu0
    %187 = vmatpush.msra.mxu0 %v92
    %188 = vmatpush.msra.mxu0 %v90
    %189 = vmatpush.msra.mxu0 %v88
    %190 = vmatpush.msra.mxu0 %v86
    %191 = vmatpush.msra.mxu0 %v84
    %192 = vmatpush.msra.mxu0 %v82
    %193 = vmatpush.msra.mxu0 %v80
    %194 = vmatpush.msra.mxu0 %v78
    %195 = vmatpush.msra.mxu0 %v76
    %196 = vmatpush.msra.mxu0 %v74
    %197 = vmatpush.msra.mxu0 %v72
    %198 = vmatpush.msra.mxu0 %v70
    %199 = vmatpush.msra.mxu0 %v68
    %200 = vmatpush.msra.mxu0 %v66
    %201 = vmatpush.msra.mxu0 %v64
    %202 = vmatpush.msra.mxu0 %v62
    %203 = vmatmul.f32.gmra.mxu0 %v60
    %v204 = vpop.f32.mrf.mxu0
    %v205 = vadd.f32 %v165, %v204
    %206 = vdwg.mxu0
    %v207 = vld [vmem:[%s0 + $0x10] sm:$0x7f]
    %s208 = scalar_lea.vmem %s1, 512
    %v209 = vld [vmem:[%s208] sm:$0xff]
    %v210 = vld [vmem:[%s208 + $0x8] sm:$0xff]
    %v211 = vld [vmem:[%s208 + $0x10] sm:$0xff]
    %v212 = vld [vmem:[%s208 + $0x18] sm:$0xff]
    %v213 = vld [vmem:[%s208 + $0x20] sm:$0xff]
    %v214 = vld [vmem:[%s208 + $0x28] sm:$0xff]
    %v215 = vld [vmem:[%s208 + $0x30] sm:$0xff]
    %v216 = vld [vmem:[%s208 + $0x38] sm:$0xff]
    %v217 = vld [vmem:[%s208 + $0x40] sm:$0xff]
    %v218 = vld [vmem:[%s208 + $0x48] sm:$0xff]
    %v219 = vld [vmem:[%s208 + $0x50] sm:$0xff]
    %v220 = vld [vmem:[%s208 + $0x58] sm:$0xff]
    %v221 = vld [vmem:[%s208 + $0x60] sm:$0xff]
    %v222 = vld [vmem:[%s208 + $0x68] sm:$0xff]
    %v223 = vld [vmem:[%s208 + $0x70] sm:$0xff]
    %v224 = vld [vmem:[%s208 + $0x78] sm:$0xff]
    %v225 = vld [vmem:[%s208 + $0x80] sm:$0xff]
    %v226 = vld [vmem:[%s208 + $0x88] sm:$0xff]
    %v227 = vld [vmem:[%s208 + $0x90] sm:$0xff]
    %v228 = vld [vmem:[%s208 + $0x98] sm:$0xff]
    %v229 = vld [vmem:[%s208 + $0xa0] sm:$0xff]
    %v230 = vld [vmem:[%s208 + $0xa8] sm:$0xff]
    %v231 = vld [vmem:[%s208 + $0xb0] sm:$0xff]
    %v232 = vld [vmem:[%s208 + $0xb8] sm:$0xff]
    %v233 = vld [vmem:[%s208 + $0xc0] sm:$0xff]
    %v234 = vld [vmem:[%s208 + $0xc8] sm:$0xff]
    %v235 = vld [vmem:[%s208 + $0xd0] sm:$0xff]
    %v236 = vld [vmem:[%s208 + $0xd8] sm:$0xff]
    %v237 = vld [vmem:[%s208 + $0xe0] sm:$0xff]
    %v238 = vld [vmem:[%s208 + $0xe8] sm:$0xff]
    %v239 = vld [vmem:[%s208 + $0xf0] sm:$0xff]
    %v240 = vld [vmem:[%s208 + $0xf8] sm:$0xff]
    %241 = vmatpush.msra.mxu0 %v239
    %242 = vmatpush.msra.mxu0 %v237
    %243 = vmatpush.msra.mxu0 %v235
    %244 = vmatpush.msra.mxu0 %v233
    %245 = vmatpush.msra.mxu0 %v231
    %246 = vmatpush.msra.mxu0 %v229
    %247 = vmatpush.msra.mxu0 %v227
    %248 = vmatpush.msra.mxu0 %v225
    %249 = vmatpush.msra.mxu0 %v223
    %250 = vmatpush.msra.mxu0 %v221
    %251 = vmatpush.msra.mxu0 %v219
    %252 = vmatpush.msra.mxu0 %v217
    %253 = vmatpush.msra.mxu0 %v215
    %254 = vmatpush.msra.mxu0 %v213
    %255 = vmatpush.msra.mxu0 %v211
    %256 = vmatpush.msra.mxu0 %v209
    %257 = vmatmul.f32.gmra.mxu0 %v207
    %v258 = vpop.f32.mrf.mxu0
    %v259 = vadd.f32 0.0, %v258
    %260 = vdwg.mxu0
    %261 = vmatpush.msra.mxu0 %v240
    %262 = vmatpush.msra.mxu0 %v238
    %263 = vmatpush.msra.mxu0 %v236
    %264 = vmatpush.msra.mxu0 %v234
    %265 = vmatpush.msra.mxu0 %v232
    %266 = vmatpush.msra.mxu0 %v230
    %267 = vmatpush.msra.mxu0 %v228
    %268 = vmatpush.msra.mxu0 %v226
    %269 = vmatpush.msra.mxu0 %v224
    %270 = vmatpush.msra.mxu0 %v222
    %271 = vmatpush.msra.mxu0 %v220
    %272 = vmatpush.msra.mxu0 %v218
    %273 = vmatpush.msra.mxu0 %v216
    %274 = vmatpush.msra.mxu0 %v214
    %275 = vmatpush.msra.mxu0 %v212
    %276 = vmatpush.msra.mxu0 %v210
    %277 = vmatmul.f32.gmra.mxu0 %v207
    %v278 = vpop.f32.mrf.mxu0
    %v279 = vadd.f32 0.0, %v278
    %280 = vdwg.mxu0
    %v281 = vadd.f32 %v185, %v259
    %v282 = vadd.f32 %v205, %v279
    %v283 = vld [vmem:[%s0 + $0x18] sm:$0x7f]
    %s284 = scalar_lea.vmem %s1, 768
    %v285 = vld [vmem:[%s284] sm:$0xff]
    %v286 = vld [vmem:[%s284 + $0x8] sm:$0xff]
    %v287 = vld [vmem:[%s284 + $0x10] sm:$0xff]
    %v288 = vld [vmem:[%s284 + $0x18] sm:$0xff]
    %v289 = vld [vmem:[%s284 + $0x20] sm:$0xff]
    %v290 = vld [vmem:[%s284 + $0x28] sm:$0xff]
    %v291 = vld [vmem:[%s284 + $0x30] sm:$0xff]
    %v292 = vld [vmem:[%s284 + $0x38] sm:$0xff]
    %v293 = vld [vmem:[%s284 + $0x40] sm:$0xff]
    %v294 = vld [vmem:[%s284 + $0x48] sm:$0xff]
    %v295 = vld [vmem:[%s284 + $0x50] sm:$0xff]
    %v296 = vld [vmem:[%s284 + $0x58] sm:$0xff]
    %v297 = vld [vmem:[%s284 + $0x60] sm:$0xff]
    %v298 = vld [vmem:[%s284 + $0x68] sm:$0xff]
    %v299 = vld [vmem:[%s284 + $0x70] sm:$0xff]
    %v300 = vld [vmem:[%s284 + $0x78] sm:$0xff]
    %v301 = vld [vmem:[%s284 + $0x80] sm:$0xff]
    %v302 = vld [vmem:[%s284 + $0x88] sm:$0xff]
    %v303 = vld [vmem:[%s284 + $0x90] sm:$0xff]
    %v304 = vld [vmem:[%s284 + $0x98] sm:$0xff]
    %v305 = vld [vmem:[%s284 + $0xa0] sm:$0xff]
    %v306 = vld [vmem:[%s284 + $0xa8] sm:$0xff]
    %v307 = vld [vmem:[%s284 + $0xb0] sm:$0xff]
    %v308 = vld [vmem:[%s284 + $0xb8] sm:$0xff]
    %v309 = vld [vmem:[%s284 + $0xc0] sm:$0xff]
    %v310 = vld [vmem:[%s284 + $0xc8] sm:$0xff]
    %v311 = vld [vmem:[%s284 + $0xd0] sm:$0xff]
    %v312 = vld [vmem:[%s284 + $0xd8] sm:$0xff]
    %v313 = vld [vmem:[%s284 + $0xe0] sm:$0xff]
    %v314 = vld [vmem:[%s284 + $0xe8] sm:$0xff]
    %v315 = vld [vmem:[%s284 + $0xf0] sm:$0xff]
    %v316 = vld [vmem:[%s284 + $0xf8] sm:$0xff]
    %317 = vmatpush.msra.mxu0 %v315
    %318 = vmatpush.msra.mxu0 %v313
    %319 = vmatpush.msra.mxu0 %v311
    %320 = vmatpush.msra.mxu0 %v309
    %321 = vmatpush.msra.mxu0 %v307
    %322 = vmatpush.msra.mxu0 %v305
    %323 = vmatpush.msra.mxu0 %v303
    %324 = vmatpush.msra.mxu0 %v301
    %325 = vmatpush.msra.mxu0 %v299
    %326 = vmatpush.msra.mxu0 %v297
    %327 = vmatpush.msra.mxu0 %v295
    %328 = vmatpush.msra.mxu0 %v293
    %329 = vmatpush.msra.mxu0 %v291
    %330 = vmatpush.msra.mxu0 %v289
    %331 = vmatpush.msra.mxu0 %v287
    %332 = vmatpush.msra.mxu0 %v285
    %333 = vmatmul.f32.gmra.mxu0 %v283
    %v334 = vpop.f32.mrf.mxu0
    %v335 = vadd.f32 0.0, %v334
    %336 = vdwg.mxu0
    %337 = vmatpush.msra.mxu0 %v316
    %338 = vmatpush.msra.mxu0 %v314
    %339 = vmatpush.msra.mxu0 %v312
    %340 = vmatpush.msra.mxu0 %v310
    %341 = vmatpush.msra.mxu0 %v308
    %342 = vmatpush.msra.mxu0 %v306
    %343 = vmatpush.msra.mxu0 %v304
    %344 = vmatpush.msra.mxu0 %v302
    %345 = vmatpush.msra.mxu0 %v300
    %346 = vmatpush.msra.mxu0 %v298
    %347 = vmatpush.msra.mxu0 %v296
    %348 = vmatpush.msra.mxu0 %v294
    %349 = vmatpush.msra.mxu0 %v292
    %350 = vmatpush.msra.mxu0 %v290
    %351 = vmatpush.msra.mxu0 %v288
    %352 = vmatpush.msra.mxu0 %v286
    %353 = vmatmul.f32.gmra.mxu0 %v283
    %v354 = vpop.f32.mrf.mxu0
    %v355 = vadd.f32 0.0, %v354
    %356 = vdwg.mxu0
    %v357 = vadd.f32 %v281, %v335
    %v358 = vadd.f32 %v282, %v355
    %v359 = vld [vmem:[%s0 + $0x1] sm:$0x7f]
    %s360 = scalar_lea.vmem %s1, 1024
    %v361 = vld [vmem:[%s360] sm:$0xff]
    %v362 = vld [vmem:[%s360 + $0x8] sm:$0xff]
    %v363 = vld [vmem:[%s360 + $0x10] sm:$0xff]
    %v364 = vld [vmem:[%s360 + $0x18] sm:$0xff]
    %v365 = vld [vmem:[%s360 + $0x20] sm:$0xff]
    %v366 = vld [vmem:[%s360 + $0x28] sm:$0xff]
    %v367 = vld [vmem:[%s360 + $0x30] sm:$0xff]
    %v368 = vld [vmem:[%s360 + $0x38] sm:$0xff]
    %v369 = vld [vmem:[%s360 + $0x40] sm:$0xff]
    %v370 = vld [vmem:[%s360 + $0x48] sm:$0xff]
    %v371 = vld [vmem:[%s360 + $0x50] sm:$0xff]
    %v372 = vld [vmem:[%s360 + $0x58] sm:$0xff]
    %v373 = vld [vmem:[%s360 + $0x60] sm:$0xff]
    %v374 = vld [vmem:[%s360 + $0x68] sm:$0xff]
    %v375 = vld [vmem:[%s360 + $0x70] sm:$0xff]
    %v376 = vld [vmem:[%s360 + $0x78] sm:$0xff]
    %v377 = vld [vmem:[%s360 + $0x80] sm:$0xff]
    %v378 = vld [vmem:[%s360 + $0x88] sm:$0xff]
    %v379 = vld [vmem:[%s360 + $0x90] sm:$0xff]
    %v380 = vld [vmem:[%s360 + $0x98] sm:$0xff]
    %v381 = vld [vmem:[%s360 + $0xa0] sm:$0xff]
    %v382 = vld [vmem:[%s360 + $0xa8] sm:$0xff]
    %v383 = vld [vmem:[%s360 + $0xb0] sm:$0xff]
    %v384 = vld [vmem:[%s360 + $0xb8] sm:$0xff]
    %v385 = vld [vmem:[%s360 + $0xc0] sm:$0xff]
    %v386 = vld [vmem:[%s360 + $0xc8] sm:$0xff]
    %v387 = vld [vmem:[%s360 + $0xd0] sm:$0xff]
    %v388 = vld [vmem:[%s360 + $0xd8] sm:$0xff]
    %v389 = vld [vmem:[%s360 + $0xe0] sm:$0xff]
    %v390 = vld [vmem:[%s360 + $0xe8] sm:$0xff]
    %v391 = vld [vmem:[%s360 + $0xf0] sm:$0xff]
    %v392 = vld [vmem:[%s360 + $0xf8] sm:$0xff]
    %393 = vmatpush.msra.mxu0 %v391
    %394 = vmatpush.msra.mxu0 %v389
    %395 = vmatpush.msra.mxu0 %v387
    %396 = vmatpush.msra.mxu0 %v385
    %397 = vmatpush.msra.mxu0 %v383
    %398 = vmatpush.msra.mxu0 %v381
    %399 = vmatpush.msra.mxu0 %v379
    %400 = vmatpush.msra.mxu0 %v377
    %401 = vmatpush.msra.mxu0 %v375
    %402 = vmatpush.msra.mxu0 %v373
    %403 = vmatpush.msra.mxu0 %v371
    %404 = vmatpush.msra.mxu0 %v369
    %405 = vmatpush.msra.mxu0 %v367
    %406 = vmatpush.msra.mxu0 %v365
    %407 = vmatpush.msra.mxu0 %v363
    %408 = vmatpush.msra.mxu0 %v361
    %409 = vmatmul.f32.gmra.mxu0 %v359
    %v410 = vpop.f32.mrf.mxu0
    %v411 = vadd.f32 0.0, %v410
    %412 = vdwg.mxu0
    %413 = vmatpush.msra.mxu0 %v392
    %414 = vmatpush.msra.mxu0 %v390
    %415 = vmatpush.msra.mxu0 %v388
    %416 = vmatpush.msra.mxu0 %v386
    %417 = vmatpush.msra.mxu0 %v384
    %418 = vmatpush.msra.mxu0 %v382
    %419 = vmatpush.msra.mxu0 %v380
    %420 = vmatpush.msra.mxu0 %v378
    %421 = vmatpush.msra.mxu0 %v376
    %422 = vmatpush.msra.mxu0 %v374
    %423 = vmatpush.msra.mxu0 %v372
    %424 = vmatpush.msra.mxu0 %v370
    %425 = vmatpush.msra.mxu0 %v368
    %426 = vmatpush.msra.mxu0 %v366
    %427 = vmatpush.msra.mxu0 %v364
    %428 = vmatpush.msra.mxu0 %v362
    %429 = vmatmul.f32.gmra.mxu0 %v359
    %v430 = vpop.f32.mrf.mxu0
    %v431 = vadd.f32 0.0, %v430
    %432 = vdwg.mxu0
    %v433 = vadd.f32 %v357, %v411
    %v434 = vadd.f32 %v358, %v431
    %435 = vst [vmem:[#allocation2] sm:$0x7f] %v433
    %vm436 = vcmask 784384
    %437 = vst.msk [vmem:[#allocation2 + $0x8] sm:$0x7f] %vm436, %v434
    %v438 = vld [vmem:[%s0 + $0x10] sm:$0x7f]
    %v439 = vld [vmem:[%s1] sm:$0xff]
    %v440 = vld [vmem:[%s1 + $0x8] sm:$0xff]
    %v441 = vld [vmem:[%s1 + $0x10] sm:$0xff]
    %v442 = vld [vmem:[%s1 + $0x18] sm:$0xff]
    %v443 = vld [vmem:[%s1 + $0x20] sm:$0xff]
    %v444 = vld [vmem:[%s1 + $0x28] sm:$0xff]
    %v445 = vld [vmem:[%s1 + $0x30] sm:$0xff]
    %v446 = vld [vmem:[%s1 + $0x38] sm:$0xff]
    %v447 = vld [vmem:[%s1 + $0x40] sm:$0xff]
    %v448 = vld [vmem:[%s1 + $0x48] sm:$0xff]
    %v449 = vld [vmem:[%s1 + $0x50] sm:$0xff]
    %v450 = vld [vmem:[%s1 + $0x58] sm:$0xff]
    %v451 = vld [vmem:[%s1 + $0x60] sm:$0xff]
    %v452 = vld [vmem:[%s1 + $0x68] sm:$0xff]
    %v453 = vld [vmem:[%s1 + $0x70] sm:$0xff]
    %v454 = vld [vmem:[%s1 + $0x78] sm:$0xff]
    %v455 = vld [vmem:[%s1 + $0x80] sm:$0xff]
    %v456 = vld [vmem:[%s1 + $0x88] sm:$0xff]
    %v457 = vld [vmem:[%s1 + $0x90] sm:$0xff]
    %v458 = vld [vmem:[%s1 + $0x98] sm:$0xff]
    %v459 = vld [vmem:[%s1 + $0xa0] sm:$0xff]
    %v460 = vld [vmem:[%s1 + $0xa8] sm:$0xff]
    %v461 = vld [vmem:[%s1 + $0xb0] sm:$0xff]
    %v462 = vld [vmem:[%s1 + $0xb8] sm:$0xff]
    %v463 = vld [vmem:[%s1 + $0xc0] sm:$0xff]
    %v464 = vld [vmem:[%s1 + $0xc8] sm:$0xff]
    %v465 = vld [vmem:[%s1 + $0xd0] sm:$0xff]
    %v466 = vld [vmem:[%s1 + $0xd8] sm:$0xff]
    %v467 = vld [vmem:[%s1 + $0xe0] sm:$0xff]
    %v468 = vld [vmem:[%s1 + $0xe8] sm:$0xff]
    %v469 = vld [vmem:[%s1 + $0xf0] sm:$0xff]
    %v470 = vld [vmem:[%s1 + $0xf8] sm:$0xff]
    %v471 = vld [vmem:[%s0 + $0x18] sm:$0x7f]
    %v472 = vld [vmem:[%s94] sm:$0xff]
    %v473 = vld [vmem:[%s94 + $0x8] sm:$0xff]
    %v474 = vld [vmem:[%s94 + $0x10] sm:$0xff]
    %v475 = vld [vmem:[%s94 + $0x18] sm:$0xff]
    %v476 = vld [vmem:[%s94 + $0x20] sm:$0xff]
    %v477 = vld [vmem:[%s94 + $0x28] sm:$0xff]
    %v478 = vld [vmem:[%s94 + $0x30] sm:$0xff]
    %v479 = vld [vmem:[%s94 + $0x38] sm:$0xff]
    %v480 = vld [vmem:[%s94 + $0x40] sm:$0xff]
    %v481 = vld [vmem:[%s94 + $0x48] sm:$0xff]
    %v482 = vld [vmem:[%s94 + $0x50] sm:$0xff]
    %v483 = vld [vmem:[%s94 + $0x58] sm:$0xff]
    %v484 = vld [vmem:[%s94 + $0x60] sm:$0xff]
    %v485 = vld [vmem:[%s94 + $0x68] sm:$0xff]
    %v486 = vld [vmem:[%s94 + $0x70] sm:$0xff]
    %v487 = vld [vmem:[%s94 + $0x78] sm:$0xff]
    %v488 = vld [vmem:[%s94 + $0x80] sm:$0xff]
    %v489 = vld [vmem:[%s94 + $0x88] sm:$0xff]
    %v490 = vld [vmem:[%s94 + $0x90] sm:$0xff]
    %v491 = vld [vmem:[%s94 + $0x98] sm:$0xff]
    %v492 = vld [vmem:[%s94 + $0xa0] sm:$0xff]
    %v493 = vld [vmem:[%s94 + $0xa8] sm:$0xff]
    %v494 = vld [vmem:[%s94 + $0xb0] sm:$0xff]
    %v495 = vld [vmem:[%s94 + $0xb8] sm:$0xff]
    %v496 = vld [vmem:[%s94 + $0xc0] sm:$0xff]
    %v497 = vld [vmem:[%s94 + $0xc8] sm:$0xff]
    %v498 = vld [vmem:[%s94 + $0xd0] sm:$0xff]
    %v499 = vld [vmem:[%s94 + $0xd8] sm:$0xff]
    %v500 = vld [vmem:[%s94 + $0xe0] sm:$0xff]
    %v501 = vld [vmem:[%s94 + $0xe8] sm:$0xff]
    %v502 = vld [vmem:[%s94 + $0xf0] sm:$0xff]
    %v503 = vld [vmem:[%s94 + $0xf8] sm:$0xff]
    %504 = vmatpush.msra.mxu0 %v502
    %505 = vmatpush.msra.mxu0 %v500
    %506 = vmatpush.msra.mxu0 %v498
    %507 = vmatpush.msra.mxu0 %v496
    %508 = vmatpush.msra.mxu0 %v494
    %509 = vmatpush.msra.mxu0 %v492
    %510 = vmatpush.msra.mxu0 %v490
    %511 = vmatpush.msra.mxu0 %v488
    %512 = vmatpush.msra.mxu0 %v486
    %513 = vmatpush.msra.mxu0 %v484
    %514 = vmatpush.msra.mxu0 %v482
    %515 = vmatpush.msra.mxu0 %v480
    %516 = vmatpush.msra.mxu0 %v478
    %517 = vmatpush.msra.mxu0 %v476
    %518 = vmatpush.msra.mxu0 %v474
    %519 = vmatpush.msra.mxu0 %v472
    %520 = vmatmul.f32.gmra.mxu0 %v471
    %v521 = vpop.f32.mrf.mxu0
    %v522 = vadd.f32 0.0, %v521
    %523 = vdwg.mxu0
    %524 = vmatpush.msra.mxu0 %v503
    %525 = vmatpush.msra.mxu0 %v501
    %526 = vmatpush.msra.mxu0 %v499
    %527 = vmatpush.msra.mxu0 %v497
    %528 = vmatpush.msra.mxu0 %v495
    %529 = vmatpush.msra.mxu0 %v493
    %530 = vmatpush.msra.mxu0 %v491
    %531 = vmatpush.msra.mxu0 %v489
    %532 = vmatpush.msra.mxu0 %v487
    %533 = vmatpush.msra.mxu0 %v485
    %534 = vmatpush.msra.mxu0 %v483
    %535 = vmatpush.msra.mxu0 %v481
    %536 = vmatpush.msra.mxu0 %v479
    %537 = vmatpush.msra.mxu0 %v477
    %538 = vmatpush.msra.mxu0 %v475
    %539 = vmatpush.msra.mxu0 %v473
    %540 = vmatmul.f32.gmra.mxu0 %v471
    %v541 = vpop.f32.mrf.mxu0
    %v542 = vadd.f32 0.0, %v541
    %543 = vdwg.mxu0
    %544 = vmatpush.msra.mxu0 %v469
    %545 = vmatpush.msra.mxu0 %v467
    %546 = vmatpush.msra.mxu0 %v465
    %547 = vmatpush.msra.mxu0 %v463
    %548 = vmatpush.msra.mxu0 %v461
    %549 = vmatpush.msra.mxu0 %v459
    %550 = vmatpush.msra.mxu0 %v457
    %551 = vmatpush.msra.mxu0 %v455
    %552 = vmatpush.msra.mxu0 %v453
    %553 = vmatpush.msra.mxu0 %v451
    %554 = vmatpush.msra.mxu0 %v449
    %555 = vmatpush.msra.mxu0 %v447
    %556 = vmatpush.msra.mxu0 %v445
    %557 = vmatpush.msra.mxu0 %v443
    %558 = vmatpush.msra.mxu0 %v441
    %559 = vmatpush.msra.mxu0 %v439
    %560 = vmatmul.f32.gmra.mxu0 %v438
    %v561 = vpop.f32.mrf.mxu0
    %v562 = vadd.f32 %v522, %v561
    %563 = vdwg.mxu0
    %564 = vmatpush.msra.mxu0 %v470
    %565 = vmatpush.msra.mxu0 %v468
    %566 = vmatpush.msra.mxu0 %v466
    %567 = vmatpush.msra.mxu0 %v464
    %568 = vmatpush.msra.mxu0 %v462
    %569 = vmatpush.msra.mxu0 %v460
    %570 = vmatpush.msra.mxu0 %v458
    %571 = vmatpush.msra.mxu0 %v456
    %572 = vmatpush.msra.mxu0 %v454
    %573 = vmatpush.msra.mxu0 %v452
    %574 = vmatpush.msra.mxu0 %v450
    %575 = vmatpush.msra.mxu0 %v448
    %576 = vmatpush.msra.mxu0 %v446
    %577 = vmatpush.msra.mxu0 %v444
    %578 = vmatpush.msra.mxu0 %v442
    %579 = vmatpush.msra.mxu0 %v440
    %580 = vmatmul.f32.gmra.mxu0 %v438
    %v581 = vpop.f32.mrf.mxu0
    %v582 = vadd.f32 %v542, %v581
    %583 = vdwg.mxu0
    %v584 = vld [vmem:[%s0 + $0x1] sm:$0x7f]
    %v585 = vld [vmem:[%s208] sm:$0xff]
    %v586 = vld [vmem:[%s208 + $0x8] sm:$0xff]
    %v587 = vld [vmem:[%s208 + $0x10] sm:$0xff]
    %v588 = vld [vmem:[%s208 + $0x18] sm:$0xff]
    %v589 = vld [vmem:[%s208 + $0x20] sm:$0xff]
    %v590 = vld [vmem:[%s208 + $0x28] sm:$0xff]
    %v591 = vld [vmem:[%s208 + $0x30] sm:$0xff]
    %v592 = vld [vmem:[%s208 + $0x38] sm:$0xff]
    %v593 = vld [vmem:[%s208 + $0x40] sm:$0xff]
    %v594 = vld [vmem:[%s208 + $0x48] sm:$0xff]
    %v595 = vld [vmem:[%s208 + $0x50] sm:$0xff]
    %v596 = vld [vmem:[%s208 + $0x58] sm:$0xff]
    %v597 = vld [vmem:[%s208 + $0x60] sm:$0xff]
    %v598 = vld [vmem:[%s208 + $0x68] sm:$0xff]
    %v599 = vld [vmem:[%s208 + $0x70] sm:$0xff]
    %v600 = vld [vmem:[%s208 + $0x78] sm:$0xff]
    %v601 = vld [vmem:[%s208 + $0x80] sm:$0xff]
    %v602 = vld [vmem:[%s208 + $0x88] sm:$0xff]
    %v603 = vld [vmem:[%s208 + $0x90] sm:$0xff]
    %v604 = vld [vmem:[%s208 + $0x98] sm:$0xff]
    %v605 = vld [vmem:[%s208 + $0xa0] sm:$0xff]
    %v606 = vld [vmem:[%s208 + $0xa8] sm:$0xff]
    %v607 = vld [vmem:[%s208 + $0xb0] sm:$0xff]
    %v608 = vld [vmem:[%s208 + $0xb8] sm:$0xff]
    %v609 = vld [vmem:[%s208 + $0xc0] sm:$0xff]
    %v610 = vld [vmem:[%s208 + $0xc8] sm:$0xff]
    %v611 = vld [vmem:[%s208 + $0xd0] sm:$0xff]
    %v612 = vld [vmem:[%s208 + $0xd8] sm:$0xff]
    %v613 = vld [vmem:[%s208 + $0xe0] sm:$0xff]
    %v614 = vld [vmem:[%s208 + $0xe8] sm:$0xff]
    %v615 = vld [vmem:[%s208 + $0xf0] sm:$0xff]
    %v616 = vld [vmem:[%s208 + $0xf8] sm:$0xff]
    %617 = vmatpush.msra.mxu0 %v615
    %618 = vmatpush.msra.mxu0 %v613
    %619 = vmatpush.msra.mxu0 %v611
    %620 = vmatpush.msra.mxu0 %v609
    %621 = vmatpush.msra.mxu0 %v607
    %622 = vmatpush.msra.mxu0 %v605
    %623 = vmatpush.msra.mxu0 %v603
    %624 = vmatpush.msra.mxu0 %v601
    %625 = vmatpush.msra.mxu0 %v599
    %626 = vmatpush.msra.mxu0 %v597
    %627 = vmatpush.msra.mxu0 %v595
    %628 = vmatpush.msra.mxu0 %v593
    %629 = vmatpush.msra.mxu0 %v591
    %630 = vmatpush.msra.mxu0 %v589
    %631 = vmatpush.msra.mxu0 %v587
    %632 = vmatpush.msra.mxu0 %v585
    %633 = vmatmul.f32.gmra.mxu0 %v584
    %v634 = vpop.f32.mrf.mxu0
    %v635 = vadd.f32 0.0, %v634
    %636 = vdwg.mxu0
    %637 = vmatpush.msra.mxu0 %v616
    %638 = vmatpush.msra.mxu0 %v614
    %639 = vmatpush.msra.mxu0 %v612
    %640 = vmatpush.msra.mxu0 %v610
    %641 = vmatpush.msra.mxu0 %v608
    %642 = vmatpush.msra.mxu0 %v606
    %643 = vmatpush.msra.mxu0 %v604
    %644 = vmatpush.msra.mxu0 %v602
    %645 = vmatpush.msra.mxu0 %v600
    %646 = vmatpush.msra.mxu0 %v598
    %647 = vmatpush.msra.mxu0 %v596
    %648 = vmatpush.msra.mxu0 %v594
    %649 = vmatpush.msra.mxu0 %v592
    %650 = vmatpush.msra.mxu0 %v590
    %651 = vmatpush.msra.mxu0 %v588
    %652 = vmatpush.msra.mxu0 %v586
    %653 = vmatmul.f32.gmra.mxu0 %v584
    %v654 = vpop.f32.mrf.mxu0
    %v655 = vadd.f32 0.0, %v654
    %656 = vdwg.mxu0
    %v657 = vadd.f32 %v562, %v635
    %v658 = vadd.f32 %v582, %v655
    %v659 = vld [vmem:[%s0 + $0x9] sm:$0x7f]
    %v660 = vld [vmem:[%s284] sm:$0xff]
    %v661 = vld [vmem:[%s284 + $0x8] sm:$0xff]
    %v662 = vld [vmem:[%s284 + $0x10] sm:$0xff]
    %v663 = vld [vmem:[%s284 + $0x18] sm:$0xff]
    %v664 = vld [vmem:[%s284 + $0x20] sm:$0xff]
    %v665 = vld [vmem:[%s284 + $0x28] sm:$0xff]
    %v666 = vld [vmem:[%s284 + $0x30] sm:$0xff]
    %v667 = vld [vmem:[%s284 + $0x38] sm:$0xff]
    %v668 = vld [vmem:[%s284 + $0x40] sm:$0xff]
    %v669 = vld [vmem:[%s284 + $0x48] sm:$0xff]
    %v670 = vld [vmem:[%s284 + $0x50] sm:$0xff]
    %v671 = vld [vmem:[%s284 + $0x58] sm:$0xff]
    %v672 = vld [vmem:[%s284 + $0x60] sm:$0xff]
    %v673 = vld [vmem:[%s284 + $0x68] sm:$0xff]
    %v674 = vld [vmem:[%s284 + $0x70] sm:$0xff]
    %v675 = vld [vmem:[%s284 + $0x78] sm:$0xff]
    %v676 = vld [vmem:[%s284 + $0x80] sm:$0xff]
    %v677 = vld [vmem:[%s284 + $0x88] sm:$0xff]
    %v678 = vld [vmem:[%s284 + $0x90] sm:$0xff]
    %v679 = vld [vmem:[%s284 + $0x98] sm:$0xff]
    %v680 = vld [vmem:[%s284 + $0xa0] sm:$0xff]
    %v681 = vld [vmem:[%s284 + $0xa8] sm:$0xff]
    %v682 = vld [vmem:[%s284 + $0xb0] sm:$0xff]
    %v683 = vld [vmem:[%s284 + $0xb8] sm:$0xff]
    %v684 = vld [vmem:[%s284 + $0xc0] sm:$0xff]
    %v685 = vld [vmem:[%s284 + $0xc8] sm:$0xff]
    %v686 = vld [vmem:[%s284 + $0xd0] sm:$0xff]
    %v687 = vld [vmem:[%s284 + $0xd8] sm:$0xff]
    %v688 = vld [vmem:[%s284 + $0xe0] sm:$0xff]
    %v689 = vld [vmem:[%s284 + $0xe8] sm:$0xff]
    %v690 = vld [vmem:[%s284 + $0xf0] sm:$0xff]
    %v691 = vld [vmem:[%s284 + $0xf8] sm:$0xff]
    %692 = vmatpush.msra.mxu0 %v690
    %693 = vmatpush.msra.mxu0 %v688
    %694 = vmatpush.msra.mxu0 %v686
    %695 = vmatpush.msra.mxu0 %v684
    %696 = vmatpush.msra.mxu0 %v682
    %697 = vmatpush.msra.mxu0 %v680
    %698 = vmatpush.msra.mxu0 %v678
    %699 = vmatpush.msra.mxu0 %v676
    %700 = vmatpush.msra.mxu0 %v674
    %701 = vmatpush.msra.mxu0 %v672
    %702 = vmatpush.msra.mxu0 %v670
    %703 = vmatpush.msra.mxu0 %v668
    %704 = vmatpush.msra.mxu0 %v666
    %705 = vmatpush.msra.mxu0 %v664
    %706 = vmatpush.msra.mxu0 %v662
    %707 = vmatpush.msra.mxu0 %v660
    %708 = vmatmul.f32.gmra.mxu0 %v659
    %v709 = vpop.f32.mrf.mxu0
    %v710 = vadd.f32 0.0, %v709
    %711 = vdwg.mxu0
    %712 = vmatpush.msra.mxu0 %v691
    %713 = vmatpush.msra.mxu0 %v689
    %714 = vmatpush.msra.mxu0 %v687
    %715 = vmatpush.msra.mxu0 %v685
    %716 = vmatpush.msra.mxu0 %v683
    %717 = vmatpush.msra.mxu0 %v681
    %718 = vmatpush.msra.mxu0 %v679
    %719 = vmatpush.msra.mxu0 %v677
    %720 = vmatpush.msra.mxu0 %v675
    %721 = vmatpush.msra.mxu0 %v673
    %722 = vmatpush.msra.mxu0 %v671
    %723 = vmatpush.msra.mxu0 %v669
    %724 = vmatpush.msra.mxu0 %v667
    %725 = vmatpush.msra.mxu0 %v665
    %726 = vmatpush.msra.mxu0 %v663
    %727 = vmatpush.msra.mxu0 %v661
    %728 = vmatmul.f32.gmra.mxu0 %v659
    %v729 = vpop.f32.mrf.mxu0
    %v730 = vadd.f32 0.0, %v729
    %731 = vdwg.mxu0
    %v732 = vadd.f32 %v657, %v710
    %v733 = vadd.f32 %v658, %v730
    %v734 = vld [vmem:[%s0 + $0x11] sm:$0x7f]
    %v735 = vld [vmem:[%s360] sm:$0xff]
    %v736 = vld [vmem:[%s360 + $0x8] sm:$0xff]
    %v737 = vld [vmem:[%s360 + $0x10] sm:$0xff]
    %v738 = vld [vmem:[%s360 + $0x18] sm:$0xff]
    %v739 = vld [vmem:[%s360 + $0x20] sm:$0xff]
    %v740 = vld [vmem:[%s360 + $0x28] sm:$0xff]
    %v741 = vld [vmem:[%s360 + $0x30] sm:$0xff]
    %v742 = vld [vmem:[%s360 + $0x38] sm:$0xff]
    %v743 = vld [vmem:[%s360 + $0x40] sm:$0xff]
    %v744 = vld [vmem:[%s360 + $0x48] sm:$0xff]
    %v745 = vld [vmem:[%s360 + $0x50] sm:$0xff]
    %v746 = vld [vmem:[%s360 + $0x58] sm:$0xff]
    %v747 = vld [vmem:[%s360 + $0x60] sm:$0xff]
    %v748 = vld [vmem:[%s360 + $0x68] sm:$0xff]
    %v749 = vld [vmem:[%s360 + $0x70] sm:$0xff]
    %v750 = vld [vmem:[%s360 + $0x78] sm:$0xff]
    %v751 = vld [vmem:[%s360 + $0x80] sm:$0xff]
    %v752 = vld [vmem:[%s360 + $0x88] sm:$0xff]
    %v753 = vld [vmem:[%s360 + $0x90] sm:$0xff]
    %v754 = vld [vmem:[%s360 + $0x98] sm:$0xff]
    %v755 = vld [vmem:[%s360 + $0xa0] sm:$0xff]
    %v756 = vld [vmem:[%s360 + $0xa8] sm:$0xff]
    %v757 = vld [vmem:[%s360 + $0xb0] sm:$0xff]
    %v758 = vld [vmem:[%s360 + $0xb8] sm:$0xff]
    %v759 = vld [vmem:[%s360 + $0xc0] sm:$0xff]
    %v760 = vld [vmem:[%s360 + $0xc8] sm:$0xff]
    %v761 = vld [vmem:[%s360 + $0xd0] sm:$0xff]
    %v762 = vld [vmem:[%s360 + $0xd8] sm:$0xff]
    %v763 = vld [vmem:[%s360 + $0xe0] sm:$0xff]
    %v764 = vld [vmem:[%s360 + $0xe8] sm:$0xff]
    %v765 = vld [vmem:[%s360 + $0xf0] sm:$0xff]
    %v766 = vld [vmem:[%s360 + $0xf8] sm:$0xff]
    %767 = vmatpush.msra.mxu0 %v765
    %768 = vmatpush.msra.mxu0 %v763
    %769 = vmatpush.msra.mxu0 %v761
    %770 = vmatpush.msra.mxu0 %v759
    %771 = vmatpush.msra.mxu0 %v757
    %772 = vmatpush.msra.mxu0 %v755
    %773 = vmatpush.msra.mxu0 %v753
    %774 = vmatpush.msra.mxu0 %v751
    %775 = vmatpush.msra.mxu0 %v749
    %776 = vmatpush.msra.mxu0 %v747
    %777 = vmatpush.msra.mxu0 %v745
    %778 = vmatpush.msra.mxu0 %v743
    %779 = vmatpush.msra.mxu0 %v741
    %780 = vmatpush.msra.mxu0 %v739
    %781 = vmatpush.msra.mxu0 %v737
    %782 = vmatpush.msra.mxu0 %v735
    %783 = vmatmul.f32.gmra.mxu0 %v734
    %v784 = vpop.f32.mrf.mxu0
    %v785 = vadd.f32 0.0, %v784
    %786 = vdwg.mxu0
    %787 = vmatpush.msra.mxu0 %v766
    %788 = vmatpush.msra.mxu0 %v764
    %789 = vmatpush.msra.mxu0 %v762
    %790 = vmatpush.msra.mxu0 %v760
    %791 = vmatpush.msra.mxu0 %v758
    %792 = vmatpush.msra.mxu0 %v756
    %793 = vmatpush.msra.mxu0 %v754
    %794 = vmatpush.msra.mxu0 %v752
    %795 = vmatpush.msra.mxu0 %v750
    %796 = vmatpush.msra.mxu0 %v748
    %797 = vmatpush.msra.mxu0 %v746
    %798 = vmatpush.msra.mxu0 %v744
    %799 = vmatpush.msra.mxu0 %v742
    %800 = vmatpush.msra.mxu0 %v740
    %801 = vmatpush.msra.mxu0 %v738
    %802 = vmatpush.msra.mxu0 %v736
    %803 = vmatmul.f32.gmra.mxu0 %v734
    %v804 = vpop.f32.mrf.mxu0
    %v805 = vadd.f32 0.0, %v804
    %806 = vdwg.mxu0
    %v807 = vadd.f32 %v732, %v785
    %v808 = vadd.f32 %v733, %v805
    %v811 = vrot.slane %v807, 1
    %v812 = vrot.slane %v808, 1
    %815 = vst [vmem:[#allocation2] sm:$0x80] %v811
    %vm816 = vcmask 785415
    %817 = vst.msk [vmem:[#allocation2 + $0x8] sm:$0x80] %vm816, %v812
    %818 = vst [vmem:[#allocation2 + $0x10] sm:$0x3f] %v811
    %vm819 = vcmask 783360
    %820 = vst.msk [vmem:[#allocation2 + $0x18] sm:$0x3f] %vm819, %v812
    %v821 = vld [vmem:[%s0 + $0x20] sm:$0x7f]
    %v822 = vld [vmem:[%s1] sm:$0xff]
    %v823 = vld [vmem:[%s1 + $0x8] sm:$0xff]
    %v824 = vld [vmem:[%s1 + $0x10] sm:$0xff]
    %v825 = vld [vmem:[%s1 + $0x18] sm:$0xff]
    %v826 = vld [vmem:[%s1 + $0x20] sm:$0xff]
    %v827 = vld [vmem:[%s1 + $0x28] sm:$0xff]
    %v828 = vld [vmem:[%s1 + $0x30] sm:$0xff]
    %v829 = vld [vmem:[%s1 + $0x38] sm:$0xff]
    %v830 = vld [vmem:[%s1 + $0x40] sm:$0xff]
    %v831 = vld [vmem:[%s1 + $0x48] sm:$0xff]
    %v832 = vld [vmem:[%s1 + $0x50] sm:$0xff]
    %v833 = vld [vmem:[%s1 + $0x58] sm:$0xff]
    %v834 = vld [vmem:[%s1 + $0x60] sm:$0xff]
    %v835 = vld [vmem:[%s1 + $0x68] sm:$0xff]
    %v836 = vld [vmem:[%s1 + $0x70] sm:$0xff]
    %v837 = vld [vmem:[%s1 + $0x78] sm:$0xff]
    %v838 = vld [vmem:[%s1 + $0x80] sm:$0xff]
    %v839 = vld [vmem:[%s1 + $0x88] sm:$0xff]
    %v840 = vld [vmem:[%s1 + $0x90] sm:$0xff]
    %v841 = vld [vmem:[%s1 + $0x98] sm:$0xff]
    %v842 = vld [vmem:[%s1 + $0xa0] sm:$0xff]
    %v843 = vld [vmem:[%s1 + $0xa8] sm:$0xff]
    %v844 = vld [vmem:[%s1 + $0xb0] sm:$0xff]
    %v845 = vld [vmem:[%s1 + $0xb8] sm:$0xff]
    %v846 = vld [vmem:[%s1 + $0xc0] sm:$0xff]
    %v847 = vld [vmem:[%s1 + $0xc8] sm:$0xff]
    %v848 = vld [vmem:[%s1 + $0xd0] sm:$0xff]
    %v849 = vld [vmem:[%s1 + $0xd8] sm:$0xff]
    %v850 = vld [vmem:[%s1 + $0xe0] sm:$0xff]
    %v851 = vld [vmem:[%s1 + $0xe8] sm:$0xff]
    %v852 = vld [vmem:[%s1 + $0xf0] sm:$0xff]
    %v853 = vld [vmem:[%s1 + $0xf8] sm:$0xff]
    %v854 = vld [vmem:[%s0 + $0x28] sm:$0x7f]
    %v855 = vld [vmem:[%s94] sm:$0xff]
    %v856 = vld [vmem:[%s94 + $0x8] sm:$0xff]
    %v857 = vld [vmem:[%s94 + $0x10] sm:$0xff]
    %v858 = vld [vmem:[%s94 + $0x18] sm:$0xff]
    %v859 = vld [vmem:[%s94 + $0x20] sm:$0xff]
    %v860 = vld [vmem:[%s94 + $0x28] sm:$0xff]
    %v861 = vld [vmem:[%s94 + $0x30] sm:$0xff]
    %v862 = vld [vmem:[%s94 + $0x38] sm:$0xff]
    %v863 = vld [vmem:[%s94 + $0x40] sm:$0xff]
    %v864 = vld [vmem:[%s94 + $0x48] sm:$0xff]
    %v865 = vld [vmem:[%s94 + $0x50] sm:$0xff]
    %v866 = vld [vmem:[%s94 + $0x58] sm:$0xff]
    %v867 = vld [vmem:[%s94 + $0x60] sm:$0xff]
    %v868 = vld [vmem:[%s94 + $0x68] sm:$0xff]
    %v869 = vld [vmem:[%s94 + $0x70] sm:$0xff]
    %v870 = vld [vmem:[%s94 + $0x78] sm:$0xff]
    %v871 = vld [vmem:[%s94 + $0x80] sm:$0xff]
    %v872 = vld [vmem:[%s94 + $0x88] sm:$0xff]
    %v873 = vld [vmem:[%s94 + $0x90] sm:$0xff]
    %v874 = vld [vmem:[%s94 + $0x98] sm:$0xff]
    %v875 = vld [vmem:[%s94 + $0xa0] sm:$0xff]
    %v876 = vld [vmem:[%s94 + $0xa8] sm:$0xff]
    %v877 = vld [vmem:[%s94 + $0xb0] sm:$0xff]
    %v878 = vld [vmem:[%s94 + $0xb8] sm:$0xff]
    %v879 = vld [vmem:[%s94 + $0xc0] sm:$0xff]
    %v880 = vld [vmem:[%s94 + $0xc8] sm:$0xff]
    %v881 = vld [vmem:[%s94 + $0xd0] sm:$0xff]
    %v882 = vld [vmem:[%s94 + $0xd8] sm:$0xff]
    %v883 = vld [vmem:[%s94 + $0xe0] sm:$0xff]
    %v884 = vld [vmem:[%s94 + $0xe8] sm:$0xff]
    %v885 = vld [vmem:[%s94 + $0xf0] sm:$0xff]
    %v886 = vld [vmem:[%s94 + $0xf8] sm:$0xff]
    %887 = vmatpush.msra.mxu0 %v885
    %888 = vmatpush.msra.mxu0 %v883
    %889 = vmatpush.msra.mxu0 %v881
    %890 = vmatpush.msra.mxu0 %v879
    %891 = vmatpush.msra.mxu0 %v877
    %892 = vmatpush.msra.mxu0 %v875
    %893 = vmatpush.msra.mxu0 %v873
    %894 = vmatpush.msra.mxu0 %v871
    %895 = vmatpush.msra.mxu0 %v869
    %896 = vmatpush.msra.mxu0 %v867
    %897 = vmatpush.msra.mxu0 %v865
    %898 = vmatpush.msra.mxu0 %v863
    %899 = vmatpush.msra.mxu0 %v861
    %900 = vmatpush.msra.mxu0 %v859
    %901 = vmatpush.msra.mxu0 %v857
    %902 = vmatpush.msra.mxu0 %v855
    %903 = vmatmul.f32.gmra.mxu0 %v854
    %v904 = vpop.f32.mrf.mxu0
    %v905 = vadd.f32 0.0, %v904
    %906 = vdwg.mxu0
    %907 = vmatpush.msra.mxu0 %v886
    %908 = vmatpush.msra.mxu0 %v884
    %909 = vmatpush.msra.mxu0 %v882
    %910 = vmatpush.msra.mxu0 %v880
    %911 = vmatpush.msra.mxu0 %v878
    %912 = vmatpush.msra.mxu0 %v876
    %913 = vmatpush.msra.mxu0 %v874
    %914 = vmatpush.msra.mxu0 %v872
    %915 = vmatpush.msra.mxu0 %v870
    %916 = vmatpush.msra.mxu0 %v868
    %917 = vmatpush.msra.mxu0 %v866
    %918 = vmatpush.msra.mxu0 %v864
    %919 = vmatpush.msra.mxu0 %v862
    %920 = vmatpush.msra.mxu0 %v860
    %921 = vmatpush.msra.mxu0 %v858
    %922 = vmatpush.msra.mxu0 %v856
    %923 = vmatmul.f32.gmra.mxu0 %v854
    %v924 = vpop.f32.mrf.mxu0
    %v925 = vadd.f32 0.0, %v924
    %926 = vdwg.mxu0
    %927 = vmatpush.msra.mxu0 %v852
    %928 = vmatpush.msra.mxu0 %v850
    %929 = vmatpush.msra.mxu0 %v848
    %930 = vmatpush.msra.mxu0 %v846
    %931 = vmatpush.msra.mxu0 %v844
    %932 = vmatpush.msra.mxu0 %v842
    %933 = vmatpush.msra.mxu0 %v840
    %934 = vmatpush.msra.mxu0 %v838
    %935 = vmatpush.msra.mxu0 %v836
    %936 = vmatpush.msra.mxu0 %v834
    %937 = vmatpush.msra.mxu0 %v832
    %938 = vmatpush.msra.mxu0 %v830
    %939 = vmatpush.msra.mxu0 %v828
    %940 = vmatpush.msra.mxu0 %v826
    %941 = vmatpush.msra.mxu0 %v824
    %942 = vmatpush.msra.mxu0 %v822
    %943 = vmatmul.f32.gmra.mxu0 %v821
    %v944 = vpop.f32.mrf.mxu0
    %v945 = vadd.f32 %v905, %v944
    %946 = vdwg.mxu0
    %947 = vmatpush.msra.mxu0 %v853
    %948 = vmatpush.msra.mxu0 %v851
    %949 = vmatpush.msra.mxu0 %v849
    %950 = vmatpush.msra.mxu0 %v847
    %951 = vmatpush.msra.mxu0 %v845
    %952 = vmatpush.msra.mxu0 %v843
    %953 = vmatpush.msra.mxu0 %v841
    %954 = vmatpush.msra.mxu0 %v839
    %955 = vmatpush.msra.mxu0 %v837
    %956 = vmatpush.msra.mxu0 %v835
    %957 = vmatpush.msra.mxu0 %v833
    %958 = vmatpush.msra.mxu0 %v831
    %959 = vmatpush.msra.mxu0 %v829
    %960 = vmatpush.msra.mxu0 %v827
    %961 = vmatpush.msra.mxu0 %v825
    %962 = vmatpush.msra.mxu0 %v823
    %963 = vmatmul.f32.gmra.mxu0 %v821
    %v964 = vpop.f32.mrf.mxu0
    %v965 = vadd.f32 %v925, %v964
    %966 = vdwg.mxu0
    %v967 = vld [vmem:[%s0 + $0x30] sm:$0x7f]
    %v968 = vld [vmem:[%s208] sm:$0xff]
    %v969 = vld [vmem:[%s208 + $0x8] sm:$0xff]
    %v970 = vld [vmem:[%s208 + $0x10] sm:$0xff]
    %v971 = vld [vmem:[%s208 + $0x18] sm:$0xff]
    %v972 = vld [vmem:[%s208 + $0x20] sm:$0xff]
    %v973 = vld [vmem:[%s208 + $0x28] sm:$0xff]
    %v974 = vld [vmem:[%s208 + $0x30] sm:$0xff]
    %v975 = vld [vmem:[%s208 + $0x38] sm:$0xff]
    %v976 = vld [vmem:[%s208 + $0x40] sm:$0xff]
    %v977 = vld [vmem:[%s208 + $0x48] sm:$0xff]
    %v978 = vld [vmem:[%s208 + $0x50] sm:$0xff]
    %v979 = vld [vmem:[%s208 + $0x58] sm:$0xff]
    %v980 = vld [vmem:[%s208 + $0x60] sm:$0xff]
    %v981 = vld [vmem:[%s208 + $0x68] sm:$0xff]
    %v982 = vld [vmem:[%s208 + $0x70] sm:$0xff]
    %v983 = vld [vmem:[%s208 + $0x78] sm:$0xff]
    %v984 = vld [vmem:[%s208 + $0x80] sm:$0xff]
    %v985 = vld [vmem:[%s208 + $0x88] sm:$0xff]
    %v986 = vld [vmem:[%s208 + $0x90] sm:$0xff]
    %v987 = vld [vmem:[%s208 + $0x98] sm:$0xff]
    %v988 = vld [vmem:[%s208 + $0xa0] sm:$0xff]
    %v989 = vld [vmem:[%s208 + $0xa8] sm:$0xff]
    %v990 = vld [vmem:[%s208 + $0xb0] sm:$0xff]
    %v991 = vld [vmem:[%s208 + $0xb8] sm:$0xff]
    %v992 = vld [vmem:[%s208 + $0xc0] sm:$0xff]
    %v993 = vld [vmem:[%s208 + $0xc8] sm:$0xff]
    %v994 = vld [vmem:[%s208 + $0xd0] sm:$0xff]
    %v995 = vld [vmem:[%s208 + $0xd8] sm:$0xff]
    %v996 = vld [vmem:[%s208 + $0xe0] sm:$0xff]
    %v997 = vld [vmem:[%s208 + $0xe8] sm:$0xff]
    %v998 = vld [vmem:[%s208 + $0xf0] sm:$0xff]
    %v999 = vld [vmem:[%s208 + $0xf8] sm:$0xff]
    %1000 = vmatpush.msra.mxu0 %v998
    %1001 = vmatpush.msra.mxu0 %v996
    %1002 = vmatpush.msra.mxu0 %v994
    %1003 = vmatpush.msra.mxu0 %v992
    %1004 = vmatpush.msra.mxu0 %v990
    %1005 = vmatpush.msra.mxu0 %v988
    %1006 = vmatpush.msra.mxu0 %v986
    %1007 = vmatpush.msra.mxu0 %v984
    %1008 = vmatpush.msra.mxu0 %v982
    %1009 = vmatpush.msra.mxu0 %v980
    %1010 = vmatpush.msra.mxu0 %v978
    %1011 = vmatpush.msra.mxu0 %v976
    %1012 = vmatpush.msra.mxu0 %v974
    %1013 = vmatpush.msra.mxu0 %v972
    %1014 = vmatpush.msra.mxu0 %v970
    %1015 = vmatpush.msra.mxu0 %v968
    %1016 = vmatmul.f32.gmra.mxu0 %v967
    %v1017 = vpop.f32.mrf.mxu0
    %v1018 = vadd.f32 0.0, %v1017
    %1019 = vdwg.mxu0
    %1020 = vmatpush.msra.mxu0 %v999
    %1021 = vmatpush.msra.mxu0 %v997
    %1022 = vmatpush.msra.mxu0 %v995
    %1023 = vmatpush.msra.mxu0 %v993
    %1024 = vmatpush.msra.mxu0 %v991
    %1025 = vmatpush.msra.mxu0 %v989
    %1026 = vmatpush.msra.mxu0 %v987
    %1027 = vmatpush.msra.mxu0 %v985
    %1028 = vmatpush.msra.mxu0 %v983
    %1029 = vmatpush.msra.mxu0 %v981
    %1030 = vmatpush.msra.mxu0 %v979
    %1031 = vmatpush.msra.mxu0 %v977
    %1032 = vmatpush.msra.mxu0 %v975
    %1033 = vmatpush.msra.mxu0 %v973
    %1034 = vmatpush.msra.mxu0 %v971
    %1035 = vmatpush.msra.mxu0 %v969
    %1036 = vmatmul.f32.gmra.mxu0 %v967
    %v1037 = vpop.f32.mrf.mxu0
    %v1038 = vadd.f32 0.0, %v1037
    %1039 = vdwg.mxu0
    %v1040 = vadd.f32 %v945, %v1018
    %v1041 = vadd.f32 %v965, %v1038
    %v1042 = vld [vmem:[%s0 + $0x38] sm:$0x7f]
    %v1043 = vld [vmem:[%s284] sm:$0xff]
    %v1044 = vld [vmem:[%s284 + $0x8] sm:$0xff]
    %v1045 = vld [vmem:[%s284 + $0x10] sm:$0xff]
    %v1046 = vld [vmem:[%s284 + $0x18] sm:$0xff]
    %v1047 = vld [vmem:[%s284 + $0x20] sm:$0xff]
    %v1048 = vld [vmem:[%s284 + $0x28] sm:$0xff]
    %v1049 = vld [vmem:[%s284 + $0x30] sm:$0xff]
    %v1050 = vld [vmem:[%s284 + $0x38] sm:$0xff]
    %v1051 = vld [vmem:[%s284 + $0x40] sm:$0xff]
    %v1052 = vld [vmem:[%s284 + $0x48] sm:$0xff]
    %v1053 = vld [vmem:[%s284 + $0x50] sm:$0xff]
    %v1054 = vld [vmem:[%s284 + $0x58] sm:$0xff]
    %v1055 = vld [vmem:[%s284 + $0x60] sm:$0xff]
    %v1056 = vld [vmem:[%s284 + $0x68] sm:$0xff]
    %v1057 = vld [vmem:[%s284 + $0x70] sm:$0xff]
    %v1058 = vld [vmem:[%s284 + $0x78] sm:$0xff]
    %v1059 = vld [vmem:[%s284 + $0x80] sm:$0xff]
    %v1060 = vld [vmem:[%s284 + $0x88] sm:$0xff]
    %v1061 = vld [vmem:[%s284 + $0x90] sm:$0xff]
    %v1062 = vld [vmem:[%s284 + $0x98] sm:$0xff]
    %v1063 = vld [vmem:[%s284 + $0xa0] sm:$0xff]
    %v1064 = vld [vmem:[%s284 + $0xa8] sm:$0xff]
    %v1065 = vld [vmem:[%s284 + $0xb0] sm:$0xff]
    %v1066 = vld [vmem:[%s284 + $0xb8] sm:$0xff]
    %v1067 = vld [vmem:[%s284 + $0xc0] sm:$0xff]
    %v1068 = vld [vmem:[%s284 + $0xc8] sm:$0xff]
    %v1069 = vld [vmem:[%s284 + $0xd0] sm:$0xff]
    %v1070 = vld [vmem:[%s284 + $0xd8] sm:$0xff]
    %v1071 = vld [vmem:[%s284 + $0xe0] sm:$0xff]
    %v1072 = vld [vmem:[%s284 + $0xe8] sm:$0xff]
    %v1073 = vld [vmem:[%s284 + $0xf0] sm:$0xff]
    %v1074 = vld [vmem:[%s284 + $0xf8] sm:$0xff]
    %1075 = vmatpush.msra.mxu0 %v1073
    %1076 = vmatpush.msra.mxu0 %v1071
    %1077 = vmatpush.msra.mxu0 %v1069
    %1078 = vmatpush.msra.mxu0 %v1067
    %1079 = vmatpush.msra.mxu0 %v1065
    %1080 = vmatpush.msra.mxu0 %v1063
    %1081 = vmatpush.msra.mxu0 %v1061
    %1082 = vmatpush.msra.mxu0 %v1059
    %1083 = vmatpush.msra.mxu0 %v1057
    %1084 = vmatpush.msra.mxu0 %v1055
    %1085 = vmatpush.msra.mxu0 %v1053
    %1086 = vmatpush.msra.mxu0 %v1051
    %1087 = vmatpush.msra.mxu0 %v1049
    %1088 = vmatpush.msra.mxu0 %v1047
    %1089 = vmatpush.msra.mxu0 %v1045
    %1090 = vmatpush.msra.mxu0 %v1043
    %1091 = vmatmul.f32.gmra.mxu0 %v1042
    %v1092 = vpop.f32.mrf.mxu0
    %v1093 = vadd.f32 0.0, %v1092
    %1094 = vdwg.mxu0
    %1095 = vmatpush.msra.mxu0 %v1074
    %1096 = vmatpush.msra.mxu0 %v1072
    %1097 = vmatpush.msra.mxu0 %v1070
    %1098 = vmatpush.msra.mxu0 %v1068
    %1099 = vmatpush.msra.mxu0 %v1066
    %1100 = vmatpush.msra.mxu0 %v1064
    %1101 = vmatpush.msra.mxu0 %v1062
    %1102 = vmatpush.msra.mxu0 %v1060
    %1103 = vmatpush.msra.mxu0 %v1058
    %1104 = vmatpush.msra.mxu0 %v1056
    %1105 = vmatpush.msra.mxu0 %v1054
    %1106 = vmatpush.msra.mxu0 %v1052
    %1107 = vmatpush.msra.mxu0 %v1050
    %1108 = vmatpush.msra.mxu0 %v1048
    %1109 = vmatpush.msra.mxu0 %v1046
    %1110 = vmatpush.msra.mxu0 %v1044
    %1111 = vmatmul.f32.gmra.mxu0 %v1042
    %v1112 = vpop.f32.mrf.mxu0
    %v1113 = vadd.f32 0.0, %v1112
    %1114 = vdwg.mxu0
    %v1115 = vadd.f32 %v1040, %v1093
    %v1116 = vadd.f32 %v1041, %v1113
    %v1117 = vld [vmem:[%s0 + $0x21] sm:$0x7f]
    %v1118 = vld [vmem:[%s360] sm:$0xff]
    %v1119 = vld [vmem:[%s360 + $0x8] sm:$0xff]
    %v1120 = vld [vmem:[%s360 + $0x10] sm:$0xff]
    %v1121 = vld [vmem:[%s360 + $0x18] sm:$0xff]
    %v1122 = vld [vmem:[%s360 + $0x20] sm:$0xff]
    %v1123 = vld [vmem:[%s360 + $0x28] sm:$0xff]
    %v1124 = vld [vmem:[%s360 + $0x30] sm:$0xff]
    %v1125 = vld [vmem:[%s360 + $0x38] sm:$0xff]
    %v1126 = vld [vmem:[%s360 + $0x40] sm:$0xff]
    %v1127 = vld [vmem:[%s360 + $0x48] sm:$0xff]
    %v1128 = vld [vmem:[%s360 + $0x50] sm:$0xff]
    %v1129 = vld [vmem:[%s360 + $0x58] sm:$0xff]
    %v1130 = vld [vmem:[%s360 + $0x60] sm:$0xff]
    %v1131 = vld [vmem:[%s360 + $0x68] sm:$0xff]
    %v1132 = vld [vmem:[%s360 + $0x70] sm:$0xff]
    %v1133 = vld [vmem:[%s360 + $0x78] sm:$0xff]
    %v1134 = vld [vmem:[%s360 + $0x80] sm:$0xff]
    %v1135 = vld [vmem:[%s360 + $0x88] sm:$0xff]
    %v1136 = vld [vmem:[%s360 + $0x90] sm:$0xff]
    %v1137 = vld [vmem:[%s360 + $0x98] sm:$0xff]
    %v1138 = vld [vmem:[%s360 + $0xa0] sm:$0xff]
    %v1139 = vld [vmem:[%s360 + $0xa8] sm:$0xff]
    %v1140 = vld [vmem:[%s360 + $0xb0] sm:$0xff]
    %v1141 = vld [vmem:[%s360 + $0xb8] sm:$0xff]
    %v1142 = vld [vmem:[%s360 + $0xc0] sm:$0xff]
    %v1143 = vld [vmem:[%s360 + $0xc8] sm:$0xff]
    %v1144 = vld [vmem:[%s360 + $0xd0] sm:$0xff]
    %v1145 = vld [vmem:[%s360 + $0xd8] sm:$0xff]
    %v1146 = vld [vmem:[%s360 + $0xe0] sm:$0xff]
    %v1147 = vld [vmem:[%s360 + $0xe8] sm:$0xff]
    %v1148 = vld [vmem:[%s360 + $0xf0] sm:$0xff]
    %v1149 = vld [vmem:[%s360 + $0xf8] sm:$0xff]
    %1150 = vmatpush.msra.mxu0 %v1148
    %1151 = vmatpush.msra.mxu0 %v1146
    %1152 = vmatpush.msra.mxu0 %v1144
    %1153 = vmatpush.msra.mxu0 %v1142
    %1154 = vmatpush.msra.mxu0 %v1140
    %1155 = vmatpush.msra.mxu0 %v1138
    %1156 = vmatpush.msra.mxu0 %v1136
    %1157 = vmatpush.msra.mxu0 %v1134
    %1158 = vmatpush.msra.mxu0 %v1132
    %1159 = vmatpush.msra.mxu0 %v1130
    %1160 = vmatpush.msra.mxu0 %v1128
    %1161 = vmatpush.msra.mxu0 %v1126
    %1162 = vmatpush.msra.mxu0 %v1124
    %1163 = vmatpush.msra.mxu0 %v1122
    %1164 = vmatpush.msra.mxu0 %v1120
    %1165 = vmatpush.msra.mxu0 %v1118
    %1166 = vmatmul.f32.gmra.mxu0 %v1117
    %v1167 = vpop.f32.mrf.mxu0
    %v1168 = vadd.f32 0.0, %v1167
    %1169 = vdwg.mxu0
    %1170 = vmatpush.msra.mxu0 %v1149
    %1171 = vmatpush.msra.mxu0 %v1147
    %1172 = vmatpush.msra.mxu0 %v1145
    %1173 = vmatpush.msra.mxu0 %v1143
    %1174 = vmatpush.msra.mxu0 %v1141
    %1175 = vmatpush.msra.mxu0 %v1139
    %1176 = vmatpush.msra.mxu0 %v1137
    %1177 = vmatpush.msra.mxu0 %v1135
    %1178 = vmatpush.msra.mxu0 %v1133
    %1179 = vmatpush.msra.mxu0 %v1131
    %1180 = vmatpush.msra.mxu0 %v1129
    %1181 = vmatpush.msra.mxu0 %v1127
    %1182 = vmatpush.msra.mxu0 %v1125
    %1183 = vmatpush.msra.mxu0 %v1123
    %1184 = vmatpush.msra.mxu0 %v1121
    %1185 = vmatpush.msra.mxu0 %v1119
    %1186 = vmatmul.f32.gmra.mxu0 %v1117
    %v1187 = vpop.f32.mrf.mxu0
    %v1188 = vadd.f32 0.0, %v1187
    %1189 = vdwg.mxu0
    %v1190 = vadd.f32 %v1115, %v1168
    %v1191 = vadd.f32 %v1116, %v1188
    %v1194 = vrot.slane %v1190, 2
    %v1195 = vrot.slane %v1191, 2
    %1198 = vst [vmem:[#allocation2 + $0x10] sm:$0xc0] %v1194
    %vm1199 = vcmask 785414
    %1200 = vst.msk [vmem:[#allocation2 + $0x18] sm:$0xc0] %vm1199, %v1195
    %1201 = vst [vmem:[#allocation2 + $0x20] sm:$0x1f] %v1194
    %vm1202 = vcmask 782336
    %1203 = vst.msk [vmem:[#allocation2 + $0x28] sm:$0x1f] %vm1202, %v1195
    %v1204 = vld [vmem:[%s0 + $0x30] sm:$0x7f]
    %v1205 = vld [vmem:[%s1] sm:$0xff]
    %v1206 = vld [vmem:[%s1 + $0x8] sm:$0xff]
    %v1207 = vld [vmem:[%s1 + $0x10] sm:$0xff]
    %v1208 = vld [vmem:[%s1 + $0x18] sm:$0xff]
    %v1209 = vld [vmem:[%s1 + $0x20] sm:$0xff]
    %v1210 = vld [vmem:[%s1 + $0x28] sm:$0xff]
    %v1211 = vld [vmem:[%s1 + $0x30] sm:$0xff]
    %v1212 = vld [vmem:[%s1 + $0x38] sm:$0xff]
    %v1213 = vld [vmem:[%s1 + $0x40] sm:$0xff]
    %v1214 = vld [vmem:[%s1 + $0x48] sm:$0xff]
    %v1215 = vld [vmem:[%s1 + $0x50] sm:$0xff]
    %v1216 = vld [vmem:[%s1 + $0x58] sm:$0xff]
    %v1217 = vld [vmem:[%s1 + $0x60] sm:$0xff]
    %v1218 = vld [vmem:[%s1 + $0x68] sm:$0xff]
    %v1219 = vld [vmem:[%s1 + $0x70] sm:$0xff]
    %v1220 = vld [vmem:[%s1 + $0x78] sm:$0xff]
    %v1221 = vld [vmem:[%s1 + $0x80] sm:$0xff]
    %v1222 = vld [vmem:[%s1 + $0x88] sm:$0xff]
    %v1223 = vld [vmem:[%s1 + $0x90] sm:$0xff]
    %v1224 = vld [vmem:[%s1 + $0x98] sm:$0xff]
    %v1225 = vld [vmem:[%s1 + $0xa0] sm:$0xff]
    %v1226 = vld [vmem:[%s1 + $0xa8] sm:$0xff]
    %v1227 = vld [vmem:[%s1 + $0xb0] sm:$0xff]
    %v1228 = vld [vmem:[%s1 + $0xb8] sm:$0xff]
    %v1229 = vld [vmem:[%s1 + $0xc0] sm:$0xff]
    %v1230 = vld [vmem:[%s1 + $0xc8] sm:$0xff]
    %v1231 = vld [vmem:[%s1 + $0xd0] sm:$0xff]
    %v1232 = vld [vmem:[%s1 + $0xd8] sm:$0xff]
    %v1233 = vld [vmem:[%s1 + $0xe0] sm:$0xff]
    %v1234 = vld [vmem:[%s1 + $0xe8] sm:$0xff]
    %v1235 = vld [vmem:[%s1 + $0xf0] sm:$0xff]
    %v1236 = vld [vmem:[%s1 + $0xf8] sm:$0xff]
    %v1237 = vld [vmem:[%s0 + $0x38] sm:$0x7f]
    %v1238 = vld [vmem:[%s94] sm:$0xff]
    %v1239 = vld [vmem:[%s94 + $0x8] sm:$0xff]
    %v1240 = vld [vmem:[%s94 + $0x10] sm:$0xff]
    %v1241 = vld [vmem:[%s94 + $0x18] sm:$0xff]
    %v1242 = vld [vmem:[%s94 + $0x20] sm:$0xff]
    %v1243 = vld [vmem:[%s94 + $0x28] sm:$0xff]
    %v1244 = vld [vmem:[%s94 + $0x30] sm:$0xff]
    %v1245 = vld [vmem:[%s94 + $0x38] sm:$0xff]
    %v1246 = vld [vmem:[%s94 + $0x40] sm:$0xff]
    %v1247 = vld [vmem:[%s94 + $0x48] sm:$0xff]
    %v1248 = vld [vmem:[%s94 + $0x50] sm:$0xff]
    %v1249 = vld [vmem:[%s94 + $0x58] sm:$0xff]
    %v1250 = vld [vmem:[%s94 + $0x60] sm:$0xff]
    %v1251 = vld [vmem:[%s94 + $0x68] sm:$0xff]
    %v1252 = vld [vmem:[%s94 + $0x70] sm:$0xff]
    %v1253 = vld [vmem:[%s94 + $0x78] sm:$0xff]
    %v1254 = vld [vmem:[%s94 + $0x80] sm:$0xff]
    %v1255 = vld [vmem:[%s94 + $0x88] sm:$0xff]
    %v1256 = vld [vmem:[%s94 + $0x90] sm:$0xff]
    %v1257 = vld [vmem:[%s94 + $0x98] sm:$0xff]
    %v1258 = vld [vmem:[%s94 + $0xa0] sm:$0xff]
    %v1259 = vld [vmem:[%s94 + $0xa8] sm:$0xff]
    %v1260 = vld [vmem:[%s94 + $0xb0] sm:$0xff]
    %v1261 = vld [vmem:[%s94 + $0xb8] sm:$0xff]
    %v1262 = vld [vmem:[%s94 + $0xc0] sm:$0xff]
    %v1263 = vld [vmem:[%s94 + $0xc8] sm:$0xff]
    %v1264 = vld [vmem:[%s94 + $0xd0] sm:$0xff]
    %v1265 = vld [vmem:[%s94 + $0xd8] sm:$0xff]
    %v1266 = vld [vmem:[%s94 + $0xe0] sm:$0xff]
    %v1267 = vld [vmem:[%s94 + $0xe8] sm:$0xff]
    %v1268 = vld [vmem:[%s94 + $0xf0] sm:$0xff]
    %v1269 = vld [vmem:[%s94 + $0xf8] sm:$0xff]
    %1270 = vmatpush.msra.mxu0 %v1268
    %1271 = vmatpush.msra.mxu0 %v1266
    %1272 = vmatpush.msra.mxu0 %v1264
    %1273 = vmatpush.msra.mxu0 %v1262
    %1274 = vmatpush.msra.mxu0 %v1260
    %1275 = vmatpush.msra.mxu0 %v1258
    %1276 = vmatpush.msra.mxu0 %v1256
    %1277 = vmatpush.msra.mxu0 %v1254
    %1278 = vmatpush.msra.mxu0 %v1252
    %1279 = vmatpush.msra.mxu0 %v1250
    %1280 = vmatpush.msra.mxu0 %v1248
    %1281 = vmatpush.msra.mxu0 %v1246
    %1282 = vmatpush.msra.mxu0 %v1244
    %1283 = vmatpush.msra.mxu0 %v1242
    %1284 = vmatpush.msra.mxu0 %v1240
    %1285 = vmatpush.msra.mxu0 %v1238
    %1286 = vmatmul.f32.gmra.mxu0 %v1237
    %v1287 = vpop.f32.mrf.mxu0
    %v1288 = vadd.f32 0.0, %v1287
    %1289 = vdwg.mxu0
    %1290 = vmatpush.msra.mxu0 %v1269
    %1291 = vmatpush.msra.mxu0 %v1267
    %1292 = vmatpush.msra.mxu0 %v1265
    %1293 = vmatpush.msra.mxu0 %v1263
    %1294 = vmatpush.msra.mxu0 %v1261
    %1295 = vmatpush.msra.mxu0 %v1259
    %1296 = vmatpush.msra.mxu0 %v1257
    %1297 = vmatpush.msra.mxu0 %v1255
    %1298 = vmatpush.msra.mxu0 %v1253
    %1299 = vmatpush.msra.mxu0 %v1251
    %1300 = vmatpush.msra.mxu0 %v1249
    %1301 = vmatpush.msra.mxu0 %v1247
    %1302 = vmatpush.msra.mxu0 %v1245
    %1303 = vmatpush.msra.mxu0 %v1243
    %1304 = vmatpush.msra.mxu0 %v1241
    %1305 = vmatpush.msra.mxu0 %v1239
    %1306 = vmatmul.f32.gmra.mxu0 %v1237
    %v1307 = vpop.f32.mrf.mxu0
    %v1308 = vadd.f32 0.0, %v1307
    %1309 = vdwg.mxu0
    %1310 = vmatpush.msra.mxu0 %v1235
    %1311 = vmatpush.msra.mxu0 %v1233
    %1312 = vmatpush.msra.mxu0 %v1231
    %1313 = vmatpush.msra.mxu0 %v1229
    %1314 = vmatpush.msra.mxu0 %v1227
    %1315 = vmatpush.msra.mxu0 %v1225
    %1316 = vmatpush.msra.mxu0 %v1223
    %1317 = vmatpush.msra.mxu0 %v1221
    %1318 = vmatpush.msra.mxu0 %v1219
    %1319 = vmatpush.msra.mxu0 %v1217
    %1320 = vmatpush.msra.mxu0 %v1215
    %1321 = vmatpush.msra.mxu0 %v1213
    %1322 = vmatpush.msra.mxu0 %v1211
    %1323 = vmatpush.msra.mxu0 %v1209
    %1324 = vmatpush.msra.mxu0 %v1207
    %1325 = vmatpush.msra.mxu0 %v1205
    %1326 = vmatmul.f32.gmra.mxu0 %v1204
    %v1327 = vpop.f32.mrf.mxu0
    %v1328 = vadd.f32 %v1288, %v1327
    %1329 = vdwg.mxu0
    %1330 = vmatpush.msra.mxu0 %v1236
    %1331 = vmatpush.msra.mxu0 %v1234
    %1332 = vmatpush.msra.mxu0 %v1232
    %1333 = vmatpush.msra.mxu0 %v1230
    %1334 = vmatpush.msra.mxu0 %v1228
    %1335 = vmatpush.msra.mxu0 %v1226
    %1336 = vmatpush.msra.mxu0 %v1224
    %1337 = vmatpush.msra.mxu0 %v1222
    %1338 = vmatpush.msra.mxu0 %v1220
    %1339 = vmatpush.msra.mxu0 %v1218
    %1340 = vmatpush.msra.mxu0 %v1216
    %1341 = vmatpush.msra.mxu0 %v1214
    %1342 = vmatpush.msra.mxu0 %v1212
    %1343 = vmatpush.msra.mxu0 %v1210
    %1344 = vmatpush.msra.mxu0 %v1208
    %1345 = vmatpush.msra.mxu0 %v1206
    %1346 = vmatmul.f32.gmra.mxu0 %v1204
    %v1347 = vpop.f32.mrf.mxu0
    %v1348 = vadd.f32 %v1308, %v1347
    %1349 = vdwg.mxu0
    %v1350 = vld [vmem:[%s0 + $0x21] sm:$0x7f]
    %v1351 = vld [vmem:[%s208] sm:$0xff]
    %v1352 = vld [vmem:[%s208 + $0x8] sm:$0xff]
    %v1353 = vld [vmem:[%s208 + $0x10] sm:$0xff]
    %v1354 = vld [vmem:[%s208 + $0x18] sm:$0xff]
    %v1355 = vld [vmem:[%s208 + $0x20] sm:$0xff]
    %v1356 = vld [vmem:[%s208 + $0x28] sm:$0xff]
    %v1357 = vld [vmem:[%s208 + $0x30] sm:$0xff]
    %v1358 = vld [vmem:[%s208 + $0x38] sm:$0xff]
    %v1359 = vld [vmem:[%s208 + $0x40] sm:$0xff]
    %v1360 = vld [vmem:[%s208 + $0x48] sm:$0xff]
    %v1361 = vld [vmem:[%s208 + $0x50] sm:$0xff]
    %v1362 = vld [vmem:[%s208 + $0x58] sm:$0xff]
    %v1363 = vld [vmem:[%s208 + $0x60] sm:$0xff]
    %v1364 = vld [vmem:[%s208 + $0x68] sm:$0xff]
    %v1365 = vld [vmem:[%s208 + $0x70] sm:$0xff]
    %v1366 = vld [vmem:[%s208 + $0x78] sm:$0xff]
    %v1367 = vld [vmem:[%s208 + $0x80] sm:$0xff]
    %v1368 = vld [vmem:[%s208 + $0x88] sm:$0xff]
    %v1369 = vld [vmem:[%s208 + $0x90] sm:$0xff]
    %v1370 = vld [vmem:[%s208 + $0x98] sm:$0xff]
    %v1371 = vld [vmem:[%s208 + $0xa0] sm:$0xff]
    %v1372 = vld [vmem:[%s208 + $0xa8] sm:$0xff]
    %v1373 = vld [vmem:[%s208 + $0xb0] sm:$0xff]
    %v1374 = vld [vmem:[%s208 + $0xb8] sm:$0xff]
    %v1375 = vld [vmem:[%s208 + $0xc0] sm:$0xff]
    %v1376 = vld [vmem:[%s208 + $0xc8] sm:$0xff]
    %v1377 = vld [vmem:[%s208 + $0xd0] sm:$0xff]
    %v1378 = vld [vmem:[%s208 + $0xd8] sm:$0xff]
    %v1379 = vld [vmem:[%s208 + $0xe0] sm:$0xff]
    %v1380 = vld [vmem:[%s208 + $0xe8] sm:$0xff]
    %v1381 = vld [vmem:[%s208 + $0xf0] sm:$0xff]
    %v1382 = vld [vmem:[%s208 + $0xf8] sm:$0xff]
    %1383 = vmatpush.msra.mxu0 %v1381
    %1384 = vmatpush.msra.mxu0 %v1379
    %1385 = vmatpush.msra.mxu0 %v1377
    %1386 = vmatpush.msra.mxu0 %v1375
    %1387 = vmatpush.msra.mxu0 %v1373
    %1388 = vmatpush.msra.mxu0 %v1371
    %1389 = vmatpush.msra.mxu0 %v1369
    %1390 = vmatpush.msra.mxu0 %v1367
    %1391 = vmatpush.msra.mxu0 %v1365
    %1392 = vmatpush.msra.mxu0 %v1363
    %1393 = vmatpush.msra.mxu0 %v1361
    %1394 = vmatpush.msra.mxu0 %v1359
    %1395 = vmatpush.msra.mxu0 %v1357
    %1396 = vmatpush.msra.mxu0 %v1355
    %1397 = vmatpush.msra.mxu0 %v1353
    %1398 = vmatpush.msra.mxu0 %v1351
    %1399 = vmatmul.f32.gmra.mxu0 %v1350
    %v1400 = vpop.f32.mrf.mxu0
    %v1401 = vadd.f32 0.0, %v1400
    %1402 = vdwg.mxu0
    %1403 = vmatpush.msra.mxu0 %v1382
    %1404 = vmatpush.msra.mxu0 %v1380
    %1405 = vmatpush.msra.mxu0 %v1378
    %1406 = vmatpush.msra.mxu0 %v1376
    %1407 = vmatpush.msra.mxu0 %v1374
    %1408 = vmatpush.msra.mxu0 %v1372
    %1409 = vmatpush.msra.mxu0 %v1370
    %1410 = vmatpush.msra.mxu0 %v1368
    %1411 = vmatpush.msra.mxu0 %v1366
    %1412 = vmatpush.msra.mxu0 %v1364
    %1413 = vmatpush.msra.mxu0 %v1362
    %1414 = vmatpush.msra.mxu0 %v1360
    %1415 = vmatpush.msra.mxu0 %v1358
    %1416 = vmatpush.msra.mxu0 %v1356
    %1417 = vmatpush.msra.mxu0 %v1354
    %1418 = vmatpush.msra.mxu0 %v1352
    %1419 = vmatmul.f32.gmra.mxu0 %v1350
    %v1420 = vpop.f32.mrf.mxu0
    %v1421 = vadd.f32 0.0, %v1420
    %1422 = vdwg.mxu0
    %v1423 = vadd.f32 %v1328, %v1401
    %v1424 = vadd.f32 %v1348, %v1421
    %v1425 = vld [vmem:[%s0 + $0x29] sm:$0x7f]
    %v1426 = vld [vmem:[%s284] sm:$0xff]
    %v1427 = vld [vmem:[%s284 + $0x8] sm:$0xff]
    %v1428 = vld [vmem:[%s284 + $0x10] sm:$0xff]
    %v1429 = vld [vmem:[%s284 + $0x18] sm:$0xff]
    %v1430 = vld [vmem:[%s284 + $0x20] sm:$0xff]
    %v1431 = vld [vmem:[%s284 + $0x28] sm:$0xff]
    %v1432 = vld [vmem:[%s284 + $0x30] sm:$0xff]
    %v1433 = vld [vmem:[%s284 + $0x38] sm:$0xff]
    %v1434 = vld [vmem:[%s284 + $0x40] sm:$0xff]
    %v1435 = vld [vmem:[%s284 + $0x48] sm:$0xff]
    %v1436 = vld [vmem:[%s284 + $0x50] sm:$0xff]
    %v1437 = vld [vmem:[%s284 + $0x58] sm:$0xff]
    %v1438 = vld [vmem:[%s284 + $0x60] sm:$0xff]
    %v1439 = vld [vmem:[%s284 + $0x68] sm:$0xff]
    %v1440 = vld [vmem:[%s284 + $0x70] sm:$0xff]
    %v1441 = vld [vmem:[%s284 + $0x78] sm:$0xff]
    %v1442 = vld [vmem:[%s284 + $0x80] sm:$0xff]
    %v1443 = vld [vmem:[%s284 + $0x88] sm:$0xff]
    %v1444 = vld [vmem:[%s284 + $0x90] sm:$0xff]
    %v1445 = vld [vmem:[%s284 + $0x98] sm:$0xff]
    %v1446 = vld [vmem:[%s284 + $0xa0] sm:$0xff]
    %v1447 = vld [vmem:[%s284 + $0xa8] sm:$0xff]
    %v1448 = vld [vmem:[%s284 + $0xb0] sm:$0xff]
    %v1449 = vld [vmem:[%s284 + $0xb8] sm:$0xff]
    %v1450 = vld [vmem:[%s284 + $0xc0] sm:$0xff]
    %v1451 = vld [vmem:[%s284 + $0xc8] sm:$0xff]
    %v1452 = vld [vmem:[%s284 + $0xd0] sm:$0xff]
    %v1453 = vld [vmem:[%s284 + $0xd8] sm:$0xff]
    %v1454 = vld [vmem:[%s284 + $0xe0] sm:$0xff]
    %v1455 = vld [vmem:[%s284 + $0xe8] sm:$0xff]
    %v1456 = vld [vmem:[%s284 + $0xf0] sm:$0xff]
    %v1457 = vld [vmem:[%s284 + $0xf8] sm:$0xff]
    %1458 = vmatpush.msra.mxu0 %v1456
    %1459 = vmatpush.msra.mxu0 %v1454
    %1460 = vmatpush.msra.mxu0 %v1452
    %1461 = vmatpush.msra.mxu0 %v1450
    %1462 = vmatpush.msra.mxu0 %v1448
    %1463 = vmatpush.msra.mxu0 %v1446
    %1464 = vmatpush.msra.mxu0 %v1444
    %1465 = vmatpush.msra.mxu0 %v1442
    %1466 = vmatpush.msra.mxu0 %v1440
    %1467 = vmatpush.msra.mxu0 %v1438
    %1468 = vmatpush.msra.mxu0 %v1436
    %1469 = vmatpush.msra.mxu0 %v1434
    %1470 = vmatpush.msra.mxu0 %v1432
    %1471 = vmatpush.msra.mxu0 %v1430
    %1472 = vmatpush.msra.mxu0 %v1428
    %1473 = vmatpush.msra.mxu0 %v1426
    %1474 = vmatmul.f32.gmra.mxu0 %v1425
    %v1475 = vpop.f32.mrf.mxu0
    %v1476 = vadd.f32 0.0, %v1475
    %1477 = vdwg.mxu0
    %1478 = vmatpush.msra.mxu0 %v1457
    %1479 = vmatpush.msra.mxu0 %v1455
    %1480 = vmatpush.msra.mxu0 %v1453
    %1481 = vmatpush.msra.mxu0 %v1451
    %1482 = vmatpush.msra.mxu0 %v1449
    %1483 = vmatpush.msra.mxu0 %v1447
    %1484 = vmatpush.msra.mxu0 %v1445
    %1485 = vmatpush.msra.mxu0 %v1443
    %1486 = vmatpush.msra.mxu0 %v1441
    %1487 = vmatpush.msra.mxu0 %v1439
    %1488 = vmatpush.msra.mxu0 %v1437
    %1489 = vmatpush.msra.mxu0 %v1435
    %1490 = vmatpush.msra.mxu0 %v1433
    %1491 = vmatpush.msra.mxu0 %v1431
    %1492 = vmatpush.msra.mxu0 %v1429
    %1493 = vmatpush.msra.mxu0 %v1427
    %1494 = vmatmul.f32.gmra.mxu0 %v1425
    %v1495 = vpop.f32.mrf.mxu0
    %v1496 = vadd.f32 0.0, %v1495
    %1497 = vdwg.mxu0
    %v1498 = vadd.f32 %v1423, %v1476
    %v1499 = vadd.f32 %v1424, %v1496
    %v1500 = vld [vmem:[%s0 + $0x31] sm:$0x7f]
    %v1501 = vld [vmem:[%s360] sm:$0xff]
    %v1502 = vld [vmem:[%s360 + $0x8] sm:$0xff]
    %v1503 = vld [vmem:[%s360 + $0x10] sm:$0xff]
    %v1504 = vld [vmem:[%s360 + $0x18] sm:$0xff]
    %v1505 = vld [vmem:[%s360 + $0x20] sm:$0xff]
    %v1506 = vld [vmem:[%s360 + $0x28] sm:$0xff]
    %v1507 = vld [vmem:[%s360 + $0x30] sm:$0xff]
    %v1508 = vld [vmem:[%s360 + $0x38] sm:$0xff]
    %v1509 = vld [vmem:[%s360 + $0x40] sm:$0xff]
    %v1510 = vld [vmem:[%s360 + $0x48] sm:$0xff]
    %v1511 = vld [vmem:[%s360 + $0x50] sm:$0xff]
    %v1512 = vld [vmem:[%s360 + $0x58] sm:$0xff]
    %v1513 = vld [vmem:[%s360 + $0x60] sm:$0xff]
    %v1514 = vld [vmem:[%s360 + $0x68] sm:$0xff]
    %v1515 = vld [vmem:[%s360 + $0x70] sm:$0xff]
    %v1516 = vld [vmem:[%s360 + $0x78] sm:$0xff]
    %v1517 = vld [vmem:[%s360 + $0x80] sm:$0xff]
    %v1518 = vld [vmem:[%s360 + $0x88] sm:$0xff]
    %v1519 = vld [vmem:[%s360 + $0x90] sm:$0xff]
    %v1520 = vld [vmem:[%s360 + $0x98] sm:$0xff]
    %v1521 = vld [vmem:[%s360 + $0xa0] sm:$0xff]
    %v1522 = vld [vmem:[%s360 + $0xa8] sm:$0xff]
    %v1523 = vld [vmem:[%s360 + $0xb0] sm:$0xff]
    %v1524 = vld [vmem:[%s360 + $0xb8] sm:$0xff]
    %v1525 = vld [vmem:[%s360 + $0xc0] sm:$0xff]
    %v1526 = vld [vmem:[%s360 + $0xc8] sm:$0xff]
    %v1527 = vld [vmem:[%s360 + $0xd0] sm:$0xff]
    %v1528 = vld [vmem:[%s360 + $0xd8] sm:$0xff]
    %v1529 = vld [vmem:[%s360 + $0xe0] sm:$0xff]
    %v1530 = vld [vmem:[%s360 + $0xe8] sm:$0xff]
    %v1531 = vld [vmem:[%s360 + $0xf0] sm:$0xff]
    %v1532 = vld [vmem:[%s360 + $0xf8] sm:$0xff]
    %1533 = vmatpush.msra.mxu0 %v1531
    %1534 = vmatpush.msra.mxu0 %v1529
    %1535 = vmatpush.msra.mxu0 %v1527
    %1536 = vmatpush.msra.mxu0 %v1525
    %1537 = vmatpush.msra.mxu0 %v1523
    %1538 = vmatpush.msra.mxu0 %v1521
    %1539 = vmatpush.msra.mxu0 %v1519
    %1540 = vmatpush.msra.mxu0 %v1517
    %1541 = vmatpush.msra.mxu0 %v1515
    %1542 = vmatpush.msra.mxu0 %v1513
    %1543 = vmatpush.msra.mxu0 %v1511
    %1544 = vmatpush.msra.mxu0 %v1509
    %1545 = vmatpush.msra.mxu0 %v1507
    %1546 = vmatpush.msra.mxu0 %v1505
    %1547 = vmatpush.msra.mxu0 %v1503
    %1548 = vmatpush.msra.mxu0 %v1501
    %1549 = vmatmul.f32.gmra.mxu0 %v1500
    %v1550 = vpop.f32.mrf.mxu0
    %v1551 = vadd.f32 0.0, %v1550
    %1552 = vdwg.mxu0
    %1553 = vmatpush.msra.mxu0 %v1532
    %1554 = vmatpush.msra.mxu0 %v1530
    %1555 = vmatpush.msra.mxu0 %v1528
    %1556 = vmatpush.msra.mxu0 %v1526
    %1557 = vmatpush.msra.mxu0 %v1524
    %1558 = vmatpush.msra.mxu0 %v1522
    %1559 = vmatpush.msra.mxu0 %v1520
    %1560 = vmatpush.msra.mxu0 %v1518
    %1561 = vmatpush.msra.mxu0 %v1516
    %1562 = vmatpush.msra.mxu0 %v1514
    %1563 = vmatpush.msra.mxu0 %v1512
    %1564 = vmatpush.msra.mxu0 %v1510
    %1565 = vmatpush.msra.mxu0 %v1508
    %1566 = vmatpush.msra.mxu0 %v1506
    %1567 = vmatpush.msra.mxu0 %v1504
    %1568 = vmatpush.msra.mxu0 %v1502
    %1569 = vmatmul.f32.gmra.mxu0 %v1500
    %v1570 = vpop.f32.mrf.mxu0
    %v1571 = vadd.f32 0.0, %v1570
    %1572 = vdwg.mxu0
    %v1573 = vadd.f32 %v1498, %v1551
    %v1574 = vadd.f32 %v1499, %v1571
    %v1577 = vrot.slane %v1573, 3
    %v1578 = vrot.slane %v1574, 3
    %1581 = vst [vmem:[#allocation2 + $0x20] sm:$0xe0] %v1577
    %vm1582 = vcmask 785413
    %1583 = vst.msk [vmem:[#allocation2 + $0x28] sm:$0xe0] %vm1582, %v1578
    %1584 = vst [vmem:[#allocation2 + $0x30] sm:$0xf] %v1577
    %vm1585 = vcmask 781312
    %1586 = vst.msk [vmem:[#allocation2 + $0x38] sm:$0xf] %vm1585, %v1578
    %v1587 = vld [vmem:[#allocation2] sm:$0xff]
    %v1588 = vld [vmem:[#allocation2 + $0x8] sm:$0xff]
    %v1589 = vld [vmem:[#allocation2 + $0x10] sm:$0xff]
    %v1590 = vld [vmem:[#allocation2 + $0x18] sm:$0xff]
    %v1591 = vld [vmem:[#allocation2 + $0x20] sm:$0xff]
    %v1592 = vld [vmem:[#allocation2 + $0x28] sm:$0xff]
    %v1593 = vld [vmem:[#allocation2 + $0x30] sm:$0xf]
    %v1594 = vld [vmem:[#allocation2 + $0x38] sm:$0xf]
    %v1595 = vadd.f32 %v1587, %v1589
    %v1596 = vadd.f32 %v1595, %v1591
    %vm1597 = vcmask 1043456
    %v1598 = vsel %vm1597, %v1593, 0.0
    %v1599 = vadd.f32 %v1596, %v1598
    %v1600 = vrot.slane %v1599, 4
    %v1601 = vadd.f32 %v1599, %v1600
    %v1602 = vrot.slane %v1601, 2
    %v1603 = vadd.f32 %v1601, %v1602
    %v1604 = vrot.slane %v1603, 1
    %v1605 = vadd.f32 %v1603, %v1604
    %vm1606 = vcmask 785408
    %v1607 = vsel %vm1606, %v1588, 0.0
    %v1608 = vsel %vm1606, %v1590, 0.0
    %v1609 = vadd.f32 %v1607, %v1608
    %v1610 = vsel %vm1606, %v1592, 0.0
    %v1611 = vadd.f32 %v1609, %v1610
    %v1612 = vsel %vm1585, %v1594, 0.0
    %v1613 = vadd.f32 %v1611, %v1612
    %v1614 = vrot.slane %v1613, 4
    %v1615 = vadd.f32 %v1613, %v1614
    %v1616 = vrot.slane %v1615, 2
    %v1617 = vadd.f32 %v1615, %v1616
    %v1618 = vrot.slane %v1617, 1
    %v1619 = vadd.f32 %v1617, %v1618
    %v1620 = vld [vmem:[%s4] sm:$0xff]
    %v1621 = vld [vmem:[%s4 + $0x8] sm:$0xff]
    %v1622 = vld [vmem:[%s4 + $0x10] sm:$0xff]
    %v1623 = vld [vmem:[%s4 + $0x18] sm:$0xff]
    %v1624 = vld [vmem:[%s4 + $0x20] sm:$0xff]
    %v1625 = vld [vmem:[%s4 + $0x28] sm:$0xff]
    %v1626 = vld [vmem:[%s4 + $0x30] sm:$0xff]
    %v1627 = vld [vmem:[%s4 + $0x38] sm:$0xff]
    %v1628 = vld [vmem:[%s4 + $0x40] sm:$0xff]
    %v1629 = vld [vmem:[%s4 + $0x48] sm:$0xff]
    %v1630 = vld [vmem:[%s4 + $0x50] sm:$0xff]
    %v1631 = vld [vmem:[%s4 + $0x58] sm:$0xff]
    %v1632 = vld [vmem:[%s4 + $0x60] sm:$0xff]
    %v1633 = vld [vmem:[%s4 + $0x68] sm:$0xff]
    %v1634 = vld [vmem:[%s4 + $0x70] sm:$0xff]
    %v1635 = vld [vmem:[%s4 + $0x78] sm:$0xff]
    %v1636 = vld [vmem:[%s4 + $0x80] sm:$0xff]
    %v1637 = vld [vmem:[%s4 + $0x88] sm:$0xff]
    %v1638 = vld [vmem:[%s4 + $0x90] sm:$0xff]
    %v1639 = vld [vmem:[%s4 + $0x98] sm:$0xff]
    %v1640 = vld [vmem:[%s4 + $0xa0] sm:$0xff]
    %v1641 = vld [vmem:[%s4 + $0xa8] sm:$0xff]
    %v1642 = vld [vmem:[%s4 + $0xb0] sm:$0xff]
    %v1643 = vld [vmem:[%s4 + $0xb8] sm:$0xff]
    %v1644 = vld [vmem:[%s4 + $0xc0] sm:$0xff]
    %v1645 = vld [vmem:[%s4 + $0xc8] sm:$0xff]
    %v1646 = vld [vmem:[%s4 + $0xd0] sm:$0xff]
    %v1647 = vld [vmem:[%s4 + $0xd8] sm:$0xff]
    %v1649 = vsel %vm1606, %v1619, 0
    %1651 = vmatpush.msra.mxu0 %v1635
    %1652 = vmatpush.msra.mxu0 %v1634
    %1653 = vmatpush.msra.mxu0 %v1633
    %1654 = vmatpush.msra.mxu0 %v1632
    %1655 = vmatpush.msra.mxu0 %v1631
    %1656 = vmatpush.msra.mxu0 %v1630
    %1657 = vmatpush.msra.mxu0 %v1629
    %1658 = vmatpush.msra.mxu0 %v1628
    %1659 = vmatpush.msra.mxu0 %v1627
    %1660 = vmatpush.msra.mxu0 %v1626
    %1661 = vmatpush.msra.mxu0 %v1625
    %1662 = vmatpush.msra.mxu0 %v1624
    %1663 = vmatpush.msra.mxu0 %v1623
    %1664 = vmatpush.msra.mxu0 %v1622
    %1665 = vmatpush.msra.mxu0 %v1621
    %1666 = vmatpush.msra.mxu0 %v1620
    %1667 = vmatmul.f32.gmra.mxu0 %v1605
    %v1668 = vpop.f32.mrf.mxu0
    %v1669 = vadd.f32 0.0, %v1668
    %1670 = vdwg.mxu0
    %1671 = vmatpush.msra.mxu0 0.0
    %1672 = vmatpush.msra.mxu0 0.0
    %1673 = vmatpush.msra.mxu0 0.0
    %1674 = vmatpush.msra.mxu0 0.0
    %1675 = vmatpush.msra.mxu0 %v1647
    %1676 = vmatpush.msra.mxu0 %v1646
    %1677 = vmatpush.msra.mxu0 %v1645
    %1678 = vmatpush.msra.mxu0 %v1644
    %1679 = vmatpush.msra.mxu0 %v1643
    %1680 = vmatpush.msra.mxu0 %v1642
    %1681 = vmatpush.msra.mxu0 %v1641
    %1682 = vmatpush.msra.mxu0 %v1640
    %1683 = vmatpush.msra.mxu0 %v1639
    %1684 = vmatpush.msra.mxu0 %v1638
    %1685 = vmatpush.msra.mxu0 %v1637
    %1686 = vmatpush.msra.mxu0 %v1636
    %1687 = vmatmul.f32.gmra.mxu0 %v1649
    %v1688 = vpop.f32.mrf.mxu0
    %v1689 = vadd.f32 %v1669, %v1688
    %1690 = vdwg.mxu0
    %v1691 = vmul.f32 %v1689, 0.0025510204
    %v1692 = vld [vmem:[%s5] sm:$0xff]
    %v1693 = vld [vmem:[%s5 + $0x8] sm:$0xff]
    %v1694 = vld [vmem:[%s5 + $0x10] sm:$0xff]
    %v1695 = vld [vmem:[%s5 + $0x18] sm:$0xff]
    %vm1696 = vcmask 130048
    %v1698 = vsel %vm1696, %v1691, 0
    %1700 = vmatpush.msra.mxu0 0.0
    %1701 = vmatpush.msra.mxu0 0.0
    %1702 = vmatpush.msra.mxu0 0.0
    %1703 = vmatpush.msra.mxu0 0.0
    %1704 = vmatpush.msra.mxu0 0.0
    %1705 = vmatpush.msra.mxu0 0.0
    %1706 = vmatpush.msra.mxu0 0.0
    %1707 = vmatpush.msra.mxu0 0.0
    %1708 = vmatpush.msra.mxu0 0.0
    %1709 = vmatpush.msra.mxu0 0.0
    %1710 = vmatpush.msra.mxu0 0.0
    %1711 = vmatpush.msra.mxu0 0.0
    %1712 = vmatpush.msra.mxu0 0.0
    %1713 = vmatpush.msra.mxu0 0.0
    %1714 = vmatpush.msra.mxu0 %v1694
    %1715 = vmatpush.msra.mxu0 %v1692
    %1716 = vmatmul.f32.gmra.mxu0 %v1698
    %v1717 = vpop.f32.mrf.mxu0
    %v1718 = vadd.f32 0.0, %v1717
    %1719 = vdwg.mxu0
    %1720 = vmatpush.msra.mxu0 0.0
    %1721 = vmatpush.msra.mxu0 0.0
    %1722 = vmatpush.msra.mxu0 0.0
    %1723 = vmatpush.msra.mxu0 0.0
    %1724 = vmatpush.msra.mxu0 0.0
    %1725 = vmatpush.msra.mxu0 0.0
    %1726 = vmatpush.msra.mxu0 0.0
    %1727 = vmatpush.msra.mxu0 0.0
    %1728 = vmatpush.msra.mxu0 0.0
    %1729 = vmatpush.msra.mxu0 0.0
    %1730 = vmatpush.msra.mxu0 0.0
    %1731 = vmatpush.msra.mxu0 0.0
    %1732 = vmatpush.msra.mxu0 0.0
    %1733 = vmatpush.msra.mxu0 0.0
    %1734 = vmatpush.msra.mxu0 %v1695
    %1735 = vmatpush.msra.mxu0 %v1693
    %1736 = vmatmul.f32.gmra.mxu0 %v1698
    %v1737 = vpop.f32.mrf.mxu0
    %v1738 = vadd.f32 0.0, %v1737
    %1739 = vdwg.mxu0
    %v1740 = vperm.slane %v1718, 0
    %v1741 = vperm.slane %v1738, 0
    %v1742 = vsub.f32 %v1587, %v1740
    %v1743 = vsub.f32 %v1588, %v1741
    %v1744 = vsub.f32 %v1589, %v1740
    %v1745 = vsub.f32 %v1590, %v1741
    %v1746 = vsub.f32 %v1591, %v1740
    %v1747 = vsub.f32 %v1592, %v1741
    %v1748 = vsub.f32 %v1593, %v1740
    %v1749 = vsub.f32 %v1594, %v1741
    %v1750 = vmul.f32 %v1742, %v1742
    %v1751 = vmul.f32 %v1743, %v1743
    %v1752 = vmul.f32 %v1744, %v1744
    %v1753 = vmul.f32 %v1745, %v1745
    %v1754 = vmul.f32 %v1746, %v1746
    %v1755 = vmul.f32 %v1747, %v1747
    %v1756 = vmul.f32 %v1748, %v1748
    %v1757 = vmul.f32 %v1749, %v1749
    %v1758 = vadd.f32 %v1750, %v1752
    %v1759 = vadd.f32 %v1758, %v1754
    %v1760 = vsel %vm1597, %v1756, 0.0
    %v1761 = vadd.f32 %v1759, %v1760
    %v1762 = vrot.slane %v1761, 4
    %v1763 = vadd.f32 %v1761, %v1762
    %v1764 = vrot.slane %v1763, 2
    %v1765 = vadd.f32 %v1763, %v1764
    %v1766 = vrot.slane %v1765, 1
    %v1767 = vadd.f32 %v1765, %v1766
    %v1768 = vsel %vm1606, %v1751, 0.0
    %v1769 = vsel %vm1606, %v1753, 0.0
    %v1770 = vadd.f32 %v1768, %v1769
    %v1771 = vsel %vm1606, %v1755, 0.0
    %v1772 = vadd.f32 %v1770, %v1771
    %v1773 = vsel %vm1585, %v1757, 0.0
    %v1774 = vadd.f32 %v1772, %v1773
    %v1775 = vrot.slane %v1774, 4
    %v1776 = vadd.f32 %v1774, %v1775
    %v1777 = vrot.slane %v1776, 2
    %v1778 = vadd.f32 %v1776, %v1777
    %v1779 = vrot.slane %v1778, 1
    %v1780 = vadd.f32 %v1778, %v1779
    %v1782 = vsel %vm1606, %v1780, 0
    %1784 = vmatpush.msra.mxu0 %v1635
    %1785 = vmatpush.msra.mxu0 %v1634
    %1786 = vmatpush.msra.mxu0 %v1633
    %1787 = vmatpush.msra.mxu0 %v1632
    %1788 = vmatpush.msra.mxu0 %v1631
    %1789 = vmatpush.msra.mxu0 %v1630
    %1790 = vmatpush.msra.mxu0 %v1629
    %1791 = vmatpush.msra.mxu0 %v1628
    %1792 = vmatpush.msra.mxu0 %v1627
    %1793 = vmatpush.msra.mxu0 %v1626
    %1794 = vmatpush.msra.mxu0 %v1625
    %1795 = vmatpush.msra.mxu0 %v1624
    %1796 = vmatpush.msra.mxu0 %v1623
    %1797 = vmatpush.msra.mxu0 %v1622
    %1798 = vmatpush.msra.mxu0 %v1621
    %1799 = vmatpush.msra.mxu0 %v1620
    %1800 = vmatmul.f32.gmra.mxu0 %v1767
    %v1801 = vpop.f32.mrf.mxu0
    %v1802 = vadd.f32 0.0, %v1801
    %1803 = vdwg.mxu0
    %1804 = vmatpush.msra.mxu0 0.0
    %1805 = vmatpush.msra.mxu0 0.0
    %1806 = vmatpush.msra.mxu0 0.0
    %1807 = vmatpush.msra.mxu0 0.0
    %1808 = vmatpush.msra.mxu0 %v1647
    %1809 = vmatpush.msra.mxu0 %v1646
    %1810 = vmatpush.msra.mxu0 %v1645
    %1811 = vmatpush.msra.mxu0 %v1644
    %1812 = vmatpush.msra.mxu0 %v1643
    %1813 = vmatpush.msra.mxu0 %v1642
    %1814 = vmatpush.msra.mxu0 %v1641
    %1815 = vmatpush.msra.mxu0 %v1640
    %1816 = vmatpush.msra.mxu0 %v1639
    %1817 = vmatpush.msra.mxu0 %v1638
    %1818 = vmatpush.msra.mxu0 %v1637
    %1819 = vmatpush.msra.mxu0 %v1636
    %1820 = vmatmul.f32.gmra.mxu0 %v1782
    %v1821 = vpop.f32.mrf.mxu0
    %v1822 = vadd.f32 %v1802, %v1821
    %1823 = vdwg.mxu0
    %v1824 = vmul.f32 %v1822, 0.0025510204
    %v1825 = vld [vmem:[%s8] sm:$0x1]
    %v1826 = vadd.f32 %v1824, 1e-05
    %v1827 = vrsqrt.pop %v1826
    %v1828 = vmul.f32 %v1827, %v1826
    %v1829 = vmul.f32 %v1828, %v1827
    %v1830 = vmul.f32 0.5, %v1829
    %v1831 = vsub.f32 1.5, %v1830
    %v1832 = vmul.f32 %v1827, %v1831
    %vm1833 = vweird.f32 %v1826
    %vm1834 = vweird.f32 %v1827
    %vm1835 = vmor %vm1833, %vm1834
    %v1836 = vsel %vm1835, %v1827, %v1832
    %v1837 = vmul.f32 %v1825, %v1836
    %v1839 = vsel %vm1696, %v1837, 0
    %1841 = vmatpush.msra.mxu0 0.0
    %1842 = vmatpush.msra.mxu0 0.0
    %1843 = vmatpush.msra.mxu0 0.0
    %1844 = vmatpush.msra.mxu0 0.0
    %1845 = vmatpush.msra.mxu0 0.0
    %1846 = vmatpush.msra.mxu0 0.0
    %1847 = vmatpush.msra.mxu0 0.0
    %1848 = vmatpush.msra.mxu0 0.0
    %1849 = vmatpush.msra.mxu0 0.0
    %1850 = vmatpush.msra.mxu0 0.0
    %1851 = vmatpush.msra.mxu0 0.0
    %1852 = vmatpush.msra.mxu0 0.0
    %1853 = vmatpush.msra.mxu0 0.0
    %1854 = vmatpush.msra.mxu0 0.0
    %1855 = vmatpush.msra.mxu0 %v1694
    %1856 = vmatpush.msra.mxu0 %v1692
    %1857 = vmatmul.f32.gmra.mxu0 %v1839
    %v1858 = vpop.f32.mrf.mxu0
    %v1859 = vadd.f32 0.0, %v1858
    %1860 = vdwg.mxu0
    %1861 = vmatpush.msra.mxu0 0.0
    %1862 = vmatpush.msra.mxu0 0.0
    %1863 = vmatpush.msra.mxu0 0.0
    %1864 = vmatpush.msra.mxu0 0.0
    %1865 = vmatpush.msra.mxu0 0.0
    %1866 = vmatpush.msra.mxu0 0.0
    %1867 = vmatpush.msra.mxu0 0.0
    %1868 = vmatpush.msra.mxu0 0.0
    %1869 = vmatpush.msra.mxu0 0.0
    %1870 = vmatpush.msra.mxu0 0.0
    %1871 = vmatpush.msra.mxu0 0.0
    %1872 = vmatpush.msra.mxu0 0.0
    %1873 = vmatpush.msra.mxu0 0.0
    %1874 = vmatpush.msra.mxu0 0.0
    %1875 = vmatpush.msra.mxu0 %v1695
    %1876 = vmatpush.msra.mxu0 %v1693
    %1877 = vmatmul.f32.gmra.mxu0 %v1839
    %v1878 = vpop.f32.mrf.mxu0
    %v1879 = vadd.f32 0.0, %v1878
    %1880 = vdwg.mxu0
    %v1881 = vperm.slane %v1859, 0
    %v1882 = vperm.slane %v1879, 0
    %v1883 = vmul.f32 %v1742, %v1881
    %v1884 = vmul.f32 %v1743, %v1882
    %v1885 = vmul.f32 %v1744, %v1881
    %v1886 = vmul.f32 %v1745, %v1882
    %v1887 = vmul.f32 %v1746, %v1881
    %v1888 = vmul.f32 %v1747, %v1882
    %v1889 = vmul.f32 %v1748, %v1881
    %v1890 = vmul.f32 %v1749, %v1882
    %v1891 = vld [vmem:[%s9] sm:$0x1]
    %v1893 = vsel %vm1696, %v1891, 0
    %1895 = vmatpush.msra.mxu0 0.0
    %1896 = vmatpush.msra.mxu0 0.0
    %1897 = vmatpush.msra.mxu0 0.0
    %1898 = vmatpush.msra.mxu0 0.0
    %1899 = vmatpush.msra.mxu0 0.0
    %1900 = vmatpush.msra.mxu0 0.0
    %1901 = vmatpush.msra.mxu0 0.0
    %1902 = vmatpush.msra.mxu0 0.0
    %1903 = vmatpush.msra.mxu0 0.0
    %1904 = vmatpush.msra.mxu0 0.0
    %1905 = vmatpush.msra.mxu0 0.0
    %1906 = vmatpush.msra.mxu0 0.0
    %1907 = vmatpush.msra.mxu0 0.0
    %1908 = vmatpush.msra.mxu0 0.0
    %1909 = vmatpush.msra.mxu0 %v1694
    %1910 = vmatpush.msra.mxu0 %v1692
    %1911 = vmatmul.f32.gmra.mxu0 %v1893
    %v1912 = vpop.f32.mrf.mxu0
    %v1913 = vadd.f32 0.0, %v1912
    %1914 = vdwg.mxu0
    %1915 = vmatpush.msra.mxu0 0.0
    %1916 = vmatpush.msra.mxu0 0.0
    %1917 = vmatpush.msra.mxu0 0.0
    %1918 = vmatpush.msra.mxu0 0.0
    %1919 = vmatpush.msra.mxu0 0.0
    %1920 = vmatpush.msra.mxu0 0.0
    %1921 = vmatpush.msra.mxu0 0.0
    %1922 = vmatpush.msra.mxu0 0.0
    %1923 = vmatpush.msra.mxu0 0.0
    %1924 = vmatpush.msra.mxu0 0.0
    %1925 = vmatpush.msra.mxu0 0.0
    %1926 = vmatpush.msra.mxu0 0.0
    %1927 = vmatpush.msra.mxu0 0.0
    %1928 = vmatpush.msra.mxu0 0.0
    %1929 = vmatpush.msra.mxu0 %v1695
    %1930 = vmatpush.msra.mxu0 %v1693
    %1931 = vmatmul.f32.gmra.mxu0 %v1893
    %v1932 = vpop.f32.mrf.mxu0
    %v1933 = vadd.f32 0.0, %v1932
    %1934 = vdwg.mxu0
    %v1935 = vperm.slane %v1913, 0
    %v1936 = vperm.slane %v1933, 0
    %v1937 = vadd.f32 %v1883, %v1935
    %v1938 = vadd.f32 %v1884, %v1936
    %v1939 = vadd.f32 %v1885, %v1935
    %v1940 = vadd.f32 %v1886, %v1936
    %v1941 = vadd.f32 %v1887, %v1935
    %v1942 = vadd.f32 %v1888, %v1936
    %v1943 = vadd.f32 %v1889, %v1935
    %v1944 = vadd.f32 %v1890, %v1936
    %v1945 = vmax.f32 %v1937, 0.0
    %v1946 = vmax.f32 %v1938, 0.0
    %v1947 = vmax.f32 %v1939, 0.0
    %v1948 = vmax.f32 %v1940, 0.0
    %v1949 = vmax.f32 %v1941, 0.0
    %v1950 = vmax.f32 %v1942, 0.0
    %v1951 = vmax.f32 %v1943, 0.0
    %v1952 = vmax.f32 %v1944, 0.0
    %1953 = vst [vmem:[#allocation2] sm:$0xff] %v1945
    %1954 = vst.msk [vmem:[#allocation2 + $0x8] sm:$0xff] %vm1606, %v1946
    %1955 = vst [vmem:[#allocation2 + $0x10] sm:$0xff] %v1947
    %1956 = vst.msk [vmem:[#allocation2 + $0x18] sm:$0xff] %vm1606, %v1948
    %1957 = vst [vmem:[#allocation2 + $0x20] sm:$0xff] %v1949
    %1958 = vst.msk [vmem:[#allocation2 + $0x28] sm:$0xff] %vm1606, %v1950
    %1959 = vst [vmem:[#allocation2 + $0x30] sm:$0xf] %v1951
    %1960 = vst.msk [vmem:[#allocation2 + $0x38] sm:$0xf] %vm1585, %v1952
    %v1961 = vld [vmem:[#allocation2] sm:$0x1f]
    %v1962 = vld [vmem:[#allocation2 + $0x8] sm:$0x1f]
    %v1963 = vld [vmem:[%s2] sm:$0xff]
    %v1964 = vld [vmem:[%s2 + $0x8] sm:$0xff]
    %v1965 = vld [vmem:[%s2 + $0x10] sm:$0xff]
    %v1966 = vld [vmem:[%s2 + $0x18] sm:$0xff]
    %v1967 = vld [vmem:[%s2 + $0x20] sm:$0xff]
    %v1968 = vld [vmem:[%s2 + $0x28] sm:$0xff]
    %v1969 = vld [vmem:[%s2 + $0x30] sm:$0xff]
    %v1970 = vld [vmem:[%s2 + $0x38] sm:$0xff]
    %v1971 = vld [vmem:[%s2 + $0x40] sm:$0xff]
    %v1972 = vld [vmem:[%s2 + $0x48] sm:$0xff]
    %v1973 = vld [vmem:[%s2 + $0x50] sm:$0xff]
    %v1974 = vld [vmem:[%s2 + $0x58] sm:$0xff]
    %v1975 = vld [vmem:[%s2 + $0x60] sm:$0xff]
    %v1976 = vld [vmem:[%s2 + $0x68] sm:$0xff]
    %v1977 = vld [vmem:[%s2 + $0x70] sm:$0xff]
    %v1978 = vld [vmem:[%s2 + $0x78] sm:$0xff]
    %v1979 = vld [vmem:[%s2 + $0x80] sm:$0xff]
    %v1980 = vld [vmem:[%s2 + $0x88] sm:$0xff]
    %v1981 = vld [vmem:[%s2 + $0x90] sm:$0xff]
    %v1982 = vld [vmem:[%s2 + $0x98] sm:$0xff]
    %v1983 = vld [vmem:[%s2 + $0xa0] sm:$0xff]
    %v1984 = vld [vmem:[%s2 + $0xa8] sm:$0xff]
    %v1985 = vld [vmem:[%s2 + $0xb0] sm:$0xff]
    %v1986 = vld [vmem:[%s2 + $0xb8] sm:$0xff]
    %v1987 = vld [vmem:[%s2 + $0xc0] sm:$0xff]
    %v1988 = vld [vmem:[%s2 + $0xc8] sm:$0xff]
    %v1989 = vld [vmem:[%s2 + $0xd0] sm:$0xff]
    %v1990 = vld [vmem:[%s2 + $0xd8] sm:$0xff]
    %v1991 = vld [vmem:[%s2 + $0xe0] sm:$0xff]
    %v1992 = vld [vmem:[%s2 + $0xe8] sm:$0xff]
    %v1993 = vld [vmem:[%s2 + $0xf0] sm:$0xff]
    %v1994 = vld [vmem:[%s2 + $0xf8] sm:$0xff]
    %v1995 = vld [vmem:[%s2 + $0x100] sm:$0xff]
    %v1996 = vld [vmem:[%s2 + $0x108] sm:$0xff]
    %v1997 = vld [vmem:[%s2 + $0x110] sm:$0xff]
    %v1998 = vld [vmem:[%s2 + $0x118] sm:$0xff]
    %v1999 = vld [vmem:[%s2 + $0x120] sm:$0xff]
    %v2000 = vld [vmem:[%s2 + $0x128] sm:$0xff]
    %v2001 = vld [vmem:[%s2 + $0x130] sm:$0xff]
    %v2002 = vld [vmem:[%s2 + $0x138] sm:$0xff]
    %v2003 = vld [vmem:[%s2 + $0x140] sm:$0xff]
    %v2004 = vld [vmem:[%s2 + $0x148] sm:$0xff]
    %v2005 = vld [vmem:[%s2 + $0x150] sm:$0xff]
    %v2006 = vld [vmem:[%s2 + $0x158] sm:$0xff]
    %v2007 = vld [vmem:[%s2 + $0x160] sm:$0xff]
    %v2008 = vld [vmem:[%s2 + $0x168] sm:$0xff]
    %v2009 = vld [vmem:[%s2 + $0x170] sm:$0xff]
    %v2010 = vld [vmem:[%s2 + $0x178] sm:$0xff]
    %v2011 = vld [vmem:[%s2 + $0x180] sm:$0xff]
    %v2012 = vld [vmem:[%s2 + $0x188] sm:$0xff]
    %v2013 = vld [vmem:[%s2 + $0x190] sm:$0xff]
    %v2014 = vld [vmem:[%s2 + $0x198] sm:$0xff]
    %v2015 = vld [vmem:[%s2 + $0x1a0] sm:$0xff]
    %v2016 = vld [vmem:[%s2 + $0x1a8] sm:$0xff]
    %v2017 = vld [vmem:[%s2 + $0x1b0] sm:$0xff]
    %v2018 = vld [vmem:[%s2 + $0x1b8] sm:$0xff]
    %v2019 = vld [vmem:[#allocation2] sm:$0x80]
    %v2020 = vld [vmem:[#allocation2 + $0x8] sm:$0x80]
    %v2021 = vld [vmem:[#allocation2 + $0x10] sm:$0xf]
    %v2022 = vld [vmem:[#allocation2 + $0x18] sm:$0xf]
    %s2023 = scalar_lea.vmem %s2, 448
    %v2024 = vld [vmem:[%s2023] sm:$0xff]
    %v2025 = vld [vmem:[%s2023 + $0x8] sm:$0xff]
    %v2026 = vld [vmem:[%s2023 + $0x10] sm:$0xff]
    %v2027 = vld [vmem:[%s2023 + $0x18] sm:$0xff]
    %v2028 = vld [vmem:[%s2023 + $0x20] sm:$0xff]
    %v2029 = vld [vmem:[%s2023 + $0x28] sm:$0xff]
    %v2030 = vld [vmem:[%s2023 + $0x30] sm:$0xff]
    %v2031 = vld [vmem:[%s2023 + $0x38] sm:$0xff]
    %v2032 = vld [vmem:[%s2023 + $0x40] sm:$0xff]
    %v2033 = vld [vmem:[%s2023 + $0x48] sm:$0xff]
    %v2034 = vld [vmem:[%s2023 + $0x50] sm:$0xff]
    %v2035 = vld [vmem:[%s2023 + $0x58] sm:$0xff]
    %v2036 = vld [vmem:[%s2023 + $0x60] sm:$0xff]
    %v2037 = vld [vmem:[%s2023 + $0x68] sm:$0xff]
    %v2038 = vld [vmem:[%s2023 + $0x70] sm:$0xff]
    %v2039 = vld [vmem:[%s2023 + $0x78] sm:$0xff]
    %v2040 = vld [vmem:[%s2023 + $0x80] sm:$0xff]
    %v2041 = vld [vmem:[%s2023 + $0x88] sm:$0xff]
    %v2042 = vld [vmem:[%s2023 + $0x90] sm:$0xff]
    %v2043 = vld [vmem:[%s2023 + $0x98] sm:$0xff]
    %v2044 = vld [vmem:[%s2023 + $0xa0] sm:$0xff]
    %v2045 = vld [vmem:[%s2023 + $0xa8] sm:$0xff]
    %v2046 = vld [vmem:[%s2023 + $0xb0] sm:$0xff]
    %v2047 = vld [vmem:[%s2023 + $0xb8] sm:$0xff]
    %v2048 = vld [vmem:[%s2023 + $0xc0] sm:$0xff]
    %v2049 = vld [vmem:[%s2023 + $0xc8] sm:$0xff]
    %v2050 = vld [vmem:[%s2023 + $0xd0] sm:$0xff]
    %v2051 = vld [vmem:[%s2023 + $0xd8] sm:$0xff]
    %v2052 = vld [vmem:[%s2023 + $0xe0] sm:$0xff]
    %v2053 = vld [vmem:[%s2023 + $0xe8] sm:$0xff]
    %v2054 = vld [vmem:[%s2023 + $0xf0] sm:$0xff]
    %v2055 = vld [vmem:[%s2023 + $0xf8] sm:$0xff]
    %v2056 = vld [vmem:[%s2023 + $0x100] sm:$0xff]
    %v2057 = vld [vmem:[%s2023 + $0x108] sm:$0xff]
    %v2058 = vld [vmem:[%s2023 + $0x110] sm:$0xff]
    %v2059 = vld [vmem:[%s2023 + $0x118] sm:$0xff]
    %v2060 = vld [vmem:[%s2023 + $0x120] sm:$0xff]
    %v2061 = vld [vmem:[%s2023 + $0x128] sm:$0xff]
    %v2062 = vld [vmem:[%s2023 + $0x130] sm:$0xff]
    %v2063 = vld [vmem:[%s2023 + $0x138] sm:$0xff]
    %v2064 = vld [vmem:[%s2023 + $0x140] sm:$0xff]
    %v2065 = vld [vmem:[%s2023 + $0x148] sm:$0xff]
    %v2066 = vld [vmem:[%s2023 + $0x150] sm:$0xff]
    %v2067 = vld [vmem:[%s2023 + $0x158] sm:$0xff]
    %v2068 = vld [vmem:[%s2023 + $0x160] sm:$0xff]
    %v2069 = vld [vmem:[%s2023 + $0x168] sm:$0xff]
    %v2070 = vld [vmem:[%s2023 + $0x170] sm:$0xff]
    %v2071 = vld [vmem:[%s2023 + $0x178] sm:$0xff]
    %v2072 = vld [vmem:[%s2023 + $0x180] sm:$0xff]
    %v2073 = vld [vmem:[%s2023 + $0x188] sm:$0xff]
    %v2074 = vld [vmem:[%s2023 + $0x190] sm:$0xff]
    %v2075 = vld [vmem:[%s2023 + $0x198] sm:$0xff]
    %v2076 = vld [vmem:[%s2023 + $0x1a0] sm:$0xff]
    %v2077 = vld [vmem:[%s2023 + $0x1a8] sm:$0xff]
    %v2078 = vld [vmem:[%s2023 + $0x1b0] sm:$0xff]
    %v2079 = vld [vmem:[%s2023 + $0x1b8] sm:$0xff]
    %vm2084 = vcmask 1040384
    %v2085 = vrot.slane %v2019, 7
    %v2086 = vrot.slane %v2021, 7
    %v2087 = vsel %vm2084, %v2085, %v2086
    %v2088 = vrot.slane %v2020, 7
    %v2089 = vrot.slane %v2022, 7
    %v2090 = vsel %vm2084, %v2088, %v2089
    %v2092 = vsel %vm1606, %v2090, 0
    %2094 = vmatpush.msra.mxu0 %v2054
    %2095 = vmatpush.msra.mxu0 %v2052
    %2096 = vmatpush.msra.mxu0 %v2050
    %2097 = vmatpush.msra.mxu0 %v2048
    %2098 = vmatpush.msra.mxu0 %v2046
    %2099 = vmatpush.msra.mxu0 %v2044
    %2100 = vmatpush.msra.mxu0 %v2042
    %2101 = vmatpush.msra.mxu0 %v2040
    %2102 = vmatpush.msra.mxu0 %v2038
    %2103 = vmatpush.msra.mxu0 %v2036
    %2104 = vmatpush.msra.mxu0 %v2034
    %2105 = vmatpush.msra.mxu0 %v2032
    %2106 = vmatpush.msra.mxu0 %v2030
    %2107 = vmatpush.msra.mxu0 %v2028
    %2108 = vmatpush.msra.mxu0 %v2026
    %2109 = vmatpush.msra.mxu0 %v2024
    %2110 = vmatmul.f32.gmra.mxu0 %v2087
    %v2111 = vpop.f32.mrf.mxu0
    %v2112 = vadd.f32 0.0, %v2111
    %2113 = vdwg.mxu0
    %2114 = vmatpush.msra.mxu0 0.0
    %2115 = vmatpush.msra.mxu0 0.0
    %2116 = vmatpush.msra.mxu0 0.0
    %2117 = vmatpush.msra.mxu0 0.0
    %2118 = vmatpush.msra.mxu0 %v2078
    %2119 = vmatpush.msra.mxu0 %v2076
    %2120 = vmatpush.msra.mxu0 %v2074
    %2121 = vmatpush.msra.mxu0 %v2072
    %2122 = vmatpush.msra.mxu0 %v2070
    %2123 = vmatpush.msra.mxu0 %v2068
    %2124 = vmatpush.msra.mxu0 %v2066
    %2125 = vmatpush.msra.mxu0 %v2064
    %2126 = vmatpush.msra.mxu0 %v2062
    %2127 = vmatpush.msra.mxu0 %v2060
    %2128 = vmatpush.msra.mxu0 %v2058
    %2129 = vmatpush.msra.mxu0 %v2056
    %2130 = vmatmul.f32.gmra.mxu0 %v2092
    %v2131 = vpop.f32.mrf.mxu0
    %v2132 = vadd.f32 %v2112, %v2131
    %2133 = vdwg.mxu0
    %2134 = vmatpush.msra.mxu0 %v2055
    %2135 = vmatpush.msra.mxu0 %v2053
    %2136 = vmatpush.msra.mxu0 %v2051
    %2137 = vmatpush.msra.mxu0 %v2049
    %2138 = vmatpush.msra.mxu0 %v2047
    %2139 = vmatpush.msra.mxu0 %v2045
    %2140 = vmatpush.msra.mxu0 %v2043
    %2141 = vmatpush.msra.mxu0 %v2041
    %2142 = vmatpush.msra.mxu0 %v2039
    %2143 = vmatpush.msra.mxu0 %v2037
    %2144 = vmatpush.msra.mxu0 %v2035
    %2145 = vmatpush.msra.mxu0 %v2033
    %2146 = vmatpush.msra.mxu0 %v2031
    %2147 = vmatpush.msra.mxu0 %v2029
    %2148 = vmatpush.msra.mxu0 %v2027
    %2149 = vmatpush.msra.mxu0 %v2025
    %2150 = vmatmul.f32.gmra.mxu0 %v2087
    %v2151 = vpop.f32.mrf.mxu0
    %v2152 = vadd.f32 0.0, %v2151
    %2153 = vdwg.mxu0
    %2154 = vmatpush.msra.mxu0 0.0
    %2155 = vmatpush.msra.mxu0 0.0
    %2156 = vmatpush.msra.mxu0 0.0
    %2157 = vmatpush.msra.mxu0 0.0
    %2158 = vmatpush.msra.mxu0 %v2079
    %2159 = vmatpush.msra.mxu0 %v2077
    %2160 = vmatpush.msra.mxu0 %v2075
    %2161 = vmatpush.msra.mxu0 %v2073
    %2162 = vmatpush.msra.mxu0 %v2071
    %2163 = vmatpush.msra.mxu0 %v2069
    %2164 = vmatpush.msra.mxu0 %v2067
    %2165 = vmatpush.msra.mxu0 %v2065
    %2166 = vmatpush.msra.mxu0 %v2063
    %2167 = vmatpush.msra.mxu0 %v2061
    %2168 = vmatpush.msra.mxu0 %v2059
    %2169 = vmatpush.msra.mxu0 %v2057
    %2170 = vmatmul.f32.gmra.mxu0 %v2092
    %v2171 = vpop.f32.mrf.mxu0
    %v2172 = vadd.f32 %v2152, %v2171
    %2173 = vdwg.mxu0
    %v2175 = vsel %vm1606, %v1962, 0
    %2177 = vmatpush.msra.mxu0 %v1993
    %2178 = vmatpush.msra.mxu0 %v1991
    %2179 = vmatpush.msra.mxu0 %v1989
    %2180 = vmatpush.msra.mxu0 %v1987
    %2181 = vmatpush.msra.mxu0 %v1985
    %2182 = vmatpush.msra.mxu0 %v1983
    %2183 = vmatpush.msra.mxu0 %v1981
    %2184 = vmatpush.msra.mxu0 %v1979
    %2185 = vmatpush.msra.mxu0 %v1977
    %2186 = vmatpush.msra.mxu0 %v1975
    %2187 = vmatpush.msra.mxu0 %v1973
    %2188 = vmatpush.msra.mxu0 %v1971
    %2189 = vmatpush.msra.mxu0 %v1969
    %2190 = vmatpush.msra.mxu0 %v1967
    %2191 = vmatpush.msra.mxu0 %v1965
    %2192 = vmatpush.msra.mxu0 %v1963
    %2193 = vmatmul.f32.gmra.mxu0 %v1961
    %v2194 = vpop.f32.mrf.mxu0
    %v2195 = vadd.f32 %v2132, %v2194
    %2196 = vdwg.mxu0
    %2197 = vmatpush.msra.mxu0 0.0
    %2198 = vmatpush.msra.mxu0 0.0
    %2199 = vmatpush.msra.mxu0 0.0
    %2200 = vmatpush.msra.mxu0 0.0
    %2201 = vmatpush.msra.mxu0 %v2017
    %2202 = vmatpush.msra.mxu0 %v2015
    %2203 = vmatpush.msra.mxu0 %v2013
    %2204 = vmatpush.msra.mxu0 %v2011
    %2205 = vmatpush.msra.mxu0 %v2009
    %2206 = vmatpush.msra.mxu0 %v2007
    %2207 = vmatpush.msra.mxu0 %v2005
    %2208 = vmatpush.msra.mxu0 %v2003
    %2209 = vmatpush.msra.mxu0 %v2001
    %2210 = vmatpush.msra.mxu0 %v1999
    %2211 = vmatpush.msra.mxu0 %v1997
    %2212 = vmatpush.msra.mxu0 %v1995
    %2213 = vmatmul.f32.gmra.mxu0 %v2175
    %v2214 = vpop.f32.mrf.mxu0
    %v2215 = vadd.f32 %v2195, %v2214
    %2216 = vdwg.mxu0
    %2217 = vmatpush.msra.mxu0 %v1994
    %2218 = vmatpush.msra.mxu0 %v1992
    %2219 = vmatpush.msra.mxu0 %v1990
    %2220 = vmatpush.msra.mxu0 %v1988
    %2221 = vmatpush.msra.mxu0 %v1986
    %2222 = vmatpush.msra.mxu0 %v1984
    %2223 = vmatpush.msra.mxu0 %v1982
    %2224 = vmatpush.msra.mxu0 %v1980
    %2225 = vmatpush.msra.mxu0 %v1978
    %2226 = vmatpush.msra.mxu0 %v1976
    %2227 = vmatpush.msra.mxu0 %v1974
    %2228 = vmatpush.msra.mxu0 %v1972
    %2229 = vmatpush.msra.mxu0 %v1970
    %2230 = vmatpush.msra.mxu0 %v1968
    %2231 = vmatpush.msra.mxu0 %v1966
    %2232 = vmatpush.msra.mxu0 %v1964
    %2233 = vmatmul.f32.gmra.mxu0 %v1961
    %v2234 = vpop.f32.mrf.mxu0
    %v2235 = vadd.f32 %v2172, %v2234
    %2236 = vdwg.mxu0
    %2237 = vmatpush.msra.mxu0 0.0
    %2238 = vmatpush.msra.mxu0 0.0
    %2239 = vmatpush.msra.mxu0 0.0
    %2240 = vmatpush.msra.mxu0 0.0
    %2241 = vmatpush.msra.mxu0 %v2018
    %2242 = vmatpush.msra.mxu0 %v2016
    %2243 = vmatpush.msra.mxu0 %v2014
    %2244 = vmatpush.msra.mxu0 %v2012
    %2245 = vmatpush.msra.mxu0 %v2010
    %2246 = vmatpush.msra.mxu0 %v2008
    %2247 = vmatpush.msra.mxu0 %v2006
    %2248 = vmatpush.msra.mxu0 %v2004
    %2249 = vmatpush.msra.mxu0 %v2002
    %2250 = vmatpush.msra.mxu0 %v2000
    %2251 = vmatpush.msra.mxu0 %v1998
    %2252 = vmatpush.msra.mxu0 %v1996
    %2253 = vmatmul.f32.gmra.mxu0 %v2175
    %v2254 = vpop.f32.mrf.mxu0
    %v2255 = vadd.f32 %v2235, %v2254
    %2256 = vdwg.mxu0
    %v2257 = vld [vmem:[#allocation2] sm:$0x3e]
    %v2258 = vld [vmem:[#allocation2 + $0x8] sm:$0x3e]
    %s2259 = scalar_lea.vmem %s2, 896
    %v2260 = vld [vmem:[%s2259] sm:$0xff]
    %v2261 = vld [vmem:[%s2259 + $0x8] sm:$0xff]
    %v2262 = vld [vmem:[%s2259 + $0x10] sm:$0xff]
    %v2263 = vld [vmem:[%s2259 + $0x18] sm:$0xff]
    %v2264 = vld [vmem:[%s2259 + $0x20] sm:$0xff]
    %v2265 = vld [vmem:[%s2259 + $0x28] sm:$0xff]
    %v2266 = vld [vmem:[%s2259 + $0x30] sm:$0xff]
    %v2267 = vld [vmem:[%s2259 + $0x38] sm:$0xff]
    %v2268 = vld [vmem:[%s2259 + $0x40] sm:$0xff]
    %v2269 = vld [vmem:[%s2259 + $0x48] sm:$0xff]
    %v2270 = vld [vmem:[%s2259 + $0x50] sm:$0xff]
    %v2271 = vld [vmem:[%s2259 + $0x58] sm:$0xff]
    %v2272 = vld [vmem:[%s2259 + $0x60] sm:$0xff]
    %v2273 = vld [vmem:[%s2259 + $0x68] sm:$0xff]
    %v2274 = vld [vmem:[%s2259 + $0x70] sm:$0xff]
    %v2275 = vld [vmem:[%s2259 + $0x78] sm:$0xff]
    %v2276 = vld [vmem:[%s2259 + $0x80] sm:$0xff]
    %v2277 = vld [vmem:[%s2259 + $0x88] sm:$0xff]
    %v2278 = vld [vmem:[%s2259 + $0x90] sm:$0xff]
    %v2279 = vld [vmem:[%s2259 + $0x98] sm:$0xff]
    %v2280 = vld [vmem:[%s2259 + $0xa0] sm:$0xff]
    %v2281 = vld [vmem:[%s2259 + $0xa8] sm:$0xff]
    %v2282 = vld [vmem:[%s2259 + $0xb0] sm:$0xff]
    %v2283 = vld [vmem:[%s2259 + $0xb8] sm:$0xff]
    %v2284 = vld [vmem:[%s2259 + $0xc0] sm:$0xff]
    %v2285 = vld [vmem:[%s2259 + $0xc8] sm:$0xff]
    %v2286 = vld [vmem:[%s2259 + $0xd0] sm:$0xff]
    %v2287 = vld [vmem:[%s2259 + $0xd8] sm:$0xff]
    %v2288 = vld [vmem:[%s2259 + $0xe0] sm:$0xff]
    %v2289 = vld [vmem:[%s2259 + $0xe8] sm:$0xff]
    %v2290 = vld [vmem:[%s2259 + $0xf0] sm:$0xff]
    %v2291 = vld [vmem:[%s2259 + $0xf8] sm:$0xff]
    %v2292 = vld [vmem:[%s2259 + $0x100] sm:$0xff]
    %v2293 = vld [vmem:[%s2259 + $0x108] sm:$0xff]
    %v2294 = vld [vmem:[%s2259 + $0x110] sm:$0xff]
    %v2295 = vld [vmem:[%s2259 + $0x118] sm:$0xff]
    %v2296 = vld [vmem:[%s2259 + $0x120] sm:$0xff]
    %v2297 = vld [vmem:[%s2259 + $0x128] sm:$0xff]
    %v2298 = vld [vmem:[%s2259 + $0x130] sm:$0xff]
    %v2299 = vld [vmem:[%s2259 + $0x138] sm:$0xff]
    %v2300 = vld [vmem:[%s2259 + $0x140] sm:$0xff]
    %v2301 = vld [vmem:[%s2259 + $0x148] sm:$0xff]
    %v2302 = vld [vmem:[%s2259 + $0x150] sm:$0xff]
    %v2303 = vld [vmem:[%s2259 + $0x158] sm:$0xff]
    %v2304 = vld [vmem:[%s2259 + $0x160] sm:$0xff]
    %v2305 = vld [vmem:[%s2259 + $0x168] sm:$0xff]
    %v2306 = vld [vmem:[%s2259 + $0x170] sm:$0xff]
    %v2307 = vld [vmem:[%s2259 + $0x178] sm:$0xff]
    %v2308 = vld [vmem:[%s2259 + $0x180] sm:$0xff]
    %v2309 = vld [vmem:[%s2259 + $0x188] sm:$0xff]
    %v2310 = vld [vmem:[%s2259 + $0x190] sm:$0xff]
    %v2311 = vld [vmem:[%s2259 + $0x198] sm:$0xff]
    %v2312 = vld [vmem:[%s2259 + $0x1a0] sm:$0xff]
    %v2313 = vld [vmem:[%s2259 + $0x1a8] sm:$0xff]
    %v2314 = vld [vmem:[%s2259 + $0x1b0] sm:$0xff]
    %v2315 = vld [vmem:[%s2259 + $0x1b8] sm:$0xff]
    %v2318 = vrot.slane %v2257, 1
    %v2319 = vrot.slane %v2258, 1
    %v2321 = vsel %vm1606, %v2319, 0
    %2323 = vmatpush.msra.mxu0 %v2290
    %2324 = vmatpush.msra.mxu0 %v2288
    %2325 = vmatpush.msra.mxu0 %v2286
    %2326 = vmatpush.msra.mxu0 %v2284
    %2327 = vmatpush.msra.mxu0 %v2282
    %2328 = vmatpush.msra.mxu0 %v2280
    %2329 = vmatpush.msra.mxu0 %v2278
    %2330 = vmatpush.msra.mxu0 %v2276
    %2331 = vmatpush.msra.mxu0 %v2274
    %2332 = vmatpush.msra.mxu0 %v2272
    %2333 = vmatpush.msra.mxu0 %v2270
    %2334 = vmatpush.msra.mxu0 %v2268
    %2335 = vmatpush.msra.mxu0 %v2266
    %2336 = vmatpush.msra.mxu0 %v2264
    %2337 = vmatpush.msra.mxu0 %v2262
    %2338 = vmatpush.msra.mxu0 %v2260
    %2339 = vmatmul.f32.gmra.mxu0 %v2318
    %v2340 = vpop.f32.mrf.mxu0
    %v2341 = vadd.f32 0.0, %v2340
    %2342 = vdwg.mxu0
    %2343 = vmatpush.msra.mxu0 0.0
    %2344 = vmatpush.msra.mxu0 0.0
    %2345 = vmatpush.msra.mxu0 0.0
    %2346 = vmatpush.msra.mxu0 0.0
    %2347 = vmatpush.msra.mxu0 %v2314
    %2348 = vmatpush.msra.mxu0 %v2312
    %2349 = vmatpush.msra.mxu0 %v2310
    %2350 = vmatpush.msra.mxu0 %v2308
    %2351 = vmatpush.msra.mxu0 %v2306
    %2352 = vmatpush.msra.mxu0 %v2304
    %2353 = vmatpush.msra.mxu0 %v2302
    %2354 = vmatpush.msra.mxu0 %v2300
    %2355 = vmatpush.msra.mxu0 %v2298
    %2356 = vmatpush.msra.mxu0 %v2296
    %2357 = vmatpush.msra.mxu0 %v2294
    %2358 = vmatpush.msra.mxu0 %v2292
    %2359 = vmatmul.f32.gmra.mxu0 %v2321
    %v2360 = vpop.f32.mrf.mxu0
    %v2361 = vadd.f32 %v2341, %v2360
    %2362 = vdwg.mxu0
    %2363 = vmatpush.msra.mxu0 %v2291
    %2364 = vmatpush.msra.mxu0 %v2289
    %2365 = vmatpush.msra.mxu0 %v2287
    %2366 = vmatpush.msra.mxu0 %v2285
    %2367 = vmatpush.msra.mxu0 %v2283
    %2368 = vmatpush.msra.mxu0 %v2281
    %2369 = vmatpush.msra.mxu0 %v2279
    %2370 = vmatpush.msra.mxu0 %v2277
    %2371 = vmatpush.msra.mxu0 %v2275
    %2372 = vmatpush.msra.mxu0 %v2273
    %2373 = vmatpush.msra.mxu0 %v2271
    %2374 = vmatpush.msra.mxu0 %v2269
    %2375 = vmatpush.msra.mxu0 %v2267
    %2376 = vmatpush.msra.mxu0 %v2265
    %2377 = vmatpush.msra.mxu0 %v2263
    %2378 = vmatpush.msra.mxu0 %v2261
    %2379 = vmatmul.f32.gmra.mxu0 %v2318
    %v2380 = vpop.f32.mrf.mxu0
    %v2381 = vadd.f32 0.0, %v2380
    %2382 = vdwg.mxu0
    %2383 = vmatpush.msra.mxu0 0.0
    %2384 = vmatpush.msra.mxu0 0.0
    %2385 = vmatpush.msra.mxu0 0.0
    %2386 = vmatpush.msra.mxu0 0.0
    %2387 = vmatpush.msra.mxu0 %v2315
    %2388 = vmatpush.msra.mxu0 %v2313
    %2389 = vmatpush.msra.mxu0 %v2311
    %2390 = vmatpush.msra.mxu0 %v2309
    %2391 = vmatpush.msra.mxu0 %v2307
    %2392 = vmatpush.msra.mxu0 %v2305
    %2393 = vmatpush.msra.mxu0 %v2303
    %2394 = vmatpush.msra.mxu0 %v2301
    %2395 = vmatpush.msra.mxu0 %v2299
    %2396 = vmatpush.msra.mxu0 %v2297
    %2397 = vmatpush.msra.mxu0 %v2295
    %2398 = vmatpush.msra.mxu0 %v2293
    %2399 = vmatmul.f32.gmra.mxu0 %v2321
    %v2400 = vpop.f32.mrf.mxu0
    %v2401 = vadd.f32 %v2381, %v2400
    %2402 = vdwg.mxu0
    %v2403 = vadd.f32 %v2215, %v2361
    %v2404 = vadd.f32 %v2255, %v2401
    %v2405 = vld [vmem:[#allocation2 + $0x10] sm:$0x1f]
    %v2406 = vld [vmem:[#allocation2 + $0x18] sm:$0x1f]
    %s2407 = scalar_lea.vmem %s2, 1344
    %v2408 = vld [vmem:[%s2407] sm:$0xff]
    %v2409 = vld [vmem:[%s2407 + $0x8] sm:$0xff]
    %v2410 = vld [vmem:[%s2407 + $0x10] sm:$0xff]
    %v2411 = vld [vmem:[%s2407 + $0x18] sm:$0xff]
    %v2412 = vld [vmem:[%s2407 + $0x20] sm:$0xff]
    %v2413 = vld [vmem:[%s2407 + $0x28] sm:$0xff]
    %v2414 = vld [vmem:[%s2407 + $0x30] sm:$0xff]
    %v2415 = vld [vmem:[%s2407 + $0x38] sm:$0xff]
    %v2416 = vld [vmem:[%s2407 + $0x40] sm:$0xff]
    %v2417 = vld [vmem:[%s2407 + $0x48] sm:$0xff]
    %v2418 = vld [vmem:[%s2407 + $0x50] sm:$0xff]
    %v2419 = vld [vmem:[%s2407 + $0x58] sm:$0xff]
    %v2420 = vld [vmem:[%s2407 + $0x60] sm:$0xff]
    %v2421 = vld [vmem:[%s2407 + $0x68] sm:$0xff]
    %v2422 = vld [vmem:[%s2407 + $0x70] sm:$0xff]
    %v2423 = vld [vmem:[%s2407 + $0x78] sm:$0xff]
    %v2424 = vld [vmem:[%s2407 + $0x80] sm:$0xff]
    %v2425 = vld [vmem:[%s2407 + $0x88] sm:$0xff]
    %v2426 = vld [vmem:[%s2407 + $0x90] sm:$0xff]
    %v2427 = vld [vmem:[%s2407 + $0x98] sm:$0xff]
    %v2428 = vld [vmem:[%s2407 + $0xa0] sm:$0xff]
    %v2429 = vld [vmem:[%s2407 + $0xa8] sm:$0xff]
    %v2430 = vld [vmem:[%s2407 + $0xb0] sm:$0xff]
    %v2431 = vld [vmem:[%s2407 + $0xb8] sm:$0xff]
    %v2432 = vld [vmem:[%s2407 + $0xc0] sm:$0xff]
    %v2433 = vld [vmem:[%s2407 + $0xc8] sm:$0xff]
    %v2434 = vld [vmem:[%s2407 + $0xd0] sm:$0xff]
    %v2435 = vld [vmem:[%s2407 + $0xd8] sm:$0xff]
    %v2436 = vld [vmem:[%s2407 + $0xe0] sm:$0xff]
    %v2437 = vld [vmem:[%s2407 + $0xe8] sm:$0xff]
    %v2438 = vld [vmem:[%s2407 + $0xf0] sm:$0xff]
    %v2439 = vld [vmem:[%s2407 + $0xf8] sm:$0xff]
    %v2440 = vld [vmem:[%s2407 + $0x100] sm:$0xff]
    %v2441 = vld [vmem:[%s2407 + $0x108] sm:$0xff]
    %v2442 = vld [vmem:[%s2407 + $0x110] sm:$0xff]
    %v2443 = vld [vmem:[%s2407 + $0x118] sm:$0xff]
    %v2444 = vld [vmem:[%s2407 + $0x120] sm:$0xff]
    %v2445 = vld [vmem:[%s2407 + $0x128] sm:$0xff]
    %v2446 = vld [vmem:[%s2407 + $0x130] sm:$0xff]
    %v2447 = vld [vmem:[%s2407 + $0x138] sm:$0xff]
    %v2448 = vld [vmem:[%s2407 + $0x140] sm:$0xff]
    %v2449 = vld [vmem:[%s2407 + $0x148] sm:$0xff]
    %v2450 = vld [vmem:[%s2407 + $0x150] sm:$0xff]
    %v2451 = vld [vmem:[%s2407 + $0x158] sm:$0xff]
    %v2452 = vld [vmem:[%s2407 + $0x160] sm:$0xff]
    %v2453 = vld [vmem:[%s2407 + $0x168] sm:$0xff]
    %v2454 = vld [vmem:[%s2407 + $0x170] sm:$0xff]
    %v2455 = vld [vmem:[%s2407 + $0x178] sm:$0xff]
    %v2456 = vld [vmem:[%s2407 + $0x180] sm:$0xff]
    %v2457 = vld [vmem:[%s2407 + $0x188] sm:$0xff]
    %v2458 = vld [vmem:[%s2407 + $0x190] sm:$0xff]
    %v2459 = vld [vmem:[%s2407 + $0x198] sm:$0xff]
    %v2460 = vld [vmem:[%s2407 + $0x1a0] sm:$0xff]
    %v2461 = vld [vmem:[%s2407 + $0x1a8] sm:$0xff]
    %v2462 = vld [vmem:[%s2407 + $0x1b0] sm:$0xff]
    %v2463 = vld [vmem:[%s2407 + $0x1b8] sm:$0xff]
    %v2465 = vsel %vm1606, %v2406, 0
    %2467 = vmatpush.msra.mxu0 %v2438
    %2468 = vmatpush.msra.mxu0 %v2436
    %2469 = vmatpush.msra.mxu0 %v2434
    %2470 = vmatpush.msra.mxu0 %v2432
    %2471 = vmatpush.msra.mxu0 %v2430
    %2472 = vmatpush.msra.mxu0 %v2428
    %2473 = vmatpush.msra.mxu0 %v2426
    %2474 = vmatpush.msra.mxu0 %v2424
    %2475 = vmatpush.msra.mxu0 %v2422
    %2476 = vmatpush.msra.mxu0 %v2420
    %2477 = vmatpush.msra.mxu0 %v2418
    %2478 = vmatpush.msra.mxu0 %v2416
    %2479 = vmatpush.msra.mxu0 %v2414
    %2480 = vmatpush.msra.mxu0 %v2412
    %2481 = vmatpush.msra.mxu0 %v2410
    %2482 = vmatpush.msra.mxu0 %v2408
    %2483 = vmatmul.f32.gmra.mxu0 %v2405
    %v2484 = vpop.f32.mrf.mxu0
    %v2485 = vadd.f32 0.0, %v2484
    %2486 = vdwg.mxu0
    %2487 = vmatpush.msra.mxu0 0.0
    %2488 = vmatpush.msra.mxu0 0.0
    %2489 = vmatpush.msra.mxu0 0.0
    %2490 = vmatpush.msra.mxu0 0.0
    %2491 = vmatpush.msra.mxu0 %v2462
    %2492 = vmatpush.msra.mxu0 %v2460
    %2493 = vmatpush.msra.mxu0 %v2458
    %2494 = vmatpush.msra.mxu0 %v2456
    %2495 = vmatpush.msra.mxu0 %v2454
    %2496 = vmatpush.msra.mxu0 %v2452
    %2497 = vmatpush.msra.mxu0 %v2450
    %2498 = vmatpush.msra.mxu0 %v2448
    %2499 = vmatpush.msra.mxu0 %v2446
    %2500 = vmatpush.msra.mxu0 %v2444
    %2501 = vmatpush.msra.mxu0 %v2442
    %2502 = vmatpush.msra.mxu0 %v2440
    %2503 = vmatmul.f32.gmra.mxu0 %v2465
    %v2504 = vpop.f32.mrf.mxu0
    %v2505 = vadd.f32 %v2485, %v2504
    %2506 = vdwg.mxu0
    %2507 = vmatpush.msra.mxu0 %v2439
    %2508 = vmatpush.msra.mxu0 %v2437
    %2509 = vmatpush.msra.mxu0 %v2435
    %2510 = vmatpush.msra.mxu0 %v2433
    %2511 = vmatpush.msra.mxu0 %v2431
    %2512 = vmatpush.msra.mxu0 %v2429
    %2513 = vmatpush.msra.mxu0 %v2427
    %2514 = vmatpush.msra.mxu0 %v2425
    %2515 = vmatpush.msra.mxu0 %v2423
    %2516 = vmatpush.msra.mxu0 %v2421
    %2517 = vmatpush.msra.mxu0 %v2419
    %2518 = vmatpush.msra.mxu0 %v2417
    %2519 = vmatpush.msra.mxu0 %v2415
    %2520 = vmatpush.msra.mxu0 %v2413
    %2521 = vmatpush.msra.mxu0 %v2411
    %2522 = vmatpush.msra.mxu0 %v2409
    %2523 = vmatmul.f32.gmra.mxu0 %v2405
    %v2524 = vpop.f32.mrf.mxu0
    %v2525 = vadd.f32 0.0, %v2524
    %2526 = vdwg.mxu0
    %2527 = vmatpush.msra.mxu0 0.0
    %2528 = vmatpush.msra.mxu0 0.0
    %2529 = vmatpush.msra.mxu0 0.0
    %2530 = vmatpush.msra.mxu0 0.0
    %2531 = vmatpush.msra.mxu0 %v2463
    %2532 = vmatpush.msra.mxu0 %v2461
    %2533 = vmatpush.msra.mxu0 %v2459
    %2534 = vmatpush.msra.mxu0 %v2457
    %2535 = vmatpush.msra.mxu0 %v2455
    %2536 = vmatpush.msra.mxu0 %v2453
    %2537 = vmatpush.msra.mxu0 %v2451
    %2538 = vmatpush.msra.mxu0 %v2449
    %2539 = vmatpush.msra.mxu0 %v2447
    %2540 = vmatpush.msra.mxu0 %v2445
    %2541 = vmatpush.msra.mxu0 %v2443
    %2542 = vmatpush.msra.mxu0 %v2441
    %2543 = vmatmul.f32.gmra.mxu0 %v2465
    %v2544 = vpop.f32.mrf.mxu0
    %v2545 = vadd.f32 %v2525, %v2544
    %2546 = vdwg.mxu0
    %v2547 = vadd.f32 %v2403, %v2505
    %v2548 = vadd.f32 %v2404, %v2545
    %v2549 = vld [vmem:[#allocation2] sm:$0x7c]
    %v2550 = vld [vmem:[#allocation2 + $0x8] sm:$0x7c]
    %s2551 = scalar_lea.vmem %s2, 1792
    %v2552 = vld [vmem:[%s2551] sm:$0xff]
    %v2553 = vld [vmem:[%s2551 + $0x8] sm:$0xff]
    %v2554 = vld [vmem:[%s2551 + $0x10] sm:$0xff]
    %v2555 = vld [vmem:[%s2551 + $0x18] sm:$0xff]
    %v2556 = vld [vmem:[%s2551 + $0x20] sm:$0xff]
    %v2557 = vld [vmem:[%s2551 + $0x28] sm:$0xff]
    %v2558 = vld [vmem:[%s2551 + $0x30] sm:$0xff]
    %v2559 = vld [vmem:[%s2551 + $0x38] sm:$0xff]
    %v2560 = vld [vmem:[%s2551 + $0x40] sm:$0xff]
    %v2561 = vld [vmem:[%s2551 + $0x48] sm:$0xff]
    %v2562 = vld [vmem:[%s2551 + $0x50] sm:$0xff]
    %v2563 = vld [vmem:[%s2551 + $0x58] sm:$0xff]
    %v2564 = vld [vmem:[%s2551 + $0x60] sm:$0xff]
    %v2565 = vld [vmem:[%s2551 + $0x68] sm:$0xff]
    %v2566 = vld [vmem:[%s2551 + $0x70] sm:$0xff]
    %v2567 = vld [vmem:[%s2551 + $0x78] sm:$0xff]
    %v2568 = vld [vmem:[%s2551 + $0x80] sm:$0xff]
    %v2569 = vld [vmem:[%s2551 + $0x88] sm:$0xff]
    %v2570 = vld [vmem:[%s2551 + $0x90] sm:$0xff]
    %v2571 = vld [vmem:[%s2551 + $0x98] sm:$0xff]
    %v2572 = vld [vmem:[%s2551 + $0xa0] sm:$0xff]
    %v2573 = vld [vmem:[%s2551 + $0xa8] sm:$0xff]
    %v2574 = vld [vmem:[%s2551 + $0xb0] sm:$0xff]
    %v2575 = vld [vmem:[%s2551 + $0xb8] sm:$0xff]
    %v2576 = vld [vmem:[%s2551 + $0xc0] sm:$0xff]
    %v2577 = vld [vmem:[%s2551 + $0xc8] sm:$0xff]
    %v2578 = vld [vmem:[%s2551 + $0xd0] sm:$0xff]
    %v2579 = vld [vmem:[%s2551 + $0xd8] sm:$0xff]
    %v2580 = vld [vmem:[%s2551 + $0xe0] sm:$0xff]
    %v2581 = vld [vmem:[%s2551 + $0xe8] sm:$0xff]
    %v2582 = vld [vmem:[%s2551 + $0xf0] sm:$0xff]
    %v2583 = vld [vmem:[%s2551 + $0xf8] sm:$0xff]
    %v2584 = vld [vmem:[%s2551 + $0x100] sm:$0xff]
    %v2585 = vld [vmem:[%s2551 + $0x108] sm:$0xff]
    %v2586 = vld [vmem:[%s2551 + $0x110] sm:$0xff]
    %v2587 = vld [vmem:[%s2551 + $0x118] sm:$0xff]
    %v2588 = vld [vmem:[%s2551 + $0x120] sm:$0xff]
    %v2589 = vld [vmem:[%s2551 + $0x128] sm:$0xff]
    %v2590 = vld [vmem:[%s2551 + $0x130] sm:$0xff]
    %v2591 = vld [vmem:[%s2551 + $0x138] sm:$0xff]
    %v2592 = vld [vmem:[%s2551 + $0x140] sm:$0xff]
    %v2593 = vld [vmem:[%s2551 + $0x148] sm:$0xff]
    %v2594 = vld [vmem:[%s2551 + $0x150] sm:$0xff]
    %v2595 = vld [vmem:[%s2551 + $0x158] sm:$0xff]
    %v2596 = vld [vmem:[%s2551 + $0x160] sm:$0xff]
    %v2597 = vld [vmem:[%s2551 + $0x168] sm:$0xff]
    %v2598 = vld [vmem:[%s2551 + $0x170] sm:$0xff]
    %v2599 = vld [vmem:[%s2551 + $0x178] sm:$0xff]
    %v2600 = vld [vmem:[%s2551 + $0x180] sm:$0xff]
    %v2601 = vld [vmem:[%s2551 + $0x188] sm:$0xff]
    %v2602 = vld [vmem:[%s2551 + $0x190] sm:$0xff]
    %v2603 = vld [vmem:[%s2551 + $0x198] sm:$0xff]
    %v2604 = vld [vmem:[%s2551 + $0x1a0] sm:$0xff]
    %v2605 = vld [vmem:[%s2551 + $0x1a8] sm:$0xff]
    %v2606 = vld [vmem:[%s2551 + $0x1b0] sm:$0xff]
    %v2607 = vld [vmem:[%s2551 + $0x1b8] sm:$0xff]
    %v2610 = vrot.slane %v2549, 2
    %v2611 = vrot.slane %v2550, 2
    %v2613 = vsel %vm1606, %v2611, 0
    %2615 = vmatpush.msra.mxu0 %v2582
    %2616 = vmatpush.msra.mxu0 %v2580
    %2617 = vmatpush.msra.mxu0 %v2578
    %2618 = vmatpush.msra.mxu0 %v2576
    %2619 = vmatpush.msra.mxu0 %v2574
    %2620 = vmatpush.msra.mxu0 %v2572
    %2621 = vmatpush.msra.mxu0 %v2570
    %2622 = vmatpush.msra.mxu0 %v2568
    %2623 = vmatpush.msra.mxu0 %v2566
    %2624 = vmatpush.msra.mxu0 %v2564
    %2625 = vmatpush.msra.mxu0 %v2562
    %2626 = vmatpush.msra.mxu0 %v2560
    %2627 = vmatpush.msra.mxu0 %v2558
    %2628 = vmatpush.msra.mxu0 %v2556
    %2629 = vmatpush.msra.mxu0 %v2554
    %2630 = vmatpush.msra.mxu0 %v2552
    %2631 = vmatmul.f32.gmra.mxu0 %v2610
    %v2632 = vpop.f32.mrf.mxu0
    %v2633 = vadd.f32 0.0, %v2632
    %2634 = vdwg.mxu0
    %2635 = vmatpush.msra.mxu0 0.0
    %2636 = vmatpush.msra.mxu0 0.0
    %2637 = vmatpush.msra.mxu0 0.0
    %2638 = vmatpush.msra.mxu0 0.0
    %2639 = vmatpush.msra.mxu0 %v2606
    %2640 = vmatpush.msra.mxu0 %v2604
    %2641 = vmatpush.msra.mxu0 %v2602
    %2642 = vmatpush.msra.mxu0 %v2600
    %2643 = vmatpush.msra.mxu0 %v2598
    %2644 = vmatpush.msra.mxu0 %v2596
    %2645 = vmatpush.msra.mxu0 %v2594
    %2646 = vmatpush.msra.mxu0 %v2592
    %2647 = vmatpush.msra.mxu0 %v2590
    %2648 = vmatpush.msra.mxu0 %v2588
    %2649 = vmatpush.msra.mxu0 %v2586
    %2650 = vmatpush.msra.mxu0 %v2584
    %2651 = vmatmul.f32.gmra.mxu0 %v2613
    %v2652 = vpop.f32.mrf.mxu0
    %v2653 = vadd.f32 %v2633, %v2652
    %2654 = vdwg.mxu0
    %2655 = vmatpush.msra.mxu0 %v2583
    %2656 = vmatpush.msra.mxu0 %v2581
    %2657 = vmatpush.msra.mxu0 %v2579
    %2658 = vmatpush.msra.mxu0 %v2577
    %2659 = vmatpush.msra.mxu0 %v2575
    %2660 = vmatpush.msra.mxu0 %v2573
    %2661 = vmatpush.msra.mxu0 %v2571
    %2662 = vmatpush.msra.mxu0 %v2569
    %2663 = vmatpush.msra.mxu0 %v2567
    %2664 = vmatpush.msra.mxu0 %v2565
    %2665 = vmatpush.msra.mxu0 %v2563
    %2666 = vmatpush.msra.mxu0 %v2561
    %2667 = vmatpush.msra.mxu0 %v2559
    %2668 = vmatpush.msra.mxu0 %v2557
    %2669 = vmatpush.msra.mxu0 %v2555
    %2670 = vmatpush.msra.mxu0 %v2553
    %2671 = vmatmul.f32.gmra.mxu0 %v2610
    %v2672 = vpop.f32.mrf.mxu0
    %v2673 = vadd.f32 0.0, %v2672
    %2674 = vdwg.mxu0
    %2675 = vmatpush.msra.mxu0 0.0
    %2676 = vmatpush.msra.mxu0 0.0
    %2677 = vmatpush.msra.mxu0 0.0
    %2678 = vmatpush.msra.mxu0 0.0
    %2679 = vmatpush.msra.mxu0 %v2607
    %2680 = vmatpush.msra.mxu0 %v2605
    %2681 = vmatpush.msra.mxu0 %v2603
    %2682 = vmatpush.msra.mxu0 %v2601
    %2683 = vmatpush.msra.mxu0 %v2599
    %2684 = vmatpush.msra.mxu0 %v2597
    %2685 = vmatpush.msra.mxu0 %v2595
    %2686 = vmatpush.msra.mxu0 %v2593
    %2687 = vmatpush.msra.mxu0 %v2591
    %2688 = vmatpush.msra.mxu0 %v2589
    %2689 = vmatpush.msra.mxu0 %v2587
    %2690 = vmatpush.msra.mxu0 %v2585
    %2691 = vmatmul.f32.gmra.mxu0 %v2613
    %v2692 = vpop.f32.mrf.mxu0
    %v2693 = vadd.f32 %v2673, %v2692
    %2694 = vdwg.mxu0
    %v2695 = vadd.f32 %v2547, %v2653
    %v2696 = vadd.f32 %v2548, %v2693
    %2697 = vst [vmem:[#allocation3] sm:$0x1f] %v2695
    %vm2698 = vcmask 258048
    %2699 = vst.msk [vmem:[#allocation3 + $0x8] sm:$0x1f] %vm2698, %v2696
    %v2700 = vld [vmem:[#allocation2 + $0x10] sm:$0xc0]
    %v2701 = vld [vmem:[#allocation2 + $0x18] sm:$0xc0]
    %v2702 = vld [vmem:[#allocation2 + $0x20] sm:$0x7]
    %v2703 = vld [vmem:[#allocation2 + $0x28] sm:$0x7]
    %v2704 = vld [vmem:[%s2] sm:$0xff]
    %v2705 = vld [vmem:[%s2 + $0x8] sm:$0xff]
    %v2706 = vld [vmem:[%s2 + $0x10] sm:$0xff]
    %v2707 = vld [vmem:[%s2 + $0x18] sm:$0xff]
    %v2708 = vld [vmem:[%s2 + $0x20] sm:$0xff]
    %v2709 = vld [vmem:[%s2 + $0x28] sm:$0xff]
    %v2710 = vld [vmem:[%s2 + $0x30] sm:$0xff]
    %v2711 = vld [vmem:[%s2 + $0x38] sm:$0xff]
    %v2712 = vld [vmem:[%s2 + $0x40] sm:$0xff]
    %v2713 = vld [vmem:[%s2 + $0x48] sm:$0xff]
    %v2714 = vld [vmem:[%s2 + $0x50] sm:$0xff]
    %v2715 = vld [vmem:[%s2 + $0x58] sm:$0xff]
    %v2716 = vld [vmem:[%s2 + $0x60] sm:$0xff]
    %v2717 = vld [vmem:[%s2 + $0x68] sm:$0xff]
    %v2718 = vld [vmem:[%s2 + $0x70] sm:$0xff]
    %v2719 = vld [vmem:[%s2 + $0x78] sm:$0xff]
    %v2720 = vld [vmem:[%s2 + $0x80] sm:$0xff]
    %v2721 = vld [vmem:[%s2 + $0x88] sm:$0xff]
    %v2722 = vld [vmem:[%s2 + $0x90] sm:$0xff]
    %v2723 = vld [vmem:[%s2 + $0x98] sm:$0xff]
    %v2724 = vld [vmem:[%s2 + $0xa0] sm:$0xff]
    %v2725 = vld [vmem:[%s2 + $0xa8] sm:$0xff]
    %v2726 = vld [vmem:[%s2 + $0xb0] sm:$0xff]
    %v2727 = vld [vmem:[%s2 + $0xb8] sm:$0xff]
    %v2728 = vld [vmem:[%s2 + $0xc0] sm:$0xff]
    %v2729 = vld [vmem:[%s2 + $0xc8] sm:$0xff]
    %v2730 = vld [vmem:[%s2 + $0xd0] sm:$0xff]
    %v2731 = vld [vmem:[%s2 + $0xd8] sm:$0xff]
    %v2732 = vld [vmem:[%s2 + $0xe0] sm:$0xff]
    %v2733 = vld [vmem:[%s2 + $0xe8] sm:$0xff]
    %v2734 = vld [vmem:[%s2 + $0xf0] sm:$0xff]
    %v2735 = vld [vmem:[%s2 + $0xf8] sm:$0xff]
    %v2736 = vld [vmem:[%s2 + $0x100] sm:$0xff]
    %v2737 = vld [vmem:[%s2 + $0x108] sm:$0xff]
    %v2738 = vld [vmem:[%s2 + $0x110] sm:$0xff]
    %v2739 = vld [vmem:[%s2 + $0x118] sm:$0xff]
    %v2740 = vld [vmem:[%s2 + $0x120] sm:$0xff]
    %v2741 = vld [vmem:[%s2 + $0x128] sm:$0xff]
    %v2742 = vld [vmem:[%s2 + $0x130] sm:$0xff]
    %v2743 = vld [vmem:[%s2 + $0x138] sm:$0xff]
    %v2744 = vld [vmem:[%s2 + $0x140] sm:$0xff]
    %v2745 = vld [vmem:[%s2 + $0x148] sm:$0xff]
    %v2746 = vld [vmem:[%s2 + $0x150] sm:$0xff]
    %v2747 = vld [vmem:[%s2 + $0x158] sm:$0xff]
    %v2748 = vld [vmem:[%s2 + $0x160] sm:$0xff]
    %v2749 = vld [vmem:[%s2 + $0x168] sm:$0xff]
    %v2750 = vld [vmem:[%s2 + $0x170] sm:$0xff]
    %v2751 = vld [vmem:[%s2 + $0x178] sm:$0xff]
    %v2752 = vld [vmem:[%s2 + $0x180] sm:$0xff]
    %v2753 = vld [vmem:[%s2 + $0x188] sm:$0xff]
    %v2754 = vld [vmem:[%s2 + $0x190] sm:$0xff]
    %v2755 = vld [vmem:[%s2 + $0x198] sm:$0xff]
    %v2756 = vld [vmem:[%s2 + $0x1a0] sm:$0xff]
    %v2757 = vld [vmem:[%s2 + $0x1a8] sm:$0xff]
    %v2758 = vld [vmem:[%s2 + $0x1b0] sm:$0xff]
    %v2759 = vld [vmem:[%s2 + $0x1b8] sm:$0xff]
    %v2760 = vld [vmem:[#allocation2 + $0x20] sm:$0xe0]
    %v2761 = vld [vmem:[#allocation2 + $0x28] sm:$0xe0]
    %v2762 = vld [vmem:[#allocation2 + $0x30] sm:$0x3]
    %v2763 = vld [vmem:[#allocation2 + $0x38] sm:$0x3]
    %v2764 = vld [vmem:[%s2023] sm:$0xff]
    %v2765 = vld [vmem:[%s2023 + $0x8] sm:$0xff]
    %v2766 = vld [vmem:[%s2023 + $0x10] sm:$0xff]
    %v2767 = vld [vmem:[%s2023 + $0x18] sm:$0xff]
    %v2768 = vld [vmem:[%s2023 + $0x20] sm:$0xff]
    %v2769 = vld [vmem:[%s2023 + $0x28] sm:$0xff]
    %v2770 = vld [vmem:[%s2023 + $0x30] sm:$0xff]
    %v2771 = vld [vmem:[%s2023 + $0x38] sm:$0xff]
    %v2772 = vld [vmem:[%s2023 + $0x40] sm:$0xff]
    %v2773 = vld [vmem:[%s2023 + $0x48] sm:$0xff]
    %v2774 = vld [vmem:[%s2023 + $0x50] sm:$0xff]
    %v2775 = vld [vmem:[%s2023 + $0x58] sm:$0xff]
    %v2776 = vld [vmem:[%s2023 + $0x60] sm:$0xff]
    %v2777 = vld [vmem:[%s2023 + $0x68] sm:$0xff]
    %v2778 = vld [vmem:[%s2023 + $0x70] sm:$0xff]
    %v2779 = vld [vmem:[%s2023 + $0x78] sm:$0xff]
    %v2780 = vld [vmem:[%s2023 + $0x80] sm:$0xff]
    %v2781 = vld [vmem:[%s2023 + $0x88] sm:$0xff]
    %v2782 = vld [vmem:[%s2023 + $0x90] sm:$0xff]
    %v2783 = vld [vmem:[%s2023 + $0x98] sm:$0xff]
    %v2784 = vld [vmem:[%s2023 + $0xa0] sm:$0xff]
    %v2785 = vld [vmem:[%s2023 + $0xa8] sm:$0xff]
    %v2786 = vld [vmem:[%s2023 + $0xb0] sm:$0xff]
    %v2787 = vld [vmem:[%s2023 + $0xb8] sm:$0xff]
    %v2788 = vld [vmem:[%s2023 + $0xc0] sm:$0xff]
    %v2789 = vld [vmem:[%s2023 + $0xc8] sm:$0xff]
    %v2790 = vld [vmem:[%s2023 + $0xd0] sm:$0xff]
    %v2791 = vld [vmem:[%s2023 + $0xd8] sm:$0xff]
    %v2792 = vld [vmem:[%s2023 + $0xe0] sm:$0xff]
    %v2793 = vld [vmem:[%s2023 + $0xe8] sm:$0xff]
    %v2794 = vld [vmem:[%s2023 + $0xf0] sm:$0xff]
    %v2795 = vld [vmem:[%s2023 + $0xf8] sm:$0xff]
    %v2796 = vld [vmem:[%s2023 + $0x100] sm:$0xff]
    %v2797 = vld [vmem:[%s2023 + $0x108] sm:$0xff]
    %v2798 = vld [vmem:[%s2023 + $0x110] sm:$0xff]
    %v2799 = vld [vmem:[%s2023 + $0x118] sm:$0xff]
    %v2800 = vld [vmem:[%s2023 + $0x120] sm:$0xff]
    %v2801 = vld [vmem:[%s2023 + $0x128] sm:$0xff]
    %v2802 = vld [vmem:[%s2023 + $0x130] sm:$0xff]
    %v2803 = vld [vmem:[%s2023 + $0x138] sm:$0xff]
    %v2804 = vld [vmem:[%s2023 + $0x140] sm:$0xff]
    %v2805 = vld [vmem:[%s2023 + $0x148] sm:$0xff]
    %v2806 = vld [vmem:[%s2023 + $0x150] sm:$0xff]
    %v2807 = vld [vmem:[%s2023 + $0x158] sm:$0xff]
    %v2808 = vld [vmem:[%s2023 + $0x160] sm:$0xff]
    %v2809 = vld [vmem:[%s2023 + $0x168] sm:$0xff]
    %v2810 = vld [vmem:[%s2023 + $0x170] sm:$0xff]
    %v2811 = vld [vmem:[%s2023 + $0x178] sm:$0xff]
    %v2812 = vld [vmem:[%s2023 + $0x180] sm:$0xff]
    %v2813 = vld [vmem:[%s2023 + $0x188] sm:$0xff]
    %v2814 = vld [vmem:[%s2023 + $0x190] sm:$0xff]
    %v2815 = vld [vmem:[%s2023 + $0x198] sm:$0xff]
    %v2816 = vld [vmem:[%s2023 + $0x1a0] sm:$0xff]
    %v2817 = vld [vmem:[%s2023 + $0x1a8] sm:$0xff]
    %v2818 = vld [vmem:[%s2023 + $0x1b0] sm:$0xff]
    %v2819 = vld [vmem:[%s2023 + $0x1b8] sm:$0xff]
    %vm2824 = vcmask 1042432
    %v2825 = vrot.slane %v2760, 5
    %v2826 = vrot.slane %v2762, 5
    %v2827 = vsel %vm2824, %v2825, %v2826
    %v2828 = vrot.slane %v2761, 5
    %v2829 = vrot.slane %v2763, 5
    %v2830 = vsel %vm2824, %v2828, %v2829
    %v2832 = vsel %vm1606, %v2830, 0
    %2834 = vmatpush.msra.mxu0 %v2794
    %2835 = vmatpush.msra.mxu0 %v2792
    %2836 = vmatpush.msra.mxu0 %v2790
    %2837 = vmatpush.msra.mxu0 %v2788
    %2838 = vmatpush.msra.mxu0 %v2786
    %2839 = vmatpush.msra.mxu0 %v2784
    %2840 = vmatpush.msra.mxu0 %v2782
    %2841 = vmatpush.msra.mxu0 %v2780
    %2842 = vmatpush.msra.mxu0 %v2778
    %2843 = vmatpush.msra.mxu0 %v2776
    %2844 = vmatpush.msra.mxu0 %v2774
    %2845 = vmatpush.msra.mxu0 %v2772
    %2846 = vmatpush.msra.mxu0 %v2770
    %2847 = vmatpush.msra.mxu0 %v2768
    %2848 = vmatpush.msra.mxu0 %v2766
    %2849 = vmatpush.msra.mxu0 %v2764
    %2850 = vmatmul.f32.gmra.mxu0 %v2827
    %v2851 = vpop.f32.mrf.mxu0
    %v2852 = vadd.f32 0.0, %v2851
    %2853 = vdwg.mxu0
    %2854 = vmatpush.msra.mxu0 0.0
    %2855 = vmatpush.msra.mxu0 0.0
    %2856 = vmatpush.msra.mxu0 0.0
    %2857 = vmatpush.msra.mxu0 0.0
    %2858 = vmatpush.msra.mxu0 %v2818
    %2859 = vmatpush.msra.mxu0 %v2816
    %2860 = vmatpush.msra.mxu0 %v2814
    %2861 = vmatpush.msra.mxu0 %v2812
    %2862 = vmatpush.msra.mxu0 %v2810
    %2863 = vmatpush.msra.mxu0 %v2808
    %2864 = vmatpush.msra.mxu0 %v2806
    %2865 = vmatpush.msra.mxu0 %v2804
    %2866 = vmatpush.msra.mxu0 %v2802
    %2867 = vmatpush.msra.mxu0 %v2800
    %2868 = vmatpush.msra.mxu0 %v2798
    %2869 = vmatpush.msra.mxu0 %v2796
    %2870 = vmatmul.f32.gmra.mxu0 %v2832
    %v2871 = vpop.f32.mrf.mxu0
    %v2872 = vadd.f32 %v2852, %v2871
    %2873 = vdwg.mxu0
    %2874 = vmatpush.msra.mxu0 %v2795
    %2875 = vmatpush.msra.mxu0 %v2793
    %2876 = vmatpush.msra.mxu0 %v2791
    %2877 = vmatpush.msra.mxu0 %v2789
    %2878 = vmatpush.msra.mxu0 %v2787
    %2879 = vmatpush.msra.mxu0 %v2785
    %2880 = vmatpush.msra.mxu0 %v2783
    %2881 = vmatpush.msra.mxu0 %v2781
    %2882 = vmatpush.msra.mxu0 %v2779
    %2883 = vmatpush.msra.mxu0 %v2777
    %2884 = vmatpush.msra.mxu0 %v2775
    %2885 = vmatpush.msra.mxu0 %v2773
    %2886 = vmatpush.msra.mxu0 %v2771
    %2887 = vmatpush.msra.mxu0 %v2769
    %2888 = vmatpush.msra.mxu0 %v2767
    %2889 = vmatpush.msra.mxu0 %v2765
    %2890 = vmatmul.f32.gmra.mxu0 %v2827
    %v2891 = vpop.f32.mrf.mxu0
    %v2892 = vadd.f32 0.0, %v2891
    %2893 = vdwg.mxu0
    %2894 = vmatpush.msra.mxu0 0.0
    %2895 = vmatpush.msra.mxu0 0.0
    %2896 = vmatpush.msra.mxu0 0.0
    %2897 = vmatpush.msra.mxu0 0.0
    %2898 = vmatpush.msra.mxu0 %v2819
    %2899 = vmatpush.msra.mxu0 %v2817
    %2900 = vmatpush.msra.mxu0 %v2815
    %2901 = vmatpush.msra.mxu0 %v2813
    %2902 = vmatpush.msra.mxu0 %v2811
    %2903 = vmatpush.msra.mxu0 %v2809
    %2904 = vmatpush.msra.mxu0 %v2807
    %2905 = vmatpush.msra.mxu0 %v2805
    %2906 = vmatpush.msra.mxu0 %v2803
    %2907 = vmatpush.msra.mxu0 %v2801
    %2908 = vmatpush.msra.mxu0 %v2799
    %2909 = vmatpush.msra.mxu0 %v2797
    %2910 = vmatmul.f32.gmra.mxu0 %v2832
    %v2911 = vpop.f32.mrf.mxu0
    %v2912 = vadd.f32 %v2892, %v2911
    %2913 = vdwg.mxu0
    %vm2918 = vcmask 1041408
    %v2919 = vrot.slane %v2700, 6
    %v2920 = vrot.slane %v2702, 6
    %v2921 = vsel %vm2918, %v2919, %v2920
    %v2922 = vrot.slane %v2701, 6
    %v2923 = vrot.slane %v2703, 6
    %v2924 = vsel %vm2918, %v2922, %v2923
    %v2926 = vsel %vm1606, %v2924, 0
    %2928 = vmatpush.msra.mxu0 %v2734
    %2929 = vmatpush.msra.mxu0 %v2732
    %2930 = vmatpush.msra.mxu0 %v2730
    %2931 = vmatpush.msra.mxu0 %v2728
    %2932 = vmatpush.msra.mxu0 %v2726
    %2933 = vmatpush.msra.mxu0 %v2724
    %2934 = vmatpush.msra.mxu0 %v2722
    %2935 = vmatpush.msra.mxu0 %v2720
    %2936 = vmatpush.msra.mxu0 %v2718
    %2937 = vmatpush.msra.mxu0 %v2716
    %2938 = vmatpush.msra.mxu0 %v2714
    %2939 = vmatpush.msra.mxu0 %v2712
    %2940 = vmatpush.msra.mxu0 %v2710
    %2941 = vmatpush.msra.mxu0 %v2708
    %2942 = vmatpush.msra.mxu0 %v2706
    %2943 = vmatpush.msra.mxu0 %v2704
    %2944 = vmatmul.f32.gmra.mxu0 %v2921
    %v2945 = vpop.f32.mrf.mxu0
    %v2946 = vadd.f32 %v2872, %v2945
    %2947 = vdwg.mxu0
    %2948 = vmatpush.msra.mxu0 0.0
    %2949 = vmatpush.msra.mxu0 0.0
    %2950 = vmatpush.msra.mxu0 0.0
    %2951 = vmatpush.msra.mxu0 0.0
    %2952 = vmatpush.msra.mxu0 %v2758
    %2953 = vmatpush.msra.mxu0 %v2756
    %2954 = vmatpush.msra.mxu0 %v2754
    %2955 = vmatpush.msra.mxu0 %v2752
    %2956 = vmatpush.msra.mxu0 %v2750
    %2957 = vmatpush.msra.mxu0 %v2748
    %2958 = vmatpush.msra.mxu0 %v2746
    %2959 = vmatpush.msra.mxu0 %v2744
    %2960 = vmatpush.msra.mxu0 %v2742
    %2961 = vmatpush.msra.mxu0 %v2740
    %2962 = vmatpush.msra.mxu0 %v2738
    %2963 = vmatpush.msra.mxu0 %v2736
    %2964 = vmatmul.f32.gmra.mxu0 %v2926
    %v2965 = vpop.f32.mrf.mxu0
    %v2966 = vadd.f32 %v2946, %v2965
    %2967 = vdwg.mxu0
    %2968 = vmatpush.msra.mxu0 %v2735
    %2969 = vmatpush.msra.mxu0 %v2733
    %2970 = vmatpush.msra.mxu0 %v2731
    %2971 = vmatpush.msra.mxu0 %v2729
    %2972 = vmatpush.msra.mxu0 %v2727
    %2973 = vmatpush.msra.mxu0 %v2725
    %2974 = vmatpush.msra.mxu0 %v2723
    %2975 = vmatpush.msra.mxu0 %v2721
    %2976 = vmatpush.msra.mxu0 %v2719
    %2977 = vmatpush.msra.mxu0 %v2717
    %2978 = vmatpush.msra.mxu0 %v2715
    %2979 = vmatpush.msra.mxu0 %v2713
    %2980 = vmatpush.msra.mxu0 %v2711
    %2981 = vmatpush.msra.mxu0 %v2709
    %2982 = vmatpush.msra.mxu0 %v2707
    %2983 = vmatpush.msra.mxu0 %v2705
    %2984 = vmatmul.f32.gmra.mxu0 %v2921
    %v2985 = vpop.f32.mrf.mxu0
    %v2986 = vadd.f32 %v2912, %v2985
    %2987 = vdwg.mxu0
    %2988 = vmatpush.msra.mxu0 0.0
    %2989 = vmatpush.msra.mxu0 0.0
    %2990 = vmatpush.msra.mxu0 0.0
    %2991 = vmatpush.msra.mxu0 0.0
    %2992 = vmatpush.msra.mxu0 %v2759
    %2993 = vmatpush.msra.mxu0 %v2757
    %2994 = vmatpush.msra.mxu0 %v2755
    %2995 = vmatpush.msra.mxu0 %v2753
    %2996 = vmatpush.msra.mxu0 %v2751
    %2997 = vmatpush.msra.mxu0 %v2749
    %2998 = vmatpush.msra.mxu0 %v2747
    %2999 = vmatpush.msra.mxu0 %v2745
    %3000 = vmatpush.msra.mxu0 %v2743
    %3001 = vmatpush.msra.mxu0 %v2741
    %3002 = vmatpush.msra.mxu0 %v2739
    %3003 = vmatpush.msra.mxu0 %v2737
    %3004 = vmatmul.f32.gmra.mxu0 %v2926
    %v3005 = vpop.f32.mrf.mxu0
    %v3006 = vadd.f32 %v2986, %v3005
    %3007 = vdwg.mxu0
    %v3008 = vld [vmem:[#allocation2 + $0x10] sm:$0x80]
    %v3009 = vld [vmem:[#allocation2 + $0x18] sm:$0x80]
    %v3010 = vld [vmem:[#allocation2 + $0x20] sm:$0xf]
    %v3011 = vld [vmem:[#allocation2 + $0x28] sm:$0xf]
    %v3012 = vld [vmem:[%s2259] sm:$0xff]
    %v3013 = vld [vmem:[%s2259 + $0x8] sm:$0xff]
    %v3014 = vld [vmem:[%s2259 + $0x10] sm:$0xff]
    %v3015 = vld [vmem:[%s2259 + $0x18] sm:$0xff]
    %v3016 = vld [vmem:[%s2259 + $0x20] sm:$0xff]
    %v3017 = vld [vmem:[%s2259 + $0x28] sm:$0xff]
    %v3018 = vld [vmem:[%s2259 + $0x30] sm:$0xff]
    %v3019 = vld [vmem:[%s2259 + $0x38] sm:$0xff]
    %v3020 = vld [vmem:[%s2259 + $0x40] sm:$0xff]
    %v3021 = vld [vmem:[%s2259 + $0x48] sm:$0xff]
    %v3022 = vld [vmem:[%s2259 + $0x50] sm:$0xff]
    %v3023 = vld [vmem:[%s2259 + $0x58] sm:$0xff]
    %v3024 = vld [vmem:[%s2259 + $0x60] sm:$0xff]
    %v3025 = vld [vmem:[%s2259 + $0x68] sm:$0xff]
    %v3026 = vld [vmem:[%s2259 + $0x70] sm:$0xff]
    %v3027 = vld [vmem:[%s2259 + $0x78] sm:$0xff]
    %v3028 = vld [vmem:[%s2259 + $0x80] sm:$0xff]
    %v3029 = vld [vmem:[%s2259 + $0x88] sm:$0xff]
    %v3030 = vld [vmem:[%s2259 + $0x90] sm:$0xff]
    %v3031 = vld [vmem:[%s2259 + $0x98] sm:$0xff]
    %v3032 = vld [vmem:[%s2259 + $0xa0] sm:$0xff]
    %v3033 = vld [vmem:[%s2259 + $0xa8] sm:$0xff]
    %v3034 = vld [vmem:[%s2259 + $0xb0] sm:$0xff]
    %v3035 = vld [vmem:[%s2259 + $0xb8] sm:$0xff]
    %v3036 = vld [vmem:[%s2259 + $0xc0] sm:$0xff]
    %v3037 = vld [vmem:[%s2259 + $0xc8] sm:$0xff]
    %v3038 = vld [vmem:[%s2259 + $0xd0] sm:$0xff]
    %v3039 = vld [vmem:[%s2259 + $0xd8] sm:$0xff]
    %v3040 = vld [vmem:[%s2259 + $0xe0] sm:$0xff]
    %v3041 = vld [vmem:[%s2259 + $0xe8] sm:$0xff]
    %v3042 = vld [vmem:[%s2259 + $0xf0] sm:$0xff]
    %v3043 = vld [vmem:[%s2259 + $0xf8] sm:$0xff]
    %v3044 = vld [vmem:[%s2259 + $0x100] sm:$0xff]
    %v3045 = vld [vmem:[%s2259 + $0x108] sm:$0xff]
    %v3046 = vld [vmem:[%s2259 + $0x110] sm:$0xff]
    %v3047 = vld [vmem:[%s2259 + $0x118] sm:$0xff]
    %v3048 = vld [vmem:[%s2259 + $0x120] sm:$0xff]
    %v3049 = vld [vmem:[%s2259 + $0x128] sm:$0xff]
    %v3050 = vld [vmem:[%s2259 + $0x130] sm:$0xff]
    %v3051 = vld [vmem:[%s2259 + $0x138] sm:$0xff]
    %v3052 = vld [vmem:[%s2259 + $0x140] sm:$0xff]
    %v3053 = vld [vmem:[%s2259 + $0x148] sm:$0xff]
    %v3054 = vld [vmem:[%s2259 + $0x150] sm:$0xff]
    %v3055 = vld [vmem:[%s2259 + $0x158] sm:$0xff]
    %v3056 = vld [vmem:[%s2259 + $0x160] sm:$0xff]
    %v3057 = vld [vmem:[%s2259 + $0x168] sm:$0xff]
    %v3058 = vld [vmem:[%s2259 + $0x170] sm:$0xff]
    %v3059 = vld [vmem:[%s2259 + $0x178] sm:$0xff]
    %v3060 = vld [vmem:[%s2259 + $0x180] sm:$0xff]
    %v3061 = vld [vmem:[%s2259 + $0x188] sm:$0xff]
    %v3062 = vld [vmem:[%s2259 + $0x190] sm:$0xff]
    %v3063 = vld [vmem:[%s2259 + $0x198] sm:$0xff]
    %v3064 = vld [vmem:[%s2259 + $0x1a0] sm:$0xff]
    %v3065 = vld [vmem:[%s2259 + $0x1a8] sm:$0xff]
    %v3066 = vld [vmem:[%s2259 + $0x1b0] sm:$0xff]
    %v3067 = vld [vmem:[%s2259 + $0x1b8] sm:$0xff]
    %v3072 = vrot.slane %v3008, 7
    %v3073 = vrot.slane %v3010, 7
    %v3074 = vsel %vm2084, %v3072, %v3073
    %v3075 = vrot.slane %v3009, 7
    %v3076 = vrot.slane %v3011, 7
    %v3077 = vsel %vm2084, %v3075, %v3076
    %v3079 = vsel %vm1606, %v3077, 0
    %3081 = vmatpush.msra.mxu0 %v3042
    %3082 = vmatpush.msra.mxu0 %v3040
    %3083 = vmatpush.msra.mxu0 %v3038
    %3084 = vmatpush.msra.mxu0 %v3036
    %3085 = vmatpush.msra.mxu0 %v3034
    %3086 = vmatpush.msra.mxu0 %v3032
    %3087 = vmatpush.msra.mxu0 %v3030
    %3088 = vmatpush.msra.mxu0 %v3028
    %3089 = vmatpush.msra.mxu0 %v3026
    %3090 = vmatpush.msra.mxu0 %v3024
    %3091 = vmatpush.msra.mxu0 %v3022
    %3092 = vmatpush.msra.mxu0 %v3020
    %3093 = vmatpush.msra.mxu0 %v3018
    %3094 = vmatpush.msra.mxu0 %v3016
    %3095 = vmatpush.msra.mxu0 %v3014
    %3096 = vmatpush.msra.mxu0 %v3012
    %3097 = vmatmul.f32.gmra.mxu0 %v3074
    %v3098 = vpop.f32.mrf.mxu0
    %v3099 = vadd.f32 0.0, %v3098
    %3100 = vdwg.mxu0
    %3101 = vmatpush.msra.mxu0 0.0
    %3102 = vmatpush.msra.mxu0 0.0
    %3103 = vmatpush.msra.mxu0 0.0
    %3104 = vmatpush.msra.mxu0 0.0
    %3105 = vmatpush.msra.mxu0 %v3066
    %3106 = vmatpush.msra.mxu0 %v3064
    %3107 = vmatpush.msra.mxu0 %v3062
    %3108 = vmatpush.msra.mxu0 %v3060
    %3109 = vmatpush.msra.mxu0 %v3058
    %3110 = vmatpush.msra.mxu0 %v3056
    %3111 = vmatpush.msra.mxu0 %v3054
    %3112 = vmatpush.msra.mxu0 %v3052
    %3113 = vmatpush.msra.mxu0 %v3050
    %3114 = vmatpush.msra.mxu0 %v3048
    %3115 = vmatpush.msra.mxu0 %v3046
    %3116 = vmatpush.msra.mxu0 %v3044
    %3117 = vmatmul.f32.gmra.mxu0 %v3079
    %v3118 = vpop.f32.mrf.mxu0
    %v3119 = vadd.f32 %v3099, %v3118
    %3120 = vdwg.mxu0
    %3121 = vmatpush.msra.mxu0 %v3043
    %3122 = vmatpush.msra.mxu0 %v3041
    %3123 = vmatpush.msra.mxu0 %v3039
    %3124 = vmatpush.msra.mxu0 %v3037
    %3125 = vmatpush.msra.mxu0 %v3035
    %3126 = vmatpush.msra.mxu0 %v3033
    %3127 = vmatpush.msra.mxu0 %v3031
    %3128 = vmatpush.msra.mxu0 %v3029
    %3129 = vmatpush.msra.mxu0 %v3027
    %3130 = vmatpush.msra.mxu0 %v3025
    %3131 = vmatpush.msra.mxu0 %v3023
    %3132 = vmatpush.msra.mxu0 %v3021
    %3133 = vmatpush.msra.mxu0 %v3019
    %3134 = vmatpush.msra.mxu0 %v3017
    %3135 = vmatpush.msra.mxu0 %v3015
    %3136 = vmatpush.msra.mxu0 %v3013
    %3137 = vmatmul.f32.gmra.mxu0 %v3074
    %v3138 = vpop.f32.mrf.mxu0
    %v3139 = vadd.f32 0.0, %v3138
    %3140 = vdwg.mxu0
    %3141 = vmatpush.msra.mxu0 0.0
    %3142 = vmatpush.msra.mxu0 0.0
    %3143 = vmatpush.msra.mxu0 0.0
    %3144 = vmatpush.msra.mxu0 0.0
    %3145 = vmatpush.msra.mxu0 %v3067
    %3146 = vmatpush.msra.mxu0 %v3065
    %3147 = vmatpush.msra.mxu0 %v3063
    %3148 = vmatpush.msra.mxu0 %v3061
    %3149 = vmatpush.msra.mxu0 %v3059
    %3150 = vmatpush.msra.mxu0 %v3057
    %3151 = vmatpush.msra.mxu0 %v3055
    %3152 = vmatpush.msra.mxu0 %v3053
    %3153 = vmatpush.msra.mxu0 %v3051
    %3154 = vmatpush.msra.mxu0 %v3049
    %3155 = vmatpush.msra.mxu0 %v3047
    %3156 = vmatpush.msra.mxu0 %v3045
    %3157 = vmatmul.f32.gmra.mxu0 %v3079
    %v3158 = vpop.f32.mrf.mxu0
    %v3159 = vadd.f32 %v3139, %v3158
    %3160 = vdwg.mxu0
    %v3161 = vadd.f32 %v2966, %v3119
    %v3162 = vadd.f32 %v3006, %v3159
    %v3163 = vld [vmem:[#allocation2 + $0x20] sm:$0xc0]
    %v3164 = vld [vmem:[#allocation2 + $0x28] sm:$0xc0]
    %v3165 = vld [vmem:[#allocation2 + $0x30] sm:$0x7]
    %v3166 = vld [vmem:[#allocation2 + $0x38] sm:$0x7]
    %v3167 = vld [vmem:[%s2407] sm:$0xff]
    %v3168 = vld [vmem:[%s2407 + $0x8] sm:$0xff]
    %v3169 = vld [vmem:[%s2407 + $0x10] sm:$0xff]
    %v3170 = vld [vmem:[%s2407 + $0x18] sm:$0xff]
    %v3171 = vld [vmem:[%s2407 + $0x20] sm:$0xff]
    %v3172 = vld [vmem:[%s2407 + $0x28] sm:$0xff]
    %v3173 = vld [vmem:[%s2407 + $0x30] sm:$0xff]
    %v3174 = vld [vmem:[%s2407 + $0x38] sm:$0xff]
    %v3175 = vld [vmem:[%s2407 + $0x40] sm:$0xff]
    %v3176 = vld [vmem:[%s2407 + $0x48] sm:$0xff]
    %v3177 = vld [vmem:[%s2407 + $0x50] sm:$0xff]
    %v3178 = vld [vmem:[%s2407 + $0x58] sm:$0xff]
    %v3179 = vld [vmem:[%s2407 + $0x60] sm:$0xff]
    %v3180 = vld [vmem:[%s2407 + $0x68] sm:$0xff]
    %v3181 = vld [vmem:[%s2407 + $0x70] sm:$0xff]
    %v3182 = vld [vmem:[%s2407 + $0x78] sm:$0xff]
    %v3183 = vld [vmem:[%s2407 + $0x80] sm:$0xff]
    %v3184 = vld [vmem:[%s2407 + $0x88] sm:$0xff]
    %v3185 = vld [vmem:[%s2407 + $0x90] sm:$0xff]
    %v3186 = vld [vmem:[%s2407 + $0x98] sm:$0xff]
    %v3187 = vld [vmem:[%s2407 + $0xa0] sm:$0xff]
    %v3188 = vld [vmem:[%s2407 + $0xa8] sm:$0xff]
    %v3189 = vld [vmem:[%s2407 + $0xb0] sm:$0xff]
    %v3190 = vld [vmem:[%s2407 + $0xb8] sm:$0xff]
    %v3191 = vld [vmem:[%s2407 + $0xc0] sm:$0xff]
    %v3192 = vld [vmem:[%s2407 + $0xc8] sm:$0xff]
    %v3193 = vld [vmem:[%s2407 + $0xd0] sm:$0xff]
    %v3194 = vld [vmem:[%s2407 + $0xd8] sm:$0xff]
    %v3195 = vld [vmem:[%s2407 + $0xe0] sm:$0xff]
    %v3196 = vld [vmem:[%s2407 + $0xe8] sm:$0xff]
    %v3197 = vld [vmem:[%s2407 + $0xf0] sm:$0xff]
    %v3198 = vld [vmem:[%s2407 + $0xf8] sm:$0xff]
    %v3199 = vld [vmem:[%s2407 + $0x100] sm:$0xff]
    %v3200 = vld [vmem:[%s2407 + $0x108] sm:$0xff]
    %v3201 = vld [vmem:[%s2407 + $0x110] sm:$0xff]
    %v3202 = vld [vmem:[%s2407 + $0x118] sm:$0xff]
    %v3203 = vld [vmem:[%s2407 + $0x120] sm:$0xff]
    %v3204 = vld [vmem:[%s2407 + $0x128] sm:$0xff]
    %v3205 = vld [vmem:[%s2407 + $0x130] sm:$0xff]
    %v3206 = vld [vmem:[%s2407 + $0x138] sm:$0xff]
    %v3207 = vld [vmem:[%s2407 + $0x140] sm:$0xff]
    %v3208 = vld [vmem:[%s2407 + $0x148] sm:$0xff]
    %v3209 = vld [vmem:[%s2407 + $0x150] sm:$0xff]
    %v3210 = vld [vmem:[%s2407 + $0x158] sm:$0xff]
    %v3211 = vld [vmem:[%s2407 + $0x160] sm:$0xff]
    %v3212 = vld [vmem:[%s2407 + $0x168] sm:$0xff]
    %v3213 = vld [vmem:[%s2407 + $0x170] sm:$0xff]
    %v3214 = vld [vmem:[%s2407 + $0x178] sm:$0xff]
    %v3215 = vld [vmem:[%s2407 + $0x180] sm:$0xff]
    %v3216 = vld [vmem:[%s2407 + $0x188] sm:$0xff]
    %v3217 = vld [vmem:[%s2407 + $0x190] sm:$0xff]
    %v3218 = vld [vmem:[%s2407 + $0x198] sm:$0xff]
    %v3219 = vld [vmem:[%s2407 + $0x1a0] sm:$0xff]
    %v3220 = vld [vmem:[%s2407 + $0x1a8] sm:$0xff]
    %v3221 = vld [vmem:[%s2407 + $0x1b0] sm:$0xff]
    %v3222 = vld [vmem:[%s2407 + $0x1b8] sm:$0xff]
    %v3227 = vrot.slane %v3163, 6
    %v3228 = vrot.slane %v3165, 6
    %v3229 = vsel %vm2918, %v3227, %v3228
    %v3230 = vrot.slane %v3164, 6
    %v3231 = vrot.slane %v3166, 6
    %v3232 = vsel %vm2918, %v3230, %v3231
    %v3234 = vsel %vm1606, %v3232, 0
    %3236 = vmatpush.msra.mxu0 %v3197
    %3237 = vmatpush.msra.mxu0 %v3195
    %3238 = vmatpush.msra.mxu0 %v3193
    %3239 = vmatpush.msra.mxu0 %v3191
    %3240 = vmatpush.msra.mxu0 %v3189
    %3241 = vmatpush.msra.mxu0 %v3187
    %3242 = vmatpush.msra.mxu0 %v3185
    %3243 = vmatpush.msra.mxu0 %v3183
    %3244 = vmatpush.msra.mxu0 %v3181
    %3245 = vmatpush.msra.mxu0 %v3179
    %3246 = vmatpush.msra.mxu0 %v3177
    %3247 = vmatpush.msra.mxu0 %v3175
    %3248 = vmatpush.msra.mxu0 %v3173
    %3249 = vmatpush.msra.mxu0 %v3171
    %3250 = vmatpush.msra.mxu0 %v3169
    %3251 = vmatpush.msra.mxu0 %v3167
    %3252 = vmatmul.f32.gmra.mxu0 %v3229
    %v3253 = vpop.f32.mrf.mxu0
    %v3254 = vadd.f32 0.0, %v3253
    %3255 = vdwg.mxu0
    %3256 = vmatpush.msra.mxu0 0.0
    %3257 = vmatpush.msra.mxu0 0.0
    %3258 = vmatpush.msra.mxu0 0.0
    %3259 = vmatpush.msra.mxu0 0.0
    %3260 = vmatpush.msra.mxu0 %v3221
    %3261 = vmatpush.msra.mxu0 %v3219
    %3262 = vmatpush.msra.mxu0 %v3217
    %3263 = vmatpush.msra.mxu0 %v3215
    %3264 = vmatpush.msra.mxu0 %v3213
    %3265 = vmatpush.msra.mxu0 %v3211
    %3266 = vmatpush.msra.mxu0 %v3209
    %3267 = vmatpush.msra.mxu0 %v3207
    %3268 = vmatpush.msra.mxu0 %v3205
    %3269 = vmatpush.msra.mxu0 %v3203
    %3270 = vmatpush.msra.mxu0 %v3201
    %3271 = vmatpush.msra.mxu0 %v3199
    %3272 = vmatmul.f32.gmra.mxu0 %v3234
    %v3273 = vpop.f32.mrf.mxu0
    %v3274 = vadd.f32 %v3254, %v3273
    %3275 = vdwg.mxu0
    %3276 = vmatpush.msra.mxu0 %v3198
    %3277 = vmatpush.msra.mxu0 %v3196
    %3278 = vmatpush.msra.mxu0 %v3194
    %3279 = vmatpush.msra.mxu0 %v3192
    %3280 = vmatpush.msra.mxu0 %v3190
    %3281 = vmatpush.msra.mxu0 %v3188
    %3282 = vmatpush.msra.mxu0 %v3186
    %3283 = vmatpush.msra.mxu0 %v3184
    %3284 = vmatpush.msra.mxu0 %v3182
    %3285 = vmatpush.msra.mxu0 %v3180
    %3286 = vmatpush.msra.mxu0 %v3178
    %3287 = vmatpush.msra.mxu0 %v3176
    %3288 = vmatpush.msra.mxu0 %v3174
    %3289 = vmatpush.msra.mxu0 %v3172
    %3290 = vmatpush.msra.mxu0 %v3170
    %3291 = vmatpush.msra.mxu0 %v3168
    %3292 = vmatmul.f32.gmra.mxu0 %v3229
    %v3293 = vpop.f32.mrf.mxu0
    %v3294 = vadd.f32 0.0, %v3293
    %3295 = vdwg.mxu0
    %3296 = vmatpush.msra.mxu0 0.0
    %3297 = vmatpush.msra.mxu0 0.0
    %3298 = vmatpush.msra.mxu0 0.0
    %3299 = vmatpush.msra.mxu0 0.0
    %3300 = vmatpush.msra.mxu0 %v3222
    %3301 = vmatpush.msra.mxu0 %v3220
    %3302 = vmatpush.msra.mxu0 %v3218
    %3303 = vmatpush.msra.mxu0 %v3216
    %3304 = vmatpush.msra.mxu0 %v3214
    %3305 = vmatpush.msra.mxu0 %v3212
    %3306 = vmatpush.msra.mxu0 %v3210
    %3307 = vmatpush.msra.mxu0 %v3208
    %3308 = vmatpush.msra.mxu0 %v3206
    %3309 = vmatpush.msra.mxu0 %v3204
    %3310 = vmatpush.msra.mxu0 %v3202
    %3311 = vmatpush.msra.mxu0 %v3200
    %3312 = vmatmul.f32.gmra.mxu0 %v3234
    %v3313 = vpop.f32.mrf.mxu0
    %v3314 = vadd.f32 %v3294, %v3313
    %3315 = vdwg.mxu0
    %v3316 = vadd.f32 %v3161, %v3274
    %v3317 = vadd.f32 %v3162, %v3314
    %v3318 = vld [vmem:[#allocation2 + $0x20] sm:$0x1f]
    %v3319 = vld [vmem:[#allocation2 + $0x28] sm:$0x1f]
    %v3320 = vld [vmem:[%s2551] sm:$0xff]
    %v3321 = vld [vmem:[%s2551 + $0x8] sm:$0xff]
    %v3322 = vld [vmem:[%s2551 + $0x10] sm:$0xff]
    %v3323 = vld [vmem:[%s2551 + $0x18] sm:$0xff]
    %v3324 = vld [vmem:[%s2551 + $0x20] sm:$0xff]
    %v3325 = vld [vmem:[%s2551 + $0x28] sm:$0xff]
    %v3326 = vld [vmem:[%s2551 + $0x30] sm:$0xff]
    %v3327 = vld [vmem:[%s2551 + $0x38] sm:$0xff]
    %v3328 = vld [vmem:[%s2551 + $0x40] sm:$0xff]
    %v3329 = vld [vmem:[%s2551 + $0x48] sm:$0xff]
    %v3330 = vld [vmem:[%s2551 + $0x50] sm:$0xff]
    %v3331 = vld [vmem:[%s2551 + $0x58] sm:$0xff]
    %v3332 = vld [vmem:[%s2551 + $0x60] sm:$0xff]
    %v3333 = vld [vmem:[%s2551 + $0x68] sm:$0xff]
    %v3334 = vld [vmem:[%s2551 + $0x70] sm:$0xff]
    %v3335 = vld [vmem:[%s2551 + $0x78] sm:$0xff]
    %v3336 = vld [vmem:[%s2551 + $0x80] sm:$0xff]
    %v3337 = vld [vmem:[%s2551 + $0x88] sm:$0xff]
    %v3338 = vld [vmem:[%s2551 + $0x90] sm:$0xff]
    %v3339 = vld [vmem:[%s2551 + $0x98] sm:$0xff]
    %v3340 = vld [vmem:[%s2551 + $0xa0] sm:$0xff]
    %v3341 = vld [vmem:[%s2551 + $0xa8] sm:$0xff]
    %v3342 = vld [vmem:[%s2551 + $0xb0] sm:$0xff]
    %v3343 = vld [vmem:[%s2551 + $0xb8] sm:$0xff]
    %v3344 = vld [vmem:[%s2551 + $0xc0] sm:$0xff]
    %v3345 = vld [vmem:[%s2551 + $0xc8] sm:$0xff]
    %v3346 = vld [vmem:[%s2551 + $0xd0] sm:$0xff]
    %v3347 = vld [vmem:[%s2551 + $0xd8] sm:$0xff]
    %v3348 = vld [vmem:[%s2551 + $0xe0] sm:$0xff]
    %v3349 = vld [vmem:[%s2551 + $0xe8] sm:$0xff]
    %v3350 = vld [vmem:[%s2551 + $0xf0] sm:$0xff]
    %v3351 = vld [vmem:[%s2551 + $0xf8] sm:$0xff]
    %v3352 = vld [vmem:[%s2551 + $0x100] sm:$0xff]
    %v3353 = vld [vmem:[%s2551 + $0x108] sm:$0xff]
    %v3354 = vld [vmem:[%s2551 + $0x110] sm:$0xff]
    %v3355 = vld [vmem:[%s2551 + $0x118] sm:$0xff]
    %v3356 = vld [vmem:[%s2551 + $0x120] sm:$0xff]
    %v3357 = vld [vmem:[%s2551 + $0x128] sm:$0xff]
    %v3358 = vld [vmem:[%s2551 + $0x130] sm:$0xff]
    %v3359 = vld [vmem:[%s2551 + $0x138] sm:$0xff]
    %v3360 = vld [vmem:[%s2551 + $0x140] sm:$0xff]
    %v3361 = vld [vmem:[%s2551 + $0x148] sm:$0xff]
    %v3362 = vld [vmem:[%s2551 + $0x150] sm:$0xff]
    %v3363 = vld [vmem:[%s2551 + $0x158] sm:$0xff]
    %v3364 = vld [vmem:[%s2551 + $0x160] sm:$0xff]
    %v3365 = vld [vmem:[%s2551 + $0x168] sm:$0xff]
    %v3366 = vld [vmem:[%s2551 + $0x170] sm:$0xff]
    %v3367 = vld [vmem:[%s2551 + $0x178] sm:$0xff]
    %v3368 = vld [vmem:[%s2551 + $0x180] sm:$0xff]
    %v3369 = vld [vmem:[%s2551 + $0x188] sm:$0xff]
    %v3370 = vld [vmem:[%s2551 + $0x190] sm:$0xff]
    %v3371 = vld [vmem:[%s2551 + $0x198] sm:$0xff]
    %v3372 = vld [vmem:[%s2551 + $0x1a0] sm:$0xff]
    %v3373 = vld [vmem:[%s2551 + $0x1a8] sm:$0xff]
    %v3374 = vld [vmem:[%s2551 + $0x1b0] sm:$0xff]
    %v3375 = vld [vmem:[%s2551 + $0x1b8] sm:$0xff]
    %v3377 = vsel %vm1606, %v3319, 0
    %3379 = vmatpush.msra.mxu0 %v3350
    %3380 = vmatpush.msra.mxu0 %v3348
    %3381 = vmatpush.msra.mxu0 %v3346
    %3382 = vmatpush.msra.mxu0 %v3344
    %3383 = vmatpush.msra.mxu0 %v3342
    %3384 = vmatpush.msra.mxu0 %v3340
    %3385 = vmatpush.msra.mxu0 %v3338
    %3386 = vmatpush.msra.mxu0 %v3336
    %3387 = vmatpush.msra.mxu0 %v3334
    %3388 = vmatpush.msra.mxu0 %v3332
    %3389 = vmatpush.msra.mxu0 %v3330
    %3390 = vmatpush.msra.mxu0 %v3328
    %3391 = vmatpush.msra.mxu0 %v3326
    %3392 = vmatpush.msra.mxu0 %v3324
    %3393 = vmatpush.msra.mxu0 %v3322
    %3394 = vmatpush.msra.mxu0 %v3320
    %3395 = vmatmul.f32.gmra.mxu0 %v3318
    %v3396 = vpop.f32.mrf.mxu0
    %v3397 = vadd.f32 0.0, %v3396
    %3398 = vdwg.mxu0
    %3399 = vmatpush.msra.mxu0 0.0
    %3400 = vmatpush.msra.mxu0 0.0
    %3401 = vmatpush.msra.mxu0 0.0
    %3402 = vmatpush.msra.mxu0 0.0
    %3403 = vmatpush.msra.mxu0 %v3374
    %3404 = vmatpush.msra.mxu0 %v3372
    %3405 = vmatpush.msra.mxu0 %v3370
    %3406 = vmatpush.msra.mxu0 %v3368
    %3407 = vmatpush.msra.mxu0 %v3366
    %3408 = vmatpush.msra.mxu0 %v3364
    %3409 = vmatpush.msra.mxu0 %v3362
    %3410 = vmatpush.msra.mxu0 %v3360
    %3411 = vmatpush.msra.mxu0 %v3358
    %3412 = vmatpush.msra.mxu0 %v3356
    %3413 = vmatpush.msra.mxu0 %v3354
    %3414 = vmatpush.msra.mxu0 %v3352
    %3415 = vmatmul.f32.gmra.mxu0 %v3377
    %v3416 = vpop.f32.mrf.mxu0
    %v3417 = vadd.f32 %v3397, %v3416
    %3418 = vdwg.mxu0
    %3419 = vmatpush.msra.mxu0 %v3351
    %3420 = vmatpush.msra.mxu0 %v3349
    %3421 = vmatpush.msra.mxu0 %v3347
    %3422 = vmatpush.msra.mxu0 %v3345
    %3423 = vmatpush.msra.mxu0 %v3343
    %3424 = vmatpush.msra.mxu0 %v3341
    %3425 = vmatpush.msra.mxu0 %v3339
    %3426 = vmatpush.msra.mxu0 %v3337
    %3427 = vmatpush.msra.mxu0 %v3335
    %3428 = vmatpush.msra.mxu0 %v3333
    %3429 = vmatpush.msra.mxu0 %v3331
    %3430 = vmatpush.msra.mxu0 %v3329
    %3431 = vmatpush.msra.mxu0 %v3327
    %3432 = vmatpush.msra.mxu0 %v3325
    %3433 = vmatpush.msra.mxu0 %v3323
    %3434 = vmatpush.msra.mxu0 %v3321
    %3435 = vmatmul.f32.gmra.mxu0 %v3318
    %v3436 = vpop.f32.mrf.mxu0
    %v3437 = vadd.f32 0.0, %v3436
    %3438 = vdwg.mxu0
    %3439 = vmatpush.msra.mxu0 0.0
    %3440 = vmatpush.msra.mxu0 0.0
    %3441 = vmatpush.msra.mxu0 0.0
    %3442 = vmatpush.msra.mxu0 0.0
    %3443 = vmatpush.msra.mxu0 %v3375
    %3444 = vmatpush.msra.mxu0 %v3373
    %3445 = vmatpush.msra.mxu0 %v3371
    %3446 = vmatpush.msra.mxu0 %v3369
    %3447 = vmatpush.msra.mxu0 %v3367
    %3448 = vmatpush.msra.mxu0 %v3365
    %3449 = vmatpush.msra.mxu0 %v3363
    %3450 = vmatpush.msra.mxu0 %v3361
    %3451 = vmatpush.msra.mxu0 %v3359
    %3452 = vmatpush.msra.mxu0 %v3357
    %3453 = vmatpush.msra.mxu0 %v3355
    %3454 = vmatpush.msra.mxu0 %v3353
    %3455 = vmatmul.f32.gmra.mxu0 %v3377
    %v3456 = vpop.f32.mrf.mxu0
    %v3457 = vadd.f32 %v3437, %v3456
    %3458 = vdwg.mxu0
    %v3459 = vadd.f32 %v3316, %v3417
    %v3460 = vadd.f32 %v3317, %v3457
    %v3463 = vrot.slane %v3459, 3
    %v3464 = vrot.slane %v3460, 3
    %3467 = vst [vmem:[#allocation3] sm:$0xe0] %v3463
    %vm3468 = vcmask 261125
    %3469 = vst.msk [vmem:[#allocation3 + $0x8] sm:$0xe0] %vm3468, %v3464
    %3470 = vst [vmem:[#allocation3 + $0x10] sm:$0x3] %v3463
    %vm3471 = vcmask 254976
    %3472 = vst.msk [vmem:[#allocation3 + $0x18] sm:$0x3] %vm3471, %v3464
    %v3473 = vld [vmem:[#allocation3] sm:$0xff]
    %v3474 = vld [vmem:[#allocation3 + $0x8] sm:$0xff]
    %v3475 = vld [vmem:[#allocation3 + $0x10] sm:$0x3]
    %v3476 = vld [vmem:[#allocation3 + $0x18] sm:$0x3]
    %v3477 = vsel %vm2918, %v3475, 0.0
    %v3478 = vadd.f32 %v3473, %v3477
    %v3479 = vrot.slane %v3478, 4
    %v3480 = vadd.f32 %v3478, %v3479
    %v3481 = vrot.slane %v3480, 2
    %v3482 = vadd.f32 %v3480, %v3481
    %v3483 = vrot.slane %v3482, 1
    %v3484 = vadd.f32 %v3482, %v3483
    %vm3485 = vcmask 261120
    %v3486 = vsel %vm3485, %v3474, 0.0
    %v3487 = vsel %vm3471, %v3476, 0.0
    %v3488 = vadd.f32 %v3486, %v3487
    %v3489 = vrot.slane %v3488, 4
    %v3490 = vadd.f32 %v3488, %v3489
    %v3491 = vrot.slane %v3490, 2
    %v3492 = vadd.f32 %v3490, %v3491
    %v3493 = vrot.slane %v3492, 1
    %v3494 = vadd.f32 %v3492, %v3493
    %v3495 = vld [vmem:[%s6] sm:$0xff]
    %v3496 = vld [vmem:[%s6 + $0x8] sm:$0xff]
    %v3497 = vld [vmem:[%s6 + $0x10] sm:$0xff]
    %v3498 = vld [vmem:[%s6 + $0x18] sm:$0xff]
    %v3499 = vld [vmem:[%s6 + $0x20] sm:$0xff]
    %v3500 = vld [vmem:[%s6 + $0x28] sm:$0xff]
    %v3501 = vld [vmem:[%s6 + $0x30] sm:$0xff]
    %v3502 = vld [vmem:[%s6 + $0x38] sm:$0xff]
    %v3503 = vld [vmem:[%s6 + $0x40] sm:$0xff]
    %v3504 = vld [vmem:[%s6 + $0x48] sm:$0xff]
    %v3505 = vld [vmem:[%s6 + $0x50] sm:$0xff]
    %v3506 = vld [vmem:[%s6 + $0x58] sm:$0xff]
    %v3507 = vld [vmem:[%s6 + $0x60] sm:$0xff]
    %v3508 = vld [vmem:[%s6 + $0x68] sm:$0xff]
    %v3509 = vld [vmem:[%s6 + $0x70] sm:$0xff]
    %v3510 = vld [vmem:[%s6 + $0x78] sm:$0xff]
    %v3511 = vld [vmem:[%s6 + $0x80] sm:$0xff]
    %v3512 = vld [vmem:[%s6 + $0x88] sm:$0xff]
    %v3513 = vld [vmem:[%s6 + $0x90] sm:$0xff]
    %v3514 = vld [vmem:[%s6 + $0x98] sm:$0xff]
    %v3516 = vsel %vm3485, %v3494, 0
    %3518 = vmatpush.msra.mxu0 %v3510
    %3519 = vmatpush.msra.mxu0 %v3509
    %3520 = vmatpush.msra.mxu0 %v3508
    %3521 = vmatpush.msra.mxu0 %v3507
    %3522 = vmatpush.msra.mxu0 %v3506
    %3523 = vmatpush.msra.mxu0 %v3505
    %3524 = vmatpush.msra.mxu0 %v3504
    %3525 = vmatpush.msra.mxu0 %v3503
    %3526 = vmatpush.msra.mxu0 %v3502
    %3527 = vmatpush.msra.mxu0 %v3501
    %3528 = vmatpush.msra.mxu0 %v3500
    %3529 = vmatpush.msra.mxu0 %v3499
    %3530 = vmatpush.msra.mxu0 %v3498
    %3531 = vmatpush.msra.mxu0 %v3497
    %3532 = vmatpush.msra.mxu0 %v3496
    %3533 = vmatpush.msra.mxu0 %v3495
    %3534 = vmatmul.f32.gmra.mxu0 %v3484
    %v3535 = vpop.f32.mrf.mxu0
    %v3536 = vadd.f32 0.0, %v3535
    %3537 = vdwg.mxu0
    %3538 = vmatpush.msra.mxu0 0.0
    %3539 = vmatpush.msra.mxu0 0.0
    %3540 = vmatpush.msra.mxu0 0.0
    %3541 = vmatpush.msra.mxu0 0.0
    %3542 = vmatpush.msra.mxu0 0.0
    %3543 = vmatpush.msra.mxu0 0.0
    %3544 = vmatpush.msra.mxu0 0.0
    %3545 = vmatpush.msra.mxu0 0.0
    %3546 = vmatpush.msra.mxu0 0.0
    %3547 = vmatpush.msra.mxu0 0.0
    %3548 = vmatpush.msra.mxu0 0.0
    %3549 = vmatpush.msra.mxu0 0.0
    %3550 = vmatpush.msra.mxu0 %v3514
    %3551 = vmatpush.msra.mxu0 %v3513
    %3552 = vmatpush.msra.mxu0 %v3512
    %3553 = vmatpush.msra.mxu0 %v3511
    %3554 = vmatmul.f32.gmra.mxu0 %v3516
    %v3555 = vpop.f32.mrf.mxu0
    %v3556 = vadd.f32 %v3536, %v3555
    %3557 = vdwg.mxu0
    %v3558 = vmul.f32 %v3556, 0.02
    %v3559 = vld [vmem:[%s7] sm:$0xff]
    %v3560 = vld [vmem:[%s7 + $0x8] sm:$0xff]
    %v3561 = vld [vmem:[%s7 + $0x10] sm:$0xff]
    %v3562 = vld [vmem:[%s7 + $0x18] sm:$0xff]
    %v3563 = vld [vmem:[%s7 + $0x20] sm:$0xff]
    %v3564 = vld [vmem:[%s7 + $0x28] sm:$0xff]
    %v3565 = vld [vmem:[%s7 + $0x30] sm:$0xff]
    %v3566 = vld [vmem:[%s7 + $0x38] sm:$0xff]
    %v3568 = vsel %vm3485, %v3558, 0
    %3570 = vmatpush.msra.mxu0 0.0
    %3571 = vmatpush.msra.mxu0 0.0
    %3572 = vmatpush.msra.mxu0 0.0
    %3573 = vmatpush.msra.mxu0 0.0
    %3574 = vmatpush.msra.mxu0 0.0
    %3575 = vmatpush.msra.mxu0 0.0
    %3576 = vmatpush.msra.mxu0 0.0
    %3577 = vmatpush.msra.mxu0 0.0
    %3578 = vmatpush.msra.mxu0 0.0
    %3579 = vmatpush.msra.mxu0 0.0
    %3580 = vmatpush.msra.mxu0 0.0
    %3581 = vmatpush.msra.mxu0 0.0
    %3582 = vmatpush.msra.mxu0 %v3565
    %3583 = vmatpush.msra.mxu0 %v3563
    %3584 = vmatpush.msra.mxu0 %v3561
    %3585 = vmatpush.msra.mxu0 %v3559
    %3586 = vmatmul.f32.gmra.mxu0 %v3568
    %v3587 = vpop.f32.mrf.mxu0
    %v3588 = vadd.f32 0.0, %v3587
    %3589 = vdwg.mxu0
    %3590 = vmatpush.msra.mxu0 0.0
    %3591 = vmatpush.msra.mxu0 0.0
    %3592 = vmatpush.msra.mxu0 0.0
    %3593 = vmatpush.msra.mxu0 0.0
    %3594 = vmatpush.msra.mxu0 0.0
    %3595 = vmatpush.msra.mxu0 0.0
    %3596 = vmatpush.msra.mxu0 0.0
    %3597 = vmatpush.msra.mxu0 0.0
    %3598 = vmatpush.msra.mxu0 0.0
    %3599 = vmatpush.msra.mxu0 0.0
    %3600 = vmatpush.msra.mxu0 0.0
    %3601 = vmatpush.msra.mxu0 0.0
    %3602 = vmatpush.msra.mxu0 %v3566
    %3603 = vmatpush.msra.mxu0 %v3564
    %3604 = vmatpush.msra.mxu0 %v3562
    %3605 = vmatpush.msra.mxu0 %v3560
    %3606 = vmatmul.f32.gmra.mxu0 %v3568
    %v3607 = vpop.f32.mrf.mxu0
    %v3608 = vadd.f32 0.0, %v3607
    %3609 = vdwg.mxu0
    %v3610 = vperm.slane %v3588, 0
    %v3611 = vperm.slane %v3608, 0
    %v3612 = vsub.f32 %v3473, %v3610
    %v3613 = vsub.f32 %v3474, %v3611
    %v3614 = vsub.f32 %v3475, %v3610
    %v3615 = vsub.f32 %v3476, %v3611
    %v3616 = vmul.f32 %v3612, %v3612
    %v3617 = vmul.f32 %v3613, %v3613
    %v3618 = vmul.f32 %v3614, %v3614
    %v3619 = vmul.f32 %v3615, %v3615
    %v3620 = vsel %vm2918, %v3618, 0.0
    %v3621 = vadd.f32 %v3616, %v3620
    %v3622 = vrot.slane %v3621, 4
    %v3623 = vadd.f32 %v3621, %v3622
    %v3624 = vrot.slane %v3623, 2
    %v3625 = vadd.f32 %v3623, %v3624
    %v3626 = vrot.slane %v3625, 1
    %v3627 = vadd.f32 %v3625, %v3626
    %v3628 = vsel %vm3485, %v3617, 0.0
    %v3629 = vsel %vm3471, %v3619, 0.0
    %v3630 = vadd.f32 %v3628, %v3629
    %v3631 = vrot.slane %v3630, 4
    %v3632 = vadd.f32 %v3630, %v3631
    %v3633 = vrot.slane %v3632, 2
    %v3634 = vadd.f32 %v3632, %v3633
    %v3635 = vrot.slane %v3634, 1
    %v3636 = vadd.f32 %v3634, %v3635
    %v3638 = vsel %vm3485, %v3636, 0
    %3640 = vmatpush.msra.mxu0 %v3510
    %3641 = vmatpush.msra.mxu0 %v3509
    %3642 = vmatpush.msra.mxu0 %v3508
    %3643 = vmatpush.msra.mxu0 %v3507
    %3644 = vmatpush.msra.mxu0 %v3506
    %3645 = vmatpush.msra.mxu0 %v3505
    %3646 = vmatpush.msra.mxu0 %v3504
    %3647 = vmatpush.msra.mxu0 %v3503
    %3648 = vmatpush.msra.mxu0 %v3502
    %3649 = vmatpush.msra.mxu0 %v3501
    %3650 = vmatpush.msra.mxu0 %v3500
    %3651 = vmatpush.msra.mxu0 %v3499
    %3652 = vmatpush.msra.mxu0 %v3498
    %3653 = vmatpush.msra.mxu0 %v3497
    %3654 = vmatpush.msra.mxu0 %v3496
    %3655 = vmatpush.msra.mxu0 %v3495
    %3656 = vmatmul.f32.gmra.mxu0 %v3627
    %v3657 = vpop.f32.mrf.mxu0
    %v3658 = vadd.f32 0.0, %v3657
    %3659 = vdwg.mxu0
    %3660 = vmatpush.msra.mxu0 0.0
    %3661 = vmatpush.msra.mxu0 0.0
    %3662 = vmatpush.msra.mxu0 0.0
    %3663 = vmatpush.msra.mxu0 0.0
    %3664 = vmatpush.msra.mxu0 0.0
    %3665 = vmatpush.msra.mxu0 0.0
    %3666 = vmatpush.msra.mxu0 0.0
    %3667 = vmatpush.msra.mxu0 0.0
    %3668 = vmatpush.msra.mxu0 0.0
    %3669 = vmatpush.msra.mxu0 0.0
    %3670 = vmatpush.msra.mxu0 0.0
    %3671 = vmatpush.msra.mxu0 0.0
    %3672 = vmatpush.msra.mxu0 %v3514
    %3673 = vmatpush.msra.mxu0 %v3513
    %3674 = vmatpush.msra.mxu0 %v3512
    %3675 = vmatpush.msra.mxu0 %v3511
    %3676 = vmatmul.f32.gmra.mxu0 %v3638
    %v3677 = vpop.f32.mrf.mxu0
    %v3678 = vadd.f32 %v3658, %v3677
    %3679 = vdwg.mxu0
    %v3680 = vmul.f32 %v3678, 0.02
    %v3681 = vld [vmem:[%s10] sm:$0x1]
    %v3682 = vadd.f32 %v3680, 1e-05
    %v3683 = vrsqrt.pop %v3682
    %v3684 = vmul.f32 %v3683, %v3682
    %v3685 = vmul.f32 %v3684, %v3683
    %v3686 = vmul.f32 0.5, %v3685
    %v3687 = vsub.f32 1.5, %v3686
    %v3688 = vmul.f32 %v3683, %v3687
    %vm3689 = vweird.f32 %v3682
    %vm3690 = vweird.f32 %v3683
    %vm3691 = vmor %vm3689, %vm3690
    %v3692 = vsel %vm3691, %v3683, %v3688
    %v3693 = vmul.f32 %v3681, %v3692
    %v3695 = vsel %vm3485, %v3693, 0
    %3697 = vmatpush.msra.mxu0 0.0
    %3698 = vmatpush.msra.mxu0 0.0
    %3699 = vmatpush.msra.mxu0 0.0
    %3700 = vmatpush.msra.mxu0 0.0
    %3701 = vmatpush.msra.mxu0 0.0
    %3702 = vmatpush.msra.mxu0 0.0
    %3703 = vmatpush.msra.mxu0 0.0
    %3704 = vmatpush.msra.mxu0 0.0
    %3705 = vmatpush.msra.mxu0 0.0
    %3706 = vmatpush.msra.mxu0 0.0
    %3707 = vmatpush.msra.mxu0 0.0
    %3708 = vmatpush.msra.mxu0 0.0
    %3709 = vmatpush.msra.mxu0 %v3565
    %3710 = vmatpush.msra.mxu0 %v3563
    %3711 = vmatpush.msra.mxu0 %v3561
    %3712 = vmatpush.msra.mxu0 %v3559
    %3713 = vmatmul.f32.gmra.mxu0 %v3695
    %v3714 = vpop.f32.mrf.mxu0
    %v3715 = vadd.f32 0.0, %v3714
    %3716 = vdwg.mxu0
    %3717 = vmatpush.msra.mxu0 0.0
    %3718 = vmatpush.msra.mxu0 0.0
    %3719 = vmatpush.msra.mxu0 0.0
    %3720 = vmatpush.msra.mxu0 0.0
    %3721 = vmatpush.msra.mxu0 0.0
    %3722 = vmatpush.msra.mxu0 0.0
    %3723 = vmatpush.msra.mxu0 0.0
    %3724 = vmatpush.msra.mxu0 0.0
    %3725 = vmatpush.msra.mxu0 0.0
    %3726 = vmatpush.msra.mxu0 0.0
    %3727 = vmatpush.msra.mxu0 0.0
    %3728 = vmatpush.msra.mxu0 0.0
    %3729 = vmatpush.msra.mxu0 %v3566
    %3730 = vmatpush.msra.mxu0 %v3564
    %3731 = vmatpush.msra.mxu0 %v3562
    %3732 = vmatpush.msra.mxu0 %v3560
    %3733 = vmatmul.f32.gmra.mxu0 %v3695
    %v3734 = vpop.f32.mrf.mxu0
    %v3735 = vadd.f32 0.0, %v3734
    %3736 = vdwg.mxu0
    %v3737 = vperm.slane %v3715, 0
    %v3738 = vperm.slane %v3735, 0
    %v3739 = vmul.f32 %v3612, %v3737
    %v3740 = vmul.f32 %v3613, %v3738
    %v3741 = vmul.f32 %v3614, %v3737
    %v3742 = vmul.f32 %v3615, %v3738
    %v3743 = vld [vmem:[%s11] sm:$0x1]
    %v3745 = vsel %vm3485, %v3743, 0
    %3747 = vmatpush.msra.mxu0 0.0
    %3748 = vmatpush.msra.mxu0 0.0
    %3749 = vmatpush.msra.mxu0 0.0
    %3750 = vmatpush.msra.mxu0 0.0
    %3751 = vmatpush.msra.mxu0 0.0
    %3752 = vmatpush.msra.mxu0 0.0
    %3753 = vmatpush.msra.mxu0 0.0
    %3754 = vmatpush.msra.mxu0 0.0
    %3755 = vmatpush.msra.mxu0 0.0
    %3756 = vmatpush.msra.mxu0 0.0
    %3757 = vmatpush.msra.mxu0 0.0
    %3758 = vmatpush.msra.mxu0 0.0
    %3759 = vmatpush.msra.mxu0 %v3565
    %3760 = vmatpush.msra.mxu0 %v3563
    %3761 = vmatpush.msra.mxu0 %v3561
    %3762 = vmatpush.msra.mxu0 %v3559
    %3763 = vmatmul.f32.gmra.mxu0 %v3745
    %v3764 = vpop.f32.mrf.mxu0
    %v3765 = vadd.f32 0.0, %v3764
    %3766 = vdwg.mxu0
    %3767 = vmatpush.msra.mxu0 0.0
    %3768 = vmatpush.msra.mxu0 0.0
    %3769 = vmatpush.msra.mxu0 0.0
    %3770 = vmatpush.msra.mxu0 0.0
    %3771 = vmatpush.msra.mxu0 0.0
    %3772 = vmatpush.msra.mxu0 0.0
    %3773 = vmatpush.msra.mxu0 0.0
    %3774 = vmatpush.msra.mxu0 0.0
    %3775 = vmatpush.msra.mxu0 0.0
    %3776 = vmatpush.msra.mxu0 0.0
    %3777 = vmatpush.msra.mxu0 0.0
    %3778 = vmatpush.msra.mxu0 0.0
    %3779 = vmatpush.msra.mxu0 %v3566
    %3780 = vmatpush.msra.mxu0 %v3564
    %3781 = vmatpush.msra.mxu0 %v3562
    %3782 = vmatpush.msra.mxu0 %v3560
    %3783 = vmatmul.f32.gmra.mxu0 %v3745
    %v3784 = vpop.f32.mrf.mxu0
    %v3785 = vadd.f32 0.0, %v3784
    %3786 = vdwg.mxu0
    %v3787 = vperm.slane %v3765, 0
    %v3788 = vperm.slane %v3785, 0
    %v3789 = vadd.f32 %v3739, %v3787
    %v3790 = vadd.f32 %v3740, %v3788
    %v3791 = vadd.f32 %v3741, %v3787
    %v3792 = vadd.f32 %v3742, %v3788
    %v3793 = vmax.f32 %v3789, 0.0
    %v3794 = vmax.f32 %v3790, 0.0
    %v3795 = vmax.f32 %v3791, 0.0
    %v3796 = vmax.f32 %v3792, 0.0
    %3797 = vst [vmem:[#allocation3] sm:$0xff] %v3793
    %3798 = vst.msk [vmem:[#allocation3 + $0x8] sm:$0xff] %vm3485, %v3794
    %3799 = vst [vmem:[#allocation3 + $0x10] sm:$0x3] %v3795
    %3800 = vst.msk [vmem:[#allocation3 + $0x18] sm:$0x3] %vm3471, %v3796
    %v3801 = vld [vmem:[#allocation3] ss:$8 sm:$0x3]
    %v3802 = vld [vmem:[%s3] sm:$0xff]
    %v3803 = vld [vmem:[%s3 + $0x8] sm:$0xff]
    %v3804 = vld [vmem:[%s3 + $0x10] sm:$0xff]
    %v3805 = vld [vmem:[%s3 + $0x18] sm:$0xff]
    %v3806 = vld [vmem:[%s3 + $0x20] sm:$0xff]
    %v3807 = vld [vmem:[%s3 + $0x28] sm:$0xff]
    %v3808 = vld [vmem:[%s3 + $0x30] sm:$0xff]
    %v3809 = vld [vmem:[%s3 + $0x38] sm:$0xff]
    %v3810 = vld [vmem:[%s3 + $0x40] sm:$0xff]
    %v3811 = vld [vmem:[%s3 + $0x48] sm:$0xff]
    %v3812 = vld [vmem:[%s3 + $0x50] sm:$0xff]
    %v3813 = vld [vmem:[%s3 + $0x58] sm:$0xff]
    %v3814 = vld [vmem:[%s3 + $0x60] sm:$0xff]
    %v3815 = vld [vmem:[%s3 + $0x68] sm:$0xff]
    %v3816 = vld [vmem:[%s3 + $0x70] sm:$0xff]
    %v3817 = vld [vmem:[%s3 + $0x78] sm:$0xff]
    %v3818 = vld [vmem:[%s3 + $0x80] sm:$0xff]
    %v3819 = vld [vmem:[%s3 + $0x88] sm:$0xff]
    %v3820 = vld [vmem:[%s3 + $0x90] sm:$0xff]
    %v3821 = vld [vmem:[%s3 + $0x98] sm:$0xff]
    %s3822 = scalar_lea.vmem [#allocation3], 1
    %v3823 = vld [vmem:[%s3822] ss:$8 sm:$0x3]
    %s3824 = scalar_lea.vmem %s3, 160
    %v3825 = vld [vmem:[%s3824] sm:$0xff]
    %v3826 = vld [vmem:[%s3824 + $0x8] sm:$0xff]
    %v3827 = vld [vmem:[%s3824 + $0x10] sm:$0xff]
    %v3828 = vld [vmem:[%s3824 + $0x18] sm:$0xff]
    %v3829 = vld [vmem:[%s3824 + $0x20] sm:$0xff]
    %v3830 = vld [vmem:[%s3824 + $0x28] sm:$0xff]
    %v3831 = vld [vmem:[%s3824 + $0x30] sm:$0xff]
    %v3832 = vld [vmem:[%s3824 + $0x38] sm:$0xff]
    %v3833 = vld [vmem:[%s3824 + $0x40] sm:$0xff]
    %v3834 = vld [vmem:[%s3824 + $0x48] sm:$0xff]
    %v3835 = vld [vmem:[%s3824 + $0x50] sm:$0xff]
    %v3836 = vld [vmem:[%s3824 + $0x58] sm:$0xff]
    %v3837 = vld [vmem:[%s3824 + $0x60] sm:$0xff]
    %v3838 = vld [vmem:[%s3824 + $0x68] sm:$0xff]
    %v3839 = vld [vmem:[%s3824 + $0x70] sm:$0xff]
    %v3840 = vld [vmem:[%s3824 + $0x78] sm:$0xff]
    %v3841 = vld [vmem:[%s3824 + $0x80] sm:$0xff]
    %v3842 = vld [vmem:[%s3824 + $0x88] sm:$0xff]
    %v3843 = vld [vmem:[%s3824 + $0x90] sm:$0xff]
    %v3844 = vld [vmem:[%s3824 + $0x98] sm:$0xff]
    %v3846 = vperm.slane %v3823, 0
    %v3847 = vperm.slane %v3823, 1
    %v3849 = vsel %vm3485, %v3847, 0
    %3851 = vmatpush.msra.mxu0 %v3840
    %3852 = vmatpush.msra.mxu0 %v3839
    %3853 = vmatpush.msra.mxu0 %v3838
    %3854 = vmatpush.msra.mxu0 %v3837
    %3855 = vmatpush.msra.mxu0 %v3836
    %3856 = vmatpush.msra.mxu0 %v3835
    %3857 = vmatpush.msra.mxu0 %v3834
    %3858 = vmatpush.msra.mxu0 %v3833
    %3859 = vmatpush.msra.mxu0 %v3832
    %3860 = vmatpush.msra.mxu0 %v3831
    %3861 = vmatpush.msra.mxu0 %v3830
    %3862 = vmatpush.msra.mxu0 %v3829
    %3863 = vmatpush.msra.mxu0 %v3828
    %3864 = vmatpush.msra.mxu0 %v3827
    %3865 = vmatpush.msra.mxu0 %v3826
    %3866 = vmatpush.msra.mxu0 %v3825
    %3867 = vmatmul.f32.gmra.mxu0 %v3846
    %v3868 = vpop.f32.mrf.mxu0
    %v3869 = vadd.f32 0.0, %v3868
    %3870 = vdwg.mxu0
    %3871 = vmatpush.msra.mxu0 0.0
    %3872 = vmatpush.msra.mxu0 0.0
    %3873 = vmatpush.msra.mxu0 0.0
    %3874 = vmatpush.msra.mxu0 0.0
    %3875 = vmatpush.msra.mxu0 0.0
    %3876 = vmatpush.msra.mxu0 0.0
    %3877 = vmatpush.msra.mxu0 0.0
    %3878 = vmatpush.msra.mxu0 0.0
    %3879 = vmatpush.msra.mxu0 0.0
    %3880 = vmatpush.msra.mxu0 0.0
    %3881 = vmatpush.msra.mxu0 0.0
    %3882 = vmatpush.msra.mxu0 0.0
    %3883 = vmatpush.msra.mxu0 %v3844
    %3884 = vmatpush.msra.mxu0 %v3843
    %3885 = vmatpush.msra.mxu0 %v3842
    %3886 = vmatpush.msra.mxu0 %v3841
    %3887 = vmatmul.f32.gmra.mxu0 %v3849
    %v3888 = vpop.f32.mrf.mxu0
    %v3889 = vadd.f32 %v3869, %v3888
    %3890 = vdwg.mxu0
    %v3892 = vperm.slane %v3801, 0
    %v3893 = vperm.slane %v3801, 1
    %v3895 = vsel %vm3485, %v3893, 0
    %3897 = vmatpush.msra.mxu0 %v3817
    %3898 = vmatpush.msra.mxu0 %v3816
    %3899 = vmatpush.msra.mxu0 %v3815
    %3900 = vmatpush.msra.mxu0 %v3814
    %3901 = vmatpush.msra.mxu0 %v3813
    %3902 = vmatpush.msra.mxu0 %v3812
    %3903 = vmatpush.msra.mxu0 %v3811
    %3904 = vmatpush.msra.mxu0 %v3810
    %3905 = vmatpush.msra.mxu0 %v3809
    %3906 = vmatpush.msra.mxu0 %v3808
    %3907 = vmatpush.msra.mxu0 %v3807
    %3908 = vmatpush.msra.mxu0 %v3806
    %3909 = vmatpush.msra.mxu0 %v3805
    %3910 = vmatpush.msra.mxu0 %v3804
    %3911 = vmatpush.msra.mxu0 %v3803
    %3912 = vmatpush.msra.mxu0 %v3802
    %3913 = vmatmul.f32.gmra.mxu0 %v3892
    %v3914 = vpop.f32.mrf.mxu0
    %v3915 = vadd.f32 %v3889, %v3914
    %3916 = vdwg.mxu0
    %3917 = vmatpush.msra.mxu0 0.0
    %3918 = vmatpush.msra.mxu0 0.0
    %3919 = vmatpush.msra.mxu0 0.0
    %3920 = vmatpush.msra.mxu0 0.0
    %3921 = vmatpush.msra.mxu0 0.0
    %3922 = vmatpush.msra.mxu0 0.0
    %3923 = vmatpush.msra.mxu0 0.0
    %3924 = vmatpush.msra.mxu0 0.0
    %3925 = vmatpush.msra.mxu0 0.0
    %3926 = vmatpush.msra.mxu0 0.0
    %3927 = vmatpush.msra.mxu0 0.0
    %3928 = vmatpush.msra.mxu0 0.0
    %3929 = vmatpush.msra.mxu0 %v3821
    %3930 = vmatpush.msra.mxu0 %v3820
    %3931 = vmatpush.msra.mxu0 %v3819
    %3932 = vmatpush.msra.mxu0 %v3818
    %3933 = vmatmul.f32.gmra.mxu0 %v3895
    %v3934 = vpop.f32.mrf.mxu0
    %v3935 = vadd.f32 %v3915, %v3934
    %3936 = vdwg.mxu0
    %s3937 = scalar_lea.vmem [#allocation3], 2
    %v3938 = vld [vmem:[%s3937] ss:$8 sm:$0x3]
    %s3939 = scalar_lea.vmem %s3, 320
    %v3940 = vld [vmem:[%s3939] sm:$0xff]
    %v3941 = vld [vmem:[%s3939 + $0x8] sm:$0xff]
    %v3942 = vld [vmem:[%s3939 + $0x10] sm:$0xff]
    %v3943 = vld [vmem:[%s3939 + $0x18] sm:$0xff]
    %v3944 = vld [vmem:[%s3939 + $0x20] sm:$0xff]
    %v3945 = vld [vmem:[%s3939 + $0x28] sm:$0xff]
    %v3946 = vld [vmem:[%s3939 + $0x30] sm:$0xff]
    %v3947 = vld [vmem:[%s3939 + $0x38] sm:$0xff]
    %v3948 = vld [vmem:[%s3939 + $0x40] sm:$0xff]
    %v3949 = vld [vmem:[%s3939 + $0x48] sm:$0xff]
    %v3950 = vld [vmem:[%s3939 + $0x50] sm:$0xff]
    %v3951 = vld [vmem:[%s3939 + $0x58] sm:$0xff]
    %v3952 = vld [vmem:[%s3939 + $0x60] sm:$0xff]
    %v3953 = vld [vmem:[%s3939 + $0x68] sm:$0xff]
    %v3954 = vld [vmem:[%s3939 + $0x70] sm:$0xff]
    %v3955 = vld [vmem:[%s3939 + $0x78] sm:$0xff]
    %v3956 = vld [vmem:[%s3939 + $0x80] sm:$0xff]
    %v3957 = vld [vmem:[%s3939 + $0x88] sm:$0xff]
    %v3958 = vld [vmem:[%s3939 + $0x90] sm:$0xff]
    %v3959 = vld [vmem:[%s3939 + $0x98] sm:$0xff]
    %v3961 = vperm.slane %v3938, 0
    %v3962 = vperm.slane %v3938, 1
    %v3964 = vsel %vm3485, %v3962, 0
    %3966 = vmatpush.msra.mxu0 %v3955
    %3967 = vmatpush.msra.mxu0 %v3954
    %3968 = vmatpush.msra.mxu0 %v3953
    %3969 = vmatpush.msra.mxu0 %v3952
    %3970 = vmatpush.msra.mxu0 %v3951
    %3971 = vmatpush.msra.mxu0 %v3950
    %3972 = vmatpush.msra.mxu0 %v3949
    %3973 = vmatpush.msra.mxu0 %v3948
    %3974 = vmatpush.msra.mxu0 %v3947
    %3975 = vmatpush.msra.mxu0 %v3946
    %3976 = vmatpush.msra.mxu0 %v3945
    %3977 = vmatpush.msra.mxu0 %v3944
    %3978 = vmatpush.msra.mxu0 %v3943
    %3979 = vmatpush.msra.mxu0 %v3942
    %3980 = vmatpush.msra.mxu0 %v3941
    %3981 = vmatpush.msra.mxu0 %v3940
    %3982 = vmatmul.f32.gmra.mxu0 %v3961
    %v3983 = vpop.f32.mrf.mxu0
    %v3984 = vadd.f32 0.0, %v3983
    %3985 = vdwg.mxu0
    %3986 = vmatpush.msra.mxu0 0.0
    %3987 = vmatpush.msra.mxu0 0.0
    %3988 = vmatpush.msra.mxu0 0.0
    %3989 = vmatpush.msra.mxu0 0.0
    %3990 = vmatpush.msra.mxu0 0.0
    %3991 = vmatpush.msra.mxu0 0.0
    %3992 = vmatpush.msra.mxu0 0.0
    %3993 = vmatpush.msra.mxu0 0.0
    %3994 = vmatpush.msra.mxu0 0.0
    %3995 = vmatpush.msra.mxu0 0.0
    %3996 = vmatpush.msra.mxu0 0.0
    %3997 = vmatpush.msra.mxu0 0.0
    %3998 = vmatpush.msra.mxu0 %v3959
    %3999 = vmatpush.msra.mxu0 %v3958
    %4000 = vmatpush.msra.mxu0 %v3957
    %4001 = vmatpush.msra.mxu0 %v3956
    %4002 = vmatmul.f32.gmra.mxu0 %v3964
    %v4003 = vpop.f32.mrf.mxu0
    %v4004 = vadd.f32 %v3984, %v4003
    %4005 = vdwg.mxu0
    %v4006 = vadd.f32 %v3935, %v4004
    %s4007 = scalar_lea.vmem [#allocation3], 3
    %v4008 = vld [vmem:[%s4007] ss:$8 sm:$0x3]
    %s4009 = scalar_lea.vmem %s3, 480
    %v4010 = vld [vmem:[%s4009] sm:$0xff]
    %v4011 = vld [vmem:[%s4009 + $0x8] sm:$0xff]
    %v4012 = vld [vmem:[%s4009 + $0x10] sm:$0xff]
    %v4013 = vld [vmem:[%s4009 + $0x18] sm:$0xff]
    %v4014 = vld [vmem:[%s4009 + $0x20] sm:$0xff]
    %v4015 = vld [vmem:[%s4009 + $0x28] sm:$0xff]
    %v4016 = vld [vmem:[%s4009 + $0x30] sm:$0xff]
    %v4017 = vld [vmem:[%s4009 + $0x38] sm:$0xff]
    %v4018 = vld [vmem:[%s4009 + $0x40] sm:$0xff]
    %v4019 = vld [vmem:[%s4009 + $0x48] sm:$0xff]
    %v4020 = vld [vmem:[%s4009 + $0x50] sm:$0xff]
    %v4021 = vld [vmem:[%s4009 + $0x58] sm:$0xff]
    %v4022 = vld [vmem:[%s4009 + $0x60] sm:$0xff]
    %v4023 = vld [vmem:[%s4009 + $0x68] sm:$0xff]
    %v4024 = vld [vmem:[%s4009 + $0x70] sm:$0xff]
    %v4025 = vld [vmem:[%s4009 + $0x78] sm:$0xff]
    %v4026 = vld [vmem:[%s4009 + $0x80] sm:$0xff]
    %v4027 = vld [vmem:[%s4009 + $0x88] sm:$0xff]
    %v4028 = vld [vmem:[%s4009 + $0x90] sm:$0xff]
    %v4029 = vld [vmem:[%s4009 + $0x98] sm:$0xff]
    %v4031 = vperm.slane %v4008, 0
    %v4032 = vperm.slane %v4008, 1
    %v4034 = vsel %vm3485, %v4032, 0
    %4036 = vmatpush.msra.mxu0 %v4025
    %4037 = vmatpush.msra.mxu0 %v4024
    %4038 = vmatpush.msra.mxu0 %v4023
    %4039 = vmatpush.msra.mxu0 %v4022
    %4040 = vmatpush.msra.mxu0 %v4021
    %4041 = vmatpush.msra.mxu0 %v4020
    %4042 = vmatpush.msra.mxu0 %v4019
    %4043 = vmatpush.msra.mxu0 %v4018
    %4044 = vmatpush.msra.mxu0 %v4017
    %4045 = vmatpush.msra.mxu0 %v4016
    %4046 = vmatpush.msra.mxu0 %v4015
    %4047 = vmatpush.msra.mxu0 %v4014
    %4048 = vmatpush.msra.mxu0 %v4013
    %4049 = vmatpush.msra.mxu0 %v4012
    %4050 = vmatpush.msra.mxu0 %v4011
    %4051 = vmatpush.msra.mxu0 %v4010
    %4052 = vmatmul.f32.gmra.mxu0 %v4031
    %v4053 = vpop.f32.mrf.mxu0
    %v4054 = vadd.f32 0.0, %v4053
    %4055 = vdwg.mxu0
    %4056 = vmatpush.msra.mxu0 0.0
    %4057 = vmatpush.msra.mxu0 0.0
    %4058 = vmatpush.msra.mxu0 0.0
    %4059 = vmatpush.msra.mxu0 0.0
    %4060 = vmatpush.msra.mxu0 0.0
    %4061 = vmatpush.msra.mxu0 0.0
    %4062 = vmatpush.msra.mxu0 0.0
    %4063 = vmatpush.msra.mxu0 0.0
    %4064 = vmatpush.msra.mxu0 0.0
    %4065 = vmatpush.msra.mxu0 0.0
    %4066 = vmatpush.msra.mxu0 0.0
    %4067 = vmatpush.msra.mxu0 0.0
    %4068 = vmatpush.msra.mxu0 %v4029
    %4069 = vmatpush.msra.mxu0 %v4028
    %4070 = vmatpush.msra.mxu0 %v4027
    %4071 = vmatpush.msra.mxu0 %v4026
    %4072 = vmatmul.f32.gmra.mxu0 %v4034
    %v4073 = vpop.f32.mrf.mxu0
    %v4074 = vadd.f32 %v4054, %v4073
    %4075 = vdwg.mxu0
    %v4076 = vadd.f32 %v4006, %v4074
    %s4077 = scalar_lea.vmem [#allocation3], 4
    %v4078 = vld [vmem:[%s4077] ss:$8 sm:$0x3]
    %s4079 = scalar_lea.vmem %s3, 640
    %v4080 = vld [vmem:[%s4079] sm:$0xff]
    %v4081 = vld [vmem:[%s4079 + $0x8] sm:$0xff]
    %v4082 = vld [vmem:[%s4079 + $0x10] sm:$0xff]
    %v4083 = vld [vmem:[%s4079 + $0x18] sm:$0xff]
    %v4084 = vld [vmem:[%s4079 + $0x20] sm:$0xff]
    %v4085 = vld [vmem:[%s4079 + $0x28] sm:$0xff]
    %v4086 = vld [vmem:[%s4079 + $0x30] sm:$0xff]
    %v4087 = vld [vmem:[%s4079 + $0x38] sm:$0xff]
    %v4088 = vld [vmem:[%s4079 + $0x40] sm:$0xff]
    %v4089 = vld [vmem:[%s4079 + $0x48] sm:$0xff]
    %v4090 = vld [vmem:[%s4079 + $0x50] sm:$0xff]
    %v4091 = vld [vmem:[%s4079 + $0x58] sm:$0xff]
    %v4092 = vld [vmem:[%s4079 + $0x60] sm:$0xff]
    %v4093 = vld [vmem:[%s4079 + $0x68] sm:$0xff]
    %v4094 = vld [vmem:[%s4079 + $0x70] sm:$0xff]
    %v4095 = vld [vmem:[%s4079 + $0x78] sm:$0xff]
    %v4096 = vld [vmem:[%s4079 + $0x80] sm:$0xff]
    %v4097 = vld [vmem:[%s4079 + $0x88] sm:$0xff]
    %v4098 = vld [vmem:[%s4079 + $0x90] sm:$0xff]
    %v4099 = vld [vmem:[%s4079 + $0x98] sm:$0xff]
    %v4101 = vperm.slane %v4078, 0
    %v4102 = vperm.slane %v4078, 1
    %v4104 = vsel %vm3485, %v4102, 0
    %4106 = vmatpush.msra.mxu0 %v4095
    %4107 = vmatpush.msra.mxu0 %v4094
    %4108 = vmatpush.msra.mxu0 %v4093
    %4109 = vmatpush.msra.mxu0 %v4092
    %4110 = vmatpush.msra.mxu0 %v4091
    %4111 = vmatpush.msra.mxu0 %v4090
    %4112 = vmatpush.msra.mxu0 %v4089
    %4113 = vmatpush.msra.mxu0 %v4088
    %4114 = vmatpush.msra.mxu0 %v4087
    %4115 = vmatpush.msra.mxu0 %v4086
    %4116 = vmatpush.msra.mxu0 %v4085
    %4117 = vmatpush.msra.mxu0 %v4084
    %4118 = vmatpush.msra.mxu0 %v4083
    %4119 = vmatpush.msra.mxu0 %v4082
    %4120 = vmatpush.msra.mxu0 %v4081
    %4121 = vmatpush.msra.mxu0 %v4080
    %4122 = vmatmul.f32.gmra.mxu0 %v4101
    %v4123 = vpop.f32.mrf.mxu0
    %v4124 = vadd.f32 0.0, %v4123
    %4125 = vdwg.mxu0
    %4126 = vmatpush.msra.mxu0 0.0
    %4127 = vmatpush.msra.mxu0 0.0
    %4128 = vmatpush.msra.mxu0 0.0
    %4129 = vmatpush.msra.mxu0 0.0
    %4130 = vmatpush.msra.mxu0 0.0
    %4131 = vmatpush.msra.mxu0 0.0
    %4132 = vmatpush.msra.mxu0 0.0
    %4133 = vmatpush.msra.mxu0 0.0
    %4134 = vmatpush.msra.mxu0 0.0
    %4135 = vmatpush.msra.mxu0 0.0
    %4136 = vmatpush.msra.mxu0 0.0
    %4137 = vmatpush.msra.mxu0 0.0
    %4138 = vmatpush.msra.mxu0 %v4099
    %4139 = vmatpush.msra.mxu0 %v4098
    %4140 = vmatpush.msra.mxu0 %v4097
    %4141 = vmatpush.msra.mxu0 %v4096
    %4142 = vmatmul.f32.gmra.mxu0 %v4104
    %v4143 = vpop.f32.mrf.mxu0
    %v4144 = vadd.f32 %v4124, %v4143
    %4145 = vdwg.mxu0
    %v4146 = vadd.f32 %v4076, %v4144
    %vm4147 = vcmask 253952
    %4148 = vst.msk [vmem:[#allocation4] sm:$0x1] %vm4147, %v4146
    %s4149 = scalar_lea.vmem [#allocation3], 5
    %v4150 = vld [vmem:[%s4149] ss:$8 sm:$0x3]
    %v4151 = vld [vmem:[%s3] sm:$0xff]
    %v4152 = vld [vmem:[%s3 + $0x8] sm:$0xff]
    %v4153 = vld [vmem:[%s3 + $0x10] sm:$0xff]
    %v4154 = vld [vmem:[%s3 + $0x18] sm:$0xff]
    %v4155 = vld [vmem:[%s3 + $0x20] sm:$0xff]
    %v4156 = vld [vmem:[%s3 + $0x28] sm:$0xff]
    %v4157 = vld [vmem:[%s3 + $0x30] sm:$0xff]
    %v4158 = vld [vmem:[%s3 + $0x38] sm:$0xff]
    %v4159 = vld [vmem:[%s3 + $0x40] sm:$0xff]
    %v4160 = vld [vmem:[%s3 + $0x48] sm:$0xff]
    %v4161 = vld [vmem:[%s3 + $0x50] sm:$0xff]
    %v4162 = vld [vmem:[%s3 + $0x58] sm:$0xff]
    %v4163 = vld [vmem:[%s3 + $0x60] sm:$0xff]
    %v4164 = vld [vmem:[%s3 + $0x68] sm:$0xff]
    %v4165 = vld [vmem:[%s3 + $0x70] sm:$0xff]
    %v4166 = vld [vmem:[%s3 + $0x78] sm:$0xff]
    %v4167 = vld [vmem:[%s3 + $0x80] sm:$0xff]
    %v4168 = vld [vmem:[%s3 + $0x88] sm:$0xff]
    %v4169 = vld [vmem:[%s3 + $0x90] sm:$0xff]
    %v4170 = vld [vmem:[%s3 + $0x98] sm:$0xff]
    %s4171 = scalar_lea.vmem [#allocation3], 6
    %v4172 = vld [vmem:[%s4171] ss:$8 sm:$0x3]
    %v4173 = vld [vmem:[%s3824] sm:$0xff]
    %v4174 = vld [vmem:[%s3824 + $0x8] sm:$0xff]
    %v4175 = vld [vmem:[%s3824 + $0x10] sm:$0xff]
    %v4176 = vld [vmem:[%s3824 + $0x18] sm:$0xff]
    %v4177 = vld [vmem:[%s3824 + $0x20] sm:$0xff]
    %v4178 = vld [vmem:[%s3824 + $0x28] sm:$0xff]
    %v4179 = vld [vmem:[%s3824 + $0x30] sm:$0xff]
    %v4180 = vld [vmem:[%s3824 + $0x38] sm:$0xff]
    %v4181 = vld [vmem:[%s3824 + $0x40] sm:$0xff]
    %v4182 = vld [vmem:[%s3824 + $0x48] sm:$0xff]
    %v4183 = vld [vmem:[%s3824 + $0x50] sm:$0xff]
    %v4184 = vld [vmem:[%s3824 + $0x58] sm:$0xff]
    %v4185 = vld [vmem:[%s3824 + $0x60] sm:$0xff]
    %v4186 = vld [vmem:[%s3824 + $0x68] sm:$0xff]
    %v4187 = vld [vmem:[%s3824 + $0x70] sm:$0xff]
    %v4188 = vld [vmem:[%s3824 + $0x78] sm:$0xff]
    %v4189 = vld [vmem:[%s3824 + $0x80] sm:$0xff]
    %v4190 = vld [vmem:[%s3824 + $0x88] sm:$0xff]
    %v4191 = vld [vmem:[%s3824 + $0x90] sm:$0xff]
    %v4192 = vld [vmem:[%s3824 + $0x98] sm:$0xff]
    %v4194 = vperm.slane %v4172, 0
    %v4195 = vperm.slane %v4172, 1
    %v4197 = vsel %vm3485, %v4195, 0
    %4199 = vmatpush.msra.mxu0 %v4188
    %4200 = vmatpush.msra.mxu0 %v4187
    %4201 = vmatpush.msra.mxu0 %v4186
    %4202 = vmatpush.msra.mxu0 %v4185
    %4203 = vmatpush.msra.mxu0 %v4184
    %4204 = vmatpush.msra.mxu0 %v4183
    %4205 = vmatpush.msra.mxu0 %v4182
    %4206 = vmatpush.msra.mxu0 %v4181
    %4207 = vmatpush.msra.mxu0 %v4180
    %4208 = vmatpush.msra.mxu0 %v4179
    %4209 = vmatpush.msra.mxu0 %v4178
    %4210 = vmatpush.msra.mxu0 %v4177
    %4211 = vmatpush.msra.mxu0 %v4176
    %4212 = vmatpush.msra.mxu0 %v4175
    %4213 = vmatpush.msra.mxu0 %v4174
    %4214 = vmatpush.msra.mxu0 %v4173
    %4215 = vmatmul.f32.gmra.mxu0 %v4194
    %v4216 = vpop.f32.mrf.mxu0
    %v4217 = vadd.f32 0.0, %v4216
    %4218 = vdwg.mxu0
    %4219 = vmatpush.msra.mxu0 0.0
    %4220 = vmatpush.msra.mxu0 0.0
    %4221 = vmatpush.msra.mxu0 0.0
    %4222 = vmatpush.msra.mxu0 0.0
    %4223 = vmatpush.msra.mxu0 0.0
    %4224 = vmatpush.msra.mxu0 0.0
    %4225 = vmatpush.msra.mxu0 0.0
    %4226 = vmatpush.msra.mxu0 0.0
    %4227 = vmatpush.msra.mxu0 0.0
    %4228 = vmatpush.msra.mxu0 0.0
    %4229 = vmatpush.msra.mxu0 0.0
    %4230 = vmatpush.msra.mxu0 0.0
    %4231 = vmatpush.msra.mxu0 %v4192
    %4232 = vmatpush.msra.mxu0 %v4191
    %4233 = vmatpush.msra.mxu0 %v4190
    %4234 = vmatpush.msra.mxu0 %v4189
    %4235 = vmatmul.f32.gmra.mxu0 %v4197
    %v4236 = vpop.f32.mrf.mxu0
    %v4237 = vadd.f32 %v4217, %v4236
    %4238 = vdwg.mxu0
    %v4240 = vperm.slane %v4150, 0
    %v4241 = vperm.slane %v4150, 1
    %v4243 = vsel %vm3485, %v4241, 0
    %4245 = vmatpush.msra.mxu0 %v4166
    %4246 = vmatpush.msra.mxu0 %v4165
    %4247 = vmatpush.msra.mxu0 %v4164
    %4248 = vmatpush.msra.mxu0 %v4163
    %4249 = vmatpush.msra.mxu0 %v4162
    %4250 = vmatpush.msra.mxu0 %v4161
    %4251 = vmatpush.msra.mxu0 %v4160
    %4252 = vmatpush.msra.mxu0 %v4159
    %4253 = vmatpush.msra.mxu0 %v4158
    %4254 = vmatpush.msra.mxu0 %v4157
    %4255 = vmatpush.msra.mxu0 %v4156
    %4256 = vmatpush.msra.mxu0 %v4155
    %4257 = vmatpush.msra.mxu0 %v4154
    %4258 = vmatpush.msra.mxu0 %v4153
    %4259 = vmatpush.msra.mxu0 %v4152
    %4260 = vmatpush.msra.mxu0 %v4151
    %4261 = vmatmul.f32.gmra.mxu0 %v4240
    %v4262 = vpop.f32.mrf.mxu0
    %v4263 = vadd.f32 %v4237, %v4262
    %4264 = vdwg.mxu0
    %4265 = vmatpush.msra.mxu0 0.0
    %4266 = vmatpush.msra.mxu0 0.0
    %4267 = vmatpush.msra.mxu0 0.0
    %4268 = vmatpush.msra.mxu0 0.0
    %4269 = vmatpush.msra.mxu0 0.0
    %4270 = vmatpush.msra.mxu0 0.0
    %4271 = vmatpush.msra.mxu0 0.0
    %4272 = vmatpush.msra.mxu0 0.0
    %4273 = vmatpush.msra.mxu0 0.0
    %4274 = vmatpush.msra.mxu0 0.0
    %4275 = vmatpush.msra.mxu0 0.0
    %4276 = vmatpush.msra.mxu0 0.0
    %4277 = vmatpush.msra.mxu0 %v4170
    %4278 = vmatpush.msra.mxu0 %v4169
    %4279 = vmatpush.msra.mxu0 %v4168
    %4280 = vmatpush.msra.mxu0 %v4167
    %4281 = vmatmul.f32.gmra.mxu0 %v4243
    %v4282 = vpop.f32.mrf.mxu0
    %v4283 = vadd.f32 %v4263, %v4282
    %4284 = vdwg.mxu0
    %s4285 = scalar_lea.vmem [#allocation3], 7
    %v4286 = vld [vmem:[%s4285] ss:$8 sm:$0x3]
    %v4287 = vld [vmem:[%s3939] sm:$0xff]
    %v4288 = vld [vmem:[%s3939 + $0x8] sm:$0xff]
    %v4289 = vld [vmem:[%s3939 + $0x10] sm:$0xff]
    %v4290 = vld [vmem:[%s3939 + $0x18] sm:$0xff]
    %v4291 = vld [vmem:[%s3939 + $0x20] sm:$0xff]
    %v4292 = vld [vmem:[%s3939 + $0x28] sm:$0xff]
    %v4293 = vld [vmem:[%s3939 + $0x30] sm:$0xff]
    %v4294 = vld [vmem:[%s3939 + $0x38] sm:$0xff]
    %v4295 = vld [vmem:[%s3939 + $0x40] sm:$0xff]
    %v4296 = vld [vmem:[%s3939 + $0x48] sm:$0xff]
    %v4297 = vld [vmem:[%s3939 + $0x50] sm:$0xff]
    %v4298 = vld [vmem:[%s3939 + $0x58] sm:$0xff]
    %v4299 = vld [vmem:[%s3939 + $0x60] sm:$0xff]
    %v4300 = vld [vmem:[%s3939 + $0x68] sm:$0xff]
    %v4301 = vld [vmem:[%s3939 + $0x70] sm:$0xff]
    %v4302 = vld [vmem:[%s3939 + $0x78] sm:$0xff]
    %v4303 = vld [vmem:[%s3939 + $0x80] sm:$0xff]
    %v4304 = vld [vmem:[%s3939 + $0x88] sm:$0xff]
    %v4305 = vld [vmem:[%s3939 + $0x90] sm:$0xff]
    %v4306 = vld [vmem:[%s3939 + $0x98] sm:$0xff]
    %v4308 = vperm.slane %v4286, 0
    %v4309 = vperm.slane %v4286, 1
    %v4311 = vsel %vm3485, %v4309, 0
    %4313 = vmatpush.msra.mxu0 %v4302
    %4314 = vmatpush.msra.mxu0 %v4301
    %4315 = vmatpush.msra.mxu0 %v4300
    %4316 = vmatpush.msra.mxu0 %v4299
    %4317 = vmatpush.msra.mxu0 %v4298
    %4318 = vmatpush.msra.mxu0 %v4297
    %4319 = vmatpush.msra.mxu0 %v4296
    %4320 = vmatpush.msra.mxu0 %v4295
    %4321 = vmatpush.msra.mxu0 %v4294
    %4322 = vmatpush.msra.mxu0 %v4293
    %4323 = vmatpush.msra.mxu0 %v4292
    %4324 = vmatpush.msra.mxu0 %v4291
    %4325 = vmatpush.msra.mxu0 %v4290
    %4326 = vmatpush.msra.mxu0 %v4289
    %4327 = vmatpush.msra.mxu0 %v4288
    %4328 = vmatpush.msra.mxu0 %v4287
    %4329 = vmatmul.f32.gmra.mxu0 %v4308
    %v4330 = vpop.f32.mrf.mxu0
    %v4331 = vadd.f32 0.0, %v4330
    %4332 = vdwg.mxu0
    %4333 = vmatpush.msra.mxu0 0.0
    %4334 = vmatpush.msra.mxu0 0.0
    %4335 = vmatpush.msra.mxu0 0.0
    %4336 = vmatpush.msra.mxu0 0.0
    %4337 = vmatpush.msra.mxu0 0.0
    %4338 = vmatpush.msra.mxu0 0.0
    %4339 = vmatpush.msra.mxu0 0.0
    %4340 = vmatpush.msra.mxu0 0.0
    %4341 = vmatpush.msra.mxu0 0.0
    %4342 = vmatpush.msra.mxu0 0.0
    %4343 = vmatpush.msra.mxu0 0.0
    %4344 = vmatpush.msra.mxu0 0.0
    %4345 = vmatpush.msra.mxu0 %v4306
    %4346 = vmatpush.msra.mxu0 %v4305
    %4347 = vmatpush.msra.mxu0 %v4304
    %4348 = vmatpush.msra.mxu0 %v4303
    %4349 = vmatmul.f32.gmra.mxu0 %v4311
    %v4350 = vpop.f32.mrf.mxu0
    %v4351 = vadd.f32 %v4331, %v4350
    %4352 = vdwg.mxu0
    %v4353 = vadd.f32 %v4283, %v4351
    %s4354 = scalar_lea.vmem [#allocation3], 16
    %v4355 = vld [vmem:[%s4354] ss:$8 sm:$0x3]
    %v4356 = vld [vmem:[%s4009] sm:$0xff]
    %v4357 = vld [vmem:[%s4009 + $0x8] sm:$0xff]
    %v4358 = vld [vmem:[%s4009 + $0x10] sm:$0xff]
    %v4359 = vld [vmem:[%s4009 + $0x18] sm:$0xff]
    %v4360 = vld [vmem:[%s4009 + $0x20] sm:$0xff]
    %v4361 = vld [vmem:[%s4009 + $0x28] sm:$0xff]
    %v4362 = vld [vmem:[%s4009 + $0x30] sm:$0xff]
    %v4363 = vld [vmem:[%s4009 + $0x38] sm:$0xff]
    %v4364 = vld [vmem:[%s4009 + $0x40] sm:$0xff]
    %v4365 = vld [vmem:[%s4009 + $0x48] sm:$0xff]
    %v4366 = vld [vmem:[%s4009 + $0x50] sm:$0xff]
    %v4367 = vld [vmem:[%s4009 + $0x58] sm:$0xff]
    %v4368 = vld [vmem:[%s4009 + $0x60] sm:$0xff]
    %v4369 = vld [vmem:[%s4009 + $0x68] sm:$0xff]
    %v4370 = vld [vmem:[%s4009 + $0x70] sm:$0xff]
    %v4371 = vld [vmem:[%s4009 + $0x78] sm:$0xff]
    %v4372 = vld [vmem:[%s4009 + $0x80] sm:$0xff]
    %v4373 = vld [vmem:[%s4009 + $0x88] sm:$0xff]
    %v4374 = vld [vmem:[%s4009 + $0x90] sm:$0xff]
    %v4375 = vld [vmem:[%s4009 + $0x98] sm:$0xff]
    %v4377 = vperm.slane %v4355, 0
    %v4378 = vperm.slane %v4355, 1
    %v4380 = vsel %vm3485, %v4378, 0
    %4382 = vmatpush.msra.mxu0 %v4371
    %4383 = vmatpush.msra.mxu0 %v4370
    %4384 = vmatpush.msra.mxu0 %v4369
    %4385 = vmatpush.msra.mxu0 %v4368
    %4386 = vmatpush.msra.mxu0 %v4367
    %4387 = vmatpush.msra.mxu0 %v4366
    %4388 = vmatpush.msra.mxu0 %v4365
    %4389 = vmatpush.msra.mxu0 %v4364
    %4390 = vmatpush.msra.mxu0 %v4363
    %4391 = vmatpush.msra.mxu0 %v4362
    %4392 = vmatpush.msra.mxu0 %v4361
    %4393 = vmatpush.msra.mxu0 %v4360
    %4394 = vmatpush.msra.mxu0 %v4359
    %4395 = vmatpush.msra.mxu0 %v4358
    %4396 = vmatpush.msra.mxu0 %v4357
    %4397 = vmatpush.msra.mxu0 %v4356
    %4398 = vmatmul.f32.gmra.mxu0 %v4377
    %v4399 = vpop.f32.mrf.mxu0
    %v4400 = vadd.f32 0.0, %v4399
    %4401 = vdwg.mxu0
    %4402 = vmatpush.msra.mxu0 0.0
    %4403 = vmatpush.msra.mxu0 0.0
    %4404 = vmatpush.msra.mxu0 0.0
    %4405 = vmatpush.msra.mxu0 0.0
    %4406 = vmatpush.msra.mxu0 0.0
    %4407 = vmatpush.msra.mxu0 0.0
    %4408 = vmatpush.msra.mxu0 0.0
    %4409 = vmatpush.msra.mxu0 0.0
    %4410 = vmatpush.msra.mxu0 0.0
    %4411 = vmatpush.msra.mxu0 0.0
    %4412 = vmatpush.msra.mxu0 0.0
    %4413 = vmatpush.msra.mxu0 0.0
    %4414 = vmatpush.msra.mxu0 %v4375
    %4415 = vmatpush.msra.mxu0 %v4374
    %4416 = vmatpush.msra.mxu0 %v4373
    %4417 = vmatpush.msra.mxu0 %v4372
    %4418 = vmatmul.f32.gmra.mxu0 %v4380
    %v4419 = vpop.f32.mrf.mxu0
    %v4420 = vadd.f32 %v4400, %v4419
    %4421 = vdwg.mxu0
    %v4422 = vadd.f32 %v4353, %v4420
    %s4423 = scalar_lea.vmem [#allocation3], 17
    %v4424 = vld [vmem:[%s4423] ss:$8 sm:$0x3]
    %v4425 = vld [vmem:[%s4079] sm:$0xff]
    %v4426 = vld [vmem:[%s4079 + $0x8] sm:$0xff]
    %v4427 = vld [vmem:[%s4079 + $0x10] sm:$0xff]
    %v4428 = vld [vmem:[%s4079 + $0x18] sm:$0xff]
    %v4429 = vld [vmem:[%s4079 + $0x20] sm:$0xff]
    %v4430 = vld [vmem:[%s4079 + $0x28] sm:$0xff]
    %v4431 = vld [vmem:[%s4079 + $0x30] sm:$0xff]
    %v4432 = vld [vmem:[%s4079 + $0x38] sm:$0xff]
    %v4433 = vld [vmem:[%s4079 + $0x40] sm:$0xff]
    %v4434 = vld [vmem:[%s4079 + $0x48] sm:$0xff]
    %v4435 = vld [vmem:[%s4079 + $0x50] sm:$0xff]
    %v4436 = vld [vmem:[%s4079 + $0x58] sm:$0xff]
    %v4437 = vld [vmem:[%s4079 + $0x60] sm:$0xff]
    %v4438 = vld [vmem:[%s4079 + $0x68] sm:$0xff]
    %v4439 = vld [vmem:[%s4079 + $0x70] sm:$0xff]
    %v4440 = vld [vmem:[%s4079 + $0x78] sm:$0xff]
    %v4441 = vld [vmem:[%s4079 + $0x80] sm:$0xff]
    %v4442 = vld [vmem:[%s4079 + $0x88] sm:$0xff]
    %v4443 = vld [vmem:[%s4079 + $0x90] sm:$0xff]
    %v4444 = vld [vmem:[%s4079 + $0x98] sm:$0xff]
    %v4446 = vperm.slane %v4424, 0
    %v4447 = vperm.slane %v4424, 1
    %v4449 = vsel %vm3485, %v4447, 0
    %4451 = vmatpush.msra.mxu0 %v4440
    %4452 = vmatpush.msra.mxu0 %v4439
    %4453 = vmatpush.msra.mxu0 %v4438
    %4454 = vmatpush.msra.mxu0 %v4437
    %4455 = vmatpush.msra.mxu0 %v4436
    %4456 = vmatpush.msra.mxu0 %v4435
    %4457 = vmatpush.msra.mxu0 %v4434
    %4458 = vmatpush.msra.mxu0 %v4433
    %4459 = vmatpush.msra.mxu0 %v4432
    %4460 = vmatpush.msra.mxu0 %v4431
    %4461 = vmatpush.msra.mxu0 %v4430
    %4462 = vmatpush.msra.mxu0 %v4429
    %4463 = vmatpush.msra.mxu0 %v4428
    %4464 = vmatpush.msra.mxu0 %v4427
    %4465 = vmatpush.msra.mxu0 %v4426
    %4466 = vmatpush.msra.mxu0 %v4425
    %4467 = vmatmul.f32.gmra.mxu0 %v4446
    %v4468 = vpop.f32.mrf.mxu0
    %v4469 = vadd.f32 0.0, %v4468
    %4470 = vdwg.mxu0
    %4471 = vmatpush.msra.mxu0 0.0
    %4472 = vmatpush.msra.mxu0 0.0
    %4473 = vmatpush.msra.mxu0 0.0
    %4474 = vmatpush.msra.mxu0 0.0
    %4475 = vmatpush.msra.mxu0 0.0
    %4476 = vmatpush.msra.mxu0 0.0
    %4477 = vmatpush.msra.mxu0 0.0
    %4478 = vmatpush.msra.mxu0 0.0
    %4479 = vmatpush.msra.mxu0 0.0
    %4480 = vmatpush.msra.mxu0 0.0
    %4481 = vmatpush.msra.mxu0 0.0
    %4482 = vmatpush.msra.mxu0 0.0
    %4483 = vmatpush.msra.mxu0 %v4444
    %4484 = vmatpush.msra.mxu0 %v4443
    %4485 = vmatpush.msra.mxu0 %v4442
    %4486 = vmatpush.msra.mxu0 %v4441
    %4487 = vmatmul.f32.gmra.mxu0 %v4449
    %v4488 = vpop.f32.mrf.mxu0
    %v4489 = vadd.f32 %v4469, %v4488
    %4490 = vdwg.mxu0
    %v4491 = vadd.f32 %v4422, %v4489
    %4492 = vst.msk [vmem:[#allocation4 + $0x1] sm:$0x1] %vm4147, %v4491
    %v4493 = vld [vmem:[#allocation4] sm:$0x3]
    %v4494 = vsel %vm3471, %v4493, 0.0
    %v4495 = vrot.slane %v4494, 4
    %v4496 = vadd.f32 %v4494, %v4495
    %v4497 = vrot.slane %v4496, 2
    %v4498 = vadd.f32 %v4496, %v4497
    %v4499 = vrot.slane %v4498, 1
    %v4500 = vadd.f32 %v4498, %v4499
    %v4501 = vrcp.pop 2.0
    %v4502 = vmul.f32 2.0, %v4501
    %v4503 = vsub.f32 1.0, %v4502
    %v4504 = vmul.f32 %v4501, %v4503
    %v4505 = vadd.f32 %v4501, %v4504
    %vm4506 = vweird.f32 %v4501
    %v4507 = vsel %vm4506, %v4501, %v4505
    %v4508 = vmul.f32 %v4500, %v4507
    %v4509 = vsub.f32 %v4493, %v4508
    %v4510 = vmul.f32 %v4509, %v4509
    %v4511 = vsel %vm3471, %v4510, 0.0
    %v4512 = vrot.slane %v4511, 4
    %v4513 = vadd.f32 %v4511, %v4512
    %v4514 = vrot.slane %v4513, 2
    %v4515 = vadd.f32 %v4513, %v4514
    %v4516 = vrot.slane %v4515, 1
    %v4517 = vadd.f32 %v4515, %v4516
    %v4518 = vmul.f32 %v4517, %v4507
    %v4519 = vld [vmem:[%s12] sm:$0x1]
    %v4520 = vadd.f32 %v4518, 1e-05
    %v4521 = vrsqrt.pop %v4520
    %v4522 = vmul.f32 %v4521, %v4520
    %v4523 = vmul.f32 %v4522, %v4521
    %v4524 = vmul.f32 0.5, %v4523
    %v4525 = vsub.f32 1.5, %v4524
    %v4526 = vmul.f32 %v4521, %v4525
    %vm4527 = vweird.f32 %v4520
    %vm4528 = vweird.f32 %v4521
    %vm4529 = vmor %vm4527, %vm4528
    %v4530 = vsel %vm4529, %v4521, %v4526
    %v4531 = vmul.f32 %v4519, %v4530
    %v4533 = vperm.slane %v4531, 0
    %v4535 = vmul.f32 %v4509, %v4533
    %v4536 = vld [vmem:[%s13] sm:$0x1]
    %v4538 = vperm.slane %v4536, 0
    %v4540 = vadd.f32 %v4535, %v4538
    %v4541 = vmax.f32 %v4540, 0.0
    %v4542 = vld [vmem:[%s14] sm:$0xff]
    %v4543 = vld [vmem:[%s14 + $0x8] sm:$0xff]
    %v4544 = vld [vmem:[%s14 + $0x10] sm:$0xff]
    %v4545 = vld [vmem:[%s14 + $0x18] sm:$0xff]
    %v4546 = vld [vmem:[%s14 + $0x20] sm:$0xff]
    %v4547 = vld [vmem:[%s14 + $0x28] sm:$0xff]
    %v4548 = vld [vmem:[%s14 + $0x30] sm:$0xff]
    %v4549 = vld [vmem:[%s14 + $0x38] sm:$0xff]
    %v4550 = vld [vmem:[%s14 + $0x40] sm:$0xff]
    %v4551 = vld [vmem:[%s14 + $0x48] sm:$0xff]
    %v4552 = vld [vmem:[%s14 + $0x50] sm:$0xff]
    %v4553 = vld [vmem:[%s14 + $0x58] sm:$0xff]
    %v4554 = vld [vmem:[%s14 + $0x60] sm:$0xff]
    %v4555 = vld [vmem:[%s14 + $0x68] sm:$0xff]
    %v4556 = vld [vmem:[%s14 + $0x70] sm:$0xff]
    %v4557 = vld [vmem:[%s14 + $0x78] sm:$0xff]
    %v4558 = vld [vmem:[%s15] sm:$0xf]
    %v4560 = vperm.slane %v4558, 0
    %v4561 = vperm.slane %v4558, 1
    %v4562 = vperm.slane %v4558, 2
    %v4563 = vperm.slane %v4558, 3
    %v4569 = vsel %vm3485, %v4541, 0
    %4571 = vmatpush.msra.mxu0 0.0
    %4572 = vmatpush.msra.mxu0 0.0
    %4573 = vmatpush.msra.mxu0 0.0
    %4574 = vmatpush.msra.mxu0 0.0
    %4575 = vmatpush.msra.mxu0 0.0
    %4576 = vmatpush.msra.mxu0 0.0
    %4577 = vmatpush.msra.mxu0 0.0
    %4578 = vmatpush.msra.mxu0 0.0
    %4579 = vmatpush.msra.mxu0 0.0
    %4580 = vmatpush.msra.mxu0 0.0
    %4581 = vmatpush.msra.mxu0 0.0
    %4582 = vmatpush.msra.mxu0 0.0
    %4583 = vmatpush.msra.mxu0 %v4554
    %4584 = vmatpush.msra.mxu0 %v4550
    %4585 = vmatpush.msra.mxu0 %v4546
    %4586 = vmatpush.msra.mxu0 %v4542
    %4587 = vmatmul.f32.gmra.mxu0 %v4569
    %v4588 = vpop.f32.mrf.mxu0
    %v4589 = vadd.f32 %v4560, %v4588
    %4590 = vdwg.mxu0
    %4591 = vmatpush.msra.mxu0 0.0
    %4592 = vmatpush.msra.mxu0 0.0
    %4593 = vmatpush.msra.mxu0 0.0
    %4594 = vmatpush.msra.mxu0 0.0
    %4595 = vmatpush.msra.mxu0 0.0
    %4596 = vmatpush.msra.mxu0 0.0
    %4597 = vmatpush.msra.mxu0 0.0
    %4598 = vmatpush.msra.mxu0 0.0
    %4599 = vmatpush.msra.mxu0 0.0
    %4600 = vmatpush.msra.mxu0 0.0
    %4601 = vmatpush.msra.mxu0 0.0
    %4602 = vmatpush.msra.mxu0 0.0
    %4603 = vmatpush.msra.mxu0 %v4555
    %4604 = vmatpush.msra.mxu0 %v4551
    %4605 = vmatpush.msra.mxu0 %v4547
    %4606 = vmatpush.msra.mxu0 %v4543
    %4607 = vmatmul.f32.gmra.mxu0 %v4569
    %v4608 = vpop.f32.mrf.mxu0
    %v4609 = vadd.f32 %v4561, %v4608
    %4610 = vdwg.mxu0
    %4611 = vmatpush.msra.mxu0 0.0
    %4612 = vmatpush.msra.mxu0 0.0
    %4613 = vmatpush.msra.mxu0 0.0
    %4614 = vmatpush.msra.mxu0 0.0
    %4615 = vmatpush.msra.mxu0 0.0
    %4616 = vmatpush.msra.mxu0 0.0
    %4617 = vmatpush.msra.mxu0 0.0
    %4618 = vmatpush.msra.mxu0 0.0
    %4619 = vmatpush.msra.mxu0 0.0
    %4620 = vmatpush.msra.mxu0 0.0
    %4621 = vmatpush.msra.mxu0 0.0
    %4622 = vmatpush.msra.mxu0 0.0
    %4623 = vmatpush.msra.mxu0 %v4556
    %4624 = vmatpush.msra.mxu0 %v4552
    %4625 = vmatpush.msra.mxu0 %v4548
    %4626 = vmatpush.msra.mxu0 %v4544
    %4627 = vmatmul.f32.gmra.mxu0 %v4569
    %v4628 = vpop.f32.mrf.mxu0
    %v4629 = vadd.f32 %v4562, %v4628
    %4630 = vdwg.mxu0
    %4631 = vmatpush.msra.mxu0 0.0
    %4632 = vmatpush.msra.mxu0 0.0
    %4633 = vmatpush.msra.mxu0 0.0
    %4634 = vmatpush.msra.mxu0 0.0
    %4635 = vmatpush.msra.mxu0 0.0
    %4636 = vmatpush.msra.mxu0 0.0
    %4637 = vmatpush.msra.mxu0 0.0
    %4638 = vmatpush.msra.mxu0 0.0
    %4639 = vmatpush.msra.mxu0 0.0
    %4640 = vmatpush.msra.mxu0 0.0
    %4641 = vmatpush.msra.mxu0 0.0
    %4642 = vmatpush.msra.mxu0 0.0
    %4643 = vmatpush.msra.mxu0 %v4557
    %4644 = vmatpush.msra.mxu0 %v4553
    %4645 = vmatpush.msra.mxu0 %v4549
    %4646 = vmatpush.msra.mxu0 %v4545
    %4647 = vmatmul.f32.gmra.mxu0 %v4569
    %v4648 = vpop.f32.mrf.mxu0
    %v4649 = vadd.f32 %v4563, %v4648
    %4650 = vdwg.mxu0
    %v4651 = vmax.f32 %v4589, 0.0
    %v4652 = vmax.f32 %v4609, 0.0
    %v4653 = vmax.f32 %v4629, 0.0
    %v4654 = vmax.f32 %v4649, 0.0
    %v4655 = vld [vmem:[%s16] sm:$0xff]
    %v4656 = vld [vmem:[%s16 + $0x8] sm:$0xff]
    %v4657 = vld [vmem:[%s16 + $0x10] sm:$0xff]
    %v4658 = vld [vmem:[%s16 + $0x18] sm:$0xff]
    %v4659 = vld [vmem:[%s16 + $0x20] sm:$0xff]
    %v4660 = vld [vmem:[%s16 + $0x28] sm:$0xff]
    %v4661 = vld [vmem:[%s16 + $0x30] sm:$0xff]
    %v4662 = vld [vmem:[%s16 + $0x38] sm:$0xff]
    %v4663 = vld [vmem:[%s16 + $0x40] sm:$0xff]
    %v4664 = vld [vmem:[%s16 + $0x48] sm:$0xff]
    %v4665 = vld [vmem:[%s16 + $0x50] sm:$0xff]
    %v4666 = vld [vmem:[%s16 + $0x58] sm:$0xff]
    %v4667 = vld [vmem:[%s16 + $0x60] sm:$0xff]
    %v4668 = vld [vmem:[%s16 + $0x68] sm:$0xff]
    %v4669 = vld [vmem:[%s16 + $0x70] sm:$0xff]
    %v4670 = vld [vmem:[%s16 + $0x78] sm:$0xff]
    %v4671 = vld [vmem:[%s16 + $0x80] sm:$0xff]
    %v4672 = vld [vmem:[%s16 + $0x88] sm:$0xff]
    %v4673 = vld [vmem:[%s16 + $0x90] sm:$0xff]
    %v4674 = vld [vmem:[%s16 + $0x98] sm:$0xff]
    %v4675 = vld [vmem:[%s16 + $0xa0] sm:$0xff]
    %v4676 = vld [vmem:[%s16 + $0xa8] sm:$0xff]
    %v4677 = vld [vmem:[%s16 + $0xb0] sm:$0xff]
    %v4678 = vld [vmem:[%s16 + $0xb8] sm:$0xff]
    %v4679 = vld [vmem:[%s16 + $0xc0] sm:$0xff]
    %v4680 = vld [vmem:[%s16 + $0xc8] sm:$0xff]
    %v4681 = vld [vmem:[%s16 + $0xd0] sm:$0xff]
    %v4682 = vld [vmem:[%s16 + $0xd8] sm:$0xff]
    %v4683 = vld [vmem:[%s16 + $0xe0] sm:$0xff]
    %v4684 = vld [vmem:[%s16 + $0xe8] sm:$0xff]
    %v4685 = vld [vmem:[%s16 + $0xf0] sm:$0xff]
    %v4686 = vld [vmem:[%s16 + $0xf8] sm:$0xff]
    %v4687 = vld [vmem:[%s16 + $0x100] sm:$0xff]
    %v4688 = vld [vmem:[%s16 + $0x108] sm:$0xff]
    %v4689 = vld [vmem:[%s16 + $0x110] sm:$0xff]
    %v4690 = vld [vmem:[%s16 + $0x118] sm:$0xff]
    %v4691 = vld [vmem:[%s16 + $0x120] sm:$0xff]
    %v4692 = vld [vmem:[%s16 + $0x128] sm:$0xff]
    %v4693 = vld [vmem:[%s16 + $0x130] sm:$0xff]
    %v4694 = vld [vmem:[%s16 + $0x138] sm:$0xff]
    %v4695 = vld [vmem:[%s16 + $0x140] sm:$0xff]
    %v4696 = vld [vmem:[%s16 + $0x148] sm:$0xff]
    %v4697 = vld [vmem:[%s16 + $0x150] sm:$0xff]
    %v4698 = vld [vmem:[%s16 + $0x158] sm:$0xff]
    %v4699 = vld [vmem:[%s16 + $0x160] sm:$0xff]
    %v4700 = vld [vmem:[%s16 + $0x168] sm:$0xff]
    %v4701 = vld [vmem:[%s16 + $0x170] sm:$0xff]
    %v4702 = vld [vmem:[%s16 + $0x178] sm:$0xff]
    %v4703 = vld [vmem:[%s16 + $0x180] sm:$0xff]
    %v4704 = vld [vmem:[%s16 + $0x188] sm:$0xff]
    %v4705 = vld [vmem:[%s16 + $0x190] sm:$0xff]
    %v4706 = vld [vmem:[%s16 + $0x198] sm:$0xff]
    %v4707 = vld [vmem:[%s16 + $0x1a0] sm:$0xff]
    %v4708 = vld [vmem:[%s16 + $0x1a8] sm:$0xff]
    %v4709 = vld [vmem:[%s16 + $0x1b0] sm:$0xff]
    %v4710 = vld [vmem:[%s16 + $0x1b8] sm:$0xff]
    %v4711 = vld [vmem:[%s16 + $0x1c0] sm:$0xff]
    %v4712 = vld [vmem:[%s16 + $0x1c8] sm:$0xff]
    %v4713 = vld [vmem:[%s16 + $0x1d0] sm:$0xff]
    %v4714 = vld [vmem:[%s16 + $0x1d8] sm:$0xff]
    %v4715 = vld [vmem:[%s16 + $0x1e0] sm:$0xff]
    %v4716 = vld [vmem:[%s16 + $0x1e8] sm:$0xff]
    %v4717 = vld [vmem:[%s16 + $0x1f0] sm:$0xff]
    %v4718 = vld [vmem:[%s16 + $0x1f8] sm:$0xff]
    %v4719 = vld [vmem:[%s17] sm:$0x1]
    %v4721 = vperm.slane %v4719, 0
    %4723 = vmatpush.msra.mxu0 %v4670
    %4724 = vmatpush.msra.mxu0 %v4669
    %4725 = vmatpush.msra.mxu0 %v4668
    %4726 = vmatpush.msra.mxu0 %v4667
    %4727 = vmatpush.msra.mxu0 %v4666
    %4728 = vmatpush.msra.mxu0 %v4665
    %4729 = vmatpush.msra.mxu0 %v4664
    %4730 = vmatpush.msra.mxu0 %v4663
    %4731 = vmatpush.msra.mxu0 %v4662
    %4732 = vmatpush.msra.mxu0 %v4661
    %4733 = vmatpush.msra.mxu0 %v4660
    %4734 = vmatpush.msra.mxu0 %v4659
    %4735 = vmatpush.msra.mxu0 %v4658
    %4736 = vmatpush.msra.mxu0 %v4657
    %4737 = vmatpush.msra.mxu0 %v4656
    %4738 = vmatpush.msra.mxu0 %v4655
    %4739 = vmatmul.f32.gmra.mxu0 %v4651
    %v4740 = vpop.f32.mrf.mxu0
    %v4741 = vadd.f32 %v4721, %v4740
    %4742 = vdwg.mxu0
    %4743 = vmatpush.msra.mxu0 %v4686
    %4744 = vmatpush.msra.mxu0 %v4685
    %4745 = vmatpush.msra.mxu0 %v4684
    %4746 = vmatpush.msra.mxu0 %v4683
    %4747 = vmatpush.msra.mxu0 %v4682
    %4748 = vmatpush.msra.mxu0 %v4681
    %4749 = vmatpush.msra.mxu0 %v4680
    %4750 = vmatpush.msra.mxu0 %v4679
    %4751 = vmatpush.msra.mxu0 %v4678
    %4752 = vmatpush.msra.mxu0 %v4677
    %4753 = vmatpush.msra.mxu0 %v4676
    %4754 = vmatpush.msra.mxu0 %v4675
    %4755 = vmatpush.msra.mxu0 %v4674
    %4756 = vmatpush.msra.mxu0 %v4673
    %4757 = vmatpush.msra.mxu0 %v4672
    %4758 = vmatpush.msra.mxu0 %v4671
    %4759 = vmatmul.f32.gmra.mxu0 %v4652
    %v4760 = vpop.f32.mrf.mxu0
    %v4761 = vadd.f32 %v4741, %v4760
    %4762 = vdwg.mxu0
    %4763 = vmatpush.msra.mxu0 %v4702
    %4764 = vmatpush.msra.mxu0 %v4701
    %4765 = vmatpush.msra.mxu0 %v4700
    %4766 = vmatpush.msra.mxu0 %v4699
    %4767 = vmatpush.msra.mxu0 %v4698
    %4768 = vmatpush.msra.mxu0 %v4697
    %4769 = vmatpush.msra.mxu0 %v4696
    %4770 = vmatpush.msra.mxu0 %v4695
    %4771 = vmatpush.msra.mxu0 %v4694
    %4772 = vmatpush.msra.mxu0 %v4693
    %4773 = vmatpush.msra.mxu0 %v4692
    %4774 = vmatpush.msra.mxu0 %v4691
    %4775 = vmatpush.msra.mxu0 %v4690
    %4776 = vmatpush.msra.mxu0 %v4689
    %4777 = vmatpush.msra.mxu0 %v4688
    %4778 = vmatpush.msra.mxu0 %v4687
    %4779 = vmatmul.f32.gmra.mxu0 %v4653
    %v4780 = vpop.f32.mrf.mxu0
    %v4781 = vadd.f32 %v4761, %v4780
    %4782 = vdwg.mxu0
    %4783 = vmatpush.msra.mxu0 %v4718
    %4784 = vmatpush.msra.mxu0 %v4717
    %4785 = vmatpush.msra.mxu0 %v4716
    %4786 = vmatpush.msra.mxu0 %v4715
    %4787 = vmatpush.msra.mxu0 %v4714
    %4788 = vmatpush.msra.mxu0 %v4713
    %4789 = vmatpush.msra.mxu0 %v4712
    %4790 = vmatpush.msra.mxu0 %v4711
    %4791 = vmatpush.msra.mxu0 %v4710
    %4792 = vmatpush.msra.mxu0 %v4709
    %4793 = vmatpush.msra.mxu0 %v4708
    %4794 = vmatpush.msra.mxu0 %v4707
    %4795 = vmatpush.msra.mxu0 %v4706
    %4796 = vmatpush.msra.mxu0 %v4705
    %4797 = vmatpush.msra.mxu0 %v4704
    %4798 = vmatpush.msra.mxu0 %v4703
    %4799 = vmatmul.f32.gmra.mxu0 %v4654
    %v4800 = vpop.f32.mrf.mxu0
    %v4801 = vadd.f32 %v4781, %v4800
    %4802 = vdwg.mxu0
    %vm4803 = vcmask 107520
    %4804 = vst.msk [vmem:[#allocation5] sm:$0x3] %vm4803, %v4801
    // Predicated region
    $region74: #{_lambda_.1} parent=1 // pred_check
      _
    $region75: #{_lambda_.1} parent=1 // pred_check_branch
      %4806 = sbr.rel (0) target = $region77
    $region76: #{_lambda_.1} parent=1 // pred_region
      %4808 = vsyncadd [#allocation6], 0
      %s4810 = sshll.u32 [#allocation5], 4
      %s4811 = int_to_ptr.vmem [resolvable:$true] %s4810
      %s4812 = sshll.u32 %s18, 4
      %s4813 = int_to_ptr.hbm [resolvable:$true] %s4812
      %4815 = dma.vmem_to_hbm [thread:$0]  %s4811, 32, %s4813, [#allocation6]
    $region77: #{_lambda_.1} parent=1 // pred_fallthru
      _
    // Predicated region
    $region78: #{_lambda_.1} parent=1 // pred_check
      _
    $region79: #{_lambda_.1} parent=1 // pred_check_branch
      %4817 = sbr.rel (0) target = $region81
    $region80: #{_lambda_.1} parent=1 // pred_region
      %4819 = dma.done [#allocation6], 32
    $region81: #{_lambda_.1} parent=1 // pred_fallthru
      _
    %4820 = vsyncpa [#allocation6], 1

</llo_original>
